<compile_context>
chip_gen: v7x
topology: tpu7x:2x2x1
jax: 0.10.0
libtpu: 0.0.40
codegen_flags: <defaults>
</compile_context>

<pallas_src>
import functools

import jax
import jax.numpy as jnp
from jax.experimental import pallas as pl
from jax.experimental.pallas import tpu as pltpu

# ---------------- static configuration (module __init__ args) ----------------
B = 2                      # batch
C_IN = 4                   # in_channels
G = 16                     # grid_size (spatial)
INPUT_SIZE = 64            # input_size  -> stride = 64 / 16 = 4
NUM_CLASSES = 3
ANCHORS = [[10.0, 13.0], [16.0, 30.0], [33.0, 23.0]]   # (A, 2)

A = len(ANCHORS)
ATTR = 5 + NUM_CLASSES          # 8
C_MID = 2 * C_IN                # 8
C_OUT = A * ATTR                # 24
C_OUTP = 128                    # conv2 output columns padded to one lane tile
GG = G * G
N_ROWS = B * GG                 # 512
STRIDE = float(INPUT_SIZE) / float(G)
LEAKY_SLOPE = 0.1
BN_EPS = 1e-5

# Row layout of the packed constants array wc (WC_ROWS, 128):
#   rows 0..C_MID-1 : conv2 weight (C_MID, 24) zero-padded to 128 columns
ROW_BNB = C_MID          # BN additive shift (cols 0:C_MID)
ROW_B2 = C_MID + 1       # conv2 bias, zero-padded to 128
ROW_SSIG = C_MID + 2     # stride   where attr t in {0,1}, else 0
ROW_SEXP = C_MID + 3     # anchor_w where t==2, anchor_h where t==3, else 0
ROW_SRAW = C_MID + 4     # 1        where t>=4 (objectness / class logits)
ROW_MGX = C_MID + 5      # 1        where t==0  (grid_x mask)
ROW_MGY = C_MID + 6      # 1        where t==1  (grid_y mask)
WC_ROWS = 16             # one (8,128)-aligned pair of sublane tiles


# --------------------------------- kernel ------------------------------------
def detect_kernel(xp_ref, w1_ref, wc_ref, gxy_ref, out_ref):
    # conv1 (3x3, pad=1) fused im2col: 9 accumulated tap matmuls on the MXU.
    # BN scale is pre-folded into w1; only the additive shift remains.
    h = None
    for k in range(9):
        dy, dx = divmod(k, 3)
        tap = xp_ref[:, dy:dy + G, dx:dx + G, :].reshape(N_ROWS, C_IN)
        part = jnp.dot(tap, w1_ref[k], preferred_element_type=jnp.float32)
        h = part if h is None else h + part
    h = h + wc_ref[ROW_BNB:ROW_BNB + 1, :C_MID]
    h = jnp.where(h > 0, h, LEAKY_SLOPE * h)            # LeakyReLU(0.1)

    # conv2 (1x1, bias=True); output columns zero-padded to 128 lanes.
    o = (jnp.dot(h, wc_ref[0:C_MID, :], preferred_element_type=jnp.float32)
         + wc_ref[ROW_B2:ROW_B2 + 1, :])

    # Box decode.  One exp on the EUP; sigmoid derived from it (inf-safe):
    #   sigmoid(o) = 1 - 1/(1 + exp(o))
    ex = jnp.exp(o)
    sig = 1.0 - pl.reciprocal(1.0 + ex, approx=True)

    s_sig = wc_ref[ROW_SSIG:ROW_SSIG + 1, :]
    s_exp = wc_ref[ROW_SEXP:ROW_SEXP + 1, :]
    s_raw = wc_ref[ROW_SRAW:ROW_SRAW + 1, :]
    m_gx = wc_ref[ROW_MGX:ROW_MGX + 1, :]
    m_gy = wc_ref[ROW_MGY:ROW_MGY + 1, :]

    # Guard the exp-overflow path: on non-w/h columns s_exp == 0 and exp(o)
    # may be inf -> inf*0 = NaN; the select keeps those columns exactly 0.
    exp_term = jnp.where(s_exp != 0.0, ex * s_exp, 0.0)

    # Grid offset rebuilt from the (512, 2) gx/gy columns + two mask rows
    # (replaces the old dense 512x128 additive constant).
    grid_add = gxy_ref[:, 0:1] * m_gx + gxy_ref[:, 1:2] * m_gy

    out_ref[...] = sig * s_sig + exp_term + o * s_raw + grid_add


# --------------------------------- wrapper -----------------------------------
@jax.jit
def detect_layer(x_nchw, w1t, wc, gxy):
    # Only NCHW -> NHWC + zero-pad in XLA (~10 KB); everything else is in-kernel.
    xn = jnp.transpose(x_nchw, (0, 2, 3, 1)).astype(jnp.float32)
    xp = jnp.pad(xn, ((0, 0), (1, 1), (1, 1), (0, 0)))       # (B, G+2, G+2, C_IN)

    vmem = functools.partial(pl.BlockSpec, memory_space=pltpu.MemorySpace.VMEM)
    res = pl.pallas_call(
        detect_kernel,
        out_shape=jax.ShapeDtypeStruct((N_ROWS, C_OUTP), jnp.float32),
        in_specs=[vmem()] * 4,
        out_specs=vmem(),
    )(xp, w1t, wc, gxy)

    # Lane-dense kernel output -> (B, A*G*G, ATTR) prediction layout.
    # res[b*GG + y*G + x, a*ATTR + t] -> pred[b, a*GG + y*G + x, t]
    res = res[:, :C_OUT].reshape(B, G, G, A, ATTR)
    return jnp.transpose(res, (0, 3, 1, 2, 4)).reshape(B, A * GG, ATTR)


# ------------------- parameter folding / constant baking ---------------------
def prepare_kernel_params(w1_hwio, gamma, beta, run_mean, run_var, w2, b2,
                          anchors):
    """Fold eval-mode BN into conv1, pack decode constants into one array."""
    bn_scale = gamma / jnp.sqrt(run_var + BN_EPS)
    bn_shift = beta - run_mean * bn_scale
    # Per-tap conv1 weights with BN scale folded in: (9, C_IN, C_MID).
    w1t = (w1_hwio * bn_scale[None, None, None, :]).reshape(
        9, C_IN, C_MID).astype(jnp.float32)

    # Per-column decode scales; column c = a*ATTR + t (c >= C_OUT is padding).
    c = jnp.arange(C_OUTP)
    valid = c < C_OUT
    t = c % ATTR
    a = jnp.minimum(c // ATTR, A - 1)
    s_sig = jnp.where(valid & (t < 2), STRIDE, 0.0)
    s_exp = jnp.where(valid & (t == 2), anchors[a, 0],
                      jnp.where(valid & (t == 3), anchors[a, 1], 0.0))
    s_raw = jnp.where(valid & (t >= 4), 1.0, 0.0)
    m_gx = jnp.where(valid & (t == 0), 1.0, 0.0)
    m_gy = jnp.where(valid & (t == 1), 1.0, 0.0)

    # Single packed (16, 128) constant block: conv2 W/b, BN shift, decode rows.
    wc = jnp.zeros((WC_ROWS, C_OUTP), jnp.float32)
    wc = wc.at[0:C_MID, :C_OUT].set(w2)
    wc = wc.at[ROW_BNB, :C_MID].set(bn_shift)
    wc = wc.at[ROW_B2, :C_OUT].set(b2)
    wc = wc.at[ROW_SSIG].set(s_sig)
    wc = wc.at[ROW_SEXP].set(s_exp)
    wc = wc.at[ROW_SRAW].set(s_raw)
    wc = wc.at[ROW_MGX].set(m_gx)
    wc = wc.at[ROW_MGY].set(m_gy)
    wc = wc.astype(jnp.float32)

    # Per-row grid offsets (already multiplied by stride); row p = b*G*G + y*G + x.
    p = jnp.arange(N_ROWS)
    gx = (p % G).astype(jnp.float32) * STRIDE
    gy = ((p // G) % G).astype(jnp.float32) * STRIDE
    gxy = jnp.stack([gx, gy], axis=1).astype(jnp.float32)     # (N_ROWS, 2)

    return w1t, wc, gxy


# ------------------------- pure-JAX reference (torch semantics) --------------
def reference(x_nchw, w1m, bn_scale, bn_shift, w2, b2, anchors):
    xn = jnp.transpose(x_nchw, (0, 2, 3, 1)).astype(jnp.float32)
    xp = jnp.pad(xn, ((0, 0), (1, 1), (1, 1), (0, 0)))
    cols = [xp[:, dy:dy + G, dx:dx + G, :] for dy in range(3) for dx in range(3)]
    xcol = jnp.concatenate(cols, axis=-1).reshape(N_ROWS, 9 * C_IN)
    h = xcol @ w1m
    h = h * bn_scale[None, :] + bn_shift[None, :]
    h = jnp.where(h > 0, h, LEAKY_SLOPE * h)
    o = h @ w2 + b2[None, :]                                    # (B*GG, C_OUT)
    out = o.reshape(B, G, G, A, ATTR).transpose(0, 3, 1, 2, 4)  # (B, A, G, G, ATTR)
    gy, gx = jnp.meshgrid(jnp.arange(G, dtype=jnp.float32),
                          jnp.arange(G, dtype=jnp.float32), indexing="ij")
    aw = anchors[:, 0].reshape(1, A, 1, 1)
    ah = anchors[:, 1].reshape(1, A, 1, 1)
    bx = (jax.nn.sigmoid(out[..., 0]) + gx) * STRIDE
    by = (jax.nn.sigmoid(out[..., 1]) + gy) * STRIDE
    bw = jnp.exp(out[..., 2]) * aw
    bh = jnp.exp(out[..., 3]) * ah
    boxes = jnp.stack([bx, by, bw, bh], axis=-1).reshape(B, -1, 4)
    obj = out[..., 4].reshape(B, -1, 1)
    cls = out[..., 5:].reshape(B, -1, NUM_CLASSES)
    return jnp.concatenate([boxes, obj, cls], axis=-1)


# ----------------------------------- main ------------------------------------
if __name__ == "__main__":
    key = jax.random.PRNGKey(0)
    ks = jax.random.split(key, 9)

    # input (NCHW, like the torch module)
    x = jax.random.normal(ks[0], (B, C_IN, G, G), dtype=jnp.float32)

    # conv1 weights generated directly in HWIO
    w1_hwio = 0.1 * jax.random.normal(ks[1], (3, 3, C_IN, C_MID), dtype=jnp.float32)

    # BatchNorm (eval mode) parameters
    gamma = 1.0 + 0.1 * jax.random.normal(ks[2], (C_MID,), dtype=jnp.float32)
    beta = 0.1 * jax.random.normal(ks[3], (C_MID,), dtype=jnp.float32)
    run_mean = 0.1 * jax.random.normal(ks[4], (C_MID,), dtype=jnp.float32)
    run_var = 1.0 + 0.5 * jax.random.uniform(ks[5], (C_MID,), dtype=jnp.float32)

    # conv2 (1x1) weights/bias, stored as (C_MID, C_OUT) / (C_OUT,)
    w2 = 0.1 * jax.random.normal(ks[6], (C_MID, C_OUT), dtype=jnp.float32)
    b2 = 0.1 * jax.random.normal(ks[7], (C_OUT,), dtype=jnp.float32)

    anchors = jnp.asarray(ANCHORS, dtype=jnp.float32)

    params = prepare_kernel_params(w1_hwio, gamma, beta, run_mean, run_var,
                                   w2, b2, anchors)

    pred = detect_layer(x, *params)
    pred = jax.block_until_ready(pred)

    bn_scale = gamma / jnp.sqrt(run_var + BN_EPS)
    bn_shift = beta - run_mean * bn_scale
    ref = reference(x, w1_hwio.reshape(9 * C_IN, C_MID), bn_scale, bn_shift,
                    w2, b2, anchors)

    assert pred.shape == (B, A * GG, ATTR), pred.shape
    max_err = float(jnp.max(jnp.abs(pred - ref)))
    assert jnp.allclose(pred, ref, rtol=2e-2, atol=2e-2), max_err

    print("KERNEL_OK")
</pallas_src>

<mosaic_0001>
module attributes {stable_mosaic.version = 11 : i64} {
  func.func @detect_kernel(%arg0: memref<2x18x18x4xf32, #tpu.memory_space<vmem>>, %arg1: memref<9x4x8xf32, #tpu.memory_space<vmem>>, %arg2: memref<16x128xf32, #tpu.memory_space<vmem>>, %arg3: memref<512x2xf32, #tpu.memory_space<vmem>>, %arg4: memref<512x128xf32, #tpu.memory_space<vmem>>) attributes {dimension_semantics = [], scalar_prefetch = 0 : i64, scratch_operands = 0 : i64, tpu.core_type = #tpu.core_type<tc>} {
    %c0 = arith.constant 0 : index
    %c0_0 = arith.constant 0 : index
    %c0_1 = arith.constant 0 : index
    %c0_2 = arith.constant 0 : index
    %0 = vector.load %arg0[%c0, %c0_0, %c0_1, %c0_2] : memref<2x18x18x4xf32, #tpu.memory_space<vmem>>, vector<2x16x16x4xf32>
    %1 = vector.shape_cast %0 : vector<2x16x16x4xf32> to vector<512x4xf32>
    %c0_3 = arith.constant 0 : index
    %c0_4 = arith.constant 0 : index
    %c0_5 = arith.constant 0 : index
    %2 = vector.load %arg1[%c0_3, %c0_4, %c0_5] : memref<9x4x8xf32, #tpu.memory_space<vmem>>, vector<1x4x8xf32>
    %3 = vector.shape_cast %2 : vector<1x4x8xf32> to vector<4x8xf32>
    %cst = arith.constant dense<0.000000e+00> : vector<512x8xf32>
    %4 = tpu.matmul %1, %3, %cst {dimension_numbers = #tpu.dot_dimension_numbers<[1], [0], [0], [1], [0, 0, 1, 1], [], []>} : vector<512x4xf32>, vector<4x8xf32>, vector<512x8xf32> -> vector<512x8xf32>
    %c0_6 = arith.constant 0 : index
    %c0_7 = arith.constant 0 : index
    %c1 = arith.constant 1 : index
    %c0_8 = arith.constant 0 : index
    %5 = vector.load %arg0[%c0_6, %c0_7, %c1, %c0_8] : memref<2x18x18x4xf32, #tpu.memory_space<vmem>>, vector<2x16x16x4xf32>
    %6 = vector.shape_cast %5 : vector<2x16x16x4xf32> to vector<512x4xf32>
    %c1_9 = arith.constant 1 : index
    %c0_10 = arith.constant 0 : index
    %c0_11 = arith.constant 0 : index
    %7 = vector.load %arg1[%c1_9, %c0_10, %c0_11] : memref<9x4x8xf32, #tpu.memory_space<vmem>>, vector<1x4x8xf32>
    %8 = vector.shape_cast %7 : vector<1x4x8xf32> to vector<4x8xf32>
    %cst_12 = arith.constant dense<0.000000e+00> : vector<512x8xf32>
    %9 = tpu.matmul %6, %8, %cst_12 {dimension_numbers = #tpu.dot_dimension_numbers<[1], [0], [0], [1], [0, 0, 1, 1], [], []>} : vector<512x4xf32>, vector<4x8xf32>, vector<512x8xf32> -> vector<512x8xf32>
    %10 = arith.addf %4, %9 : vector<512x8xf32>
    %c0_13 = arith.constant 0 : index
    %c0_14 = arith.constant 0 : index
    %c2 = arith.constant 2 : index
    %c0_15 = arith.constant 0 : index
    %11 = vector.load %arg0[%c0_13, %c0_14, %c2, %c0_15] : memref<2x18x18x4xf32, #tpu.memory_space<vmem>>, vector<2x16x16x4xf32>
    %12 = vector.shape_cast %11 : vector<2x16x16x4xf32> to vector<512x4xf32>
    %c2_16 = arith.constant 2 : index
    %c0_17 = arith.constant 0 : index
    %c0_18 = arith.constant 0 : index
    %13 = vector.load %arg1[%c2_16, %c0_17, %c0_18] : memref<9x4x8xf32, #tpu.memory_space<vmem>>, vector<1x4x8xf32>
    %14 = vector.shape_cast %13 : vector<1x4x8xf32> to vector<4x8xf32>
    %cst_19 = arith.constant dense<0.000000e+00> : vector<512x8xf32>
    %15 = tpu.matmul %12, %14, %cst_19 {dimension_numbers = #tpu.dot_dimension_numbers<[1], [0], [0], [1], [0, 0, 1, 1], [], []>} : vector<512x4xf32>, vector<4x8xf32>, vector<512x8xf32> -> vector<512x8xf32>
    %16 = arith.addf %10, %15 : vector<512x8xf32>
    %c0_20 = arith.constant 0 : index
    %c1_21 = arith.constant 1 : index
    %c0_22 = arith.constant 0 : index
    %c0_23 = arith.constant 0 : index
    %17 = vector.load %arg0[%c0_20, %c1_21, %c0_22, %c0_23] : memref<2x18x18x4xf32, #tpu.memory_space<vmem>>, vector<2x16x16x4xf32>
    %18 = vector.shape_cast %17 : vector<2x16x16x4xf32> to vector<512x4xf32>
    %c3 = arith.constant 3 : index
    %c0_24 = arith.constant 0 : index
    %c0_25 = arith.constant 0 : index
    %19 = vector.load %arg1[%c3, %c0_24, %c0_25] : memref<9x4x8xf32, #tpu.memory_space<vmem>>, vector<1x4x8xf32>
    %20 = vector.shape_cast %19 : vector<1x4x8xf32> to vector<4x8xf32>
    %cst_26 = arith.constant dense<0.000000e+00> : vector<512x8xf32>
    %21 = tpu.matmul %18, %20, %cst_26 {dimension_numbers = #tpu.dot_dimension_numbers<[1], [0], [0], [1], [0, 0, 1, 1], [], []>} : vector<512x4xf32>, vector<4x8xf32>, vector<512x8xf32> -> vector<512x8xf32>
    %22 = arith.addf %16, %21 : vector<512x8xf32>
    %c0_27 = arith.constant 0 : index
    %c1_28 = arith.constant 1 : index
    %c1_29 = arith.constant 1 : index
    %c0_30 = arith.constant 0 : index
    %23 = vector.load %arg0[%c0_27, %c1_28, %c1_29, %c0_30] : memref<2x18x18x4xf32, #tpu.memory_space<vmem>>, vector<2x16x16x4xf32>
    %24 = vector.shape_cast %23 : vector<2x16x16x4xf32> to vector<512x4xf32>
    %c4 = arith.constant 4 : index
    %c0_31 = arith.constant 0 : index
    %c0_32 = arith.constant 0 : index
    %25 = vector.load %arg1[%c4, %c0_31, %c0_32] : memref<9x4x8xf32, #tpu.memory_space<vmem>>, vector<1x4x8xf32>
    %26 = vector.shape_cast %25 : vector<1x4x8xf32> to vector<4x8xf32>
    %cst_33 = arith.constant dense<0.000000e+00> : vector<512x8xf32>
    %27 = tpu.matmul %24, %26, %cst_33 {dimension_numbers = #tpu.dot_dimension_numbers<[1], [0], [0], [1], [0, 0, 1, 1], [], []>} : vector<512x4xf32>, vector<4x8xf32>, vector<512x8xf32> -> vector<512x8xf32>
    %28 = arith.addf %22, %27 : vector<512x8xf32>
    %c0_34 = arith.constant 0 : index
    %c1_35 = arith.constant 1 : index
    %c2_36 = arith.constant 2 : index
    %c0_37 = arith.constant 0 : index
    %29 = vector.load %arg0[%c0_34, %c1_35, %c2_36, %c0_37] : memref<2x18x18x4xf32, #tpu.memory_space<vmem>>, vector<2x16x16x4xf32>
    %30 = vector.shape_cast %29 : vector<2x16x16x4xf32> to vector<512x4xf32>
    %c5 = arith.constant 5 : index
    %c0_38 = arith.constant 0 : index
    %c0_39 = arith.constant 0 : index
    %31 = vector.load %arg1[%c5, %c0_38, %c0_39] : memref<9x4x8xf32, #tpu.memory_space<vmem>>, vector<1x4x8xf32>
    %32 = vector.shape_cast %31 : vector<1x4x8xf32> to vector<4x8xf32>
    %cst_40 = arith.constant dense<0.000000e+00> : vector<512x8xf32>
    %33 = tpu.matmul %30, %32, %cst_40 {dimension_numbers = #tpu.dot_dimension_numbers<[1], [0], [0], [1], [0, 0, 1, 1], [], []>} : vector<512x4xf32>, vector<4x8xf32>, vector<512x8xf32> -> vector<512x8xf32>
    %34 = arith.addf %28, %33 : vector<512x8xf32>
    %c0_41 = arith.constant 0 : index
    %c2_42 = arith.constant 2 : index
    %c0_43 = arith.constant 0 : index
    %c0_44 = arith.constant 0 : index
    %35 = vector.load %arg0[%c0_41, %c2_42, %c0_43, %c0_44] : memref<2x18x18x4xf32, #tpu.memory_space<vmem>>, vector<2x16x16x4xf32>
    %36 = vector.shape_cast %35 : vector<2x16x16x4xf32> to vector<512x4xf32>
    %c6 = arith.constant 6 : index
    %c0_45 = arith.constant 0 : index
    %c0_46 = arith.constant 0 : index
    %37 = vector.load %arg1[%c6, %c0_45, %c0_46] : memref<9x4x8xf32, #tpu.memory_space<vmem>>, vector<1x4x8xf32>
    %38 = vector.shape_cast %37 : vector<1x4x8xf32> to vector<4x8xf32>
    %cst_47 = arith.constant dense<0.000000e+00> : vector<512x8xf32>
    %39 = tpu.matmul %36, %38, %cst_47 {dimension_numbers = #tpu.dot_dimension_numbers<[1], [0], [0], [1], [0, 0, 1, 1], [], []>} : vector<512x4xf32>, vector<4x8xf32>, vector<512x8xf32> -> vector<512x8xf32>
    %40 = arith.addf %34, %39 : vector<512x8xf32>
    %c0_48 = arith.constant 0 : index
    %c2_49 = arith.constant 2 : index
    %c1_50 = arith.constant 1 : index
    %c0_51 = arith.constant 0 : index
    %41 = vector.load %arg0[%c0_48, %c2_49, %c1_50, %c0_51] : memref<2x18x18x4xf32, #tpu.memory_space<vmem>>, vector<2x16x16x4xf32>
    %42 = vector.shape_cast %41 : vector<2x16x16x4xf32> to vector<512x4xf32>
    %c7 = arith.constant 7 : index
    %c0_52 = arith.constant 0 : index
    %c0_53 = arith.constant 0 : index
    %43 = vector.load %arg1[%c7, %c0_52, %c0_53] : memref<9x4x8xf32, #tpu.memory_space<vmem>>, vector<1x4x8xf32>
    %44 = vector.shape_cast %43 : vector<1x4x8xf32> to vector<4x8xf32>
    %cst_54 = arith.constant dense<0.000000e+00> : vector<512x8xf32>
    %45 = tpu.matmul %42, %44, %cst_54 {dimension_numbers = #tpu.dot_dimension_numbers<[1], [0], [0], [1], [0, 0, 1, 1], [], []>} : vector<512x4xf32>, vector<4x8xf32>, vector<512x8xf32> -> vector<512x8xf32>
    %46 = arith.addf %40, %45 : vector<512x8xf32>
    %c0_55 = arith.constant 0 : index
    %c2_56 = arith.constant 2 : index
    %c2_57 = arith.constant 2 : index
    %c0_58 = arith.constant 0 : index
    %47 = vector.load %arg0[%c0_55, %c2_56, %c2_57, %c0_58] : memref<2x18x18x4xf32, #tpu.memory_space<vmem>>, vector<2x16x16x4xf32>
    %48 = vector.shape_cast %47 : vector<2x16x16x4xf32> to vector<512x4xf32>
    %c8 = arith.constant 8 : index
    %c0_59 = arith.constant 0 : index
    %c0_60 = arith.constant 0 : index
    %49 = vector.load %arg1[%c8, %c0_59, %c0_60] : memref<9x4x8xf32, #tpu.memory_space<vmem>>, vector<1x4x8xf32>
    %50 = vector.shape_cast %49 : vector<1x4x8xf32> to vector<4x8xf32>
    %cst_61 = arith.constant dense<0.000000e+00> : vector<512x8xf32>
    %51 = tpu.matmul %48, %50, %cst_61 {dimension_numbers = #tpu.dot_dimension_numbers<[1], [0], [0], [1], [0, 0, 1, 1], [], []>} : vector<512x4xf32>, vector<4x8xf32>, vector<512x8xf32> -> vector<512x8xf32>
    %52 = arith.addf %46, %51 : vector<512x8xf32>
    %c8_62 = arith.constant 8 : index
    %c0_63 = arith.constant 0 : index
    %53 = vector.load %arg2[%c8_62, %c0_63] : memref<16x128xf32, #tpu.memory_space<vmem>>, vector<1x8xf32>
    %54 = vector.broadcast %53 : vector<1x8xf32> to vector<512x8xf32>
    %55 = arith.addf %52, %54 : vector<512x8xf32>
    %cst_64 = arith.constant 0.000000e+00 : f32
    %56 = vector.broadcast %cst_64 : f32 to vector<512x8xf32>
    %57 = arith.cmpf ogt, %55, %56 : vector<512x8xf32>
    %cst_65 = arith.constant 1.000000e-01 : f32
    %58 = vector.broadcast %cst_65 : f32 to vector<512x8xf32>
    %59 = arith.mulf %58, %55 : vector<512x8xf32>
    %60 = arith.select %57, %55, %59 : vector<512x8xi1>, vector<512x8xf32>
    %c0_66 = arith.constant 0 : index
    %c0_67 = arith.constant 0 : index
    %61 = vector.load %arg2[%c0_66, %c0_67] : memref<16x128xf32, #tpu.memory_space<vmem>>, vector<8x128xf32>
    %cst_68 = arith.constant dense<0.000000e+00> : vector<512x128xf32>
    %62 = tpu.matmul %60, %61, %cst_68 {dimension_numbers = #tpu.dot_dimension_numbers<[1], [0], [0], [1], [0, 0, 1, 1], [], []>} : vector<512x8xf32>, vector<8x128xf32>, vector<512x128xf32> -> vector<512x128xf32>
    %c9 = arith.constant 9 : index
    %c0_69 = arith.constant 0 : index
    %63 = vector.load %arg2[%c9, %c0_69] : memref<16x128xf32, #tpu.memory_space<vmem>>, vector<1x128xf32>
    %64 = vector.broadcast %63 : vector<1x128xf32> to vector<512x128xf32>
    %65 = arith.addf %62, %64 : vector<512x128xf32>
    %66 = math.exp %65 : vector<512x128xf32>
    %cst_70 = arith.constant 1.000000e+00 : f32
    %67 = vector.broadcast %cst_70 : f32 to vector<512x128xf32>
    %68 = arith.addf %67, %66 : vector<512x128xf32>
    %69 = tpu.reciprocal %68 {approx = true} : vector<512x128xf32> -> vector<512x128xf32>
    %cst_71 = arith.constant 1.000000e+00 : f32
    %70 = vector.broadcast %cst_71 : f32 to vector<512x128xf32>
    %71 = arith.subf %70, %69 : vector<512x128xf32>
    %c10 = arith.constant 10 : index
    %c0_72 = arith.constant 0 : index
    %72 = vector.load %arg2[%c10, %c0_72] : memref<16x128xf32, #tpu.memory_space<vmem>>, vector<1x128xf32>
    %c11 = arith.constant 11 : index
    %c0_73 = arith.constant 0 : index
    %73 = vector.load %arg2[%c11, %c0_73] : memref<16x128xf32, #tpu.memory_space<vmem>>, vector<1x128xf32>
    %c12 = arith.constant 12 : index
    %c0_74 = arith.constant 0 : index
    %74 = vector.load %arg2[%c12, %c0_74] : memref<16x128xf32, #tpu.memory_space<vmem>>, vector<1x128xf32>
    %c13 = arith.constant 13 : index
    %c0_75 = arith.constant 0 : index
    %75 = vector.load %arg2[%c13, %c0_75] : memref<16x128xf32, #tpu.memory_space<vmem>>, vector<1x128xf32>
    %c14 = arith.constant 14 : index
    %c0_76 = arith.constant 0 : index
    %76 = vector.load %arg2[%c14, %c0_76] : memref<16x128xf32, #tpu.memory_space<vmem>>, vector<1x128xf32>
    %cst_77 = arith.constant 0.000000e+00 : f32
    %77 = vector.broadcast %cst_77 : f32 to vector<1x128xf32>
    %78 = arith.cmpf one, %73, %77 : vector<1x128xf32>
    %79 = vector.broadcast %73 : vector<1x128xf32> to vector<512x128xf32>
    %80 = arith.mulf %66, %79 : vector<512x128xf32>
    %cst_78 = arith.constant 0.000000e+00 : f32
    %81 = vector.shape_cast %78 : vector<1x128xi1> to vector<1x128xi1>
    %82 = vector.broadcast %81 : vector<1x128xi1> to vector<512x128xi1>
    %83 = vector.broadcast %cst_78 : f32 to vector<512x128xf32>
    %84 = arith.select %82, %80, %83 : vector<512x128xi1>, vector<512x128xf32>
    %c0_79 = arith.constant 0 : index
    %c0_80 = arith.constant 0 : index
    %85 = vector.load %arg3[%c0_79, %c0_80] : memref<512x2xf32, #tpu.memory_space<vmem>>, vector<512x1xf32>
    %86 = vector.broadcast %85 : vector<512x1xf32> to vector<512x128xf32>
    %87 = vector.broadcast %75 : vector<1x128xf32> to vector<512x128xf32>
    %88 = arith.mulf %86, %87 : vector<512x128xf32>
    %c0_81 = arith.constant 0 : index
    %c1_82 = arith.constant 1 : index
    %89 = vector.load %arg3[%c0_81, %c1_82] : memref<512x2xf32, #tpu.memory_space<vmem>>, vector<512x1xf32>
    %90 = vector.broadcast %89 : vector<512x1xf32> to vector<512x128xf32>
    %91 = vector.broadcast %76 : vector<1x128xf32> to vector<512x128xf32>
    %92 = arith.mulf %90, %91 : vector<512x128xf32>
    %93 = arith.addf %88, %92 : vector<512x128xf32>
    %94 = vector.broadcast %72 : vector<1x128xf32> to vector<512x128xf32>
    %95 = arith.mulf %71, %94 : vector<512x128xf32>
    %96 = arith.addf %95, %84 : vector<512x128xf32>
    %97 = vector.broadcast %74 : vector<1x128xf32> to vector<512x128xf32>
    %98 = arith.mulf %65, %97 : vector<512x128xf32>
    %99 = arith.addf %96, %98 : vector<512x128xf32>
    %100 = arith.addf %99, %93 : vector<512x128xf32>
    %c0_83 = arith.constant 0 : index
    %c0_84 = arith.constant 0 : index
    %101 = vector.load %arg4[%c0_83, %c0_84] : memref<512x128xf32, #tpu.memory_space<vmem>>, vector<512x128xf32>
    tpu.vector_store %arg4[%c0_83, %c0_84], %100 {strides = array<i32>} : memref<512x128xf32, #tpu.memory_space<vmem>>, vector<512x128xf32>,
    return
  }
}

</mosaic_0001>

<llo_original>
// kernel: detect_layer.1
$region0: #{detect_layer.1}
  #allocation0 [shape = 'u32[]', space=smem, size = 0x4, offset = 0x4, fixed_abs, tag = 'smem constant byte address 0x4 - core index']
  #allocation1 [shape = 'u32[144,128]{1,0:T(1,128)}', space=vmem, size = 0x12000, scoped, tag = 'internal scratch']
  %s0 = inlined_call_operand.vmem [shape: f32[2,18,18,4], index: 0, kind: input, shape index: {}]
  %s1 = inlined_call_operand.vmem [shape: f32[9,4,8], index: 1, kind: input, shape index: {}]
  %s2 = inlined_call_operand.vmem [shape: f32[16,128], index: 2, kind: input, shape index: {}]
  %s3 = inlined_call_operand.vmem [shape: f32[512,2], index: 3, kind: input, shape index: {}]
  %s4 = inlined_call_operand.vmem [shape: f32[512,128], index: 4, kind: output, shape index: {}]
  %s5 = sld [smem:[#allocation0]]
  $region26: #{detect_layer.1} parent=0
    _
  %s7 = ssub.s32 1, %s5
  %s8 = scalar_select 0, %s7, %s5
  // Predicated region
  $region2: #{detect_layer.1} parent=0 // pred_check
    _
  $region3: #{detect_layer.1} parent=0 // pred_check_branch
    %10 = sbr.rel (0) target = $region5
  $region4: #{detect_layer.1} parent=0 // pred_region
    _
  $region5: #{detect_layer.1} parent=0 // pred_fallthru
    _
  // Predicated region
  $region6: #{detect_layer.1} parent=0 // pred_check
    _
  $region7: #{detect_layer.1} parent=0 // pred_check_branch
    %12 = sbr.rel (0) target = $region9
  $region8: #{detect_layer.1} parent=0 // pred_region
    _
  $region9: #{detect_layer.1} parent=0 // pred_fallthru
    _
  // Predicated region
  $region10: #{detect_layer.1} parent=0 // pred_check
    _
  $region11: #{detect_layer.1} parent=0 // pred_check_branch
    %14 = sbr.rel (0) target = $region13
  $region12: #{detect_layer.1} parent=0 // pred_region
    _
  $region13: #{detect_layer.1} parent=0 // pred_fallthru
    _
  // Predicated region
  $region14: #{detect_layer.1} parent=0 // pred_check
    _
  $region15: #{detect_layer.1} parent=0 // pred_check_branch
    %16 = sbr.rel (0) target = $region17
  $region16: #{detect_layer.1} parent=0 // pred_region
    _
  $region17: #{detect_layer.1} parent=0 // pred_fallthru
    _
  %v17 = vld [vmem:[%s0] sm:$0xff]
  %v18 = vld [vmem:[%s0 + $0x8] sm:$0xff]
  %v19 = vld [vmem:[%s0 + $0x18] sm:$0xff]
  %v20 = vld [vmem:[%s0 + $0x20] sm:$0xff]
  %v21 = vld [vmem:[%s0 + $0x30] sm:$0xff]
  %v22 = vld [vmem:[%s0 + $0x38] sm:$0xff]
  %v23 = vld [vmem:[%s0 + $0x48] sm:$0xff]
  %v24 = vld [vmem:[%s0 + $0x50] sm:$0xff]
  %v25 = vld [vmem:[%s0 + $0x60] sm:$0xff]
  %v26 = vld [vmem:[%s0 + $0x68] sm:$0xff]
  %v27 = vld [vmem:[%s0 + $0x78] sm:$0xff]
  %v28 = vld [vmem:[%s0 + $0x80] sm:$0xff]
  %v29 = vld [vmem:[%s0 + $0x90] sm:$0xff]
  %v30 = vld [vmem:[%s0 + $0x98] sm:$0xff]
  %v31 = vld [vmem:[%s0 + $0xa8] sm:$0xff]
  %v32 = vld [vmem:[%s0 + $0xb0] sm:$0xff]
  %v33 = vld [vmem:[%s0 + $0xc0] sm:$0xff]
  %v34 = vld [vmem:[%s0 + $0xc8] sm:$0xff]
  %v35 = vld [vmem:[%s0 + $0xd8] sm:$0xff]
  %v36 = vld [vmem:[%s0 + $0xe0] sm:$0xff]
  %v37 = vld [vmem:[%s0 + $0xf0] sm:$0xff]
  %v38 = vld [vmem:[%s0 + $0xf8] sm:$0xff]
  %v39 = vld [vmem:[%s0 + $0x108] sm:$0xff]
  %v40 = vld [vmem:[%s0 + $0x110] sm:$0xff]
  %v41 = vld [vmem:[%s0 + $0x120] sm:$0xff]
  %v42 = vld [vmem:[%s0 + $0x128] sm:$0xff]
  %v43 = vld [vmem:[%s0 + $0x138] sm:$0xff]
  %v44 = vld [vmem:[%s0 + $0x140] sm:$0xff]
  %v45 = vld [vmem:[%s0 + $0x150] sm:$0xff]
  %v46 = vld [vmem:[%s0 + $0x158] sm:$0xff]
  %v47 = vld [vmem:[%s0 + $0x168] sm:$0xff]
  %v48 = vld [vmem:[%s0 + $0x170] sm:$0xff]
  %v49 = vld [vmem:[%s0 + $0x1b0] sm:$0xff]
  %v50 = vld [vmem:[%s0 + $0x1b8] sm:$0xff]
  %v51 = vld [vmem:[%s0 + $0x1c8] sm:$0xff]
  %v52 = vld [vmem:[%s0 + $0x1d0] sm:$0xff]
  %v53 = vld [vmem:[%s0 + $0x1e0] sm:$0xff]
  %v54 = vld [vmem:[%s0 + $0x1e8] sm:$0xff]
  %v55 = vld [vmem:[%s0 + $0x1f8] sm:$0xff]
  %v56 = vld [vmem:[%s0 + $0x200] sm:$0xff]
  %v57 = vld [vmem:[%s0 + $0x210] sm:$0xff]
  %v58 = vld [vmem:[%s0 + $0x218] sm:$0xff]
  %v59 = vld [vmem:[%s0 + $0x228] sm:$0xff]
  %v60 = vld [vmem:[%s0 + $0x230] sm:$0xff]
  %v61 = vld [vmem:[%s0 + $0x240] sm:$0xff]
  %v62 = vld [vmem:[%s0 + $0x248] sm:$0xff]
  %v63 = vld [vmem:[%s0 + $0x258] sm:$0xff]
  %v64 = vld [vmem:[%s0 + $0x260] sm:$0xff]
  %v65 = vld [vmem:[%s0 + $0x270] sm:$0xff]
  %v66 = vld [vmem:[%s0 + $0x278] sm:$0xff]
  %v67 = vld [vmem:[%s0 + $0x288] sm:$0xff]
  %v68 = vld [vmem:[%s0 + $0x290] sm:$0xff]
  %v69 = vld [vmem:[%s0 + $0x2a0] sm:$0xff]
  %v70 = vld [vmem:[%s0 + $0x2a8] sm:$0xff]
  %v71 = vld [vmem:[%s0 + $0x2b8] sm:$0xff]
  %v72 = vld [vmem:[%s0 + $0x2c0] sm:$0xff]
  %v73 = vld [vmem:[%s0 + $0x2d0] sm:$0xff]
  %v74 = vld [vmem:[%s0 + $0x2d8] sm:$0xff]
  %v75 = vld [vmem:[%s0 + $0x2e8] sm:$0xff]
  %v76 = vld [vmem:[%s0 + $0x2f0] sm:$0xff]
  %v77 = vld [vmem:[%s0 + $0x300] sm:$0xff]
  %v78 = vld [vmem:[%s0 + $0x308] sm:$0xff]
  %v79 = vld [vmem:[%s0 + $0x318] sm:$0xff]
  %v80 = vld [vmem:[%s0 + $0x320] sm:$0xff]
  %v81 = vld [vmem:[%s1] sm:$0xf]
  %v82 = vld [vmem:[%s0 + $0x1] sm:$0xff]
  %v83 = vld [vmem:[%s0 + $0x9] sm:$0xff]
  %v84 = vld [vmem:[%s0 + $0x19] sm:$0xff]
  %v85 = vld [vmem:[%s0 + $0x21] sm:$0xff]
  %v86 = vld [vmem:[%s0 + $0x31] sm:$0xff]
  %v87 = vld [vmem:[%s0 + $0x39] sm:$0xff]
  %v88 = vld [vmem:[%s0 + $0x49] sm:$0xff]
  %v89 = vld [vmem:[%s0 + $0x51] sm:$0xff]
  %v90 = vld [vmem:[%s0 + $0x61] sm:$0xff]
  %v91 = vld [vmem:[%s0 + $0x69] sm:$0xff]
  %v92 = vld [vmem:[%s0 + $0x79] sm:$0xff]
  %v93 = vld [vmem:[%s0 + $0x81] sm:$0xff]
  %v94 = vld [vmem:[%s0 + $0x91] sm:$0xff]
  %v95 = vld [vmem:[%s0 + $0x99] sm:$0xff]
  %v96 = vld [vmem:[%s0 + $0xa9] sm:$0xff]
  %v97 = vld [vmem:[%s0 + $0xb1] sm:$0xff]
  %v98 = vld [vmem:[%s0 + $0xc1] sm:$0xff]
  %v99 = vld [vmem:[%s0 + $0xc9] sm:$0xff]
  %v100 = vld [vmem:[%s0 + $0xd9] sm:$0xff]
  %v101 = vld [vmem:[%s0 + $0xe1] sm:$0xff]
  %v102 = vld [vmem:[%s0 + $0xf1] sm:$0xff]
  %v103 = vld [vmem:[%s0 + $0xf9] sm:$0xff]
  %v104 = vld [vmem:[%s0 + $0x109] sm:$0xff]
  %v105 = vld [vmem:[%s0 + $0x111] sm:$0xff]
  %v106 = vld [vmem:[%s0 + $0x121] sm:$0xff]
  %v107 = vld [vmem:[%s0 + $0x129] sm:$0xff]
  %v108 = vld [vmem:[%s0 + $0x139] sm:$0xff]
  %v109 = vld [vmem:[%s0 + $0x141] sm:$0xff]
  %v110 = vld [vmem:[%s0 + $0x151] sm:$0xff]
  %v111 = vld [vmem:[%s0 + $0x159] sm:$0xff]
  %v112 = vld [vmem:[%s0 + $0x169] sm:$0xff]
  %v113 = vld [vmem:[%s0 + $0x171] sm:$0xff]
  %v114 = vld [vmem:[%s0 + $0x1b1] sm:$0xff]
  %v115 = vld [vmem:[%s0 + $0x1b9] sm:$0xff]
  %v116 = vld [vmem:[%s0 + $0x1c9] sm:$0xff]
  %v117 = vld [vmem:[%s0 + $0x1d1] sm:$0xff]
  %v118 = vld [vmem:[%s0 + $0x1e1] sm:$0xff]
  %v119 = vld [vmem:[%s0 + $0x1e9] sm:$0xff]
  %v120 = vld [vmem:[%s0 + $0x1f9] sm:$0xff]
  %v121 = vld [vmem:[%s0 + $0x201] sm:$0xff]
  %v122 = vld [vmem:[%s0 + $0x211] sm:$0xff]
  %v123 = vld [vmem:[%s0 + $0x219] sm:$0xff]
  %v124 = vld [vmem:[%s0 + $0x229] sm:$0xff]
  %v125 = vld [vmem:[%s0 + $0x231] sm:$0xff]
  %v126 = vld [vmem:[%s0 + $0x241] sm:$0xff]
  %v127 = vld [vmem:[%s0 + $0x249] sm:$0xff]
  %v128 = vld [vmem:[%s0 + $0x259] sm:$0xff]
  %v129 = vld [vmem:[%s0 + $0x261] sm:$0xff]
  %v130 = vld [vmem:[%s0 + $0x271] sm:$0xff]
  %v131 = vld [vmem:[%s0 + $0x279] sm:$0xff]
  %v132 = vld [vmem:[%s0 + $0x289] sm:$0xff]
  %v133 = vld [vmem:[%s0 + $0x291] sm:$0xff]
  %v134 = vld [vmem:[%s0 + $0x2a1] sm:$0xff]
  %v135 = vld [vmem:[%s0 + $0x2a9] sm:$0xff]
  %v136 = vld [vmem:[%s0 + $0x2b9] sm:$0xff]
  %v137 = vld [vmem:[%s0 + $0x2c1] sm:$0xff]
  %v138 = vld [vmem:[%s0 + $0x2d1] sm:$0xff]
  %v139 = vld [vmem:[%s0 + $0x2d9] sm:$0xff]
  %v140 = vld [vmem:[%s0 + $0x2e9] sm:$0xff]
  %v141 = vld [vmem:[%s0 + $0x2f1] sm:$0xff]
  %v142 = vld [vmem:[%s0 + $0x301] sm:$0xff]
  %v143 = vld [vmem:[%s0 + $0x309] sm:$0xff]
  %v144 = vld [vmem:[%s0 + $0x319] sm:$0xff]
  %v145 = vld [vmem:[%s0 + $0x321] sm:$0xff]
  %s146 = scalar_lea.vmem %s1, 4
  %v147 = vld [vmem:[%s146] sm:$0xf]
  %vm148 = vcmask 31744
  %v150 = vsel %vm148, %v82, 0
  %v153 = vsel %vm148, %v83, 0
  %v156 = vsel %vm148, %v84, 0
  %v159 = vsel %vm148, %v85, 0
  %v162 = vsel %vm148, %v86, 0
  %v165 = vsel %vm148, %v87, 0
  %v168 = vsel %vm148, %v88, 0
  %v171 = vsel %vm148, %v89, 0
  %v174 = vsel %vm148, %v90, 0
  %v177 = vsel %vm148, %v91, 0
  %v180 = vsel %vm148, %v92, 0
  %v183 = vsel %vm148, %v93, 0
  %v186 = vsel %vm148, %v94, 0
  %v189 = vsel %vm148, %v95, 0
  %v192 = vsel %vm148, %v96, 0
  %v195 = vsel %vm148, %v97, 0
  %v198 = vsel %vm148, %v98, 0
  %v201 = vsel %vm148, %v99, 0
  %v204 = vsel %vm148, %v100, 0
  %v207 = vsel %vm148, %v101, 0
  %v210 = vsel %vm148, %v102, 0
  %v213 = vsel %vm148, %v103, 0
  %v216 = vsel %vm148, %v104, 0
  %v219 = vsel %vm148, %v105, 0
  %v222 = vsel %vm148, %v106, 0
  %v225 = vsel %vm148, %v107, 0
  %v228 = vsel %vm148, %v108, 0
  %v231 = vsel %vm148, %v109, 0
  %v234 = vsel %vm148, %v110, 0
  %v237 = vsel %vm148, %v111, 0
  %v240 = vsel %vm148, %v112, 0
  %v243 = vsel %vm148, %v113, 0
  %v246 = vsel %vm148, %v114, 0
  %v249 = vsel %vm148, %v115, 0
  %v252 = vsel %vm148, %v116, 0
  %v255 = vsel %vm148, %v117, 0
  %v258 = vsel %vm148, %v118, 0
  %v261 = vsel %vm148, %v119, 0
  %v264 = vsel %vm148, %v120, 0
  %v267 = vsel %vm148, %v121, 0
  %v270 = vsel %vm148, %v122, 0
  %v273 = vsel %vm148, %v123, 0
  %v276 = vsel %vm148, %v124, 0
  %v279 = vsel %vm148, %v125, 0
  %v282 = vsel %vm148, %v126, 0
  %v285 = vsel %vm148, %v127, 0
  %v288 = vsel %vm148, %v128, 0
  %v291 = vsel %vm148, %v129, 0
  %v294 = vsel %vm148, %v130, 0
  %v297 = vsel %vm148, %v131, 0
  %v300 = vsel %vm148, %v132, 0
  %v303 = vsel %vm148, %v133, 0
  %v306 = vsel %vm148, %v134, 0
  %v309 = vsel %vm148, %v135, 0
  %v312 = vsel %vm148, %v136, 0
  %v315 = vsel %vm148, %v137, 0
  %v318 = vsel %vm148, %v138, 0
  %v321 = vsel %vm148, %v139, 0
  %v324 = vsel %vm148, %v140, 0
  %v327 = vsel %vm148, %v141, 0
  %v330 = vsel %vm148, %v142, 0
  %v333 = vsel %vm148, %v143, 0
  %v336 = vsel %vm148, %v144, 0
  %v339 = vsel %vm148, %v145, 0
  %vm341 = vcmask 1043456
  %v343 = vsel %vm341, %v147, 0
  %345 = vmatprep.subr.mxu0 0.0
  %346 = vmatpush1.msra.mxu0 %v343
  %347 = vmatprep.subr.mxu0 0.0
  %348 = vmatpush1.msra.mxu0 0.0
  %349 = vmatprep.subr.mxu0 0.0
  %350 = vmatpush1.msra.mxu0 0.0
  %351 = vmatprep.subr.mxu0 0.0
  %352 = vmatpush1.msra.mxu0 0.0
  %353 = vmatprep.subr.mxu0 0.0
  %354 = vmatpush1.msra.mxu0 0.0
  %355 = vmatprep.subr.mxu0 0.0
  %356 = vmatpush1.msra.mxu0 0.0
  %357 = vmatprep.subr.mxu0 0.0
  %358 = vmatpush1.msra.mxu0 0.0
  %359 = vmatprep.subr.mxu0 0.0
  %360 = vmatpush1.msra.mxu0 0.0
  %361 = vmatprep.subr.mxu0 0.0
  %362 = vmatpush1.msra.mxu0 0.0
  %363 = vmatprep.subr.mxu0 0.0
  %364 = vmatpush1.msra.mxu0 0.0
  %365 = vmatprep.subr.mxu0 0.0
  %366 = vmatpush1.msra.mxu0 0.0
  %367 = vmatprep.subr.mxu0 0.0
  %368 = vmatpush1.msra.mxu0 0.0
  %369 = vmatprep.subr.mxu0 0.0
  %370 = vmatpush1.msra.mxu0 0.0
  %371 = vmatprep.subr.mxu0 0.0
  %372 = vmatpush1.msra.mxu0 0.0
  %373 = vmatprep.subr.mxu0 0.0
  %374 = vmatpush1.msra.mxu0 0.0
  %375 = vmatprep.subr.mxu0 0.0
  %376 = vmatpush1.msra.mxu0 0.0
  %377 = vmatprep.subr.mxu0 0.0
  %378 = vmatpush1.msra.mxu0 0.0
  %379 = vmatprep.subr.mxu0 0.0
  %380 = vmatpush1.msra.mxu0 0.0
  %381 = vmatprep.subr.mxu0 0.0
  %382 = vmatpush1.msra.mxu0 0.0
  %383 = vmatprep.subr.mxu0 0.0
  %384 = vmatpush1.msra.mxu0 0.0
  %385 = vmatprep.subr.mxu0 0.0
  %386 = vmatpush1.msra.mxu0 0.0
  %387 = vmatprep.subr.mxu0 0.0
  %388 = vmatpush1.msra.mxu0 0.0
  %389 = vmatprep.subr.mxu0 0.0
  %390 = vmatpush1.msra.mxu0 0.0
  %391 = vmatprep.subr.mxu0 0.0
  %392 = vmatpush1.msra.mxu0 0.0
  %393 = vmatprep.subr.mxu0 0.0
  %394 = vmatpush1.msra.mxu0 0.0
  %395 = vmatprep.subr.mxu0 0.0
  %396 = vmatpush1.msra.mxu0 0.0
  %397 = vmatprep.subr.mxu0 0.0
  %398 = vmatpush1.msra.mxu0 0.0
  %399 = vmatprep.subr.mxu0 0.0
  %400 = vmatpush1.msra.mxu0 0.0
  %401 = vmatprep.subr.mxu0 0.0
  %402 = vmatpush1.msra.mxu0 0.0
  %403 = vmatprep.subr.mxu0 0.0
  %404 = vmatpush1.msra.mxu0 0.0
  %405 = vmatprep.subr.mxu0 0.0
  %406 = vmatpush1.msra.mxu0 0.0
  %407 = vmatprep.subr.mxu0 0.0
  %408 = vmatpush1.msra.mxu0 0.0
  %409 = vmatprep.mubr.f32.mxu0 0.0
  %410 = vmatmul.mubr.f32.gmra.mrb[0].mxu0 %v150
  %v411 = vpop.f32.mrb[0].mxu0
  %v412 = vadd.f32 0.0, %v411
  %v413 = vpop.f32.mrb[0].mxu0
  %414 = vmatprep.mubr.f32.mxu0 0.0
  %415 = vmatmul.mubr.f32.gmra.mrb[0].mxu0 %v153
  %v416 = vpop.f32.mrb[0].mxu0
  %v417 = vadd.f32 0.0, %v416
  %v418 = vpop.f32.mrb[0].mxu0
  %419 = vmatprep.mubr.f32.mxu0 0.0
  %420 = vmatmul.mubr.f32.gmra.mrb[0].mxu0 %v156
  %v421 = vpop.f32.mrb[0].mxu0
  %v422 = vadd.f32 0.0, %v421
  %v423 = vpop.f32.mrb[0].mxu0
  %424 = vmatprep.mubr.f32.mxu0 0.0
  %425 = vmatmul.mubr.f32.gmra.mrb[0].mxu0 %v159
  %v426 = vpop.f32.mrb[0].mxu0
  %v427 = vadd.f32 0.0, %v426
  %v428 = vpop.f32.mrb[0].mxu0
  %429 = vmatprep.mubr.f32.mxu0 0.0
  %430 = vmatmul.mubr.f32.gmra.mrb[0].mxu0 %v162
  %v431 = vpop.f32.mrb[0].mxu0
  %v432 = vadd.f32 0.0, %v431
  %v433 = vpop.f32.mrb[0].mxu0
  %434 = vmatprep.mubr.f32.mxu0 0.0
  %435 = vmatmul.mubr.f32.gmra.mrb[0].mxu0 %v165
  %v436 = vpop.f32.mrb[0].mxu0
  %v437 = vadd.f32 0.0, %v436
  %v438 = vpop.f32.mrb[0].mxu0
  %439 = vmatprep.mubr.f32.mxu0 0.0
  %440 = vmatmul.mubr.f32.gmra.mrb[0].mxu0 %v168
  %v441 = vpop.f32.mrb[0].mxu0
  %v442 = vadd.f32 0.0, %v441
  %v443 = vpop.f32.mrb[0].mxu0
  %444 = vmatprep.mubr.f32.mxu0 0.0
  %445 = vmatmul.mubr.f32.gmra.mrb[0].mxu0 %v171
  %v446 = vpop.f32.mrb[0].mxu0
  %v447 = vadd.f32 0.0, %v446
  %v448 = vpop.f32.mrb[0].mxu0
  %449 = vmatprep.mubr.f32.mxu0 0.0
  %450 = vmatmul.mubr.f32.gmra.mrb[0].mxu0 %v174
  %v451 = vpop.f32.mrb[0].mxu0
  %v452 = vadd.f32 0.0, %v451
  %v453 = vpop.f32.mrb[0].mxu0
  %454 = vmatprep.mubr.f32.mxu0 0.0
  %455 = vmatmul.mubr.f32.gmra.mrb[0].mxu0 %v177
  %v456 = vpop.f32.mrb[0].mxu0
  %v457 = vadd.f32 0.0, %v456
  %v458 = vpop.f32.mrb[0].mxu0
  %459 = vmatprep.mubr.f32.mxu0 0.0
  %460 = vmatmul.mubr.f32.gmra.mrb[0].mxu0 %v180
  %v461 = vpop.f32.mrb[0].mxu0
  %v462 = vadd.f32 0.0, %v461
  %v463 = vpop.f32.mrb[0].mxu0
  %464 = vmatprep.mubr.f32.mxu0 0.0
  %465 = vmatmul.mubr.f32.gmra.mrb[0].mxu0 %v183
  %v466 = vpop.f32.mrb[0].mxu0
  %v467 = vadd.f32 0.0, %v466
  %v468 = vpop.f32.mrb[0].mxu0
  %469 = vmatprep.mubr.f32.mxu0 0.0
  %470 = vmatmul.mubr.f32.gmra.mrb[0].mxu0 %v186
  %v471 = vpop.f32.mrb[0].mxu0
  %v472 = vadd.f32 0.0, %v471
  %v473 = vpop.f32.mrb[0].mxu0
  %474 = vmatprep.mubr.f32.mxu0 0.0
  %475 = vmatmul.mubr.f32.gmra.mrb[0].mxu0 %v189
  %v476 = vpop.f32.mrb[0].mxu0
  %v477 = vadd.f32 0.0, %v476
  %v478 = vpop.f32.mrb[0].mxu0
  %479 = vmatprep.mubr.f32.mxu0 0.0
  %480 = vmatmul.mubr.f32.gmra.mrb[0].mxu0 %v192
  %v481 = vpop.f32.mrb[0].mxu0
  %v482 = vadd.f32 0.0, %v481
  %v483 = vpop.f32.mrb[0].mxu0
  %484 = vmatprep.mubr.f32.mxu0 0.0
  %485 = vmatmul.mubr.f32.gmra.mrb[0].mxu0 %v195
  %v486 = vpop.f32.mrb[0].mxu0
  %v487 = vadd.f32 0.0, %v486
  %v488 = vpop.f32.mrb[0].mxu0
  %489 = vmatprep.mubr.f32.mxu0 0.0
  %490 = vmatmul.mubr.f32.gmra.mrb[0].mxu0 %v198
  %v491 = vpop.f32.mrb[0].mxu0
  %v492 = vadd.f32 0.0, %v491
  %v493 = vpop.f32.mrb[0].mxu0
  %494 = vmatprep.mubr.f32.mxu0 0.0
  %495 = vmatmul.mubr.f32.gmra.mrb[0].mxu0 %v201
  %v496 = vpop.f32.mrb[0].mxu0
  %v497 = vadd.f32 0.0, %v496
  %v498 = vpop.f32.mrb[0].mxu0
  %499 = vmatprep.mubr.f32.mxu0 0.0
  %500 = vmatmul.mubr.f32.gmra.mrb[0].mxu0 %v204
  %v501 = vpop.f32.mrb[0].mxu0
  %v502 = vadd.f32 0.0, %v501
  %v503 = vpop.f32.mrb[0].mxu0
  %504 = vmatprep.mubr.f32.mxu0 0.0
  %505 = vmatmul.mubr.f32.gmra.mrb[0].mxu0 %v207
  %v506 = vpop.f32.mrb[0].mxu0
  %v507 = vadd.f32 0.0, %v506
  %v508 = vpop.f32.mrb[0].mxu0
  %509 = vmatprep.mubr.f32.mxu0 0.0
  %510 = vmatmul.mubr.f32.gmra.mrb[0].mxu0 %v210
  %v511 = vpop.f32.mrb[0].mxu0
  %v512 = vadd.f32 0.0, %v511
  %v513 = vpop.f32.mrb[0].mxu0
  %514 = vmatprep.mubr.f32.mxu0 0.0
  %515 = vmatmul.mubr.f32.gmra.mrb[0].mxu0 %v213
  %v516 = vpop.f32.mrb[0].mxu0
  %v517 = vadd.f32 0.0, %v516
  %v518 = vpop.f32.mrb[0].mxu0
  %519 = vmatprep.mubr.f32.mxu0 0.0
  %520 = vmatmul.mubr.f32.gmra.mrb[0].mxu0 %v216
  %v521 = vpop.f32.mrb[0].mxu0
  %v522 = vadd.f32 0.0, %v521
  %v523 = vpop.f32.mrb[0].mxu0
  %524 = vmatprep.mubr.f32.mxu0 0.0
  %525 = vmatmul.mubr.f32.gmra.mrb[0].mxu0 %v219
  %v526 = vpop.f32.mrb[0].mxu0
  %v527 = vadd.f32 0.0, %v526
  %v528 = vpop.f32.mrb[0].mxu0
  %529 = vmatprep.mubr.f32.mxu0 0.0
  %530 = vmatmul.mubr.f32.gmra.mrb[0].mxu0 %v222
  %v531 = vpop.f32.mrb[0].mxu0
  %v532 = vadd.f32 0.0, %v531
  %v533 = vpop.f32.mrb[0].mxu0
  %534 = vmatprep.mubr.f32.mxu0 0.0
  %535 = vmatmul.mubr.f32.gmra.mrb[0].mxu0 %v225
  %v536 = vpop.f32.mrb[0].mxu0
  %v537 = vadd.f32 0.0, %v536
  %v538 = vpop.f32.mrb[0].mxu0
  %539 = vmatprep.mubr.f32.mxu0 0.0
  %540 = vmatmul.mubr.f32.gmra.mrb[0].mxu0 %v228
  %v541 = vpop.f32.mrb[0].mxu0
  %v542 = vadd.f32 0.0, %v541
  %v543 = vpop.f32.mrb[0].mxu0
  %544 = vmatprep.mubr.f32.mxu0 0.0
  %545 = vmatmul.mubr.f32.gmra.mrb[0].mxu0 %v231
  %v546 = vpop.f32.mrb[0].mxu0
  %v547 = vadd.f32 0.0, %v546
  %v548 = vpop.f32.mrb[0].mxu0
  %549 = vmatprep.mubr.f32.mxu0 0.0
  %550 = vmatmul.mubr.f32.gmra.mrb[0].mxu0 %v234
  %v551 = vpop.f32.mrb[0].mxu0
  %v552 = vadd.f32 0.0, %v551
  %v553 = vpop.f32.mrb[0].mxu0
  %554 = vmatprep.mubr.f32.mxu0 0.0
  %555 = vmatmul.mubr.f32.gmra.mrb[0].mxu0 %v237
  %v556 = vpop.f32.mrb[0].mxu0
  %v557 = vadd.f32 0.0, %v556
  %v558 = vpop.f32.mrb[0].mxu0
  %559 = vmatprep.mubr.f32.mxu0 0.0
  %560 = vmatmul.mubr.f32.gmra.mrb[0].mxu0 %v240
  %v561 = vpop.f32.mrb[0].mxu0
  %v562 = vadd.f32 0.0, %v561
  %v563 = vpop.f32.mrb[0].mxu0
  %564 = vmatprep.mubr.f32.mxu0 0.0
  %565 = vmatmul.mubr.f32.gmra.mrb[0].mxu0 %v243
  %v566 = vpop.f32.mrb[0].mxu0
  %v567 = vadd.f32 0.0, %v566
  %v568 = vpop.f32.mrb[0].mxu0
  %569 = vmatprep.mubr.f32.mxu0 0.0
  %570 = vmatmul.mubr.f32.gmra.mrb[0].mxu0 %v246
  %v571 = vpop.f32.mrb[0].mxu0
  %v572 = vadd.f32 0.0, %v571
  %v573 = vpop.f32.mrb[0].mxu0
  %574 = vmatprep.mubr.f32.mxu0 0.0
  %575 = vmatmul.mubr.f32.gmra.mrb[0].mxu0 %v249
  %v576 = vpop.f32.mrb[0].mxu0
  %v577 = vadd.f32 0.0, %v576
  %v578 = vpop.f32.mrb[0].mxu0
  %579 = vmatprep.mubr.f32.mxu0 0.0
  %580 = vmatmul.mubr.f32.gmra.mrb[0].mxu0 %v252
  %v581 = vpop.f32.mrb[0].mxu0
  %v582 = vadd.f32 0.0, %v581
  %v583 = vpop.f32.mrb[0].mxu0
  %584 = vmatprep.mubr.f32.mxu0 0.0
  %585 = vmatmul.mubr.f32.gmra.mrb[0].mxu0 %v255
  %v586 = vpop.f32.mrb[0].mxu0
  %v587 = vadd.f32 0.0, %v586
  %v588 = vpop.f32.mrb[0].mxu0
  %589 = vmatprep.mubr.f32.mxu0 0.0
  %590 = vmatmul.mubr.f32.gmra.mrb[0].mxu0 %v258
  %v591 = vpop.f32.mrb[0].mxu0
  %v592 = vadd.f32 0.0, %v591
  %v593 = vpop.f32.mrb[0].mxu0
  %594 = vmatprep.mubr.f32.mxu0 0.0
  %595 = vmatmul.mubr.f32.gmra.mrb[0].mxu0 %v261
  %v596 = vpop.f32.mrb[0].mxu0
  %v597 = vadd.f32 0.0, %v596
  %v598 = vpop.f32.mrb[0].mxu0
  %599 = vmatprep.mubr.f32.mxu0 0.0
  %600 = vmatmul.mubr.f32.gmra.mrb[0].mxu0 %v264
  %v601 = vpop.f32.mrb[0].mxu0
  %v602 = vadd.f32 0.0, %v601
  %v603 = vpop.f32.mrb[0].mxu0
  %604 = vmatprep.mubr.f32.mxu0 0.0
  %605 = vmatmul.mubr.f32.gmra.mrb[0].mxu0 %v267
  %v606 = vpop.f32.mrb[0].mxu0
  %v607 = vadd.f32 0.0, %v606
  %v608 = vpop.f32.mrb[0].mxu0
  %609 = vmatprep.mubr.f32.mxu0 0.0
  %610 = vmatmul.mubr.f32.gmra.mrb[0].mxu0 %v270
  %v611 = vpop.f32.mrb[0].mxu0
  %v612 = vadd.f32 0.0, %v611
  %v613 = vpop.f32.mrb[0].mxu0
  %614 = vmatprep.mubr.f32.mxu0 0.0
  %615 = vmatmul.mubr.f32.gmra.mrb[0].mxu0 %v273
  %v616 = vpop.f32.mrb[0].mxu0
  %v617 = vadd.f32 0.0, %v616
  %v618 = vpop.f32.mrb[0].mxu0
  %619 = vmatprep.mubr.f32.mxu0 0.0
  %620 = vmatmul.mubr.f32.gmra.mrb[0].mxu0 %v276
  %v621 = vpop.f32.mrb[0].mxu0
  %v622 = vadd.f32 0.0, %v621
  %v623 = vpop.f32.mrb[0].mxu0
  %624 = vmatprep.mubr.f32.mxu0 0.0
  %625 = vmatmul.mubr.f32.gmra.mrb[0].mxu0 %v279
  %v626 = vpop.f32.mrb[0].mxu0
  %v627 = vadd.f32 0.0, %v626
  %v628 = vpop.f32.mrb[0].mxu0
  %629 = vmatprep.mubr.f32.mxu0 0.0
  %630 = vmatmul.mubr.f32.gmra.mrb[0].mxu0 %v282
  %v631 = vpop.f32.mrb[0].mxu0
  %v632 = vadd.f32 0.0, %v631
  %v633 = vpop.f32.mrb[0].mxu0
  %634 = vmatprep.mubr.f32.mxu0 0.0
  %635 = vmatmul.mubr.f32.gmra.mrb[0].mxu0 %v285
  %v636 = vpop.f32.mrb[0].mxu0
  %v637 = vadd.f32 0.0, %v636
  %v638 = vpop.f32.mrb[0].mxu0
  %639 = vmatprep.mubr.f32.mxu0 0.0
  %640 = vmatmul.mubr.f32.gmra.mrb[0].mxu0 %v288
  %v641 = vpop.f32.mrb[0].mxu0
  %v642 = vadd.f32 0.0, %v641
  %v643 = vpop.f32.mrb[0].mxu0
  %644 = vmatprep.mubr.f32.mxu0 0.0
  %645 = vmatmul.mubr.f32.gmra.mrb[0].mxu0 %v291
  %v646 = vpop.f32.mrb[0].mxu0
  %v647 = vadd.f32 0.0, %v646
  %v648 = vpop.f32.mrb[0].mxu0
  %649 = vmatprep.mubr.f32.mxu0 0.0
  %650 = vmatmul.mubr.f32.gmra.mrb[0].mxu0 %v294
  %v651 = vpop.f32.mrb[0].mxu0
  %v652 = vadd.f32 0.0, %v651
  %v653 = vpop.f32.mrb[0].mxu0
  %654 = vmatprep.mubr.f32.mxu0 0.0
  %655 = vmatmul.mubr.f32.gmra.mrb[0].mxu0 %v297
  %v656 = vpop.f32.mrb[0].mxu0
  %v657 = vadd.f32 0.0, %v656
  %v658 = vpop.f32.mrb[0].mxu0
  %659 = vmatprep.mubr.f32.mxu0 0.0
  %660 = vmatmul.mubr.f32.gmra.mrb[0].mxu0 %v300
  %v661 = vpop.f32.mrb[0].mxu0
  %v662 = vadd.f32 0.0, %v661
  %v663 = vpop.f32.mrb[0].mxu0
  %664 = vmatprep.mubr.f32.mxu0 0.0
  %665 = vmatmul.mubr.f32.gmra.mrb[0].mxu0 %v303
  %v666 = vpop.f32.mrb[0].mxu0
  %v667 = vadd.f32 0.0, %v666
  %v668 = vpop.f32.mrb[0].mxu0
  %669 = vmatprep.mubr.f32.mxu0 0.0
  %670 = vmatmul.mubr.f32.gmra.mrb[0].mxu0 %v306
  %v671 = vpop.f32.mrb[0].mxu0
  %v672 = vadd.f32 0.0, %v671
  %v673 = vpop.f32.mrb[0].mxu0
  %674 = vmatprep.mubr.f32.mxu0 0.0
  %675 = vmatmul.mubr.f32.gmra.mrb[0].mxu0 %v309
  %v676 = vpop.f32.mrb[0].mxu0
  %v677 = vadd.f32 0.0, %v676
  %v678 = vpop.f32.mrb[0].mxu0
  %679 = vmatprep.mubr.f32.mxu0 0.0
  %680 = vmatmul.mubr.f32.gmra.mrb[0].mxu0 %v312
  %v681 = vpop.f32.mrb[0].mxu0
  %v682 = vadd.f32 0.0, %v681
  %v683 = vpop.f32.mrb[0].mxu0
  %684 = vmatprep.mubr.f32.mxu0 0.0
  %685 = vmatmul.mubr.f32.gmra.mrb[0].mxu0 %v315
  %v686 = vpop.f32.mrb[0].mxu0
  %v687 = vadd.f32 0.0, %v686
  %v688 = vpop.f32.mrb[0].mxu0
  %689 = vmatprep.mubr.f32.mxu0 0.0
  %690 = vmatmul.mubr.f32.gmra.mrb[0].mxu0 %v318
  %v691 = vpop.f32.mrb[0].mxu0
  %v692 = vadd.f32 0.0, %v691
  %v693 = vpop.f32.mrb[0].mxu0
  %694 = vmatprep.mubr.f32.mxu0 0.0
  %695 = vmatmul.mubr.f32.gmra.mrb[0].mxu0 %v321
  %v696 = vpop.f32.mrb[0].mxu0
  %v697 = vadd.f32 0.0, %v696
  %v698 = vpop.f32.mrb[0].mxu0
  %699 = vmatprep.mubr.f32.mxu0 0.0
  %700 = vmatmul.mubr.f32.gmra.mrb[0].mxu0 %v324
  %v701 = vpop.f32.mrb[0].mxu0
  %v702 = vadd.f32 0.0, %v701
  %v703 = vpop.f32.mrb[0].mxu0
  %704 = vmatprep.mubr.f32.mxu0 0.0
  %705 = vmatmul.mubr.f32.gmra.mrb[0].mxu0 %v327
  %v706 = vpop.f32.mrb[0].mxu0
  %v707 = vadd.f32 0.0, %v706
  %v708 = vpop.f32.mrb[0].mxu0
  %709 = vmatprep.mubr.f32.mxu0 0.0
  %710 = vmatmul.mubr.f32.gmra.mrb[0].mxu0 %v330
  %v711 = vpop.f32.mrb[0].mxu0
  %v712 = vadd.f32 0.0, %v711
  %v713 = vpop.f32.mrb[0].mxu0
  %714 = vmatprep.mubr.f32.mxu0 0.0
  %715 = vmatmul.mubr.f32.gmra.mrb[0].mxu0 %v333
  %v716 = vpop.f32.mrb[0].mxu0
  %v717 = vadd.f32 0.0, %v716
  %v718 = vpop.f32.mrb[0].mxu0
  %719 = vmatprep.mubr.f32.mxu0 0.0
  %720 = vmatmul.mubr.f32.gmra.mrb[0].mxu0 %v336
  %v721 = vpop.f32.mrb[0].mxu0
  %v722 = vadd.f32 0.0, %v721
  %v723 = vpop.f32.mrb[0].mxu0
  %724 = vmatprep.mubr.f32.mxu0 0.0
  %725 = vmatmul.mubr.f32.gmra.mrb[0].mxu0 %v339
  %v726 = vpop.f32.mrb[0].mxu0
  %v727 = vadd.f32 0.0, %v726
  %v728 = vpop.f32.mrb[0].mxu0
  %729 = vdwg.mxu0
  %v731 = vsel %vm148, %v17, 0
  %v734 = vsel %vm148, %v18, 0
  %v737 = vsel %vm148, %v19, 0
  %v740 = vsel %vm148, %v20, 0
  %v743 = vsel %vm148, %v21, 0
  %v746 = vsel %vm148, %v22, 0
  %v749 = vsel %vm148, %v23, 0
  %v752 = vsel %vm148, %v24, 0
  %v755 = vsel %vm148, %v25, 0
  %v758 = vsel %vm148, %v26, 0
  %v761 = vsel %vm148, %v27, 0
  %v764 = vsel %vm148, %v28, 0
  %v767 = vsel %vm148, %v29, 0
  %v770 = vsel %vm148, %v30, 0
  %v773 = vsel %vm148, %v31, 0
  %v776 = vsel %vm148, %v32, 0
  %v779 = vsel %vm148, %v33, 0
  %v782 = vsel %vm148, %v34, 0
  %v785 = vsel %vm148, %v35, 0
  %v788 = vsel %vm148, %v36, 0
  %v791 = vsel %vm148, %v37, 0
  %v794 = vsel %vm148, %v38, 0
  %v797 = vsel %vm148, %v39, 0
  %v800 = vsel %vm148, %v40, 0
  %v803 = vsel %vm148, %v41, 0
  %v806 = vsel %vm148, %v42, 0
  %v809 = vsel %vm148, %v43, 0
  %v812 = vsel %vm148, %v44, 0
  %v815 = vsel %vm148, %v45, 0
  %v818 = vsel %vm148, %v46, 0
  %v821 = vsel %vm148, %v47, 0
  %v824 = vsel %vm148, %v48, 0
  %v827 = vsel %vm148, %v49, 0
  %v830 = vsel %vm148, %v50, 0
  %v833 = vsel %vm148, %v51, 0
  %v836 = vsel %vm148, %v52, 0
  %v839 = vsel %vm148, %v53, 0
  %v842 = vsel %vm148, %v54, 0
  %v845 = vsel %vm148, %v55, 0
  %v848 = vsel %vm148, %v56, 0
  %v851 = vsel %vm148, %v57, 0
  %v854 = vsel %vm148, %v58, 0
  %v857 = vsel %vm148, %v59, 0
  %v860 = vsel %vm148, %v60, 0
  %v863 = vsel %vm148, %v61, 0
  %v866 = vsel %vm148, %v62, 0
  %v869 = vsel %vm148, %v63, 0
  %v872 = vsel %vm148, %v64, 0
  %v875 = vsel %vm148, %v65, 0
  %v878 = vsel %vm148, %v66, 0
  %v881 = vsel %vm148, %v67, 0
  %v884 = vsel %vm148, %v68, 0
  %v887 = vsel %vm148, %v69, 0
  %v890 = vsel %vm148, %v70, 0
  %v893 = vsel %vm148, %v71, 0
  %v896 = vsel %vm148, %v72, 0
  %v899 = vsel %vm148, %v73, 0
  %v902 = vsel %vm148, %v74, 0
  %v905 = vsel %vm148, %v75, 0
  %v908 = vsel %vm148, %v76, 0
  %v911 = vsel %vm148, %v77, 0
  %v914 = vsel %vm148, %v78, 0
  %v917 = vsel %vm148, %v79, 0
  %v920 = vsel %vm148, %v80, 0
  %v923 = vsel %vm341, %v81, 0
  %925 = vmatprep.subr.mxu0 0.0
  %926 = vmatpush1.msra.mxu0 %v923
  %927 = vmatprep.subr.mxu0 0.0
  %928 = vmatpush1.msra.mxu0 0.0
  %929 = vmatprep.subr.mxu0 0.0
  %930 = vmatpush1.msra.mxu0 0.0
  %931 = vmatprep.subr.mxu0 0.0
  %932 = vmatpush1.msra.mxu0 0.0
  %933 = vmatprep.subr.mxu0 0.0
  %934 = vmatpush1.msra.mxu0 0.0
  %935 = vmatprep.subr.mxu0 0.0
  %936 = vmatpush1.msra.mxu0 0.0
  %937 = vmatprep.subr.mxu0 0.0
  %938 = vmatpush1.msra.mxu0 0.0
  %939 = vmatprep.subr.mxu0 0.0
  %940 = vmatpush1.msra.mxu0 0.0
  %941 = vmatprep.subr.mxu0 0.0
  %942 = vmatpush1.msra.mxu0 0.0
  %943 = vmatprep.subr.mxu0 0.0
  %944 = vmatpush1.msra.mxu0 0.0
  %945 = vmatprep.subr.mxu0 0.0
  %946 = vmatpush1.msra.mxu0 0.0
  %947 = vmatprep.subr.mxu0 0.0
  %948 = vmatpush1.msra.mxu0 0.0
  %949 = vmatprep.subr.mxu0 0.0
  %950 = vmatpush1.msra.mxu0 0.0
  %951 = vmatprep.subr.mxu0 0.0
  %952 = vmatpush1.msra.mxu0 0.0
  %953 = vmatprep.subr.mxu0 0.0
  %954 = vmatpush1.msra.mxu0 0.0
  %955 = vmatprep.subr.mxu0 0.0
  %956 = vmatpush1.msra.mxu0 0.0
  %957 = vmatprep.subr.mxu0 0.0
  %958 = vmatpush1.msra.mxu0 0.0
  %959 = vmatprep.subr.mxu0 0.0
  %960 = vmatpush1.msra.mxu0 0.0
  %961 = vmatprep.subr.mxu0 0.0
  %962 = vmatpush1.msra.mxu0 0.0
  %963 = vmatprep.subr.mxu0 0.0
  %964 = vmatpush1.msra.mxu0 0.0
  %965 = vmatprep.subr.mxu0 0.0
  %966 = vmatpush1.msra.mxu0 0.0
  %967 = vmatprep.subr.mxu0 0.0
  %968 = vmatpush1.msra.mxu0 0.0
  %969 = vmatprep.subr.mxu0 0.0
  %970 = vmatpush1.msra.mxu0 0.0
  %971 = vmatprep.subr.mxu0 0.0
  %972 = vmatpush1.msra.mxu0 0.0
  %973 = vmatprep.subr.mxu0 0.0
  %974 = vmatpush1.msra.mxu0 0.0
  %975 = vmatprep.subr.mxu0 0.0
  %976 = vmatpush1.msra.mxu0 0.0
  %977 = vmatprep.subr.mxu0 0.0
  %978 = vmatpush1.msra.mxu0 0.0
  %979 = vmatprep.subr.mxu0 0.0
  %980 = vmatpush1.msra.mxu0 0.0
  %981 = vmatprep.subr.mxu0 0.0
  %982 = vmatpush1.msra.mxu0 0.0
  %983 = vmatprep.subr.mxu0 0.0
  %984 = vmatpush1.msra.mxu0 0.0
  %985 = vmatprep.subr.mxu0 0.0
  %986 = vmatpush1.msra.mxu0 0.0
  %987 = vmatprep.subr.mxu0 0.0
  %988 = vmatpush1.msra.mxu0 0.0
  %989 = vmatprep.mubr.f32.mxu0 0.0
  %990 = vmatmul.mubr.f32.gmra.mrb[0].mxu0 %v731
  %v991 = vpop.f32.mrb[0].mxu0
  %v992 = vadd.f32 %v412, %v991
  %v993 = vpop.f32.mrb[0].mxu0
  %994 = vmatprep.mubr.f32.mxu0 0.0
  %995 = vmatmul.mubr.f32.gmra.mrb[0].mxu0 %v734
  %v996 = vpop.f32.mrb[0].mxu0
  %v997 = vadd.f32 %v417, %v996
  %v998 = vpop.f32.mrb[0].mxu0
  %999 = vmatprep.mubr.f32.mxu0 0.0
  %1000 = vmatmul.mubr.f32.gmra.mrb[0].mxu0 %v737
  %v1001 = vpop.f32.mrb[0].mxu0
  %v1002 = vadd.f32 %v422, %v1001
  %v1003 = vpop.f32.mrb[0].mxu0
  %1004 = vmatprep.mubr.f32.mxu0 0.0
  %1005 = vmatmul.mubr.f32.gmra.mrb[0].mxu0 %v740
  %v1006 = vpop.f32.mrb[0].mxu0
  %v1007 = vadd.f32 %v427, %v1006
  %v1008 = vpop.f32.mrb[0].mxu0
  %1009 = vmatprep.mubr.f32.mxu0 0.0
  %1010 = vmatmul.mubr.f32.gmra.mrb[0].mxu0 %v743
  %v1011 = vpop.f32.mrb[0].mxu0
  %v1012 = vadd.f32 %v432, %v1011
  %v1013 = vpop.f32.mrb[0].mxu0
  %1014 = vmatprep.mubr.f32.mxu0 0.0
  %1015 = vmatmul.mubr.f32.gmra.mrb[0].mxu0 %v746
  %v1016 = vpop.f32.mrb[0].mxu0
  %v1017 = vadd.f32 %v437, %v1016
  %v1018 = vpop.f32.mrb[0].mxu0
  %1019 = vmatprep.mubr.f32.mxu0 0.0
  %1020 = vmatmul.mubr.f32.gmra.mrb[0].mxu0 %v749
  %v1021 = vpop.f32.mrb[0].mxu0
  %v1022 = vadd.f32 %v442, %v1021
  %v1023 = vpop.f32.mrb[0].mxu0
  %1024 = vmatprep.mubr.f32.mxu0 0.0
  %1025 = vmatmul.mubr.f32.gmra.mrb[0].mxu0 %v752
  %v1026 = vpop.f32.mrb[0].mxu0
  %v1027 = vadd.f32 %v447, %v1026
  %v1028 = vpop.f32.mrb[0].mxu0
  %1029 = vmatprep.mubr.f32.mxu0 0.0
  %1030 = vmatmul.mubr.f32.gmra.mrb[0].mxu0 %v755
  %v1031 = vpop.f32.mrb[0].mxu0
  %v1032 = vadd.f32 %v452, %v1031
  %v1033 = vpop.f32.mrb[0].mxu0
  %1034 = vmatprep.mubr.f32.mxu0 0.0
  %1035 = vmatmul.mubr.f32.gmra.mrb[0].mxu0 %v758
  %v1036 = vpop.f32.mrb[0].mxu0
  %v1037 = vadd.f32 %v457, %v1036
  %v1038 = vpop.f32.mrb[0].mxu0
  %1039 = vmatprep.mubr.f32.mxu0 0.0
  %1040 = vmatmul.mubr.f32.gmra.mrb[0].mxu0 %v761
  %v1041 = vpop.f32.mrb[0].mxu0
  %v1042 = vadd.f32 %v462, %v1041
  %v1043 = vpop.f32.mrb[0].mxu0
  %1044 = vmatprep.mubr.f32.mxu0 0.0
  %1045 = vmatmul.mubr.f32.gmra.mrb[0].mxu0 %v764
  %v1046 = vpop.f32.mrb[0].mxu0
  %v1047 = vadd.f32 %v467, %v1046
  %v1048 = vpop.f32.mrb[0].mxu0
  %1049 = vmatprep.mubr.f32.mxu0 0.0
  %1050 = vmatmul.mubr.f32.gmra.mrb[0].mxu0 %v767
  %v1051 = vpop.f32.mrb[0].mxu0
  %v1052 = vadd.f32 %v472, %v1051
  %v1053 = vpop.f32.mrb[0].mxu0
  %1054 = vmatprep.mubr.f32.mxu0 0.0
  %1055 = vmatmul.mubr.f32.gmra.mrb[0].mxu0 %v770
  %v1056 = vpop.f32.mrb[0].mxu0
  %v1057 = vadd.f32 %v477, %v1056
  %v1058 = vpop.f32.mrb[0].mxu0
  %1059 = vmatprep.mubr.f32.mxu0 0.0
  %1060 = vmatmul.mubr.f32.gmra.mrb[0].mxu0 %v773
  %v1061 = vpop.f32.mrb[0].mxu0
  %v1062 = vadd.f32 %v482, %v1061
  %v1063 = vpop.f32.mrb[0].mxu0
  %1064 = vmatprep.mubr.f32.mxu0 0.0
  %1065 = vmatmul.mubr.f32.gmra.mrb[0].mxu0 %v776
  %v1066 = vpop.f32.mrb[0].mxu0
  %v1067 = vadd.f32 %v487, %v1066
  %v1068 = vpop.f32.mrb[0].mxu0
  %1069 = vmatprep.mubr.f32.mxu0 0.0
  %1070 = vmatmul.mubr.f32.gmra.mrb[0].mxu0 %v779
  %v1071 = vpop.f32.mrb[0].mxu0
  %v1072 = vadd.f32 %v492, %v1071
  %v1073 = vpop.f32.mrb[0].mxu0
  %1074 = vmatprep.mubr.f32.mxu0 0.0
  %1075 = vmatmul.mubr.f32.gmra.mrb[0].mxu0 %v782
  %v1076 = vpop.f32.mrb[0].mxu0
  %v1077 = vadd.f32 %v497, %v1076
  %v1078 = vpop.f32.mrb[0].mxu0
  %1079 = vmatprep.mubr.f32.mxu0 0.0
  %1080 = vmatmul.mubr.f32.gmra.mrb[0].mxu0 %v785
  %v1081 = vpop.f32.mrb[0].mxu0
  %v1082 = vadd.f32 %v502, %v1081
  %v1083 = vpop.f32.mrb[0].mxu0
  %1084 = vmatprep.mubr.f32.mxu0 0.0
  %1085 = vmatmul.mubr.f32.gmra.mrb[0].mxu0 %v788
  %v1086 = vpop.f32.mrb[0].mxu0
  %v1087 = vadd.f32 %v507, %v1086
  %v1088 = vpop.f32.mrb[0].mxu0
  %1089 = vmatprep.mubr.f32.mxu0 0.0
  %1090 = vmatmul.mubr.f32.gmra.mrb[0].mxu0 %v791
  %v1091 = vpop.f32.mrb[0].mxu0
  %v1092 = vadd.f32 %v512, %v1091
  %v1093 = vpop.f32.mrb[0].mxu0
  %1094 = vmatprep.mubr.f32.mxu0 0.0
  %1095 = vmatmul.mubr.f32.gmra.mrb[0].mxu0 %v794
  %v1096 = vpop.f32.mrb[0].mxu0
  %v1097 = vadd.f32 %v517, %v1096
  %v1098 = vpop.f32.mrb[0].mxu0
  %1099 = vmatprep.mubr.f32.mxu0 0.0
  %1100 = vmatmul.mubr.f32.gmra.mrb[0].mxu0 %v797
  %v1101 = vpop.f32.mrb[0].mxu0
  %v1102 = vadd.f32 %v522, %v1101
  %v1103 = vpop.f32.mrb[0].mxu0
  %1104 = vmatprep.mubr.f32.mxu0 0.0
  %1105 = vmatmul.mubr.f32.gmra.mrb[0].mxu0 %v800
  %v1106 = vpop.f32.mrb[0].mxu0
  %v1107 = vadd.f32 %v527, %v1106
  %v1108 = vpop.f32.mrb[0].mxu0
  %1109 = vmatprep.mubr.f32.mxu0 0.0
  %1110 = vmatmul.mubr.f32.gmra.mrb[0].mxu0 %v803
  %v1111 = vpop.f32.mrb[0].mxu0
  %v1112 = vadd.f32 %v532, %v1111
  %v1113 = vpop.f32.mrb[0].mxu0
  %1114 = vmatprep.mubr.f32.mxu0 0.0
  %1115 = vmatmul.mubr.f32.gmra.mrb[0].mxu0 %v806
  %v1116 = vpop.f32.mrb[0].mxu0
  %v1117 = vadd.f32 %v537, %v1116
  %v1118 = vpop.f32.mrb[0].mxu0
  %1119 = vmatprep.mubr.f32.mxu0 0.0
  %1120 = vmatmul.mubr.f32.gmra.mrb[0].mxu0 %v809
  %v1121 = vpop.f32.mrb[0].mxu0
  %v1122 = vadd.f32 %v542, %v1121
  %v1123 = vpop.f32.mrb[0].mxu0
  %1124 = vmatprep.mubr.f32.mxu0 0.0
  %1125 = vmatmul.mubr.f32.gmra.mrb[0].mxu0 %v812
  %v1126 = vpop.f32.mrb[0].mxu0
  %v1127 = vadd.f32 %v547, %v1126
  %v1128 = vpop.f32.mrb[0].mxu0
  %1129 = vmatprep.mubr.f32.mxu0 0.0
  %1130 = vmatmul.mubr.f32.gmra.mrb[0].mxu0 %v815
  %v1131 = vpop.f32.mrb[0].mxu0
  %v1132 = vadd.f32 %v552, %v1131
  %v1133 = vpop.f32.mrb[0].mxu0
  %1134 = vmatprep.mubr.f32.mxu0 0.0
  %1135 = vmatmul.mubr.f32.gmra.mrb[0].mxu0 %v818
  %v1136 = vpop.f32.mrb[0].mxu0
  %v1137 = vadd.f32 %v557, %v1136
  %v1138 = vpop.f32.mrb[0].mxu0
  %1139 = vmatprep.mubr.f32.mxu0 0.0
  %1140 = vmatmul.mubr.f32.gmra.mrb[0].mxu0 %v821
  %v1141 = vpop.f32.mrb[0].mxu0
  %v1142 = vadd.f32 %v562, %v1141
  %v1143 = vpop.f32.mrb[0].mxu0
  %1144 = vmatprep.mubr.f32.mxu0 0.0
  %1145 = vmatmul.mubr.f32.gmra.mrb[0].mxu0 %v824
  %v1146 = vpop.f32.mrb[0].mxu0
  %v1147 = vadd.f32 %v567, %v1146
  %v1148 = vpop.f32.mrb[0].mxu0
  %1149 = vmatprep.mubr.f32.mxu0 0.0
  %1150 = vmatmul.mubr.f32.gmra.mrb[0].mxu0 %v827
  %v1151 = vpop.f32.mrb[0].mxu0
  %v1152 = vadd.f32 %v572, %v1151
  %v1153 = vpop.f32.mrb[0].mxu0
  %1154 = vmatprep.mubr.f32.mxu0 0.0
  %1155 = vmatmul.mubr.f32.gmra.mrb[0].mxu0 %v830
  %v1156 = vpop.f32.mrb[0].mxu0
  %v1157 = vadd.f32 %v577, %v1156
  %v1158 = vpop.f32.mrb[0].mxu0
  %1159 = vmatprep.mubr.f32.mxu0 0.0
  %1160 = vmatmul.mubr.f32.gmra.mrb[0].mxu0 %v833
  %v1161 = vpop.f32.mrb[0].mxu0
  %v1162 = vadd.f32 %v582, %v1161
  %v1163 = vpop.f32.mrb[0].mxu0
  %1164 = vmatprep.mubr.f32.mxu0 0.0
  %1165 = vmatmul.mubr.f32.gmra.mrb[0].mxu0 %v836
  %v1166 = vpop.f32.mrb[0].mxu0
  %v1167 = vadd.f32 %v587, %v1166
  %v1168 = vpop.f32.mrb[0].mxu0
  %1169 = vmatprep.mubr.f32.mxu0 0.0
  %1170 = vmatmul.mubr.f32.gmra.mrb[0].mxu0 %v839
  %v1171 = vpop.f32.mrb[0].mxu0
  %v1172 = vadd.f32 %v592, %v1171
  %v1173 = vpop.f32.mrb[0].mxu0
  %1174 = vmatprep.mubr.f32.mxu0 0.0
  %1175 = vmatmul.mubr.f32.gmra.mrb[0].mxu0 %v842
  %v1176 = vpop.f32.mrb[0].mxu0
  %v1177 = vadd.f32 %v597, %v1176
  %v1178 = vpop.f32.mrb[0].mxu0
  %1179 = vmatprep.mubr.f32.mxu0 0.0
  %1180 = vmatmul.mubr.f32.gmra.mrb[0].mxu0 %v845
  %v1181 = vpop.f32.mrb[0].mxu0
  %v1182 = vadd.f32 %v602, %v1181
  %v1183 = vpop.f32.mrb[0].mxu0
  %1184 = vmatprep.mubr.f32.mxu0 0.0
  %1185 = vmatmul.mubr.f32.gmra.mrb[0].mxu0 %v848
  %v1186 = vpop.f32.mrb[0].mxu0
  %v1187 = vadd.f32 %v607, %v1186
  %v1188 = vpop.f32.mrb[0].mxu0
  %1189 = vmatprep.mubr.f32.mxu0 0.0
  %1190 = vmatmul.mubr.f32.gmra.mrb[0].mxu0 %v851
  %v1191 = vpop.f32.mrb[0].mxu0
  %v1192 = vadd.f32 %v612, %v1191
  %v1193 = vpop.f32.mrb[0].mxu0
  %1194 = vmatprep.mubr.f32.mxu0 0.0
  %1195 = vmatmul.mubr.f32.gmra.mrb[0].mxu0 %v854
  %v1196 = vpop.f32.mrb[0].mxu0
  %v1197 = vadd.f32 %v617, %v1196
  %v1198 = vpop.f32.mrb[0].mxu0
  %1199 = vmatprep.mubr.f32.mxu0 0.0
  %1200 = vmatmul.mubr.f32.gmra.mrb[0].mxu0 %v857
  %v1201 = vpop.f32.mrb[0].mxu0
  %v1202 = vadd.f32 %v622, %v1201
  %v1203 = vpop.f32.mrb[0].mxu0
  %1204 = vmatprep.mubr.f32.mxu0 0.0
  %1205 = vmatmul.mubr.f32.gmra.mrb[0].mxu0 %v860
  %v1206 = vpop.f32.mrb[0].mxu0
  %v1207 = vadd.f32 %v627, %v1206
  %v1208 = vpop.f32.mrb[0].mxu0
  %1209 = vmatprep.mubr.f32.mxu0 0.0
  %1210 = vmatmul.mubr.f32.gmra.mrb[0].mxu0 %v863
  %v1211 = vpop.f32.mrb[0].mxu0
  %v1212 = vadd.f32 %v632, %v1211
  %v1213 = vpop.f32.mrb[0].mxu0
  %1214 = vmatprep.mubr.f32.mxu0 0.0
  %1215 = vmatmul.mubr.f32.gmra.mrb[0].mxu0 %v866
  %v1216 = vpop.f32.mrb[0].mxu0
  %v1217 = vadd.f32 %v637, %v1216
  %v1218 = vpop.f32.mrb[0].mxu0
  %1219 = vmatprep.mubr.f32.mxu0 0.0
  %1220 = vmatmul.mubr.f32.gmra.mrb[0].mxu0 %v869
  %v1221 = vpop.f32.mrb[0].mxu0
  %v1222 = vadd.f32 %v642, %v1221
  %v1223 = vpop.f32.mrb[0].mxu0
  %1224 = vmatprep.mubr.f32.mxu0 0.0
  %1225 = vmatmul.mubr.f32.gmra.mrb[0].mxu0 %v872
  %v1226 = vpop.f32.mrb[0].mxu0
  %v1227 = vadd.f32 %v647, %v1226
  %v1228 = vpop.f32.mrb[0].mxu0
  %1229 = vmatprep.mubr.f32.mxu0 0.0
  %1230 = vmatmul.mubr.f32.gmra.mrb[0].mxu0 %v875
  %v1231 = vpop.f32.mrb[0].mxu0
  %v1232 = vadd.f32 %v652, %v1231
  %v1233 = vpop.f32.mrb[0].mxu0
  %1234 = vmatprep.mubr.f32.mxu0 0.0
  %1235 = vmatmul.mubr.f32.gmra.mrb[0].mxu0 %v878
  %v1236 = vpop.f32.mrb[0].mxu0
  %v1237 = vadd.f32 %v657, %v1236
  %v1238 = vpop.f32.mrb[0].mxu0
  %1239 = vmatprep.mubr.f32.mxu0 0.0
  %1240 = vmatmul.mubr.f32.gmra.mrb[0].mxu0 %v881
  %v1241 = vpop.f32.mrb[0].mxu0
  %v1242 = vadd.f32 %v662, %v1241
  %v1243 = vpop.f32.mrb[0].mxu0
  %1244 = vmatprep.mubr.f32.mxu0 0.0
  %1245 = vmatmul.mubr.f32.gmra.mrb[0].mxu0 %v884
  %v1246 = vpop.f32.mrb[0].mxu0
  %v1247 = vadd.f32 %v667, %v1246
  %v1248 = vpop.f32.mrb[0].mxu0
  %1249 = vmatprep.mubr.f32.mxu0 0.0
  %1250 = vmatmul.mubr.f32.gmra.mrb[0].mxu0 %v887
  %v1251 = vpop.f32.mrb[0].mxu0
  %v1252 = vadd.f32 %v672, %v1251
  %v1253 = vpop.f32.mrb[0].mxu0
  %1254 = vmatprep.mubr.f32.mxu0 0.0
  %1255 = vmatmul.mubr.f32.gmra.mrb[0].mxu0 %v890
  %v1256 = vpop.f32.mrb[0].mxu0
  %v1257 = vadd.f32 %v677, %v1256
  %v1258 = vpop.f32.mrb[0].mxu0
  %1259 = vmatprep.mubr.f32.mxu0 0.0
  %1260 = vmatmul.mubr.f32.gmra.mrb[0].mxu0 %v893
  %v1261 = vpop.f32.mrb[0].mxu0
  %v1262 = vadd.f32 %v682, %v1261
  %v1263 = vpop.f32.mrb[0].mxu0
  %1264 = vmatprep.mubr.f32.mxu0 0.0
  %1265 = vmatmul.mubr.f32.gmra.mrb[0].mxu0 %v896
  %v1266 = vpop.f32.mrb[0].mxu0
  %v1267 = vadd.f32 %v687, %v1266
  %v1268 = vpop.f32.mrb[0].mxu0
  %1269 = vmatprep.mubr.f32.mxu0 0.0
  %1270 = vmatmul.mubr.f32.gmra.mrb[0].mxu0 %v899
  %v1271 = vpop.f32.mrb[0].mxu0
  %v1272 = vadd.f32 %v692, %v1271
  %v1273 = vpop.f32.mrb[0].mxu0
  %1274 = vmatprep.mubr.f32.mxu0 0.0
  %1275 = vmatmul.mubr.f32.gmra.mrb[0].mxu0 %v902
  %v1276 = vpop.f32.mrb[0].mxu0
  %v1277 = vadd.f32 %v697, %v1276
  %v1278 = vpop.f32.mrb[0].mxu0
  %1279 = vmatprep.mubr.f32.mxu0 0.0
  %1280 = vmatmul.mubr.f32.gmra.mrb[0].mxu0 %v905
  %v1281 = vpop.f32.mrb[0].mxu0
  %v1282 = vadd.f32 %v702, %v1281
  %v1283 = vpop.f32.mrb[0].mxu0
  %1284 = vmatprep.mubr.f32.mxu0 0.0
  %1285 = vmatmul.mubr.f32.gmra.mrb[0].mxu0 %v908
  %v1286 = vpop.f32.mrb[0].mxu0
  %v1287 = vadd.f32 %v707, %v1286
  %v1288 = vpop.f32.mrb[0].mxu0
  %1289 = vmatprep.mubr.f32.mxu0 0.0
  %1290 = vmatmul.mubr.f32.gmra.mrb[0].mxu0 %v911
  %v1291 = vpop.f32.mrb[0].mxu0
  %v1292 = vadd.f32 %v712, %v1291
  %v1293 = vpop.f32.mrb[0].mxu0
  %1294 = vmatprep.mubr.f32.mxu0 0.0
  %1295 = vmatmul.mubr.f32.gmra.mrb[0].mxu0 %v914
  %v1296 = vpop.f32.mrb[0].mxu0
  %v1297 = vadd.f32 %v717, %v1296
  %v1298 = vpop.f32.mrb[0].mxu0
  %1299 = vmatprep.mubr.f32.mxu0 0.0
  %1300 = vmatmul.mubr.f32.gmra.mrb[0].mxu0 %v917
  %v1301 = vpop.f32.mrb[0].mxu0
  %v1302 = vadd.f32 %v722, %v1301
  %v1303 = vpop.f32.mrb[0].mxu0
  %1304 = vmatprep.mubr.f32.mxu0 0.0
  %1305 = vmatmul.mubr.f32.gmra.mrb[0].mxu0 %v920
  %v1306 = vpop.f32.mrb[0].mxu0
  %v1307 = vadd.f32 %v727, %v1306
  %v1308 = vpop.f32.mrb[0].mxu0
  %1309 = vdwg.mxu0
  %v1310 = vld [vmem:[%s0 + $0x2] sm:$0xff]
  %v1311 = vld [vmem:[%s0 + $0xa] sm:$0xff]
  %v1312 = vld [vmem:[%s0 + $0x1a] sm:$0xff]
  %v1313 = vld [vmem:[%s0 + $0x22] sm:$0xff]
  %v1314 = vld [vmem:[%s0 + $0x32] sm:$0xff]
  %v1315 = vld [vmem:[%s0 + $0x3a] sm:$0xff]
  %v1316 = vld [vmem:[%s0 + $0x4a] sm:$0xff]
  %v1317 = vld [vmem:[%s0 + $0x52] sm:$0xff]
  %v1318 = vld [vmem:[%s0 + $0x62] sm:$0xff]
  %v1319 = vld [vmem:[%s0 + $0x6a] sm:$0xff]
  %v1320 = vld [vmem:[%s0 + $0x7a] sm:$0xff]
  %v1321 = vld [vmem:[%s0 + $0x82] sm:$0xff]
  %v1322 = vld [vmem:[%s0 + $0x92] sm:$0xff]
  %v1323 = vld [vmem:[%s0 + $0x9a] sm:$0xff]
  %v1324 = vld [vmem:[%s0 + $0xaa] sm:$0xff]
  %v1325 = vld [vmem:[%s0 + $0xb2] sm:$0xff]
  %v1326 = vld [vmem:[%s0 + $0xc2] sm:$0xff]
  %v1327 = vld [vmem:[%s0 + $0xca] sm:$0xff]
  %v1328 = vld [vmem:[%s0 + $0xda] sm:$0xff]
  %v1329 = vld [vmem:[%s0 + $0xe2] sm:$0xff]
  %v1330 = vld [vmem:[%s0 + $0xf2] sm:$0xff]
  %v1331 = vld [vmem:[%s0 + $0xfa] sm:$0xff]
  %v1332 = vld [vmem:[%s0 + $0x10a] sm:$0xff]
  %v1333 = vld [vmem:[%s0 + $0x112] sm:$0xff]
  %v1334 = vld [vmem:[%s0 + $0x122] sm:$0xff]
  %v1335 = vld [vmem:[%s0 + $0x12a] sm:$0xff]
  %v1336 = vld [vmem:[%s0 + $0x13a] sm:$0xff]
  %v1337 = vld [vmem:[%s0 + $0x142] sm:$0xff]
  %v1338 = vld [vmem:[%s0 + $0x152] sm:$0xff]
  %v1339 = vld [vmem:[%s0 + $0x15a] sm:$0xff]
  %v1340 = vld [vmem:[%s0 + $0x16a] sm:$0xff]
  %v1341 = vld [vmem:[%s0 + $0x172] sm:$0xff]
  %v1342 = vld [vmem:[%s0 + $0x1b2] sm:$0xff]
  %v1343 = vld [vmem:[%s0 + $0x1ba] sm:$0xff]
  %v1344 = vld [vmem:[%s0 + $0x1ca] sm:$0xff]
  %v1345 = vld [vmem:[%s0 + $0x1d2] sm:$0xff]
  %v1346 = vld [vmem:[%s0 + $0x1e2] sm:$0xff]
  %v1347 = vld [vmem:[%s0 + $0x1ea] sm:$0xff]
  %v1348 = vld [vmem:[%s0 + $0x1fa] sm:$0xff]
  %v1349 = vld [vmem:[%s0 + $0x202] sm:$0xff]
  %v1350 = vld [vmem:[%s0 + $0x212] sm:$0xff]
  %v1351 = vld [vmem:[%s0 + $0x21a] sm:$0xff]
  %v1352 = vld [vmem:[%s0 + $0x22a] sm:$0xff]
  %v1353 = vld [vmem:[%s0 + $0x232] sm:$0xff]
  %v1354 = vld [vmem:[%s0 + $0x242] sm:$0xff]
  %v1355 = vld [vmem:[%s0 + $0x24a] sm:$0xff]
  %v1356 = vld [vmem:[%s0 + $0x25a] sm:$0xff]
  %v1357 = vld [vmem:[%s0 + $0x262] sm:$0xff]
  %v1358 = vld [vmem:[%s0 + $0x272] sm:$0xff]
  %v1359 = vld [vmem:[%s0 + $0x27a] sm:$0xff]
  %v1360 = vld [vmem:[%s0 + $0x28a] sm:$0xff]
  %v1361 = vld [vmem:[%s0 + $0x292] sm:$0xff]
  %v1362 = vld [vmem:[%s0 + $0x2a2] sm:$0xff]
  %v1363 = vld [vmem:[%s0 + $0x2aa] sm:$0xff]
  %v1364 = vld [vmem:[%s0 + $0x2ba] sm:$0xff]
  %v1365 = vld [vmem:[%s0 + $0x2c2] sm:$0xff]
  %v1366 = vld [vmem:[%s0 + $0x2d2] sm:$0xff]
  %v1367 = vld [vmem:[%s0 + $0x2da] sm:$0xff]
  %v1368 = vld [vmem:[%s0 + $0x2ea] sm:$0xff]
  %v1369 = vld [vmem:[%s0 + $0x2f2] sm:$0xff]
  %v1370 = vld [vmem:[%s0 + $0x302] sm:$0xff]
  %v1371 = vld [vmem:[%s0 + $0x30a] sm:$0xff]
  %v1372 = vld [vmem:[%s0 + $0x31a] sm:$0xff]
  %v1373 = vld [vmem:[%s0 + $0x322] sm:$0xff]
  %s1374 = scalar_lea.vmem %s1, 8
  %v1375 = vld [vmem:[%s1374] sm:$0xf]
  %v1377 = vsel %vm148, %v1310, 0
  %v1380 = vsel %vm148, %v1311, 0
  %v1383 = vsel %vm148, %v1312, 0
  %v1386 = vsel %vm148, %v1313, 0
  %v1389 = vsel %vm148, %v1314, 0
  %v1392 = vsel %vm148, %v1315, 0
  %v1395 = vsel %vm148, %v1316, 0
  %v1398 = vsel %vm148, %v1317, 0
  %v1401 = vsel %vm148, %v1318, 0
  %v1404 = vsel %vm148, %v1319, 0
  %v1407 = vsel %vm148, %v1320, 0
  %v1410 = vsel %vm148, %v1321, 0
  %v1413 = vsel %vm148, %v1322, 0
  %v1416 = vsel %vm148, %v1323, 0
  %v1419 = vsel %vm148, %v1324, 0
  %v1422 = vsel %vm148, %v1325, 0
  %v1425 = vsel %vm148, %v1326, 0
  %v1428 = vsel %vm148, %v1327, 0
  %v1431 = vsel %vm148, %v1328, 0
  %v1434 = vsel %vm148, %v1329, 0
  %v1437 = vsel %vm148, %v1330, 0
  %v1440 = vsel %vm148, %v1331, 0
  %v1443 = vsel %vm148, %v1332, 0
  %v1446 = vsel %vm148, %v1333, 0
  %v1449 = vsel %vm148, %v1334, 0
  %v1452 = vsel %vm148, %v1335, 0
  %v1455 = vsel %vm148, %v1336, 0
  %v1458 = vsel %vm148, %v1337, 0
  %v1461 = vsel %vm148, %v1338, 0
  %v1464 = vsel %vm148, %v1339, 0
  %v1467 = vsel %vm148, %v1340, 0
  %v1470 = vsel %vm148, %v1341, 0
  %v1473 = vsel %vm148, %v1342, 0
  %v1476 = vsel %vm148, %v1343, 0
  %v1479 = vsel %vm148, %v1344, 0
  %v1482 = vsel %vm148, %v1345, 0
  %v1485 = vsel %vm148, %v1346, 0
  %v1488 = vsel %vm148, %v1347, 0
  %v1491 = vsel %vm148, %v1348, 0
  %v1494 = vsel %vm148, %v1349, 0
  %v1497 = vsel %vm148, %v1350, 0
  %v1500 = vsel %vm148, %v1351, 0
  %v1503 = vsel %vm148, %v1352, 0
  %v1506 = vsel %vm148, %v1353, 0
  %v1509 = vsel %vm148, %v1354, 0
  %v1512 = vsel %vm148, %v1355, 0
  %v1515 = vsel %vm148, %v1356, 0
  %v1518 = vsel %vm148, %v1357, 0
  %v1521 = vsel %vm148, %v1358, 0
  %v1524 = vsel %vm148, %v1359, 0
  %v1527 = vsel %vm148, %v1360, 0
  %v1530 = vsel %vm148, %v1361, 0
  %v1533 = vsel %vm148, %v1362, 0
  %v1536 = vsel %vm148, %v1363, 0
  %v1539 = vsel %vm148, %v1364, 0
  %v1542 = vsel %vm148, %v1365, 0
  %v1545 = vsel %vm148, %v1366, 0
  %v1548 = vsel %vm148, %v1367, 0
  %v1551 = vsel %vm148, %v1368, 0
  %v1554 = vsel %vm148, %v1369, 0
  %v1557 = vsel %vm148, %v1370, 0
  %v1560 = vsel %vm148, %v1371, 0
  %v1563 = vsel %vm148, %v1372, 0
  %v1566 = vsel %vm148, %v1373, 0
  %v1569 = vsel %vm341, %v1375, 0
  %1571 = vmatprep.subr.mxu0 0.0
  %1572 = vmatpush1.msra.mxu0 %v1569
  %1573 = vmatprep.subr.mxu0 0.0
  %1574 = vmatpush1.msra.mxu0 0.0
  %1575 = vmatprep.subr.mxu0 0.0
  %1576 = vmatpush1.msra.mxu0 0.0
  %1577 = vmatprep.subr.mxu0 0.0
  %1578 = vmatpush1.msra.mxu0 0.0
  %1579 = vmatprep.subr.mxu0 0.0
  %1580 = vmatpush1.msra.mxu0 0.0
  %1581 = vmatprep.subr.mxu0 0.0
  %1582 = vmatpush1.msra.mxu0 0.0
  %1583 = vmatprep.subr.mxu0 0.0
  %1584 = vmatpush1.msra.mxu0 0.0
  %1585 = vmatprep.subr.mxu0 0.0
  %1586 = vmatpush1.msra.mxu0 0.0
  %1587 = vmatprep.subr.mxu0 0.0
  %1588 = vmatpush1.msra.mxu0 0.0
  %1589 = vmatprep.subr.mxu0 0.0
  %1590 = vmatpush1.msra.mxu0 0.0
  %1591 = vmatprep.subr.mxu0 0.0
  %1592 = vmatpush1.msra.mxu0 0.0
  %1593 = vmatprep.subr.mxu0 0.0
  %1594 = vmatpush1.msra.mxu0 0.0
  %1595 = vmatprep.subr.mxu0 0.0
  %1596 = vmatpush1.msra.mxu0 0.0
  %1597 = vmatprep.subr.mxu0 0.0
  %1598 = vmatpush1.msra.mxu0 0.0
  %1599 = vmatprep.subr.mxu0 0.0
  %1600 = vmatpush1.msra.mxu0 0.0
  %1601 = vmatprep.subr.mxu0 0.0
  %1602 = vmatpush1.msra.mxu0 0.0
  %1603 = vmatprep.subr.mxu0 0.0
  %1604 = vmatpush1.msra.mxu0 0.0
  %1605 = vmatprep.subr.mxu0 0.0
  %1606 = vmatpush1.msra.mxu0 0.0
  %1607 = vmatprep.subr.mxu0 0.0
  %1608 = vmatpush1.msra.mxu0 0.0
  %1609 = vmatprep.subr.mxu0 0.0
  %1610 = vmatpush1.msra.mxu0 0.0
  %1611 = vmatprep.subr.mxu0 0.0
  %1612 = vmatpush1.msra.mxu0 0.0
  %1613 = vmatprep.subr.mxu0 0.0
  %1614 = vmatpush1.msra.mxu0 0.0
  %1615 = vmatprep.subr.mxu0 0.0
  %1616 = vmatpush1.msra.mxu0 0.0
  %1617 = vmatprep.subr.mxu0 0.0
  %1618 = vmatpush1.msra.mxu0 0.0
  %1619 = vmatprep.subr.mxu0 0.0
  %1620 = vmatpush1.msra.mxu0 0.0
  %1621 = vmatprep.subr.mxu0 0.0
  %1622 = vmatpush1.msra.mxu0 0.0
  %1623 = vmatprep.subr.mxu0 0.0
  %1624 = vmatpush1.msra.mxu0 0.0
  %1625 = vmatprep.subr.mxu0 0.0
  %1626 = vmatpush1.msra.mxu0 0.0
  %1627 = vmatprep.subr.mxu0 0.0
  %1628 = vmatpush1.msra.mxu0 0.0
  %1629 = vmatprep.subr.mxu0 0.0
  %1630 = vmatpush1.msra.mxu0 0.0
  %1631 = vmatprep.subr.mxu0 0.0
  %1632 = vmatpush1.msra.mxu0 0.0
  %1633 = vmatprep.subr.mxu0 0.0
  %1634 = vmatpush1.msra.mxu0 0.0
  %1635 = vmatprep.mubr.f32.mxu0 0.0
  %1636 = vmatmul.mubr.f32.gmra.mrb[0].mxu0 %v1377
  %v1637 = vpop.f32.mrb[0].mxu0
  %v1638 = vadd.f32 0.0, %v1637
  %v1639 = vpop.f32.mrb[0].mxu0
  %1640 = vmatprep.mubr.f32.mxu0 0.0
  %1641 = vmatmul.mubr.f32.gmra.mrb[0].mxu0 %v1380
  %v1642 = vpop.f32.mrb[0].mxu0
  %v1643 = vadd.f32 0.0, %v1642
  %v1644 = vpop.f32.mrb[0].mxu0
  %1645 = vmatprep.mubr.f32.mxu0 0.0
  %1646 = vmatmul.mubr.f32.gmra.mrb[0].mxu0 %v1383
  %v1647 = vpop.f32.mrb[0].mxu0
  %v1648 = vadd.f32 0.0, %v1647
  %v1649 = vpop.f32.mrb[0].mxu0
  %1650 = vmatprep.mubr.f32.mxu0 0.0
  %1651 = vmatmul.mubr.f32.gmra.mrb[0].mxu0 %v1386
  %v1652 = vpop.f32.mrb[0].mxu0
  %v1653 = vadd.f32 0.0, %v1652
  %v1654 = vpop.f32.mrb[0].mxu0
  %1655 = vmatprep.mubr.f32.mxu0 0.0
  %1656 = vmatmul.mubr.f32.gmra.mrb[0].mxu0 %v1389
  %v1657 = vpop.f32.mrb[0].mxu0
  %v1658 = vadd.f32 0.0, %v1657
  %v1659 = vpop.f32.mrb[0].mxu0
  %1660 = vmatprep.mubr.f32.mxu0 0.0
  %1661 = vmatmul.mubr.f32.gmra.mrb[0].mxu0 %v1392
  %v1662 = vpop.f32.mrb[0].mxu0
  %v1663 = vadd.f32 0.0, %v1662
  %v1664 = vpop.f32.mrb[0].mxu0
  %1665 = vmatprep.mubr.f32.mxu0 0.0
  %1666 = vmatmul.mubr.f32.gmra.mrb[0].mxu0 %v1395
  %v1667 = vpop.f32.mrb[0].mxu0
  %v1668 = vadd.f32 0.0, %v1667
  %v1669 = vpop.f32.mrb[0].mxu0
  %1670 = vmatprep.mubr.f32.mxu0 0.0
  %1671 = vmatmul.mubr.f32.gmra.mrb[0].mxu0 %v1398
  %v1672 = vpop.f32.mrb[0].mxu0
  %v1673 = vadd.f32 0.0, %v1672
  %v1674 = vpop.f32.mrb[0].mxu0
  %1675 = vmatprep.mubr.f32.mxu0 0.0
  %1676 = vmatmul.mubr.f32.gmra.mrb[0].mxu0 %v1401
  %v1677 = vpop.f32.mrb[0].mxu0
  %v1678 = vadd.f32 0.0, %v1677
  %v1679 = vpop.f32.mrb[0].mxu0
  %1680 = vmatprep.mubr.f32.mxu0 0.0
  %1681 = vmatmul.mubr.f32.gmra.mrb[0].mxu0 %v1404
  %v1682 = vpop.f32.mrb[0].mxu0
  %v1683 = vadd.f32 0.0, %v1682
  %v1684 = vpop.f32.mrb[0].mxu0
  %1685 = vmatprep.mubr.f32.mxu0 0.0
  %1686 = vmatmul.mubr.f32.gmra.mrb[0].mxu0 %v1407
  %v1687 = vpop.f32.mrb[0].mxu0
  %v1688 = vadd.f32 0.0, %v1687
  %v1689 = vpop.f32.mrb[0].mxu0
  %1690 = vmatprep.mubr.f32.mxu0 0.0
  %1691 = vmatmul.mubr.f32.gmra.mrb[0].mxu0 %v1410
  %v1692 = vpop.f32.mrb[0].mxu0
  %v1693 = vadd.f32 0.0, %v1692
  %v1694 = vpop.f32.mrb[0].mxu0
  %1695 = vmatprep.mubr.f32.mxu0 0.0
  %1696 = vmatmul.mubr.f32.gmra.mrb[0].mxu0 %v1413
  %v1697 = vpop.f32.mrb[0].mxu0
  %v1698 = vadd.f32 0.0, %v1697
  %v1699 = vpop.f32.mrb[0].mxu0
  %1700 = vmatprep.mubr.f32.mxu0 0.0
  %1701 = vmatmul.mubr.f32.gmra.mrb[0].mxu0 %v1416
  %v1702 = vpop.f32.mrb[0].mxu0
  %v1703 = vadd.f32 0.0, %v1702
  %v1704 = vpop.f32.mrb[0].mxu0
  %1705 = vmatprep.mubr.f32.mxu0 0.0
  %1706 = vmatmul.mubr.f32.gmra.mrb[0].mxu0 %v1419
  %v1707 = vpop.f32.mrb[0].mxu0
  %v1708 = vadd.f32 0.0, %v1707
  %v1709 = vpop.f32.mrb[0].mxu0
  %1710 = vmatprep.mubr.f32.mxu0 0.0
  %1711 = vmatmul.mubr.f32.gmra.mrb[0].mxu0 %v1422
  %v1712 = vpop.f32.mrb[0].mxu0
  %v1713 = vadd.f32 0.0, %v1712
  %v1714 = vpop.f32.mrb[0].mxu0
  %1715 = vmatprep.mubr.f32.mxu0 0.0
  %1716 = vmatmul.mubr.f32.gmra.mrb[0].mxu0 %v1425
  %v1717 = vpop.f32.mrb[0].mxu0
  %v1718 = vadd.f32 0.0, %v1717
  %v1719 = vpop.f32.mrb[0].mxu0
  %1720 = vmatprep.mubr.f32.mxu0 0.0
  %1721 = vmatmul.mubr.f32.gmra.mrb[0].mxu0 %v1428
  %v1722 = vpop.f32.mrb[0].mxu0
  %v1723 = vadd.f32 0.0, %v1722
  %v1724 = vpop.f32.mrb[0].mxu0
  %1725 = vmatprep.mubr.f32.mxu0 0.0
  %1726 = vmatmul.mubr.f32.gmra.mrb[0].mxu0 %v1431
  %v1727 = vpop.f32.mrb[0].mxu0
  %v1728 = vadd.f32 0.0, %v1727
  %v1729 = vpop.f32.mrb[0].mxu0
  %1730 = vmatprep.mubr.f32.mxu0 0.0
  %1731 = vmatmul.mubr.f32.gmra.mrb[0].mxu0 %v1434
  %v1732 = vpop.f32.mrb[0].mxu0
  %v1733 = vadd.f32 0.0, %v1732
  %v1734 = vpop.f32.mrb[0].mxu0
  %1735 = vmatprep.mubr.f32.mxu0 0.0
  %1736 = vmatmul.mubr.f32.gmra.mrb[0].mxu0 %v1437
  %v1737 = vpop.f32.mrb[0].mxu0
  %v1738 = vadd.f32 0.0, %v1737
  %v1739 = vpop.f32.mrb[0].mxu0
  %1740 = vmatprep.mubr.f32.mxu0 0.0
  %1741 = vmatmul.mubr.f32.gmra.mrb[0].mxu0 %v1440
  %v1742 = vpop.f32.mrb[0].mxu0
  %v1743 = vadd.f32 0.0, %v1742
  %v1744 = vpop.f32.mrb[0].mxu0
  %1745 = vmatprep.mubr.f32.mxu0 0.0
  %1746 = vmatmul.mubr.f32.gmra.mrb[0].mxu0 %v1443
  %v1747 = vpop.f32.mrb[0].mxu0
  %v1748 = vadd.f32 0.0, %v1747
  %v1749 = vpop.f32.mrb[0].mxu0
  %1750 = vmatprep.mubr.f32.mxu0 0.0
  %1751 = vmatmul.mubr.f32.gmra.mrb[0].mxu0 %v1446
  %v1752 = vpop.f32.mrb[0].mxu0
  %v1753 = vadd.f32 0.0, %v1752
  %v1754 = vpop.f32.mrb[0].mxu0
  %1755 = vmatprep.mubr.f32.mxu0 0.0
  %1756 = vmatmul.mubr.f32.gmra.mrb[0].mxu0 %v1449
  %v1757 = vpop.f32.mrb[0].mxu0
  %v1758 = vadd.f32 0.0, %v1757
  %v1759 = vpop.f32.mrb[0].mxu0
  %1760 = vmatprep.mubr.f32.mxu0 0.0
  %1761 = vmatmul.mubr.f32.gmra.mrb[0].mxu0 %v1452
  %v1762 = vpop.f32.mrb[0].mxu0
  %v1763 = vadd.f32 0.0, %v1762
  %v1764 = vpop.f32.mrb[0].mxu0
  %1765 = vmatprep.mubr.f32.mxu0 0.0
  %1766 = vmatmul.mubr.f32.gmra.mrb[0].mxu0 %v1455
  %v1767 = vpop.f32.mrb[0].mxu0
  %v1768 = vadd.f32 0.0, %v1767
  %v1769 = vpop.f32.mrb[0].mxu0
  %1770 = vmatprep.mubr.f32.mxu0 0.0
  %1771 = vmatmul.mubr.f32.gmra.mrb[0].mxu0 %v1458
  %v1772 = vpop.f32.mrb[0].mxu0
  %v1773 = vadd.f32 0.0, %v1772
  %v1774 = vpop.f32.mrb[0].mxu0
  %1775 = vmatprep.mubr.f32.mxu0 0.0
  %1776 = vmatmul.mubr.f32.gmra.mrb[0].mxu0 %v1461
  %v1777 = vpop.f32.mrb[0].mxu0
  %v1778 = vadd.f32 0.0, %v1777
  %v1779 = vpop.f32.mrb[0].mxu0
  %1780 = vmatprep.mubr.f32.mxu0 0.0
  %1781 = vmatmul.mubr.f32.gmra.mrb[0].mxu0 %v1464
  %v1782 = vpop.f32.mrb[0].mxu0
  %v1783 = vadd.f32 0.0, %v1782
  %v1784 = vpop.f32.mrb[0].mxu0
  %1785 = vmatprep.mubr.f32.mxu0 0.0
  %1786 = vmatmul.mubr.f32.gmra.mrb[0].mxu0 %v1467
  %v1787 = vpop.f32.mrb[0].mxu0
  %v1788 = vadd.f32 0.0, %v1787
  %v1789 = vpop.f32.mrb[0].mxu0
  %1790 = vmatprep.mubr.f32.mxu0 0.0
  %1791 = vmatmul.mubr.f32.gmra.mrb[0].mxu0 %v1470
  %v1792 = vpop.f32.mrb[0].mxu0
  %v1793 = vadd.f32 0.0, %v1792
  %v1794 = vpop.f32.mrb[0].mxu0
  %1795 = vmatprep.mubr.f32.mxu0 0.0
  %1796 = vmatmul.mubr.f32.gmra.mrb[0].mxu0 %v1473
  %v1797 = vpop.f32.mrb[0].mxu0
  %v1798 = vadd.f32 0.0, %v1797
  %v1799 = vpop.f32.mrb[0].mxu0
  %1800 = vmatprep.mubr.f32.mxu0 0.0
  %1801 = vmatmul.mubr.f32.gmra.mrb[0].mxu0 %v1476
  %v1802 = vpop.f32.mrb[0].mxu0
  %v1803 = vadd.f32 0.0, %v1802
  %v1804 = vpop.f32.mrb[0].mxu0
  %1805 = vmatprep.mubr.f32.mxu0 0.0
  %1806 = vmatmul.mubr.f32.gmra.mrb[0].mxu0 %v1479
  %v1807 = vpop.f32.mrb[0].mxu0
  %v1808 = vadd.f32 0.0, %v1807
  %v1809 = vpop.f32.mrb[0].mxu0
  %1810 = vmatprep.mubr.f32.mxu0 0.0
  %1811 = vmatmul.mubr.f32.gmra.mrb[0].mxu0 %v1482
  %v1812 = vpop.f32.mrb[0].mxu0
  %v1813 = vadd.f32 0.0, %v1812
  %v1814 = vpop.f32.mrb[0].mxu0
  %1815 = vmatprep.mubr.f32.mxu0 0.0
  %1816 = vmatmul.mubr.f32.gmra.mrb[0].mxu0 %v1485
  %v1817 = vpop.f32.mrb[0].mxu0
  %v1818 = vadd.f32 0.0, %v1817
  %v1819 = vpop.f32.mrb[0].mxu0
  %1820 = vmatprep.mubr.f32.mxu0 0.0
  %1821 = vmatmul.mubr.f32.gmra.mrb[0].mxu0 %v1488
  %v1822 = vpop.f32.mrb[0].mxu0
  %v1823 = vadd.f32 0.0, %v1822
  %v1824 = vpop.f32.mrb[0].mxu0
  %1825 = vmatprep.mubr.f32.mxu0 0.0
  %1826 = vmatmul.mubr.f32.gmra.mrb[0].mxu0 %v1491
  %v1827 = vpop.f32.mrb[0].mxu0
  %v1828 = vadd.f32 0.0, %v1827
  %v1829 = vpop.f32.mrb[0].mxu0
  %1830 = vmatprep.mubr.f32.mxu0 0.0
  %1831 = vmatmul.mubr.f32.gmra.mrb[0].mxu0 %v1494
  %v1832 = vpop.f32.mrb[0].mxu0
  %v1833 = vadd.f32 0.0, %v1832
  %v1834 = vpop.f32.mrb[0].mxu0
  %1835 = vmatprep.mubr.f32.mxu0 0.0
  %1836 = vmatmul.mubr.f32.gmra.mrb[0].mxu0 %v1497
  %v1837 = vpop.f32.mrb[0].mxu0
  %v1838 = vadd.f32 0.0, %v1837
  %v1839 = vpop.f32.mrb[0].mxu0
  %1840 = vmatprep.mubr.f32.mxu0 0.0
  %1841 = vmatmul.mubr.f32.gmra.mrb[0].mxu0 %v1500
  %v1842 = vpop.f32.mrb[0].mxu0
  %v1843 = vadd.f32 0.0, %v1842
  %v1844 = vpop.f32.mrb[0].mxu0
  %1845 = vmatprep.mubr.f32.mxu0 0.0
  %1846 = vmatmul.mubr.f32.gmra.mrb[0].mxu0 %v1503
  %v1847 = vpop.f32.mrb[0].mxu0
  %v1848 = vadd.f32 0.0, %v1847
  %v1849 = vpop.f32.mrb[0].mxu0
  %1850 = vmatprep.mubr.f32.mxu0 0.0
  %1851 = vmatmul.mubr.f32.gmra.mrb[0].mxu0 %v1506
  %v1852 = vpop.f32.mrb[0].mxu0
  %v1853 = vadd.f32 0.0, %v1852
  %v1854 = vpop.f32.mrb[0].mxu0
  %1855 = vmatprep.mubr.f32.mxu0 0.0
  %1856 = vmatmul.mubr.f32.gmra.mrb[0].mxu0 %v1509
  %v1857 = vpop.f32.mrb[0].mxu0
  %v1858 = vadd.f32 0.0, %v1857
  %v1859 = vpop.f32.mrb[0].mxu0
  %1860 = vmatprep.mubr.f32.mxu0 0.0
  %1861 = vmatmul.mubr.f32.gmra.mrb[0].mxu0 %v1512
  %v1862 = vpop.f32.mrb[0].mxu0
  %v1863 = vadd.f32 0.0, %v1862
  %v1864 = vpop.f32.mrb[0].mxu0
  %1865 = vmatprep.mubr.f32.mxu0 0.0
  %1866 = vmatmul.mubr.f32.gmra.mrb[0].mxu0 %v1515
  %v1867 = vpop.f32.mrb[0].mxu0
  %v1868 = vadd.f32 0.0, %v1867
  %v1869 = vpop.f32.mrb[0].mxu0
  %1870 = vmatprep.mubr.f32.mxu0 0.0
  %1871 = vmatmul.mubr.f32.gmra.mrb[0].mxu0 %v1518
  %v1872 = vpop.f32.mrb[0].mxu0
  %v1873 = vadd.f32 0.0, %v1872
  %v1874 = vpop.f32.mrb[0].mxu0
  %1875 = vmatprep.mubr.f32.mxu0 0.0
  %1876 = vmatmul.mubr.f32.gmra.mrb[0].mxu0 %v1521
  %v1877 = vpop.f32.mrb[0].mxu0
  %v1878 = vadd.f32 0.0, %v1877
  %v1879 = vpop.f32.mrb[0].mxu0
  %1880 = vmatprep.mubr.f32.mxu0 0.0
  %1881 = vmatmul.mubr.f32.gmra.mrb[0].mxu0 %v1524
  %v1882 = vpop.f32.mrb[0].mxu0
  %v1883 = vadd.f32 0.0, %v1882
  %v1884 = vpop.f32.mrb[0].mxu0
  %1885 = vmatprep.mubr.f32.mxu0 0.0
  %1886 = vmatmul.mubr.f32.gmra.mrb[0].mxu0 %v1527
  %v1887 = vpop.f32.mrb[0].mxu0
  %v1888 = vadd.f32 0.0, %v1887
  %v1889 = vpop.f32.mrb[0].mxu0
  %1890 = vmatprep.mubr.f32.mxu0 0.0
  %1891 = vmatmul.mubr.f32.gmra.mrb[0].mxu0 %v1530
  %v1892 = vpop.f32.mrb[0].mxu0
  %v1893 = vadd.f32 0.0, %v1892
  %v1894 = vpop.f32.mrb[0].mxu0
  %1895 = vmatprep.mubr.f32.mxu0 0.0
  %1896 = vmatmul.mubr.f32.gmra.mrb[0].mxu0 %v1533
  %v1897 = vpop.f32.mrb[0].mxu0
  %v1898 = vadd.f32 0.0, %v1897
  %v1899 = vpop.f32.mrb[0].mxu0
  %1900 = vmatprep.mubr.f32.mxu0 0.0
  %1901 = vmatmul.mubr.f32.gmra.mrb[0].mxu0 %v1536
  %v1902 = vpop.f32.mrb[0].mxu0
  %v1903 = vadd.f32 0.0, %v1902
  %v1904 = vpop.f32.mrb[0].mxu0
  %1905 = vmatprep.mubr.f32.mxu0 0.0
  %1906 = vmatmul.mubr.f32.gmra.mrb[0].mxu0 %v1539
  %v1907 = vpop.f32.mrb[0].mxu0
  %v1908 = vadd.f32 0.0, %v1907
  %v1909 = vpop.f32.mrb[0].mxu0
  %1910 = vmatprep.mubr.f32.mxu0 0.0
  %1911 = vmatmul.mubr.f32.gmra.mrb[0].mxu0 %v1542
  %v1912 = vpop.f32.mrb[0].mxu0
  %v1913 = vadd.f32 0.0, %v1912
  %v1914 = vpop.f32.mrb[0].mxu0
  %1915 = vmatprep.mubr.f32.mxu0 0.0
  %1916 = vmatmul.mubr.f32.gmra.mrb[0].mxu0 %v1545
  %v1917 = vpop.f32.mrb[0].mxu0
  %v1918 = vadd.f32 0.0, %v1917
  %v1919 = vpop.f32.mrb[0].mxu0
  %1920 = vmatprep.mubr.f32.mxu0 0.0
  %1921 = vmatmul.mubr.f32.gmra.mrb[0].mxu0 %v1548
  %v1922 = vpop.f32.mrb[0].mxu0
  %v1923 = vadd.f32 0.0, %v1922
  %v1924 = vpop.f32.mrb[0].mxu0
  %1925 = vmatprep.mubr.f32.mxu0 0.0
  %1926 = vmatmul.mubr.f32.gmra.mrb[0].mxu0 %v1551
  %v1927 = vpop.f32.mrb[0].mxu0
  %v1928 = vadd.f32 0.0, %v1927
  %v1929 = vpop.f32.mrb[0].mxu0
  %1930 = vmatprep.mubr.f32.mxu0 0.0
  %1931 = vmatmul.mubr.f32.gmra.mrb[0].mxu0 %v1554
  %v1932 = vpop.f32.mrb[0].mxu0
  %v1933 = vadd.f32 0.0, %v1932
  %v1934 = vpop.f32.mrb[0].mxu0
  %1935 = vmatprep.mubr.f32.mxu0 0.0
  %1936 = vmatmul.mubr.f32.gmra.mrb[0].mxu0 %v1557
  %v1937 = vpop.f32.mrb[0].mxu0
  %v1938 = vadd.f32 0.0, %v1937
  %v1939 = vpop.f32.mrb[0].mxu0
  %1940 = vmatprep.mubr.f32.mxu0 0.0
  %1941 = vmatmul.mubr.f32.gmra.mrb[0].mxu0 %v1560
  %v1942 = vpop.f32.mrb[0].mxu0
  %v1943 = vadd.f32 0.0, %v1942
  %v1944 = vpop.f32.mrb[0].mxu0
  %1945 = vmatprep.mubr.f32.mxu0 0.0
  %1946 = vmatmul.mubr.f32.gmra.mrb[0].mxu0 %v1563
  %v1947 = vpop.f32.mrb[0].mxu0
  %v1948 = vadd.f32 0.0, %v1947
  %v1949 = vpop.f32.mrb[0].mxu0
  %1950 = vmatprep.mubr.f32.mxu0 0.0
  %1951 = vmatmul.mubr.f32.gmra.mrb[0].mxu0 %v1566
  %v1952 = vpop.f32.mrb[0].mxu0
  %v1953 = vadd.f32 0.0, %v1952
  %v1954 = vpop.f32.mrb[0].mxu0
  %1955 = vdwg.mxu0
  %v1956 = vadd.f32 %v992, %v1638
  %v1957 = vadd.f32 %v997, %v1643
  %v1958 = vadd.f32 %v1002, %v1648
  %v1959 = vadd.f32 %v1007, %v1653
  %v1960 = vadd.f32 %v1012, %v1658
  %v1961 = vadd.f32 %v1017, %v1663
  %v1962 = vadd.f32 %v1022, %v1668
  %v1963 = vadd.f32 %v1027, %v1673
  %v1964 = vadd.f32 %v1032, %v1678
  %v1965 = vadd.f32 %v1037, %v1683
  %v1966 = vadd.f32 %v1042, %v1688
  %v1967 = vadd.f32 %v1047, %v1693
  %v1968 = vadd.f32 %v1052, %v1698
  %v1969 = vadd.f32 %v1057, %v1703
  %v1970 = vadd.f32 %v1062, %v1708
  %v1971 = vadd.f32 %v1067, %v1713
  %v1972 = vadd.f32 %v1072, %v1718
  %v1973 = vadd.f32 %v1077, %v1723
  %v1974 = vadd.f32 %v1082, %v1728
  %v1975 = vadd.f32 %v1087, %v1733
  %v1976 = vadd.f32 %v1092, %v1738
  %v1977 = vadd.f32 %v1097, %v1743
  %v1978 = vadd.f32 %v1102, %v1748
  %v1979 = vadd.f32 %v1107, %v1753
  %v1980 = vadd.f32 %v1112, %v1758
  %v1981 = vadd.f32 %v1117, %v1763
  %v1982 = vadd.f32 %v1122, %v1768
  %v1983 = vadd.f32 %v1127, %v1773
  %v1984 = vadd.f32 %v1132, %v1778
  %v1985 = vadd.f32 %v1137, %v1783
  %v1986 = vadd.f32 %v1142, %v1788
  %v1987 = vadd.f32 %v1147, %v1793
  %v1988 = vadd.f32 %v1152, %v1798
  %v1989 = vadd.f32 %v1157, %v1803
  %v1990 = vadd.f32 %v1162, %v1808
  %v1991 = vadd.f32 %v1167, %v1813
  %v1992 = vadd.f32 %v1172, %v1818
  %v1993 = vadd.f32 %v1177, %v1823
  %v1994 = vadd.f32 %v1182, %v1828
  %v1995 = vadd.f32 %v1187, %v1833
  %v1996 = vadd.f32 %v1192, %v1838
  %v1997 = vadd.f32 %v1197, %v1843
  %v1998 = vadd.f32 %v1202, %v1848
  %v1999 = vadd.f32 %v1207, %v1853
  %v2000 = vadd.f32 %v1212, %v1858
  %v2001 = vadd.f32 %v1217, %v1863
  %v2002 = vadd.f32 %v1222, %v1868
  %v2003 = vadd.f32 %v1227, %v1873
  %v2004 = vadd.f32 %v1232, %v1878
  %v2005 = vadd.f32 %v1237, %v1883
  %v2006 = vadd.f32 %v1242, %v1888
  %v2007 = vadd.f32 %v1247, %v1893
  %v2008 = vadd.f32 %v1252, %v1898
  %v2009 = vadd.f32 %v1257, %v1903
  %v2010 = vadd.f32 %v1262, %v1908
  %v2011 = vadd.f32 %v1267, %v1913
  %v2012 = vadd.f32 %v1272, %v1918
  %v2013 = vadd.f32 %v1277, %v1923
  %v2014 = vadd.f32 %v1282, %v1928
  %v2015 = vadd.f32 %v1287, %v1933
  %v2016 = vadd.f32 %v1292, %v1938
  %v2017 = vadd.f32 %v1297, %v1943
  %v2018 = vadd.f32 %v1302, %v1948
  %v2019 = vadd.f32 %v1307, %v1953
  %s2020 = scalar_lea.vmem %s0, 24
  %v2021 = vld [vmem:[%s2020] sm:$0xff]
  %v2022 = vld [vmem:[%s2020 + $0x8] sm:$0xff]
  %v2023 = vld [vmem:[%s2020 + $0x18] sm:$0xff]
  %v2024 = vld [vmem:[%s2020 + $0x20] sm:$0xff]
  %v2025 = vld [vmem:[%s2020 + $0x30] sm:$0xff]
  %v2026 = vld [vmem:[%s2020 + $0x38] sm:$0xff]
  %v2027 = vld [vmem:[%s2020 + $0x48] sm:$0xff]
  %v2028 = vld [vmem:[%s2020 + $0x50] sm:$0xff]
  %v2029 = vld [vmem:[%s2020 + $0x60] sm:$0xff]
  %v2030 = vld [vmem:[%s2020 + $0x68] sm:$0xff]
  %v2031 = vld [vmem:[%s2020 + $0x78] sm:$0xff]
  %v2032 = vld [vmem:[%s2020 + $0x80] sm:$0xff]
  %v2033 = vld [vmem:[%s2020 + $0x90] sm:$0xff]
  %v2034 = vld [vmem:[%s2020 + $0x98] sm:$0xff]
  %v2035 = vld [vmem:[%s2020 + $0xa8] sm:$0xff]
  %v2036 = vld [vmem:[%s2020 + $0xb0] sm:$0xff]
  %v2037 = vld [vmem:[%s2020 + $0xc0] sm:$0xff]
  %v2038 = vld [vmem:[%s2020 + $0xc8] sm:$0xff]
  %v2039 = vld [vmem:[%s2020 + $0xd8] sm:$0xff]
  %v2040 = vld [vmem:[%s2020 + $0xe0] sm:$0xff]
  %v2041 = vld [vmem:[%s2020 + $0xf0] sm:$0xff]
  %v2042 = vld [vmem:[%s2020 + $0xf8] sm:$0xff]
  %v2043 = vld [vmem:[%s2020 + $0x108] sm:$0xff]
  %v2044 = vld [vmem:[%s2020 + $0x110] sm:$0xff]
  %v2045 = vld [vmem:[%s2020 + $0x120] sm:$0xff]
  %v2046 = vld [vmem:[%s2020 + $0x128] sm:$0xff]
  %v2047 = vld [vmem:[%s2020 + $0x138] sm:$0xff]
  %v2048 = vld [vmem:[%s2020 + $0x140] sm:$0xff]
  %v2049 = vld [vmem:[%s2020 + $0x150] sm:$0xff]
  %v2050 = vld [vmem:[%s2020 + $0x158] sm:$0xff]
  %v2051 = vld [vmem:[%s2020 + $0x168] sm:$0xff]
  %v2052 = vld [vmem:[%s2020 + $0x170] sm:$0xff]
  %v2053 = vld [vmem:[%s2020 + $0x1b0] sm:$0xff]
  %v2054 = vld [vmem:[%s2020 + $0x1b8] sm:$0xff]
  %v2055 = vld [vmem:[%s2020 + $0x1c8] sm:$0xff]
  %v2056 = vld [vmem:[%s2020 + $0x1d0] sm:$0xff]
  %v2057 = vld [vmem:[%s2020 + $0x1e0] sm:$0xff]
  %v2058 = vld [vmem:[%s2020 + $0x1e8] sm:$0xff]
  %v2059 = vld [vmem:[%s2020 + $0x1f8] sm:$0xff]
  %v2060 = vld [vmem:[%s2020 + $0x200] sm:$0xff]
  %v2061 = vld [vmem:[%s2020 + $0x210] sm:$0xff]
  %v2062 = vld [vmem:[%s2020 + $0x218] sm:$0xff]
  %v2063 = vld [vmem:[%s2020 + $0x228] sm:$0xff]
  %v2064 = vld [vmem:[%s2020 + $0x230] sm:$0xff]
  %v2065 = vld [vmem:[%s2020 + $0x240] sm:$0xff]
  %v2066 = vld [vmem:[%s2020 + $0x248] sm:$0xff]
  %v2067 = vld [vmem:[%s2020 + $0x258] sm:$0xff]
  %v2068 = vld [vmem:[%s2020 + $0x260] sm:$0xff]
  %v2069 = vld [vmem:[%s2020 + $0x270] sm:$0xff]
  %v2070 = vld [vmem:[%s2020 + $0x278] sm:$0xff]
  %v2071 = vld [vmem:[%s2020 + $0x288] sm:$0xff]
  %v2072 = vld [vmem:[%s2020 + $0x290] sm:$0xff]
  %v2073 = vld [vmem:[%s2020 + $0x2a0] sm:$0xff]
  %v2074 = vld [vmem:[%s2020 + $0x2a8] sm:$0xff]
  %v2075 = vld [vmem:[%s2020 + $0x2b8] sm:$0xff]
  %v2076 = vld [vmem:[%s2020 + $0x2c0] sm:$0xff]
  %v2077 = vld [vmem:[%s2020 + $0x2d0] sm:$0xff]
  %v2078 = vld [vmem:[%s2020 + $0x2d8] sm:$0xff]
  %v2079 = vld [vmem:[%s2020 + $0x2e8] sm:$0xff]
  %v2080 = vld [vmem:[%s2020 + $0x2f0] sm:$0xff]
  %v2081 = vld [vmem:[%s2020 + $0x300] sm:$0xff]
  %v2082 = vld [vmem:[%s2020 + $0x308] sm:$0xff]
  %v2083 = vld [vmem:[%s2020 + $0x318] sm:$0xff]
  %v2084 = vld [vmem:[%s2020 + $0x320] sm:$0xff]
  %s2085 = scalar_lea.vmem %s1, 12
  %v2086 = vld [vmem:[%s2085] sm:$0xf]
  %v2088 = vsel %vm148, %v2021, 0
  %v2091 = vsel %vm148, %v2022, 0
  %v2094 = vsel %vm148, %v2023, 0
  %v2097 = vsel %vm148, %v2024, 0
  %v2100 = vsel %vm148, %v2025, 0
  %v2103 = vsel %vm148, %v2026, 0
  %v2106 = vsel %vm148, %v2027, 0
  %v2109 = vsel %vm148, %v2028, 0
  %v2112 = vsel %vm148, %v2029, 0
  %v2115 = vsel %vm148, %v2030, 0
  %v2118 = vsel %vm148, %v2031, 0
  %v2121 = vsel %vm148, %v2032, 0
  %v2124 = vsel %vm148, %v2033, 0
  %v2127 = vsel %vm148, %v2034, 0
  %v2130 = vsel %vm148, %v2035, 0
  %v2133 = vsel %vm148, %v2036, 0
  %v2136 = vsel %vm148, %v2037, 0
  %v2139 = vsel %vm148, %v2038, 0
  %v2142 = vsel %vm148, %v2039, 0
  %v2145 = vsel %vm148, %v2040, 0
  %v2148 = vsel %vm148, %v2041, 0
  %v2151 = vsel %vm148, %v2042, 0
  %v2154 = vsel %vm148, %v2043, 0
  %v2157 = vsel %vm148, %v2044, 0
  %v2160 = vsel %vm148, %v2045, 0
  %v2163 = vsel %vm148, %v2046, 0
  %v2166 = vsel %vm148, %v2047, 0
  %v2169 = vsel %vm148, %v2048, 0
  %v2172 = vsel %vm148, %v2049, 0
  %v2175 = vsel %vm148, %v2050, 0
  %v2178 = vsel %vm148, %v2051, 0
  %v2181 = vsel %vm148, %v2052, 0
  %v2184 = vsel %vm148, %v2053, 0
  %v2187 = vsel %vm148, %v2054, 0
  %v2190 = vsel %vm148, %v2055, 0
  %v2193 = vsel %vm148, %v2056, 0
  %v2196 = vsel %vm148, %v2057, 0
  %v2199 = vsel %vm148, %v2058, 0
  %v2202 = vsel %vm148, %v2059, 0
  %v2205 = vsel %vm148, %v2060, 0
  %v2208 = vsel %vm148, %v2061, 0
  %v2211 = vsel %vm148, %v2062, 0
  %v2214 = vsel %vm148, %v2063, 0
  %v2217 = vsel %vm148, %v2064, 0
  %v2220 = vsel %vm148, %v2065, 0
  %v2223 = vsel %vm148, %v2066, 0
  %v2226 = vsel %vm148, %v2067, 0
  %v2229 = vsel %vm148, %v2068, 0
  %v2232 = vsel %vm148, %v2069, 0
  %v2235 = vsel %vm148, %v2070, 0
  %v2238 = vsel %vm148, %v2071, 0
  %v2241 = vsel %vm148, %v2072, 0
  %v2244 = vsel %vm148, %v2073, 0
  %v2247 = vsel %vm148, %v2074, 0
  %v2250 = vsel %vm148, %v2075, 0
  %v2253 = vsel %vm148, %v2076, 0
  %v2256 = vsel %vm148, %v2077, 0
  %v2259 = vsel %vm148, %v2078, 0
  %v2262 = vsel %vm148, %v2079, 0
  %v2265 = vsel %vm148, %v2080, 0
  %v2268 = vsel %vm148, %v2081, 0
  %v2271 = vsel %vm148, %v2082, 0
  %v2274 = vsel %vm148, %v2083, 0
  %v2277 = vsel %vm148, %v2084, 0
  %v2280 = vsel %vm341, %v2086, 0
  %2282 = vmatprep.subr.mxu0 0.0
  %2283 = vmatpush1.msra.mxu0 %v2280
  %2284 = vmatprep.subr.mxu0 0.0
  %2285 = vmatpush1.msra.mxu0 0.0
  %2286 = vmatprep.subr.mxu0 0.0
  %2287 = vmatpush1.msra.mxu0 0.0
  %2288 = vmatprep.subr.mxu0 0.0
  %2289 = vmatpush1.msra.mxu0 0.0
  %2290 = vmatprep.subr.mxu0 0.0
  %2291 = vmatpush1.msra.mxu0 0.0
  %2292 = vmatprep.subr.mxu0 0.0
  %2293 = vmatpush1.msra.mxu0 0.0
  %2294 = vmatprep.subr.mxu0 0.0
  %2295 = vmatpush1.msra.mxu0 0.0
  %2296 = vmatprep.subr.mxu0 0.0
  %2297 = vmatpush1.msra.mxu0 0.0
  %2298 = vmatprep.subr.mxu0 0.0
  %2299 = vmatpush1.msra.mxu0 0.0
  %2300 = vmatprep.subr.mxu0 0.0
  %2301 = vmatpush1.msra.mxu0 0.0
  %2302 = vmatprep.subr.mxu0 0.0
  %2303 = vmatpush1.msra.mxu0 0.0
  %2304 = vmatprep.subr.mxu0 0.0
  %2305 = vmatpush1.msra.mxu0 0.0
  %2306 = vmatprep.subr.mxu0 0.0
  %2307 = vmatpush1.msra.mxu0 0.0
  %2308 = vmatprep.subr.mxu0 0.0
  %2309 = vmatpush1.msra.mxu0 0.0
  %2310 = vmatprep.subr.mxu0 0.0
  %2311 = vmatpush1.msra.mxu0 0.0
  %2312 = vmatprep.subr.mxu0 0.0
  %2313 = vmatpush1.msra.mxu0 0.0
  %2314 = vmatprep.subr.mxu0 0.0
  %2315 = vmatpush1.msra.mxu0 0.0
  %2316 = vmatprep.subr.mxu0 0.0
  %2317 = vmatpush1.msra.mxu0 0.0
  %2318 = vmatprep.subr.mxu0 0.0
  %2319 = vmatpush1.msra.mxu0 0.0
  %2320 = vmatprep.subr.mxu0 0.0
  %2321 = vmatpush1.msra.mxu0 0.0
  %2322 = vmatprep.subr.mxu0 0.0
  %2323 = vmatpush1.msra.mxu0 0.0
  %2324 = vmatprep.subr.mxu0 0.0
  %2325 = vmatpush1.msra.mxu0 0.0
  %2326 = vmatprep.subr.mxu0 0.0
  %2327 = vmatpush1.msra.mxu0 0.0
  %2328 = vmatprep.subr.mxu0 0.0
  %2329 = vmatpush1.msra.mxu0 0.0
  %2330 = vmatprep.subr.mxu0 0.0
  %2331 = vmatpush1.msra.mxu0 0.0
  %2332 = vmatprep.subr.mxu0 0.0
  %2333 = vmatpush1.msra.mxu0 0.0
  %2334 = vmatprep.subr.mxu0 0.0
  %2335 = vmatpush1.msra.mxu0 0.0
  %2336 = vmatprep.subr.mxu0 0.0
  %2337 = vmatpush1.msra.mxu0 0.0
  %2338 = vmatprep.subr.mxu0 0.0
  %2339 = vmatpush1.msra.mxu0 0.0
  %2340 = vmatprep.subr.mxu0 0.0
  %2341 = vmatpush1.msra.mxu0 0.0
  %2342 = vmatprep.subr.mxu0 0.0
  %2343 = vmatpush1.msra.mxu0 0.0
  %2344 = vmatprep.subr.mxu0 0.0
  %2345 = vmatpush1.msra.mxu0 0.0
  %2346 = vmatprep.mubr.f32.mxu0 0.0
  %2347 = vmatmul.mubr.f32.gmra.mrb[0].mxu0 %v2088
  %v2348 = vpop.f32.mrb[0].mxu0
  %v2349 = vadd.f32 0.0, %v2348
  %v2350 = vpop.f32.mrb[0].mxu0
  %2351 = vmatprep.mubr.f32.mxu0 0.0
  %2352 = vmatmul.mubr.f32.gmra.mrb[0].mxu0 %v2091
  %v2353 = vpop.f32.mrb[0].mxu0
  %v2354 = vadd.f32 0.0, %v2353
  %v2355 = vpop.f32.mrb[0].mxu0
  %2356 = vmatprep.mubr.f32.mxu0 0.0
  %2357 = vmatmul.mubr.f32.gmra.mrb[0].mxu0 %v2094
  %v2358 = vpop.f32.mrb[0].mxu0
  %v2359 = vadd.f32 0.0, %v2358
  %v2360 = vpop.f32.mrb[0].mxu0
  %2361 = vmatprep.mubr.f32.mxu0 0.0
  %2362 = vmatmul.mubr.f32.gmra.mrb[0].mxu0 %v2097
  %v2363 = vpop.f32.mrb[0].mxu0
  %v2364 = vadd.f32 0.0, %v2363
  %v2365 = vpop.f32.mrb[0].mxu0
  %2366 = vmatprep.mubr.f32.mxu0 0.0
  %2367 = vmatmul.mubr.f32.gmra.mrb[0].mxu0 %v2100
  %v2368 = vpop.f32.mrb[0].mxu0
  %v2369 = vadd.f32 0.0, %v2368
  %v2370 = vpop.f32.mrb[0].mxu0
  %2371 = vmatprep.mubr.f32.mxu0 0.0
  %2372 = vmatmul.mubr.f32.gmra.mrb[0].mxu0 %v2103
  %v2373 = vpop.f32.mrb[0].mxu0
  %v2374 = vadd.f32 0.0, %v2373
  %v2375 = vpop.f32.mrb[0].mxu0
  %2376 = vmatprep.mubr.f32.mxu0 0.0
  %2377 = vmatmul.mubr.f32.gmra.mrb[0].mxu0 %v2106
  %v2378 = vpop.f32.mrb[0].mxu0
  %v2379 = vadd.f32 0.0, %v2378
  %v2380 = vpop.f32.mrb[0].mxu0
  %2381 = vmatprep.mubr.f32.mxu0 0.0
  %2382 = vmatmul.mubr.f32.gmra.mrb[0].mxu0 %v2109
  %v2383 = vpop.f32.mrb[0].mxu0
  %v2384 = vadd.f32 0.0, %v2383
  %v2385 = vpop.f32.mrb[0].mxu0
  %2386 = vmatprep.mubr.f32.mxu0 0.0
  %2387 = vmatmul.mubr.f32.gmra.mrb[0].mxu0 %v2112
  %v2388 = vpop.f32.mrb[0].mxu0
  %v2389 = vadd.f32 0.0, %v2388
  %v2390 = vpop.f32.mrb[0].mxu0
  %2391 = vmatprep.mubr.f32.mxu0 0.0
  %2392 = vmatmul.mubr.f32.gmra.mrb[0].mxu0 %v2115
  %v2393 = vpop.f32.mrb[0].mxu0
  %v2394 = vadd.f32 0.0, %v2393
  %v2395 = vpop.f32.mrb[0].mxu0
  %2396 = vmatprep.mubr.f32.mxu0 0.0
  %2397 = vmatmul.mubr.f32.gmra.mrb[0].mxu0 %v2118
  %v2398 = vpop.f32.mrb[0].mxu0
  %v2399 = vadd.f32 0.0, %v2398
  %v2400 = vpop.f32.mrb[0].mxu0
  %2401 = vmatprep.mubr.f32.mxu0 0.0
  %2402 = vmatmul.mubr.f32.gmra.mrb[0].mxu0 %v2121
  %v2403 = vpop.f32.mrb[0].mxu0
  %v2404 = vadd.f32 0.0, %v2403
  %v2405 = vpop.f32.mrb[0].mxu0
  %2406 = vmatprep.mubr.f32.mxu0 0.0
  %2407 = vmatmul.mubr.f32.gmra.mrb[0].mxu0 %v2124
  %v2408 = vpop.f32.mrb[0].mxu0
  %v2409 = vadd.f32 0.0, %v2408
  %v2410 = vpop.f32.mrb[0].mxu0
  %2411 = vmatprep.mubr.f32.mxu0 0.0
  %2412 = vmatmul.mubr.f32.gmra.mrb[0].mxu0 %v2127
  %v2413 = vpop.f32.mrb[0].mxu0
  %v2414 = vadd.f32 0.0, %v2413
  %v2415 = vpop.f32.mrb[0].mxu0
  %2416 = vmatprep.mubr.f32.mxu0 0.0
  %2417 = vmatmul.mubr.f32.gmra.mrb[0].mxu0 %v2130
  %v2418 = vpop.f32.mrb[0].mxu0
  %v2419 = vadd.f32 0.0, %v2418
  %v2420 = vpop.f32.mrb[0].mxu0
  %2421 = vmatprep.mubr.f32.mxu0 0.0
  %2422 = vmatmul.mubr.f32.gmra.mrb[0].mxu0 %v2133
  %v2423 = vpop.f32.mrb[0].mxu0
  %v2424 = vadd.f32 0.0, %v2423
  %v2425 = vpop.f32.mrb[0].mxu0
  %2426 = vmatprep.mubr.f32.mxu0 0.0
  %2427 = vmatmul.mubr.f32.gmra.mrb[0].mxu0 %v2136
  %v2428 = vpop.f32.mrb[0].mxu0
  %v2429 = vadd.f32 0.0, %v2428
  %v2430 = vpop.f32.mrb[0].mxu0
  %2431 = vmatprep.mubr.f32.mxu0 0.0
  %2432 = vmatmul.mubr.f32.gmra.mrb[0].mxu0 %v2139
  %v2433 = vpop.f32.mrb[0].mxu0
  %v2434 = vadd.f32 0.0, %v2433
  %v2435 = vpop.f32.mrb[0].mxu0
  %2436 = vmatprep.mubr.f32.mxu0 0.0
  %2437 = vmatmul.mubr.f32.gmra.mrb[0].mxu0 %v2142
  %v2438 = vpop.f32.mrb[0].mxu0
  %v2439 = vadd.f32 0.0, %v2438
  %v2440 = vpop.f32.mrb[0].mxu0
  %2441 = vmatprep.mubr.f32.mxu0 0.0
  %2442 = vmatmul.mubr.f32.gmra.mrb[0].mxu0 %v2145
  %v2443 = vpop.f32.mrb[0].mxu0
  %v2444 = vadd.f32 0.0, %v2443
  %v2445 = vpop.f32.mrb[0].mxu0
  %2446 = vmatprep.mubr.f32.mxu0 0.0
  %2447 = vmatmul.mubr.f32.gmra.mrb[0].mxu0 %v2148
  %v2448 = vpop.f32.mrb[0].mxu0
  %v2449 = vadd.f32 0.0, %v2448
  %v2450 = vpop.f32.mrb[0].mxu0
  %2451 = vmatprep.mubr.f32.mxu0 0.0
  %2452 = vmatmul.mubr.f32.gmra.mrb[0].mxu0 %v2151
  %v2453 = vpop.f32.mrb[0].mxu0
  %v2454 = vadd.f32 0.0, %v2453
  %v2455 = vpop.f32.mrb[0].mxu0
  %2456 = vmatprep.mubr.f32.mxu0 0.0
  %2457 = vmatmul.mubr.f32.gmra.mrb[0].mxu0 %v2154
  %v2458 = vpop.f32.mrb[0].mxu0
  %v2459 = vadd.f32 0.0, %v2458
  %v2460 = vpop.f32.mrb[0].mxu0
  %2461 = vmatprep.mubr.f32.mxu0 0.0
  %2462 = vmatmul.mubr.f32.gmra.mrb[0].mxu0 %v2157
  %v2463 = vpop.f32.mrb[0].mxu0
  %v2464 = vadd.f32 0.0, %v2463
  %v2465 = vpop.f32.mrb[0].mxu0
  %2466 = vmatprep.mubr.f32.mxu0 0.0
  %2467 = vmatmul.mubr.f32.gmra.mrb[0].mxu0 %v2160
  %v2468 = vpop.f32.mrb[0].mxu0
  %v2469 = vadd.f32 0.0, %v2468
  %v2470 = vpop.f32.mrb[0].mxu0
  %2471 = vmatprep.mubr.f32.mxu0 0.0
  %2472 = vmatmul.mubr.f32.gmra.mrb[0].mxu0 %v2163
  %v2473 = vpop.f32.mrb[0].mxu0
  %v2474 = vadd.f32 0.0, %v2473
  %v2475 = vpop.f32.mrb[0].mxu0
  %2476 = vmatprep.mubr.f32.mxu0 0.0
  %2477 = vmatmul.mubr.f32.gmra.mrb[0].mxu0 %v2166
  %v2478 = vpop.f32.mrb[0].mxu0
  %v2479 = vadd.f32 0.0, %v2478
  %v2480 = vpop.f32.mrb[0].mxu0
  %2481 = vmatprep.mubr.f32.mxu0 0.0
  %2482 = vmatmul.mubr.f32.gmra.mrb[0].mxu0 %v2169
  %v2483 = vpop.f32.mrb[0].mxu0
  %v2484 = vadd.f32 0.0, %v2483
  %v2485 = vpop.f32.mrb[0].mxu0
  %2486 = vmatprep.mubr.f32.mxu0 0.0
  %2487 = vmatmul.mubr.f32.gmra.mrb[0].mxu0 %v2172
  %v2488 = vpop.f32.mrb[0].mxu0
  %v2489 = vadd.f32 0.0, %v2488
  %v2490 = vpop.f32.mrb[0].mxu0
  %2491 = vmatprep.mubr.f32.mxu0 0.0
  %2492 = vmatmul.mubr.f32.gmra.mrb[0].mxu0 %v2175
  %v2493 = vpop.f32.mrb[0].mxu0
  %v2494 = vadd.f32 0.0, %v2493
  %v2495 = vpop.f32.mrb[0].mxu0
  %2496 = vmatprep.mubr.f32.mxu0 0.0
  %2497 = vmatmul.mubr.f32.gmra.mrb[0].mxu0 %v2178
  %v2498 = vpop.f32.mrb[0].mxu0
  %v2499 = vadd.f32 0.0, %v2498
  %v2500 = vpop.f32.mrb[0].mxu0
  %2501 = vmatprep.mubr.f32.mxu0 0.0
  %2502 = vmatmul.mubr.f32.gmra.mrb[0].mxu0 %v2181
  %v2503 = vpop.f32.mrb[0].mxu0
  %v2504 = vadd.f32 0.0, %v2503
  %v2505 = vpop.f32.mrb[0].mxu0
  %2506 = vmatprep.mubr.f32.mxu0 0.0
  %2507 = vmatmul.mubr.f32.gmra.mrb[0].mxu0 %v2184
  %v2508 = vpop.f32.mrb[0].mxu0
  %v2509 = vadd.f32 0.0, %v2508
  %v2510 = vpop.f32.mrb[0].mxu0
  %2511 = vmatprep.mubr.f32.mxu0 0.0
  %2512 = vmatmul.mubr.f32.gmra.mrb[0].mxu0 %v2187
  %v2513 = vpop.f32.mrb[0].mxu0
  %v2514 = vadd.f32 0.0, %v2513
  %v2515 = vpop.f32.mrb[0].mxu0
  %2516 = vmatprep.mubr.f32.mxu0 0.0
  %2517 = vmatmul.mubr.f32.gmra.mrb[0].mxu0 %v2190
  %v2518 = vpop.f32.mrb[0].mxu0
  %v2519 = vadd.f32 0.0, %v2518
  %v2520 = vpop.f32.mrb[0].mxu0
  %2521 = vmatprep.mubr.f32.mxu0 0.0
  %2522 = vmatmul.mubr.f32.gmra.mrb[0].mxu0 %v2193
  %v2523 = vpop.f32.mrb[0].mxu0
  %v2524 = vadd.f32 0.0, %v2523
  %v2525 = vpop.f32.mrb[0].mxu0
  %2526 = vmatprep.mubr.f32.mxu0 0.0
  %2527 = vmatmul.mubr.f32.gmra.mrb[0].mxu0 %v2196
  %v2528 = vpop.f32.mrb[0].mxu0
  %v2529 = vadd.f32 0.0, %v2528
  %v2530 = vpop.f32.mrb[0].mxu0
  %2531 = vmatprep.mubr.f32.mxu0 0.0
  %2532 = vmatmul.mubr.f32.gmra.mrb[0].mxu0 %v2199
  %v2533 = vpop.f32.mrb[0].mxu0
  %v2534 = vadd.f32 0.0, %v2533
  %v2535 = vpop.f32.mrb[0].mxu0
  %2536 = vmatprep.mubr.f32.mxu0 0.0
  %2537 = vmatmul.mubr.f32.gmra.mrb[0].mxu0 %v2202
  %v2538 = vpop.f32.mrb[0].mxu0
  %v2539 = vadd.f32 0.0, %v2538
  %v2540 = vpop.f32.mrb[0].mxu0
  %2541 = vmatprep.mubr.f32.mxu0 0.0
  %2542 = vmatmul.mubr.f32.gmra.mrb[0].mxu0 %v2205
  %v2543 = vpop.f32.mrb[0].mxu0
  %v2544 = vadd.f32 0.0, %v2543
  %v2545 = vpop.f32.mrb[0].mxu0
  %2546 = vmatprep.mubr.f32.mxu0 0.0
  %2547 = vmatmul.mubr.f32.gmra.mrb[0].mxu0 %v2208
  %v2548 = vpop.f32.mrb[0].mxu0
  %v2549 = vadd.f32 0.0, %v2548
  %v2550 = vpop.f32.mrb[0].mxu0
  %2551 = vmatprep.mubr.f32.mxu0 0.0
  %2552 = vmatmul.mubr.f32.gmra.mrb[0].mxu0 %v2211
  %v2553 = vpop.f32.mrb[0].mxu0
  %v2554 = vadd.f32 0.0, %v2553
  %v2555 = vpop.f32.mrb[0].mxu0
  %2556 = vmatprep.mubr.f32.mxu0 0.0
  %2557 = vmatmul.mubr.f32.gmra.mrb[0].mxu0 %v2214
  %v2558 = vpop.f32.mrb[0].mxu0
  %v2559 = vadd.f32 0.0, %v2558
  %v2560 = vpop.f32.mrb[0].mxu0
  %2561 = vmatprep.mubr.f32.mxu0 0.0
  %2562 = vmatmul.mubr.f32.gmra.mrb[0].mxu0 %v2217
  %v2563 = vpop.f32.mrb[0].mxu0
  %v2564 = vadd.f32 0.0, %v2563
  %v2565 = vpop.f32.mrb[0].mxu0
  %2566 = vmatprep.mubr.f32.mxu0 0.0
  %2567 = vmatmul.mubr.f32.gmra.mrb[0].mxu0 %v2220
  %v2568 = vpop.f32.mrb[0].mxu0
  %v2569 = vadd.f32 0.0, %v2568
  %v2570 = vpop.f32.mrb[0].mxu0
  %2571 = vmatprep.mubr.f32.mxu0 0.0
  %2572 = vmatmul.mubr.f32.gmra.mrb[0].mxu0 %v2223
  %v2573 = vpop.f32.mrb[0].mxu0
  %v2574 = vadd.f32 0.0, %v2573
  %v2575 = vpop.f32.mrb[0].mxu0
  %2576 = vmatprep.mubr.f32.mxu0 0.0
  %2577 = vmatmul.mubr.f32.gmra.mrb[0].mxu0 %v2226
  %v2578 = vpop.f32.mrb[0].mxu0
  %v2579 = vadd.f32 0.0, %v2578
  %v2580 = vpop.f32.mrb[0].mxu0
  %2581 = vmatprep.mubr.f32.mxu0 0.0
  %2582 = vmatmul.mubr.f32.gmra.mrb[0].mxu0 %v2229
  %v2583 = vpop.f32.mrb[0].mxu0
  %v2584 = vadd.f32 0.0, %v2583
  %v2585 = vpop.f32.mrb[0].mxu0
  %2586 = vmatprep.mubr.f32.mxu0 0.0
  %2587 = vmatmul.mubr.f32.gmra.mrb[0].mxu0 %v2232
  %v2588 = vpop.f32.mrb[0].mxu0
  %v2589 = vadd.f32 0.0, %v2588
  %v2590 = vpop.f32.mrb[0].mxu0
  %2591 = vmatprep.mubr.f32.mxu0 0.0
  %2592 = vmatmul.mubr.f32.gmra.mrb[0].mxu0 %v2235
  %v2593 = vpop.f32.mrb[0].mxu0
  %v2594 = vadd.f32 0.0, %v2593
  %v2595 = vpop.f32.mrb[0].mxu0
  %2596 = vmatprep.mubr.f32.mxu0 0.0
  %2597 = vmatmul.mubr.f32.gmra.mrb[0].mxu0 %v2238
  %v2598 = vpop.f32.mrb[0].mxu0
  %v2599 = vadd.f32 0.0, %v2598
  %v2600 = vpop.f32.mrb[0].mxu0
  %2601 = vmatprep.mubr.f32.mxu0 0.0
  %2602 = vmatmul.mubr.f32.gmra.mrb[0].mxu0 %v2241
  %v2603 = vpop.f32.mrb[0].mxu0
  %v2604 = vadd.f32 0.0, %v2603
  %v2605 = vpop.f32.mrb[0].mxu0
  %2606 = vmatprep.mubr.f32.mxu0 0.0
  %2607 = vmatmul.mubr.f32.gmra.mrb[0].mxu0 %v2244
  %v2608 = vpop.f32.mrb[0].mxu0
  %v2609 = vadd.f32 0.0, %v2608
  %v2610 = vpop.f32.mrb[0].mxu0
  %2611 = vmatprep.mubr.f32.mxu0 0.0
  %2612 = vmatmul.mubr.f32.gmra.mrb[0].mxu0 %v2247
  %v2613 = vpop.f32.mrb[0].mxu0
  %v2614 = vadd.f32 0.0, %v2613
  %v2615 = vpop.f32.mrb[0].mxu0
  %2616 = vmatprep.mubr.f32.mxu0 0.0
  %2617 = vmatmul.mubr.f32.gmra.mrb[0].mxu0 %v2250
  %v2618 = vpop.f32.mrb[0].mxu0
  %v2619 = vadd.f32 0.0, %v2618
  %v2620 = vpop.f32.mrb[0].mxu0
  %2621 = vmatprep.mubr.f32.mxu0 0.0
  %2622 = vmatmul.mubr.f32.gmra.mrb[0].mxu0 %v2253
  %v2623 = vpop.f32.mrb[0].mxu0
  %v2624 = vadd.f32 0.0, %v2623
  %v2625 = vpop.f32.mrb[0].mxu0
  %2626 = vmatprep.mubr.f32.mxu0 0.0
  %2627 = vmatmul.mubr.f32.gmra.mrb[0].mxu0 %v2256
  %v2628 = vpop.f32.mrb[0].mxu0
  %v2629 = vadd.f32 0.0, %v2628
  %v2630 = vpop.f32.mrb[0].mxu0
  %2631 = vmatprep.mubr.f32.mxu0 0.0
  %2632 = vmatmul.mubr.f32.gmra.mrb[0].mxu0 %v2259
  %v2633 = vpop.f32.mrb[0].mxu0
  %v2634 = vadd.f32 0.0, %v2633
  %v2635 = vpop.f32.mrb[0].mxu0
  %2636 = vmatprep.mubr.f32.mxu0 0.0
  %2637 = vmatmul.mubr.f32.gmra.mrb[0].mxu0 %v2262
  %v2638 = vpop.f32.mrb[0].mxu0
  %v2639 = vadd.f32 0.0, %v2638
  %v2640 = vpop.f32.mrb[0].mxu0
  %2641 = vmatprep.mubr.f32.mxu0 0.0
  %2642 = vmatmul.mubr.f32.gmra.mrb[0].mxu0 %v2265
  %v2643 = vpop.f32.mrb[0].mxu0
  %v2644 = vadd.f32 0.0, %v2643
  %v2645 = vpop.f32.mrb[0].mxu0
  %2646 = vmatprep.mubr.f32.mxu0 0.0
  %2647 = vmatmul.mubr.f32.gmra.mrb[0].mxu0 %v2268
  %v2648 = vpop.f32.mrb[0].mxu0
  %v2649 = vadd.f32 0.0, %v2648
  %v2650 = vpop.f32.mrb[0].mxu0
  %2651 = vmatprep.mubr.f32.mxu0 0.0
  %2652 = vmatmul.mubr.f32.gmra.mrb[0].mxu0 %v2271
  %v2653 = vpop.f32.mrb[0].mxu0
  %v2654 = vadd.f32 0.0, %v2653
  %v2655 = vpop.f32.mrb[0].mxu0
  %2656 = vmatprep.mubr.f32.mxu0 0.0
  %2657 = vmatmul.mubr.f32.gmra.mrb[0].mxu0 %v2274
  %v2658 = vpop.f32.mrb[0].mxu0
  %v2659 = vadd.f32 0.0, %v2658
  %v2660 = vpop.f32.mrb[0].mxu0
  %2661 = vmatprep.mubr.f32.mxu0 0.0
  %2662 = vmatmul.mubr.f32.gmra.mrb[0].mxu0 %v2277
  %v2663 = vpop.f32.mrb[0].mxu0
  %v2664 = vadd.f32 0.0, %v2663
  %v2665 = vpop.f32.mrb[0].mxu0
  %2666 = vdwg.mxu0
  %v2667 = vadd.f32 %v1956, %v2349
  %v2668 = vadd.f32 %v1957, %v2354
  %v2669 = vadd.f32 %v1958, %v2359
  %v2670 = vadd.f32 %v1959, %v2364
  %v2671 = vadd.f32 %v1960, %v2369
  %v2672 = vadd.f32 %v1961, %v2374
  %v2673 = vadd.f32 %v1962, %v2379
  %v2674 = vadd.f32 %v1963, %v2384
  %v2675 = vadd.f32 %v1964, %v2389
  %v2676 = vadd.f32 %v1965, %v2394
  %v2677 = vadd.f32 %v1966, %v2399
  %v2678 = vadd.f32 %v1967, %v2404
  %v2679 = vadd.f32 %v1968, %v2409
  %v2680 = vadd.f32 %v1969, %v2414
  %v2681 = vadd.f32 %v1970, %v2419
  %v2682 = vadd.f32 %v1971, %v2424
  %v2683 = vadd.f32 %v1972, %v2429
  %v2684 = vadd.f32 %v1973, %v2434
  %v2685 = vadd.f32 %v1974, %v2439
  %v2686 = vadd.f32 %v1975, %v2444
  %v2687 = vadd.f32 %v1976, %v2449
  %v2688 = vadd.f32 %v1977, %v2454
  %v2689 = vadd.f32 %v1978, %v2459
  %v2690 = vadd.f32 %v1979, %v2464
  %v2691 = vadd.f32 %v1980, %v2469
  %v2692 = vadd.f32 %v1981, %v2474
  %v2693 = vadd.f32 %v1982, %v2479
  %v2694 = vadd.f32 %v1983, %v2484
  %v2695 = vadd.f32 %v1984, %v2489
  %v2696 = vadd.f32 %v1985, %v2494
  %v2697 = vadd.f32 %v1986, %v2499
  %v2698 = vadd.f32 %v1987, %v2504
  %v2699 = vadd.f32 %v1988, %v2509
  %v2700 = vadd.f32 %v1989, %v2514
  %v2701 = vadd.f32 %v1990, %v2519
  %v2702 = vadd.f32 %v1991, %v2524
  %v2703 = vadd.f32 %v1992, %v2529
  %v2704 = vadd.f32 %v1993, %v2534
  %v2705 = vadd.f32 %v1994, %v2539
  %v2706 = vadd.f32 %v1995, %v2544
  %v2707 = vadd.f32 %v1996, %v2549
  %v2708 = vadd.f32 %v1997, %v2554
  %v2709 = vadd.f32 %v1998, %v2559
  %v2710 = vadd.f32 %v1999, %v2564
  %v2711 = vadd.f32 %v2000, %v2569
  %v2712 = vadd.f32 %v2001, %v2574
  %v2713 = vadd.f32 %v2002, %v2579
  %v2714 = vadd.f32 %v2003, %v2584
  %v2715 = vadd.f32 %v2004, %v2589
  %v2716 = vadd.f32 %v2005, %v2594
  %v2717 = vadd.f32 %v2006, %v2599
  %v2718 = vadd.f32 %v2007, %v2604
  %v2719 = vadd.f32 %v2008, %v2609
  %v2720 = vadd.f32 %v2009, %v2614
  %v2721 = vadd.f32 %v2010, %v2619
  %v2722 = vadd.f32 %v2011, %v2624
  %v2723 = vadd.f32 %v2012, %v2629
  %v2724 = vadd.f32 %v2013, %v2634
  %v2725 = vadd.f32 %v2014, %v2639
  %v2726 = vadd.f32 %v2015, %v2644
  %v2727 = vadd.f32 %v2016, %v2649
  %v2728 = vadd.f32 %v2017, %v2654
  %v2729 = vadd.f32 %v2018, %v2659
  %v2730 = vadd.f32 %v2019, %v2664
  %v2731 = vld [vmem:[%s2020 + $0x1] sm:$0xff]
  %v2732 = vld [vmem:[%s2020 + $0x9] sm:$0xff]
  %v2733 = vld [vmem:[%s2020 + $0x19] sm:$0xff]
  %v2734 = vld [vmem:[%s2020 + $0x21] sm:$0xff]
  %v2735 = vld [vmem:[%s2020 + $0x31] sm:$0xff]
  %v2736 = vld [vmem:[%s2020 + $0x39] sm:$0xff]
  %v2737 = vld [vmem:[%s2020 + $0x49] sm:$0xff]
  %v2738 = vld [vmem:[%s2020 + $0x51] sm:$0xff]
  %v2739 = vld [vmem:[%s2020 + $0x61] sm:$0xff]
  %v2740 = vld [vmem:[%s2020 + $0x69] sm:$0xff]
  %v2741 = vld [vmem:[%s2020 + $0x79] sm:$0xff]
  %v2742 = vld [vmem:[%s2020 + $0x81] sm:$0xff]
  %v2743 = vld [vmem:[%s2020 + $0x91] sm:$0xff]
  %v2744 = vld [vmem:[%s2020 + $0x99] sm:$0xff]
  %v2745 = vld [vmem:[%s2020 + $0xa9] sm:$0xff]
  %v2746 = vld [vmem:[%s2020 + $0xb1] sm:$0xff]
  %v2747 = vld [vmem:[%s2020 + $0xc1] sm:$0xff]
  %v2748 = vld [vmem:[%s2020 + $0xc9] sm:$0xff]
  %v2749 = vld [vmem:[%s2020 + $0xd9] sm:$0xff]
  %v2750 = vld [vmem:[%s2020 + $0xe1] sm:$0xff]
  %v2751 = vld [vmem:[%s2020 + $0xf1] sm:$0xff]
  %v2752 = vld [vmem:[%s2020 + $0xf9] sm:$0xff]
  %v2753 = vld [vmem:[%s2020 + $0x109] sm:$0xff]
  %v2754 = vld [vmem:[%s2020 + $0x111] sm:$0xff]
  %v2755 = vld [vmem:[%s2020 + $0x121] sm:$0xff]
  %v2756 = vld [vmem:[%s2020 + $0x129] sm:$0xff]
  %v2757 = vld [vmem:[%s2020 + $0x139] sm:$0xff]
  %v2758 = vld [vmem:[%s2020 + $0x141] sm:$0xff]
  %v2759 = vld [vmem:[%s2020 + $0x151] sm:$0xff]
  %v2760 = vld [vmem:[%s2020 + $0x159] sm:$0xff]
  %v2761 = vld [vmem:[%s2020 + $0x169] sm:$0xff]
  %v2762 = vld [vmem:[%s2020 + $0x171] sm:$0xff]
  %v2763 = vld [vmem:[%s2020 + $0x1b1] sm:$0xff]
  %v2764 = vld [vmem:[%s2020 + $0x1b9] sm:$0xff]
  %v2765 = vld [vmem:[%s2020 + $0x1c9] sm:$0xff]
  %v2766 = vld [vmem:[%s2020 + $0x1d1] sm:$0xff]
  %v2767 = vld [vmem:[%s2020 + $0x1e1] sm:$0xff]
  %v2768 = vld [vmem:[%s2020 + $0x1e9] sm:$0xff]
  %v2769 = vld [vmem:[%s2020 + $0x1f9] sm:$0xff]
  %v2770 = vld [vmem:[%s2020 + $0x201] sm:$0xff]
  %v2771 = vld [vmem:[%s2020 + $0x211] sm:$0xff]
  %v2772 = vld [vmem:[%s2020 + $0x219] sm:$0xff]
  %v2773 = vld [vmem:[%s2020 + $0x229] sm:$0xff]
  %v2774 = vld [vmem:[%s2020 + $0x231] sm:$0xff]
  %v2775 = vld [vmem:[%s2020 + $0x241] sm:$0xff]
  %v2776 = vld [vmem:[%s2020 + $0x249] sm:$0xff]
  %v2777 = vld [vmem:[%s2020 + $0x259] sm:$0xff]
  %v2778 = vld [vmem:[%s2020 + $0x261] sm:$0xff]
  %v2779 = vld [vmem:[%s2020 + $0x271] sm:$0xff]
  %v2780 = vld [vmem:[%s2020 + $0x279] sm:$0xff]
  %v2781 = vld [vmem:[%s2020 + $0x289] sm:$0xff]
  %v2782 = vld [vmem:[%s2020 + $0x291] sm:$0xff]
  %v2783 = vld [vmem:[%s2020 + $0x2a1] sm:$0xff]
  %v2784 = vld [vmem:[%s2020 + $0x2a9] sm:$0xff]
  %v2785 = vld [vmem:[%s2020 + $0x2b9] sm:$0xff]
  %v2786 = vld [vmem:[%s2020 + $0x2c1] sm:$0xff]
  %v2787 = vld [vmem:[%s2020 + $0x2d1] sm:$0xff]
  %v2788 = vld [vmem:[%s2020 + $0x2d9] sm:$0xff]
  %v2789 = vld [vmem:[%s2020 + $0x2e9] sm:$0xff]
  %v2790 = vld [vmem:[%s2020 + $0x2f1] sm:$0xff]
  %v2791 = vld [vmem:[%s2020 + $0x301] sm:$0xff]
  %v2792 = vld [vmem:[%s2020 + $0x309] sm:$0xff]
  %v2793 = vld [vmem:[%s2020 + $0x319] sm:$0xff]
  %v2794 = vld [vmem:[%s2020 + $0x321] sm:$0xff]
  %s2795 = scalar_lea.vmem %s1, 16
  %v2796 = vld [vmem:[%s2795] sm:$0xf]
  %v2798 = vsel %vm148, %v2731, 0
  %v2801 = vsel %vm148, %v2732, 0
  %v2804 = vsel %vm148, %v2733, 0
  %v2807 = vsel %vm148, %v2734, 0
  %v2810 = vsel %vm148, %v2735, 0
  %v2813 = vsel %vm148, %v2736, 0
  %v2816 = vsel %vm148, %v2737, 0
  %v2819 = vsel %vm148, %v2738, 0
  %v2822 = vsel %vm148, %v2739, 0
  %v2825 = vsel %vm148, %v2740, 0
  %v2828 = vsel %vm148, %v2741, 0
  %v2831 = vsel %vm148, %v2742, 0
  %v2834 = vsel %vm148, %v2743, 0
  %v2837 = vsel %vm148, %v2744, 0
  %v2840 = vsel %vm148, %v2745, 0
  %v2843 = vsel %vm148, %v2746, 0
  %v2846 = vsel %vm148, %v2747, 0
  %v2849 = vsel %vm148, %v2748, 0
  %v2852 = vsel %vm148, %v2749, 0
  %v2855 = vsel %vm148, %v2750, 0
  %v2858 = vsel %vm148, %v2751, 0
  %v2861 = vsel %vm148, %v2752, 0
  %v2864 = vsel %vm148, %v2753, 0
  %v2867 = vsel %vm148, %v2754, 0
  %v2870 = vsel %vm148, %v2755, 0
  %v2873 = vsel %vm148, %v2756, 0
  %v2876 = vsel %vm148, %v2757, 0
  %v2879 = vsel %vm148, %v2758, 0
  %v2882 = vsel %vm148, %v2759, 0
  %v2885 = vsel %vm148, %v2760, 0
  %v2888 = vsel %vm148, %v2761, 0
  %v2891 = vsel %vm148, %v2762, 0
  %v2894 = vsel %vm148, %v2763, 0
  %v2897 = vsel %vm148, %v2764, 0
  %v2900 = vsel %vm148, %v2765, 0
  %v2903 = vsel %vm148, %v2766, 0
  %v2906 = vsel %vm148, %v2767, 0
  %v2909 = vsel %vm148, %v2768, 0
  %v2912 = vsel %vm148, %v2769, 0
  %v2915 = vsel %vm148, %v2770, 0
  %v2918 = vsel %vm148, %v2771, 0
  %v2921 = vsel %vm148, %v2772, 0
  %v2924 = vsel %vm148, %v2773, 0
  %v2927 = vsel %vm148, %v2774, 0
  %v2930 = vsel %vm148, %v2775, 0
  %v2933 = vsel %vm148, %v2776, 0
  %v2936 = vsel %vm148, %v2777, 0
  %v2939 = vsel %vm148, %v2778, 0
  %v2942 = vsel %vm148, %v2779, 0
  %v2945 = vsel %vm148, %v2780, 0
  %v2948 = vsel %vm148, %v2781, 0
  %v2951 = vsel %vm148, %v2782, 0
  %v2954 = vsel %vm148, %v2783, 0
  %v2957 = vsel %vm148, %v2784, 0
  %v2960 = vsel %vm148, %v2785, 0
  %v2963 = vsel %vm148, %v2786, 0
  %v2966 = vsel %vm148, %v2787, 0
  %v2969 = vsel %vm148, %v2788, 0
  %v2972 = vsel %vm148, %v2789, 0
  %v2975 = vsel %vm148, %v2790, 0
  %v2978 = vsel %vm148, %v2791, 0
  %v2981 = vsel %vm148, %v2792, 0
  %v2984 = vsel %vm148, %v2793, 0
  %v2987 = vsel %vm148, %v2794, 0
  %v2990 = vsel %vm341, %v2796, 0
  %2992 = vmatprep.subr.mxu0 0.0
  %2993 = vmatpush1.msra.mxu0 %v2990
  %2994 = vmatprep.subr.mxu0 0.0
  %2995 = vmatpush1.msra.mxu0 0.0
  %2996 = vmatprep.subr.mxu0 0.0
  %2997 = vmatpush1.msra.mxu0 0.0
  %2998 = vmatprep.subr.mxu0 0.0
  %2999 = vmatpush1.msra.mxu0 0.0
  %3000 = vmatprep.subr.mxu0 0.0
  %3001 = vmatpush1.msra.mxu0 0.0
  %3002 = vmatprep.subr.mxu0 0.0
  %3003 = vmatpush1.msra.mxu0 0.0
  %3004 = vmatprep.subr.mxu0 0.0
  %3005 = vmatpush1.msra.mxu0 0.0
  %3006 = vmatprep.subr.mxu0 0.0
  %3007 = vmatpush1.msra.mxu0 0.0
  %3008 = vmatprep.subr.mxu0 0.0
  %3009 = vmatpush1.msra.mxu0 0.0
  %3010 = vmatprep.subr.mxu0 0.0
  %3011 = vmatpush1.msra.mxu0 0.0
  %3012 = vmatprep.subr.mxu0 0.0
  %3013 = vmatpush1.msra.mxu0 0.0
  %3014 = vmatprep.subr.mxu0 0.0
  %3015 = vmatpush1.msra.mxu0 0.0
  %3016 = vmatprep.subr.mxu0 0.0
  %3017 = vmatpush1.msra.mxu0 0.0
  %3018 = vmatprep.subr.mxu0 0.0
  %3019 = vmatpush1.msra.mxu0 0.0
  %3020 = vmatprep.subr.mxu0 0.0
  %3021 = vmatpush1.msra.mxu0 0.0
  %3022 = vmatprep.subr.mxu0 0.0
  %3023 = vmatpush1.msra.mxu0 0.0
  %3024 = vmatprep.subr.mxu0 0.0
  %3025 = vmatpush1.msra.mxu0 0.0
  %3026 = vmatprep.subr.mxu0 0.0
  %3027 = vmatpush1.msra.mxu0 0.0
  %3028 = vmatprep.subr.mxu0 0.0
  %3029 = vmatpush1.msra.mxu0 0.0
  %3030 = vmatprep.subr.mxu0 0.0
  %3031 = vmatpush1.msra.mxu0 0.0
  %3032 = vmatprep.subr.mxu0 0.0
  %3033 = vmatpush1.msra.mxu0 0.0
  %3034 = vmatprep.subr.mxu0 0.0
  %3035 = vmatpush1.msra.mxu0 0.0
  %3036 = vmatprep.subr.mxu0 0.0
  %3037 = vmatpush1.msra.mxu0 0.0
  %3038 = vmatprep.subr.mxu0 0.0
  %3039 = vmatpush1.msra.mxu0 0.0
  %3040 = vmatprep.subr.mxu0 0.0
  %3041 = vmatpush1.msra.mxu0 0.0
  %3042 = vmatprep.subr.mxu0 0.0
  %3043 = vmatpush1.msra.mxu0 0.0
  %3044 = vmatprep.subr.mxu0 0.0
  %3045 = vmatpush1.msra.mxu0 0.0
  %3046 = vmatprep.subr.mxu0 0.0
  %3047 = vmatpush1.msra.mxu0 0.0
  %3048 = vmatprep.subr.mxu0 0.0
  %3049 = vmatpush1.msra.mxu0 0.0
  %3050 = vmatprep.subr.mxu0 0.0
  %3051 = vmatpush1.msra.mxu0 0.0
  %3052 = vmatprep.subr.mxu0 0.0
  %3053 = vmatpush1.msra.mxu0 0.0
  %3054 = vmatprep.subr.mxu0 0.0
  %3055 = vmatpush1.msra.mxu0 0.0
  %3056 = vmatprep.mubr.f32.mxu0 0.0
  %3057 = vmatmul.mubr.f32.gmra.mrb[0].mxu0 %v2798
  %v3058 = vpop.f32.mrb[0].mxu0
  %v3059 = vadd.f32 0.0, %v3058
  %v3060 = vpop.f32.mrb[0].mxu0
  %3061 = vmatprep.mubr.f32.mxu0 0.0
  %3062 = vmatmul.mubr.f32.gmra.mrb[0].mxu0 %v2801
  %v3063 = vpop.f32.mrb[0].mxu0
  %v3064 = vadd.f32 0.0, %v3063
  %v3065 = vpop.f32.mrb[0].mxu0
  %3066 = vmatprep.mubr.f32.mxu0 0.0
  %3067 = vmatmul.mubr.f32.gmra.mrb[0].mxu0 %v2804
  %v3068 = vpop.f32.mrb[0].mxu0
  %v3069 = vadd.f32 0.0, %v3068
  %v3070 = vpop.f32.mrb[0].mxu0
  %3071 = vmatprep.mubr.f32.mxu0 0.0
  %3072 = vmatmul.mubr.f32.gmra.mrb[0].mxu0 %v2807
  %v3073 = vpop.f32.mrb[0].mxu0
  %v3074 = vadd.f32 0.0, %v3073
  %v3075 = vpop.f32.mrb[0].mxu0
  %3076 = vmatprep.mubr.f32.mxu0 0.0
  %3077 = vmatmul.mubr.f32.gmra.mrb[0].mxu0 %v2810
  %v3078 = vpop.f32.mrb[0].mxu0
  %v3079 = vadd.f32 0.0, %v3078
  %v3080 = vpop.f32.mrb[0].mxu0
  %3081 = vmatprep.mubr.f32.mxu0 0.0
  %3082 = vmatmul.mubr.f32.gmra.mrb[0].mxu0 %v2813
  %v3083 = vpop.f32.mrb[0].mxu0
  %v3084 = vadd.f32 0.0, %v3083
  %v3085 = vpop.f32.mrb[0].mxu0
  %3086 = vmatprep.mubr.f32.mxu0 0.0
  %3087 = vmatmul.mubr.f32.gmra.mrb[0].mxu0 %v2816
  %v3088 = vpop.f32.mrb[0].mxu0
  %v3089 = vadd.f32 0.0, %v3088
  %v3090 = vpop.f32.mrb[0].mxu0
  %3091 = vmatprep.mubr.f32.mxu0 0.0
  %3092 = vmatmul.mubr.f32.gmra.mrb[0].mxu0 %v2819
  %v3093 = vpop.f32.mrb[0].mxu0
  %v3094 = vadd.f32 0.0, %v3093
  %v3095 = vpop.f32.mrb[0].mxu0
  %3096 = vmatprep.mubr.f32.mxu0 0.0
  %3097 = vmatmul.mubr.f32.gmra.mrb[0].mxu0 %v2822
  %v3098 = vpop.f32.mrb[0].mxu0
  %v3099 = vadd.f32 0.0, %v3098
  %v3100 = vpop.f32.mrb[0].mxu0
  %3101 = vmatprep.mubr.f32.mxu0 0.0
  %3102 = vmatmul.mubr.f32.gmra.mrb[0].mxu0 %v2825
  %v3103 = vpop.f32.mrb[0].mxu0
  %v3104 = vadd.f32 0.0, %v3103
  %v3105 = vpop.f32.mrb[0].mxu0
  %3106 = vmatprep.mubr.f32.mxu0 0.0
  %3107 = vmatmul.mubr.f32.gmra.mrb[0].mxu0 %v2828
  %v3108 = vpop.f32.mrb[0].mxu0
  %v3109 = vadd.f32 0.0, %v3108
  %v3110 = vpop.f32.mrb[0].mxu0
  %3111 = vmatprep.mubr.f32.mxu0 0.0
  %3112 = vmatmul.mubr.f32.gmra.mrb[0].mxu0 %v2831
  %v3113 = vpop.f32.mrb[0].mxu0
  %v3114 = vadd.f32 0.0, %v3113
  %v3115 = vpop.f32.mrb[0].mxu0
  %3116 = vmatprep.mubr.f32.mxu0 0.0
  %3117 = vmatmul.mubr.f32.gmra.mrb[0].mxu0 %v2834
  %v3118 = vpop.f32.mrb[0].mxu0
  %v3119 = vadd.f32 0.0, %v3118
  %v3120 = vpop.f32.mrb[0].mxu0
  %3121 = vmatprep.mubr.f32.mxu0 0.0
  %3122 = vmatmul.mubr.f32.gmra.mrb[0].mxu0 %v2837
  %v3123 = vpop.f32.mrb[0].mxu0
  %v3124 = vadd.f32 0.0, %v3123
  %v3125 = vpop.f32.mrb[0].mxu0
  %3126 = vmatprep.mubr.f32.mxu0 0.0
  %3127 = vmatmul.mubr.f32.gmra.mrb[0].mxu0 %v2840
  %v3128 = vpop.f32.mrb[0].mxu0
  %v3129 = vadd.f32 0.0, %v3128
  %v3130 = vpop.f32.mrb[0].mxu0
  %3131 = vmatprep.mubr.f32.mxu0 0.0
  %3132 = vmatmul.mubr.f32.gmra.mrb[0].mxu0 %v2843
  %v3133 = vpop.f32.mrb[0].mxu0
  %v3134 = vadd.f32 0.0, %v3133
  %v3135 = vpop.f32.mrb[0].mxu0
  %3136 = vmatprep.mubr.f32.mxu0 0.0
  %3137 = vmatmul.mubr.f32.gmra.mrb[0].mxu0 %v2846
  %v3138 = vpop.f32.mrb[0].mxu0
  %v3139 = vadd.f32 0.0, %v3138
  %v3140 = vpop.f32.mrb[0].mxu0
  %3141 = vmatprep.mubr.f32.mxu0 0.0
  %3142 = vmatmul.mubr.f32.gmra.mrb[0].mxu0 %v2849
  %v3143 = vpop.f32.mrb[0].mxu0
  %v3144 = vadd.f32 0.0, %v3143
  %v3145 = vpop.f32.mrb[0].mxu0
  %3146 = vmatprep.mubr.f32.mxu0 0.0
  %3147 = vmatmul.mubr.f32.gmra.mrb[0].mxu0 %v2852
  %v3148 = vpop.f32.mrb[0].mxu0
  %v3149 = vadd.f32 0.0, %v3148
  %v3150 = vpop.f32.mrb[0].mxu0
  %3151 = vmatprep.mubr.f32.mxu0 0.0
  %3152 = vmatmul.mubr.f32.gmra.mrb[0].mxu0 %v2855
  %v3153 = vpop.f32.mrb[0].mxu0
  %v3154 = vadd.f32 0.0, %v3153
  %v3155 = vpop.f32.mrb[0].mxu0
  %3156 = vmatprep.mubr.f32.mxu0 0.0
  %3157 = vmatmul.mubr.f32.gmra.mrb[0].mxu0 %v2858
  %v3158 = vpop.f32.mrb[0].mxu0
  %v3159 = vadd.f32 0.0, %v3158
  %v3160 = vpop.f32.mrb[0].mxu0
  %3161 = vmatprep.mubr.f32.mxu0 0.0
  %3162 = vmatmul.mubr.f32.gmra.mrb[0].mxu0 %v2861
  %v3163 = vpop.f32.mrb[0].mxu0
  %v3164 = vadd.f32 0.0, %v3163
  %v3165 = vpop.f32.mrb[0].mxu0
  %3166 = vmatprep.mubr.f32.mxu0 0.0
  %3167 = vmatmul.mubr.f32.gmra.mrb[0].mxu0 %v2864
  %v3168 = vpop.f32.mrb[0].mxu0
  %v3169 = vadd.f32 0.0, %v3168
  %v3170 = vpop.f32.mrb[0].mxu0
  %3171 = vmatprep.mubr.f32.mxu0 0.0
  %3172 = vmatmul.mubr.f32.gmra.mrb[0].mxu0 %v2867
  %v3173 = vpop.f32.mrb[0].mxu0
  %v3174 = vadd.f32 0.0, %v3173
  %v3175 = vpop.f32.mrb[0].mxu0
  %3176 = vmatprep.mubr.f32.mxu0 0.0
  %3177 = vmatmul.mubr.f32.gmra.mrb[0].mxu0 %v2870
  %v3178 = vpop.f32.mrb[0].mxu0
  %v3179 = vadd.f32 0.0, %v3178
  %v3180 = vpop.f32.mrb[0].mxu0
  %3181 = vmatprep.mubr.f32.mxu0 0.0
  %3182 = vmatmul.mubr.f32.gmra.mrb[0].mxu0 %v2873
  %v3183 = vpop.f32.mrb[0].mxu0
  %v3184 = vadd.f32 0.0, %v3183
  %v3185 = vpop.f32.mrb[0].mxu0
  %3186 = vmatprep.mubr.f32.mxu0 0.0
  %3187 = vmatmul.mubr.f32.gmra.mrb[0].mxu0 %v2876
  %v3188 = vpop.f32.mrb[0].mxu0
  %v3189 = vadd.f32 0.0, %v3188
  %v3190 = vpop.f32.mrb[0].mxu0
  %3191 = vmatprep.mubr.f32.mxu0 0.0
  %3192 = vmatmul.mubr.f32.gmra.mrb[0].mxu0 %v2879
  %v3193 = vpop.f32.mrb[0].mxu0
  %v3194 = vadd.f32 0.0, %v3193
  %v3195 = vpop.f32.mrb[0].mxu0
  %3196 = vmatprep.mubr.f32.mxu0 0.0
  %3197 = vmatmul.mubr.f32.gmra.mrb[0].mxu0 %v2882
  %v3198 = vpop.f32.mrb[0].mxu0
  %v3199 = vadd.f32 0.0, %v3198
  %v3200 = vpop.f32.mrb[0].mxu0
  %3201 = vmatprep.mubr.f32.mxu0 0.0
  %3202 = vmatmul.mubr.f32.gmra.mrb[0].mxu0 %v2885
  %v3203 = vpop.f32.mrb[0].mxu0
  %v3204 = vadd.f32 0.0, %v3203
  %v3205 = vpop.f32.mrb[0].mxu0
  %3206 = vmatprep.mubr.f32.mxu0 0.0
  %3207 = vmatmul.mubr.f32.gmra.mrb[0].mxu0 %v2888
  %v3208 = vpop.f32.mrb[0].mxu0
  %v3209 = vadd.f32 0.0, %v3208
  %v3210 = vpop.f32.mrb[0].mxu0
  %3211 = vmatprep.mubr.f32.mxu0 0.0
  %3212 = vmatmul.mubr.f32.gmra.mrb[0].mxu0 %v2891
  %v3213 = vpop.f32.mrb[0].mxu0
  %v3214 = vadd.f32 0.0, %v3213
  %v3215 = vpop.f32.mrb[0].mxu0
  %3216 = vmatprep.mubr.f32.mxu0 0.0
  %3217 = vmatmul.mubr.f32.gmra.mrb[0].mxu0 %v2894
  %v3218 = vpop.f32.mrb[0].mxu0
  %v3219 = vadd.f32 0.0, %v3218
  %v3220 = vpop.f32.mrb[0].mxu0
  %3221 = vmatprep.mubr.f32.mxu0 0.0
  %3222 = vmatmul.mubr.f32.gmra.mrb[0].mxu0 %v2897
  %v3223 = vpop.f32.mrb[0].mxu0
  %v3224 = vadd.f32 0.0, %v3223
  %v3225 = vpop.f32.mrb[0].mxu0
  %3226 = vmatprep.mubr.f32.mxu0 0.0
  %3227 = vmatmul.mubr.f32.gmra.mrb[0].mxu0 %v2900
  %v3228 = vpop.f32.mrb[0].mxu0
  %v3229 = vadd.f32 0.0, %v3228
  %v3230 = vpop.f32.mrb[0].mxu0
  %3231 = vmatprep.mubr.f32.mxu0 0.0
  %3232 = vmatmul.mubr.f32.gmra.mrb[0].mxu0 %v2903
  %v3233 = vpop.f32.mrb[0].mxu0
  %v3234 = vadd.f32 0.0, %v3233
  %v3235 = vpop.f32.mrb[0].mxu0
  %3236 = vmatprep.mubr.f32.mxu0 0.0
  %3237 = vmatmul.mubr.f32.gmra.mrb[0].mxu0 %v2906
  %v3238 = vpop.f32.mrb[0].mxu0
  %v3239 = vadd.f32 0.0, %v3238
  %v3240 = vpop.f32.mrb[0].mxu0
  %3241 = vmatprep.mubr.f32.mxu0 0.0
  %3242 = vmatmul.mubr.f32.gmra.mrb[0].mxu0 %v2909
  %v3243 = vpop.f32.mrb[0].mxu0
  %v3244 = vadd.f32 0.0, %v3243
  %v3245 = vpop.f32.mrb[0].mxu0
  %3246 = vmatprep.mubr.f32.mxu0 0.0
  %3247 = vmatmul.mubr.f32.gmra.mrb[0].mxu0 %v2912
  %v3248 = vpop.f32.mrb[0].mxu0
  %v3249 = vadd.f32 0.0, %v3248
  %v3250 = vpop.f32.mrb[0].mxu0
  %3251 = vmatprep.mubr.f32.mxu0 0.0
  %3252 = vmatmul.mubr.f32.gmra.mrb[0].mxu0 %v2915
  %v3253 = vpop.f32.mrb[0].mxu0
  %v3254 = vadd.f32 0.0, %v3253
  %v3255 = vpop.f32.mrb[0].mxu0
  %3256 = vmatprep.mubr.f32.mxu0 0.0
  %3257 = vmatmul.mubr.f32.gmra.mrb[0].mxu0 %v2918
  %v3258 = vpop.f32.mrb[0].mxu0
  %v3259 = vadd.f32 0.0, %v3258
  %v3260 = vpop.f32.mrb[0].mxu0
  %3261 = vmatprep.mubr.f32.mxu0 0.0
  %3262 = vmatmul.mubr.f32.gmra.mrb[0].mxu0 %v2921
  %v3263 = vpop.f32.mrb[0].mxu0
  %v3264 = vadd.f32 0.0, %v3263
  %v3265 = vpop.f32.mrb[0].mxu0
  %3266 = vmatprep.mubr.f32.mxu0 0.0
  %3267 = vmatmul.mubr.f32.gmra.mrb[0].mxu0 %v2924
  %v3268 = vpop.f32.mrb[0].mxu0
  %v3269 = vadd.f32 0.0, %v3268
  %v3270 = vpop.f32.mrb[0].mxu0
  %3271 = vmatprep.mubr.f32.mxu0 0.0
  %3272 = vmatmul.mubr.f32.gmra.mrb[0].mxu0 %v2927
  %v3273 = vpop.f32.mrb[0].mxu0
  %v3274 = vadd.f32 0.0, %v3273
  %v3275 = vpop.f32.mrb[0].mxu0
  %3276 = vmatprep.mubr.f32.mxu0 0.0
  %3277 = vmatmul.mubr.f32.gmra.mrb[0].mxu0 %v2930
  %v3278 = vpop.f32.mrb[0].mxu0
  %v3279 = vadd.f32 0.0, %v3278
  %v3280 = vpop.f32.mrb[0].mxu0
  %3281 = vmatprep.mubr.f32.mxu0 0.0
  %3282 = vmatmul.mubr.f32.gmra.mrb[0].mxu0 %v2933
  %v3283 = vpop.f32.mrb[0].mxu0
  %v3284 = vadd.f32 0.0, %v3283
  %v3285 = vpop.f32.mrb[0].mxu0
  %3286 = vmatprep.mubr.f32.mxu0 0.0
  %3287 = vmatmul.mubr.f32.gmra.mrb[0].mxu0 %v2936
  %v3288 = vpop.f32.mrb[0].mxu0
  %v3289 = vadd.f32 0.0, %v3288
  %v3290 = vpop.f32.mrb[0].mxu0
  %3291 = vmatprep.mubr.f32.mxu0 0.0
  %3292 = vmatmul.mubr.f32.gmra.mrb[0].mxu0 %v2939
  %v3293 = vpop.f32.mrb[0].mxu0
  %v3294 = vadd.f32 0.0, %v3293
  %v3295 = vpop.f32.mrb[0].mxu0
  %3296 = vmatprep.mubr.f32.mxu0 0.0
  %3297 = vmatmul.mubr.f32.gmra.mrb[0].mxu0 %v2942
  %v3298 = vpop.f32.mrb[0].mxu0
  %v3299 = vadd.f32 0.0, %v3298
  %v3300 = vpop.f32.mrb[0].mxu0
  %3301 = vmatprep.mubr.f32.mxu0 0.0
  %3302 = vmatmul.mubr.f32.gmra.mrb[0].mxu0 %v2945
  %v3303 = vpop.f32.mrb[0].mxu0
  %v3304 = vadd.f32 0.0, %v3303
  %v3305 = vpop.f32.mrb[0].mxu0
  %3306 = vmatprep.mubr.f32.mxu0 0.0
  %3307 = vmatmul.mubr.f32.gmra.mrb[0].mxu0 %v2948
  %v3308 = vpop.f32.mrb[0].mxu0
  %v3309 = vadd.f32 0.0, %v3308
  %v3310 = vpop.f32.mrb[0].mxu0
  %3311 = vmatprep.mubr.f32.mxu0 0.0
  %3312 = vmatmul.mubr.f32.gmra.mrb[0].mxu0 %v2951
  %v3313 = vpop.f32.mrb[0].mxu0
  %v3314 = vadd.f32 0.0, %v3313
  %v3315 = vpop.f32.mrb[0].mxu0
  %3316 = vmatprep.mubr.f32.mxu0 0.0
  %3317 = vmatmul.mubr.f32.gmra.mrb[0].mxu0 %v2954
  %v3318 = vpop.f32.mrb[0].mxu0
  %v3319 = vadd.f32 0.0, %v3318
  %v3320 = vpop.f32.mrb[0].mxu0
  %3321 = vmatprep.mubr.f32.mxu0 0.0
  %3322 = vmatmul.mubr.f32.gmra.mrb[0].mxu0 %v2957
  %v3323 = vpop.f32.mrb[0].mxu0
  %v3324 = vadd.f32 0.0, %v3323
  %v3325 = vpop.f32.mrb[0].mxu0
  %3326 = vmatprep.mubr.f32.mxu0 0.0
  %3327 = vmatmul.mubr.f32.gmra.mrb[0].mxu0 %v2960
  %v3328 = vpop.f32.mrb[0].mxu0
  %v3329 = vadd.f32 0.0, %v3328
  %v3330 = vpop.f32.mrb[0].mxu0
  %3331 = vmatprep.mubr.f32.mxu0 0.0
  %3332 = vmatmul.mubr.f32.gmra.mrb[0].mxu0 %v2963
  %v3333 = vpop.f32.mrb[0].mxu0
  %v3334 = vadd.f32 0.0, %v3333
  %v3335 = vpop.f32.mrb[0].mxu0
  %3336 = vmatprep.mubr.f32.mxu0 0.0
  %3337 = vmatmul.mubr.f32.gmra.mrb[0].mxu0 %v2966
  %v3338 = vpop.f32.mrb[0].mxu0
  %v3339 = vadd.f32 0.0, %v3338
  %v3340 = vpop.f32.mrb[0].mxu0
  %3341 = vmatprep.mubr.f32.mxu0 0.0
  %3342 = vmatmul.mubr.f32.gmra.mrb[0].mxu0 %v2969
  %v3343 = vpop.f32.mrb[0].mxu0
  %v3344 = vadd.f32 0.0, %v3343
  %v3345 = vpop.f32.mrb[0].mxu0
  %3346 = vmatprep.mubr.f32.mxu0 0.0
  %3347 = vmatmul.mubr.f32.gmra.mrb[0].mxu0 %v2972
  %v3348 = vpop.f32.mrb[0].mxu0
  %v3349 = vadd.f32 0.0, %v3348
  %v3350 = vpop.f32.mrb[0].mxu0
  %3351 = vmatprep.mubr.f32.mxu0 0.0
  %3352 = vmatmul.mubr.f32.gmra.mrb[0].mxu0 %v2975
  %v3353 = vpop.f32.mrb[0].mxu0
  %v3354 = vadd.f32 0.0, %v3353
  %v3355 = vpop.f32.mrb[0].mxu0
  %3356 = vmatprep.mubr.f32.mxu0 0.0
  %3357 = vmatmul.mubr.f32.gmra.mrb[0].mxu0 %v2978
  %v3358 = vpop.f32.mrb[0].mxu0
  %v3359 = vadd.f32 0.0, %v3358
  %v3360 = vpop.f32.mrb[0].mxu0
  %3361 = vmatprep.mubr.f32.mxu0 0.0
  %3362 = vmatmul.mubr.f32.gmra.mrb[0].mxu0 %v2981
  %v3363 = vpop.f32.mrb[0].mxu0
  %v3364 = vadd.f32 0.0, %v3363
  %v3365 = vpop.f32.mrb[0].mxu0
  %3366 = vmatprep.mubr.f32.mxu0 0.0
  %3367 = vmatmul.mubr.f32.gmra.mrb[0].mxu0 %v2984
  %v3368 = vpop.f32.mrb[0].mxu0
  %v3369 = vadd.f32 0.0, %v3368
  %v3370 = vpop.f32.mrb[0].mxu0
  %3371 = vmatprep.mubr.f32.mxu0 0.0
  %3372 = vmatmul.mubr.f32.gmra.mrb[0].mxu0 %v2987
  %v3373 = vpop.f32.mrb[0].mxu0
  %v3374 = vadd.f32 0.0, %v3373
  %v3375 = vpop.f32.mrb[0].mxu0
  %3376 = vdwg.mxu0
  %v3377 = vadd.f32 %v2667, %v3059
  %v3378 = vadd.f32 %v2668, %v3064
  %v3379 = vadd.f32 %v2669, %v3069
  %v3380 = vadd.f32 %v2670, %v3074
  %v3381 = vadd.f32 %v2671, %v3079
  %v3382 = vadd.f32 %v2672, %v3084
  %v3383 = vadd.f32 %v2673, %v3089
  %v3384 = vadd.f32 %v2674, %v3094
  %v3385 = vadd.f32 %v2675, %v3099
  %v3386 = vadd.f32 %v2676, %v3104
  %v3387 = vadd.f32 %v2677, %v3109
  %v3388 = vadd.f32 %v2678, %v3114
  %v3389 = vadd.f32 %v2679, %v3119
  %v3390 = vadd.f32 %v2680, %v3124
  %v3391 = vadd.f32 %v2681, %v3129
  %v3392 = vadd.f32 %v2682, %v3134
  %v3393 = vadd.f32 %v2683, %v3139
  %v3394 = vadd.f32 %v2684, %v3144
  %v3395 = vadd.f32 %v2685, %v3149
  %v3396 = vadd.f32 %v2686, %v3154
  %v3397 = vadd.f32 %v2687, %v3159
  %v3398 = vadd.f32 %v2688, %v3164
  %v3399 = vadd.f32 %v2689, %v3169
  %v3400 = vadd.f32 %v2690, %v3174
  %v3401 = vadd.f32 %v2691, %v3179
  %v3402 = vadd.f32 %v2692, %v3184
  %v3403 = vadd.f32 %v2693, %v3189
  %v3404 = vadd.f32 %v2694, %v3194
  %v3405 = vadd.f32 %v2695, %v3199
  %v3406 = vadd.f32 %v2696, %v3204
  %v3407 = vadd.f32 %v2697, %v3209
  %v3408 = vadd.f32 %v2698, %v3214
  %v3409 = vadd.f32 %v2699, %v3219
  %v3410 = vadd.f32 %v2700, %v3224
  %v3411 = vadd.f32 %v2701, %v3229
  %v3412 = vadd.f32 %v2702, %v3234
  %v3413 = vadd.f32 %v2703, %v3239
  %v3414 = vadd.f32 %v2704, %v3244
  %v3415 = vadd.f32 %v2705, %v3249
  %v3416 = vadd.f32 %v2706, %v3254
  %v3417 = vadd.f32 %v2707, %v3259
  %v3418 = vadd.f32 %v2708, %v3264
  %v3419 = vadd.f32 %v2709, %v3269
  %v3420 = vadd.f32 %v2710, %v3274
  %v3421 = vadd.f32 %v2711, %v3279
  %v3422 = vadd.f32 %v2712, %v3284
  %v3423 = vadd.f32 %v2713, %v3289
  %v3424 = vadd.f32 %v2714, %v3294
  %v3425 = vadd.f32 %v2715, %v3299
  %v3426 = vadd.f32 %v2716, %v3304
  %v3427 = vadd.f32 %v2717, %v3309
  %v3428 = vadd.f32 %v2718, %v3314
  %v3429 = vadd.f32 %v2719, %v3319
  %v3430 = vadd.f32 %v2720, %v3324
  %v3431 = vadd.f32 %v2721, %v3329
  %v3432 = vadd.f32 %v2722, %v3334
  %v3433 = vadd.f32 %v2723, %v3339
  %v3434 = vadd.f32 %v2724, %v3344
  %v3435 = vadd.f32 %v2725, %v3349
  %v3436 = vadd.f32 %v2726, %v3354
  %v3437 = vadd.f32 %v2727, %v3359
  %v3438 = vadd.f32 %v2728, %v3364
  %v3439 = vadd.f32 %v2729, %v3369
  %v3440 = vadd.f32 %v2730, %v3374
  %v3441 = vld [vmem:[%s2020 + $0x2] sm:$0xff]
  %v3442 = vld [vmem:[%s2020 + $0xa] sm:$0xff]
  %v3443 = vld [vmem:[%s2020 + $0x1a] sm:$0xff]
  %v3444 = vld [vmem:[%s2020 + $0x22] sm:$0xff]
  %v3445 = vld [vmem:[%s2020 + $0x32] sm:$0xff]
  %v3446 = vld [vmem:[%s2020 + $0x3a] sm:$0xff]
  %v3447 = vld [vmem:[%s2020 + $0x4a] sm:$0xff]
  %v3448 = vld [vmem:[%s2020 + $0x52] sm:$0xff]
  %v3449 = vld [vmem:[%s2020 + $0x62] sm:$0xff]
  %v3450 = vld [vmem:[%s2020 + $0x6a] sm:$0xff]
  %v3451 = vld [vmem:[%s2020 + $0x7a] sm:$0xff]
  %v3452 = vld [vmem:[%s2020 + $0x82] sm:$0xff]
  %v3453 = vld [vmem:[%s2020 + $0x92] sm:$0xff]
  %v3454 = vld [vmem:[%s2020 + $0x9a] sm:$0xff]
  %v3455 = vld [vmem:[%s2020 + $0xaa] sm:$0xff]
  %v3456 = vld [vmem:[%s2020 + $0xb2] sm:$0xff]
  %v3457 = vld [vmem:[%s2020 + $0xc2] sm:$0xff]
  %v3458 = vld [vmem:[%s2020 + $0xca] sm:$0xff]
  %v3459 = vld [vmem:[%s2020 + $0xda] sm:$0xff]
  %v3460 = vld [vmem:[%s2020 + $0xe2] sm:$0xff]
  %v3461 = vld [vmem:[%s2020 + $0xf2] sm:$0xff]
  %v3462 = vld [vmem:[%s2020 + $0xfa] sm:$0xff]
  %v3463 = vld [vmem:[%s2020 + $0x10a] sm:$0xff]
  %v3464 = vld [vmem:[%s2020 + $0x112] sm:$0xff]
  %v3465 = vld [vmem:[%s2020 + $0x122] sm:$0xff]
  %v3466 = vld [vmem:[%s2020 + $0x12a] sm:$0xff]
  %v3467 = vld [vmem:[%s2020 + $0x13a] sm:$0xff]
  %v3468 = vld [vmem:[%s2020 + $0x142] sm:$0xff]
  %v3469 = vld [vmem:[%s2020 + $0x152] sm:$0xff]
  %v3470 = vld [vmem:[%s2020 + $0x15a] sm:$0xff]
  %v3471 = vld [vmem:[%s2020 + $0x16a] sm:$0xff]
  %v3472 = vld [vmem:[%s2020 + $0x172] sm:$0xff]
  %v3473 = vld [vmem:[%s2020 + $0x1b2] sm:$0xff]
  %v3474 = vld [vmem:[%s2020 + $0x1ba] sm:$0xff]
  %v3475 = vld [vmem:[%s2020 + $0x1ca] sm:$0xff]
  %v3476 = vld [vmem:[%s2020 + $0x1d2] sm:$0xff]
  %v3477 = vld [vmem:[%s2020 + $0x1e2] sm:$0xff]
  %v3478 = vld [vmem:[%s2020 + $0x1ea] sm:$0xff]
  %v3479 = vld [vmem:[%s2020 + $0x1fa] sm:$0xff]
  %v3480 = vld [vmem:[%s2020 + $0x202] sm:$0xff]
  %v3481 = vld [vmem:[%s2020 + $0x212] sm:$0xff]
  %v3482 = vld [vmem:[%s2020 + $0x21a] sm:$0xff]
  %v3483 = vld [vmem:[%s2020 + $0x22a] sm:$0xff]
  %v3484 = vld [vmem:[%s2020 + $0x232] sm:$0xff]
  %v3485 = vld [vmem:[%s2020 + $0x242] sm:$0xff]
  %v3486 = vld [vmem:[%s2020 + $0x24a] sm:$0xff]
  %v3487 = vld [vmem:[%s2020 + $0x25a] sm:$0xff]
  %v3488 = vld [vmem:[%s2020 + $0x262] sm:$0xff]
  %v3489 = vld [vmem:[%s2020 + $0x272] sm:$0xff]
  %v3490 = vld [vmem:[%s2020 + $0x27a] sm:$0xff]
  %v3491 = vld [vmem:[%s2020 + $0x28a] sm:$0xff]
  %v3492 = vld [vmem:[%s2020 + $0x292] sm:$0xff]
  %v3493 = vld [vmem:[%s2020 + $0x2a2] sm:$0xff]
  %v3494 = vld [vmem:[%s2020 + $0x2aa] sm:$0xff]
  %v3495 = vld [vmem:[%s2020 + $0x2ba] sm:$0xff]
  %v3496 = vld [vmem:[%s2020 + $0x2c2] sm:$0xff]
  %v3497 = vld [vmem:[%s2020 + $0x2d2] sm:$0xff]
  %v3498 = vld [vmem:[%s2020 + $0x2da] sm:$0xff]
  %v3499 = vld [vmem:[%s2020 + $0x2ea] sm:$0xff]
  %v3500 = vld [vmem:[%s2020 + $0x2f2] sm:$0xff]
  %v3501 = vld [vmem:[%s2020 + $0x302] sm:$0xff]
  %v3502 = vld [vmem:[%s2020 + $0x30a] sm:$0xff]
  %v3503 = vld [vmem:[%s2020 + $0x31a] sm:$0xff]
  %v3504 = vld [vmem:[%s2020 + $0x322] sm:$0xff]
  %s3505 = scalar_lea.vmem %s1, 20
  %v3506 = vld [vmem:[%s3505] sm:$0xf]
  %v3508 = vsel %vm148, %v3441, 0
  %v3511 = vsel %vm148, %v3442, 0
  %v3514 = vsel %vm148, %v3443, 0
  %v3517 = vsel %vm148, %v3444, 0
  %v3520 = vsel %vm148, %v3445, 0
  %v3523 = vsel %vm148, %v3446, 0
  %v3526 = vsel %vm148, %v3447, 0
  %v3529 = vsel %vm148, %v3448, 0
  %v3532 = vsel %vm148, %v3449, 0
  %v3535 = vsel %vm148, %v3450, 0
  %v3538 = vsel %vm148, %v3451, 0
  %v3541 = vsel %vm148, %v3452, 0
  %v3544 = vsel %vm148, %v3453, 0
  %v3547 = vsel %vm148, %v3454, 0
  %v3550 = vsel %vm148, %v3455, 0
  %v3553 = vsel %vm148, %v3456, 0
  %v3556 = vsel %vm148, %v3457, 0
  %v3559 = vsel %vm148, %v3458, 0
  %v3562 = vsel %vm148, %v3459, 0
  %v3565 = vsel %vm148, %v3460, 0
  %v3568 = vsel %vm148, %v3461, 0
  %v3571 = vsel %vm148, %v3462, 0
  %v3574 = vsel %vm148, %v3463, 0
  %v3577 = vsel %vm148, %v3464, 0
  %v3580 = vsel %vm148, %v3465, 0
  %v3583 = vsel %vm148, %v3466, 0
  %v3586 = vsel %vm148, %v3467, 0
  %v3589 = vsel %vm148, %v3468, 0
  %v3592 = vsel %vm148, %v3469, 0
  %v3595 = vsel %vm148, %v3470, 0
  %v3598 = vsel %vm148, %v3471, 0
  %v3601 = vsel %vm148, %v3472, 0
  %v3604 = vsel %vm148, %v3473, 0
  %v3607 = vsel %vm148, %v3474, 0
  %v3610 = vsel %vm148, %v3475, 0
  %v3613 = vsel %vm148, %v3476, 0
  %v3616 = vsel %vm148, %v3477, 0
  %v3619 = vsel %vm148, %v3478, 0
  %v3622 = vsel %vm148, %v3479, 0
  %v3625 = vsel %vm148, %v3480, 0
  %v3628 = vsel %vm148, %v3481, 0
  %v3631 = vsel %vm148, %v3482, 0
  %v3634 = vsel %vm148, %v3483, 0
  %v3637 = vsel %vm148, %v3484, 0
  %v3640 = vsel %vm148, %v3485, 0
  %v3643 = vsel %vm148, %v3486, 0
  %v3646 = vsel %vm148, %v3487, 0
  %v3649 = vsel %vm148, %v3488, 0
  %v3652 = vsel %vm148, %v3489, 0
  %v3655 = vsel %vm148, %v3490, 0
  %v3658 = vsel %vm148, %v3491, 0
  %v3661 = vsel %vm148, %v3492, 0
  %v3664 = vsel %vm148, %v3493, 0
  %v3667 = vsel %vm148, %v3494, 0
  %v3670 = vsel %vm148, %v3495, 0
  %v3673 = vsel %vm148, %v3496, 0
  %v3676 = vsel %vm148, %v3497, 0
  %v3679 = vsel %vm148, %v3498, 0
  %v3682 = vsel %vm148, %v3499, 0
  %v3685 = vsel %vm148, %v3500, 0
  %v3688 = vsel %vm148, %v3501, 0
  %v3691 = vsel %vm148, %v3502, 0
  %v3694 = vsel %vm148, %v3503, 0
  %v3697 = vsel %vm148, %v3504, 0
  %v3700 = vsel %vm341, %v3506, 0
  %3702 = vmatprep.subr.mxu0 0.0
  %3703 = vmatpush1.msra.mxu0 %v3700
  %3704 = vmatprep.subr.mxu0 0.0
  %3705 = vmatpush1.msra.mxu0 0.0
  %3706 = vmatprep.subr.mxu0 0.0
  %3707 = vmatpush1.msra.mxu0 0.0
  %3708 = vmatprep.subr.mxu0 0.0
  %3709 = vmatpush1.msra.mxu0 0.0
  %3710 = vmatprep.subr.mxu0 0.0
  %3711 = vmatpush1.msra.mxu0 0.0
  %3712 = vmatprep.subr.mxu0 0.0
  %3713 = vmatpush1.msra.mxu0 0.0
  %3714 = vmatprep.subr.mxu0 0.0
  %3715 = vmatpush1.msra.mxu0 0.0
  %3716 = vmatprep.subr.mxu0 0.0
  %3717 = vmatpush1.msra.mxu0 0.0
  %3718 = vmatprep.subr.mxu0 0.0
  %3719 = vmatpush1.msra.mxu0 0.0
  %3720 = vmatprep.subr.mxu0 0.0
  %3721 = vmatpush1.msra.mxu0 0.0
  %3722 = vmatprep.subr.mxu0 0.0
  %3723 = vmatpush1.msra.mxu0 0.0
  %3724 = vmatprep.subr.mxu0 0.0
  %3725 = vmatpush1.msra.mxu0 0.0
  %3726 = vmatprep.subr.mxu0 0.0
  %3727 = vmatpush1.msra.mxu0 0.0
  %3728 = vmatprep.subr.mxu0 0.0
  %3729 = vmatpush1.msra.mxu0 0.0
  %3730 = vmatprep.subr.mxu0 0.0
  %3731 = vmatpush1.msra.mxu0 0.0
  %3732 = vmatprep.subr.mxu0 0.0
  %3733 = vmatpush1.msra.mxu0 0.0
  %3734 = vmatprep.subr.mxu0 0.0
  %3735 = vmatpush1.msra.mxu0 0.0
  %3736 = vmatprep.subr.mxu0 0.0
  %3737 = vmatpush1.msra.mxu0 0.0
  %3738 = vmatprep.subr.mxu0 0.0
  %3739 = vmatpush1.msra.mxu0 0.0
  %3740 = vmatprep.subr.mxu0 0.0
  %3741 = vmatpush1.msra.mxu0 0.0
  %3742 = vmatprep.subr.mxu0 0.0
  %3743 = vmatpush1.msra.mxu0 0.0
  %3744 = vmatprep.subr.mxu0 0.0
  %3745 = vmatpush1.msra.mxu0 0.0
  %3746 = vmatprep.subr.mxu0 0.0
  %3747 = vmatpush1.msra.mxu0 0.0
  %3748 = vmatprep.subr.mxu0 0.0
  %3749 = vmatpush1.msra.mxu0 0.0
  %3750 = vmatprep.subr.mxu0 0.0
  %3751 = vmatpush1.msra.mxu0 0.0
  %3752 = vmatprep.subr.mxu0 0.0
  %3753 = vmatpush1.msra.mxu0 0.0
  %3754 = vmatprep.subr.mxu0 0.0
  %3755 = vmatpush1.msra.mxu0 0.0
  %3756 = vmatprep.subr.mxu0 0.0
  %3757 = vmatpush1.msra.mxu0 0.0
  %3758 = vmatprep.subr.mxu0 0.0
  %3759 = vmatpush1.msra.mxu0 0.0
  %3760 = vmatprep.subr.mxu0 0.0
  %3761 = vmatpush1.msra.mxu0 0.0
  %3762 = vmatprep.subr.mxu0 0.0
  %3763 = vmatpush1.msra.mxu0 0.0
  %3764 = vmatprep.subr.mxu0 0.0
  %3765 = vmatpush1.msra.mxu0 0.0
  %3766 = vmatprep.mubr.f32.mxu0 0.0
  %3767 = vmatmul.mubr.f32.gmra.mrb[0].mxu0 %v3508
  %v3768 = vpop.f32.mrb[0].mxu0
  %v3769 = vadd.f32 0.0, %v3768
  %v3770 = vpop.f32.mrb[0].mxu0
  %3771 = vmatprep.mubr.f32.mxu0 0.0
  %3772 = vmatmul.mubr.f32.gmra.mrb[0].mxu0 %v3511
  %v3773 = vpop.f32.mrb[0].mxu0
  %v3774 = vadd.f32 0.0, %v3773
  %v3775 = vpop.f32.mrb[0].mxu0
  %3776 = vmatprep.mubr.f32.mxu0 0.0
  %3777 = vmatmul.mubr.f32.gmra.mrb[0].mxu0 %v3514
  %v3778 = vpop.f32.mrb[0].mxu0
  %v3779 = vadd.f32 0.0, %v3778
  %v3780 = vpop.f32.mrb[0].mxu0
  %3781 = vmatprep.mubr.f32.mxu0 0.0
  %3782 = vmatmul.mubr.f32.gmra.mrb[0].mxu0 %v3517
  %v3783 = vpop.f32.mrb[0].mxu0
  %v3784 = vadd.f32 0.0, %v3783
  %v3785 = vpop.f32.mrb[0].mxu0
  %3786 = vmatprep.mubr.f32.mxu0 0.0
  %3787 = vmatmul.mubr.f32.gmra.mrb[0].mxu0 %v3520
  %v3788 = vpop.f32.mrb[0].mxu0
  %v3789 = vadd.f32 0.0, %v3788
  %v3790 = vpop.f32.mrb[0].mxu0
  %3791 = vmatprep.mubr.f32.mxu0 0.0
  %3792 = vmatmul.mubr.f32.gmra.mrb[0].mxu0 %v3523
  %v3793 = vpop.f32.mrb[0].mxu0
  %v3794 = vadd.f32 0.0, %v3793
  %v3795 = vpop.f32.mrb[0].mxu0
  %3796 = vmatprep.mubr.f32.mxu0 0.0
  %3797 = vmatmul.mubr.f32.gmra.mrb[0].mxu0 %v3526
  %v3798 = vpop.f32.mrb[0].mxu0
  %v3799 = vadd.f32 0.0, %v3798
  %v3800 = vpop.f32.mrb[0].mxu0
  %3801 = vmatprep.mubr.f32.mxu0 0.0
  %3802 = vmatmul.mubr.f32.gmra.mrb[0].mxu0 %v3529
  %v3803 = vpop.f32.mrb[0].mxu0
  %v3804 = vadd.f32 0.0, %v3803
  %v3805 = vpop.f32.mrb[0].mxu0
  %3806 = vmatprep.mubr.f32.mxu0 0.0
  %3807 = vmatmul.mubr.f32.gmra.mrb[0].mxu0 %v3532
  %v3808 = vpop.f32.mrb[0].mxu0
  %v3809 = vadd.f32 0.0, %v3808
  %v3810 = vpop.f32.mrb[0].mxu0
  %3811 = vmatprep.mubr.f32.mxu0 0.0
  %3812 = vmatmul.mubr.f32.gmra.mrb[0].mxu0 %v3535
  %v3813 = vpop.f32.mrb[0].mxu0
  %v3814 = vadd.f32 0.0, %v3813
  %v3815 = vpop.f32.mrb[0].mxu0
  %3816 = vmatprep.mubr.f32.mxu0 0.0
  %3817 = vmatmul.mubr.f32.gmra.mrb[0].mxu0 %v3538
  %v3818 = vpop.f32.mrb[0].mxu0
  %v3819 = vadd.f32 0.0, %v3818
  %v3820 = vpop.f32.mrb[0].mxu0
  %3821 = vmatprep.mubr.f32.mxu0 0.0
  %3822 = vmatmul.mubr.f32.gmra.mrb[0].mxu0 %v3541
  %v3823 = vpop.f32.mrb[0].mxu0
  %v3824 = vadd.f32 0.0, %v3823
  %v3825 = vpop.f32.mrb[0].mxu0
  %3826 = vmatprep.mubr.f32.mxu0 0.0
  %3827 = vmatmul.mubr.f32.gmra.mrb[0].mxu0 %v3544
  %v3828 = vpop.f32.mrb[0].mxu0
  %v3829 = vadd.f32 0.0, %v3828
  %v3830 = vpop.f32.mrb[0].mxu0
  %3831 = vmatprep.mubr.f32.mxu0 0.0
  %3832 = vmatmul.mubr.f32.gmra.mrb[0].mxu0 %v3547
  %v3833 = vpop.f32.mrb[0].mxu0
  %v3834 = vadd.f32 0.0, %v3833
  %v3835 = vpop.f32.mrb[0].mxu0
  %3836 = vmatprep.mubr.f32.mxu0 0.0
  %3837 = vmatmul.mubr.f32.gmra.mrb[0].mxu0 %v3550
  %v3838 = vpop.f32.mrb[0].mxu0
  %v3839 = vadd.f32 0.0, %v3838
  %v3840 = vpop.f32.mrb[0].mxu0
  %3841 = vmatprep.mubr.f32.mxu0 0.0
  %3842 = vmatmul.mubr.f32.gmra.mrb[0].mxu0 %v3553
  %v3843 = vpop.f32.mrb[0].mxu0
  %v3844 = vadd.f32 0.0, %v3843
  %v3845 = vpop.f32.mrb[0].mxu0
  %3846 = vmatprep.mubr.f32.mxu0 0.0
  %3847 = vmatmul.mubr.f32.gmra.mrb[0].mxu0 %v3556
  %v3848 = vpop.f32.mrb[0].mxu0
  %v3849 = vadd.f32 0.0, %v3848
  %v3850 = vpop.f32.mrb[0].mxu0
  %3851 = vmatprep.mubr.f32.mxu0 0.0
  %3852 = vmatmul.mubr.f32.gmra.mrb[0].mxu0 %v3559
  %v3853 = vpop.f32.mrb[0].mxu0
  %v3854 = vadd.f32 0.0, %v3853
  %v3855 = vpop.f32.mrb[0].mxu0
  %3856 = vmatprep.mubr.f32.mxu0 0.0
  %3857 = vmatmul.mubr.f32.gmra.mrb[0].mxu0 %v3562
  %v3858 = vpop.f32.mrb[0].mxu0
  %v3859 = vadd.f32 0.0, %v3858
  %v3860 = vpop.f32.mrb[0].mxu0
  %3861 = vmatprep.mubr.f32.mxu0 0.0
  %3862 = vmatmul.mubr.f32.gmra.mrb[0].mxu0 %v3565
  %v3863 = vpop.f32.mrb[0].mxu0
  %v3864 = vadd.f32 0.0, %v3863
  %v3865 = vpop.f32.mrb[0].mxu0
  %3866 = vmatprep.mubr.f32.mxu0 0.0
  %3867 = vmatmul.mubr.f32.gmra.mrb[0].mxu0 %v3568
  %v3868 = vpop.f32.mrb[0].mxu0
  %v3869 = vadd.f32 0.0, %v3868
  %v3870 = vpop.f32.mrb[0].mxu0
  %3871 = vmatprep.mubr.f32.mxu0 0.0
  %3872 = vmatmul.mubr.f32.gmra.mrb[0].mxu0 %v3571
  %v3873 = vpop.f32.mrb[0].mxu0
  %v3874 = vadd.f32 0.0, %v3873
  %v3875 = vpop.f32.mrb[0].mxu0
  %3876 = vmatprep.mubr.f32.mxu0 0.0
  %3877 = vmatmul.mubr.f32.gmra.mrb[0].mxu0 %v3574
  %v3878 = vpop.f32.mrb[0].mxu0
  %v3879 = vadd.f32 0.0, %v3878
  %v3880 = vpop.f32.mrb[0].mxu0
  %3881 = vmatprep.mubr.f32.mxu0 0.0
  %3882 = vmatmul.mubr.f32.gmra.mrb[0].mxu0 %v3577
  %v3883 = vpop.f32.mrb[0].mxu0
  %v3884 = vadd.f32 0.0, %v3883
  %v3885 = vpop.f32.mrb[0].mxu0
  %3886 = vmatprep.mubr.f32.mxu0 0.0
  %3887 = vmatmul.mubr.f32.gmra.mrb[0].mxu0 %v3580
  %v3888 = vpop.f32.mrb[0].mxu0
  %v3889 = vadd.f32 0.0, %v3888
  %v3890 = vpop.f32.mrb[0].mxu0
  %3891 = vmatprep.mubr.f32.mxu0 0.0
  %3892 = vmatmul.mubr.f32.gmra.mrb[0].mxu0 %v3583
  %v3893 = vpop.f32.mrb[0].mxu0
  %v3894 = vadd.f32 0.0, %v3893
  %v3895 = vpop.f32.mrb[0].mxu0
  %3896 = vmatprep.mubr.f32.mxu0 0.0
  %3897 = vmatmul.mubr.f32.gmra.mrb[0].mxu0 %v3586
  %v3898 = vpop.f32.mrb[0].mxu0
  %v3899 = vadd.f32 0.0, %v3898
  %v3900 = vpop.f32.mrb[0].mxu0
  %3901 = vmatprep.mubr.f32.mxu0 0.0
  %3902 = vmatmul.mubr.f32.gmra.mrb[0].mxu0 %v3589
  %v3903 = vpop.f32.mrb[0].mxu0
  %v3904 = vadd.f32 0.0, %v3903
  %v3905 = vpop.f32.mrb[0].mxu0
  %3906 = vmatprep.mubr.f32.mxu0 0.0
  %3907 = vmatmul.mubr.f32.gmra.mrb[0].mxu0 %v3592
  %v3908 = vpop.f32.mrb[0].mxu0
  %v3909 = vadd.f32 0.0, %v3908
  %v3910 = vpop.f32.mrb[0].mxu0
  %3911 = vmatprep.mubr.f32.mxu0 0.0
  %3912 = vmatmul.mubr.f32.gmra.mrb[0].mxu0 %v3595
  %v3913 = vpop.f32.mrb[0].mxu0
  %v3914 = vadd.f32 0.0, %v3913
  %v3915 = vpop.f32.mrb[0].mxu0
  %3916 = vmatprep.mubr.f32.mxu0 0.0
  %3917 = vmatmul.mubr.f32.gmra.mrb[0].mxu0 %v3598
  %v3918 = vpop.f32.mrb[0].mxu0
  %v3919 = vadd.f32 0.0, %v3918
  %v3920 = vpop.f32.mrb[0].mxu0
  %3921 = vmatprep.mubr.f32.mxu0 0.0
  %3922 = vmatmul.mubr.f32.gmra.mrb[0].mxu0 %v3601
  %v3923 = vpop.f32.mrb[0].mxu0
  %v3924 = vadd.f32 0.0, %v3923
  %v3925 = vpop.f32.mrb[0].mxu0
  %3926 = vmatprep.mubr.f32.mxu0 0.0
  %3927 = vmatmul.mubr.f32.gmra.mrb[0].mxu0 %v3604
  %v3928 = vpop.f32.mrb[0].mxu0
  %v3929 = vadd.f32 0.0, %v3928
  %v3930 = vpop.f32.mrb[0].mxu0
  %3931 = vmatprep.mubr.f32.mxu0 0.0
  %3932 = vmatmul.mubr.f32.gmra.mrb[0].mxu0 %v3607
  %v3933 = vpop.f32.mrb[0].mxu0
  %v3934 = vadd.f32 0.0, %v3933
  %v3935 = vpop.f32.mrb[0].mxu0
  %3936 = vmatprep.mubr.f32.mxu0 0.0
  %3937 = vmatmul.mubr.f32.gmra.mrb[0].mxu0 %v3610
  %v3938 = vpop.f32.mrb[0].mxu0
  %v3939 = vadd.f32 0.0, %v3938
  %v3940 = vpop.f32.mrb[0].mxu0
  %3941 = vmatprep.mubr.f32.mxu0 0.0
  %3942 = vmatmul.mubr.f32.gmra.mrb[0].mxu0 %v3613
  %v3943 = vpop.f32.mrb[0].mxu0
  %v3944 = vadd.f32 0.0, %v3943
  %v3945 = vpop.f32.mrb[0].mxu0
  %3946 = vmatprep.mubr.f32.mxu0 0.0
  %3947 = vmatmul.mubr.f32.gmra.mrb[0].mxu0 %v3616
  %v3948 = vpop.f32.mrb[0].mxu0
  %v3949 = vadd.f32 0.0, %v3948
  %v3950 = vpop.f32.mrb[0].mxu0
  %3951 = vmatprep.mubr.f32.mxu0 0.0
  %3952 = vmatmul.mubr.f32.gmra.mrb[0].mxu0 %v3619
  %v3953 = vpop.f32.mrb[0].mxu0
  %v3954 = vadd.f32 0.0, %v3953
  %v3955 = vpop.f32.mrb[0].mxu0
  %3956 = vmatprep.mubr.f32.mxu0 0.0
  %3957 = vmatmul.mubr.f32.gmra.mrb[0].mxu0 %v3622
  %v3958 = vpop.f32.mrb[0].mxu0
  %v3959 = vadd.f32 0.0, %v3958
  %v3960 = vpop.f32.mrb[0].mxu0
  %3961 = vmatprep.mubr.f32.mxu0 0.0
  %3962 = vmatmul.mubr.f32.gmra.mrb[0].mxu0 %v3625
  %v3963 = vpop.f32.mrb[0].mxu0
  %v3964 = vadd.f32 0.0, %v3963
  %v3965 = vpop.f32.mrb[0].mxu0
  %3966 = vmatprep.mubr.f32.mxu0 0.0
  %3967 = vmatmul.mubr.f32.gmra.mrb[0].mxu0 %v3628
  %v3968 = vpop.f32.mrb[0].mxu0
  %v3969 = vadd.f32 0.0, %v3968
  %v3970 = vpop.f32.mrb[0].mxu0
  %3971 = vmatprep.mubr.f32.mxu0 0.0
  %3972 = vmatmul.mubr.f32.gmra.mrb[0].mxu0 %v3631
  %v3973 = vpop.f32.mrb[0].mxu0
  %v3974 = vadd.f32 0.0, %v3973
  %v3975 = vpop.f32.mrb[0].mxu0
  %3976 = vmatprep.mubr.f32.mxu0 0.0
  %3977 = vmatmul.mubr.f32.gmra.mrb[0].mxu0 %v3634
  %v3978 = vpop.f32.mrb[0].mxu0
  %v3979 = vadd.f32 0.0, %v3978
  %v3980 = vpop.f32.mrb[0].mxu0
  %3981 = vmatprep.mubr.f32.mxu0 0.0
  %3982 = vmatmul.mubr.f32.gmra.mrb[0].mxu0 %v3637
  %v3983 = vpop.f32.mrb[0].mxu0
  %v3984 = vadd.f32 0.0, %v3983
  %v3985 = vpop.f32.mrb[0].mxu0
  %3986 = vmatprep.mubr.f32.mxu0 0.0
  %3987 = vmatmul.mubr.f32.gmra.mrb[0].mxu0 %v3640
  %v3988 = vpop.f32.mrb[0].mxu0
  %v3989 = vadd.f32 0.0, %v3988
  %v3990 = vpop.f32.mrb[0].mxu0
  %3991 = vmatprep.mubr.f32.mxu0 0.0
  %3992 = vmatmul.mubr.f32.gmra.mrb[0].mxu0 %v3643
  %v3993 = vpop.f32.mrb[0].mxu0
  %v3994 = vadd.f32 0.0, %v3993
  %v3995 = vpop.f32.mrb[0].mxu0
  %3996 = vmatprep.mubr.f32.mxu0 0.0
  %3997 = vmatmul.mubr.f32.gmra.mrb[0].mxu0 %v3646
  %v3998 = vpop.f32.mrb[0].mxu0
  %v3999 = vadd.f32 0.0, %v3998
  %v4000 = vpop.f32.mrb[0].mxu0
  %4001 = vmatprep.mubr.f32.mxu0 0.0
  %4002 = vmatmul.mubr.f32.gmra.mrb[0].mxu0 %v3649
  %v4003 = vpop.f32.mrb[0].mxu0
  %v4004 = vadd.f32 0.0, %v4003
  %v4005 = vpop.f32.mrb[0].mxu0
  %4006 = vmatprep.mubr.f32.mxu0 0.0
  %4007 = vmatmul.mubr.f32.gmra.mrb[0].mxu0 %v3652
  %v4008 = vpop.f32.mrb[0].mxu0
  %v4009 = vadd.f32 0.0, %v4008
  %v4010 = vpop.f32.mrb[0].mxu0
  %4011 = vmatprep.mubr.f32.mxu0 0.0
  %4012 = vmatmul.mubr.f32.gmra.mrb[0].mxu0 %v3655
  %v4013 = vpop.f32.mrb[0].mxu0
  %v4014 = vadd.f32 0.0, %v4013
  %v4015 = vpop.f32.mrb[0].mxu0
  %4016 = vmatprep.mubr.f32.mxu0 0.0
  %4017 = vmatmul.mubr.f32.gmra.mrb[0].mxu0 %v3658
  %v4018 = vpop.f32.mrb[0].mxu0
  %v4019 = vadd.f32 0.0, %v4018
  %v4020 = vpop.f32.mrb[0].mxu0
  %4021 = vmatprep.mubr.f32.mxu0 0.0
  %4022 = vmatmul.mubr.f32.gmra.mrb[0].mxu0 %v3661
  %v4023 = vpop.f32.mrb[0].mxu0
  %v4024 = vadd.f32 0.0, %v4023
  %v4025 = vpop.f32.mrb[0].mxu0
  %4026 = vmatprep.mubr.f32.mxu0 0.0
  %4027 = vmatmul.mubr.f32.gmra.mrb[0].mxu0 %v3664
  %v4028 = vpop.f32.mrb[0].mxu0
  %v4029 = vadd.f32 0.0, %v4028
  %v4030 = vpop.f32.mrb[0].mxu0
  %4031 = vmatprep.mubr.f32.mxu0 0.0
  %4032 = vmatmul.mubr.f32.gmra.mrb[0].mxu0 %v3667
  %v4033 = vpop.f32.mrb[0].mxu0
  %v4034 = vadd.f32 0.0, %v4033
  %v4035 = vpop.f32.mrb[0].mxu0
  %4036 = vmatprep.mubr.f32.mxu0 0.0
  %4037 = vmatmul.mubr.f32.gmra.mrb[0].mxu0 %v3670
  %v4038 = vpop.f32.mrb[0].mxu0
  %v4039 = vadd.f32 0.0, %v4038
  %v4040 = vpop.f32.mrb[0].mxu0
  %4041 = vmatprep.mubr.f32.mxu0 0.0
  %4042 = vmatmul.mubr.f32.gmra.mrb[0].mxu0 %v3673
  %v4043 = vpop.f32.mrb[0].mxu0
  %v4044 = vadd.f32 0.0, %v4043
  %v4045 = vpop.f32.mrb[0].mxu0
  %4046 = vmatprep.mubr.f32.mxu0 0.0
  %4047 = vmatmul.mubr.f32.gmra.mrb[0].mxu0 %v3676
  %v4048 = vpop.f32.mrb[0].mxu0
  %v4049 = vadd.f32 0.0, %v4048
  %v4050 = vpop.f32.mrb[0].mxu0
  %4051 = vmatprep.mubr.f32.mxu0 0.0
  %4052 = vmatmul.mubr.f32.gmra.mrb[0].mxu0 %v3679
  %v4053 = vpop.f32.mrb[0].mxu0
  %v4054 = vadd.f32 0.0, %v4053
  %v4055 = vpop.f32.mrb[0].mxu0
  %4056 = vmatprep.mubr.f32.mxu0 0.0
  %4057 = vmatmul.mubr.f32.gmra.mrb[0].mxu0 %v3682
  %v4058 = vpop.f32.mrb[0].mxu0
  %v4059 = vadd.f32 0.0, %v4058
  %v4060 = vpop.f32.mrb[0].mxu0
  %4061 = vmatprep.mubr.f32.mxu0 0.0
  %4062 = vmatmul.mubr.f32.gmra.mrb[0].mxu0 %v3685
  %v4063 = vpop.f32.mrb[0].mxu0
  %v4064 = vadd.f32 0.0, %v4063
  %v4065 = vpop.f32.mrb[0].mxu0
  %4066 = vmatprep.mubr.f32.mxu0 0.0
  %4067 = vmatmul.mubr.f32.gmra.mrb[0].mxu0 %v3688
  %v4068 = vpop.f32.mrb[0].mxu0
  %v4069 = vadd.f32 0.0, %v4068
  %v4070 = vpop.f32.mrb[0].mxu0
  %4071 = vmatprep.mubr.f32.mxu0 0.0
  %4072 = vmatmul.mubr.f32.gmra.mrb[0].mxu0 %v3691
  %v4073 = vpop.f32.mrb[0].mxu0
  %v4074 = vadd.f32 0.0, %v4073
  %v4075 = vpop.f32.mrb[0].mxu0
  %4076 = vmatprep.mubr.f32.mxu0 0.0
  %4077 = vmatmul.mubr.f32.gmra.mrb[0].mxu0 %v3694
  %v4078 = vpop.f32.mrb[0].mxu0
  %v4079 = vadd.f32 0.0, %v4078
  %v4080 = vpop.f32.mrb[0].mxu0
  %4081 = vmatprep.mubr.f32.mxu0 0.0
  %4082 = vmatmul.mubr.f32.gmra.mrb[0].mxu0 %v3697
  %v4083 = vpop.f32.mrb[0].mxu0
  %v4084 = vadd.f32 0.0, %v4083
  %v4085 = vpop.f32.mrb[0].mxu0
  %4086 = vdwg.mxu0
  %v4087 = vadd.f32 %v3377, %v3769
  %v4088 = vadd.f32 %v3378, %v3774
  %v4089 = vadd.f32 %v3379, %v3779
  %v4090 = vadd.f32 %v3380, %v3784
  %v4091 = vadd.f32 %v3381, %v3789
  %v4092 = vadd.f32 %v3382, %v3794
  %v4093 = vadd.f32 %v3383, %v3799
  %v4094 = vadd.f32 %v3384, %v3804
  %v4095 = vadd.f32 %v3385, %v3809
  %v4096 = vadd.f32 %v3386, %v3814
  %v4097 = vadd.f32 %v3387, %v3819
  %v4098 = vadd.f32 %v3388, %v3824
  %v4099 = vadd.f32 %v3389, %v3829
  %v4100 = vadd.f32 %v3390, %v3834
  %v4101 = vadd.f32 %v3391, %v3839
  %v4102 = vadd.f32 %v3392, %v3844
  %v4103 = vadd.f32 %v3393, %v3849
  %v4104 = vadd.f32 %v3394, %v3854
  %v4105 = vadd.f32 %v3395, %v3859
  %v4106 = vadd.f32 %v3396, %v3864
  %v4107 = vadd.f32 %v3397, %v3869
  %v4108 = vadd.f32 %v3398, %v3874
  %v4109 = vadd.f32 %v3399, %v3879
  %v4110 = vadd.f32 %v3400, %v3884
  %v4111 = vadd.f32 %v3401, %v3889
  %v4112 = vadd.f32 %v3402, %v3894
  %v4113 = vadd.f32 %v3403, %v3899
  %v4114 = vadd.f32 %v3404, %v3904
  %v4115 = vadd.f32 %v3405, %v3909
  %v4116 = vadd.f32 %v3406, %v3914
  %v4117 = vadd.f32 %v3407, %v3919
  %v4118 = vadd.f32 %v3408, %v3924
  %v4119 = vadd.f32 %v3409, %v3929
  %v4120 = vadd.f32 %v3410, %v3934
  %v4121 = vadd.f32 %v3411, %v3939
  %v4122 = vadd.f32 %v3412, %v3944
  %v4123 = vadd.f32 %v3413, %v3949
  %v4124 = vadd.f32 %v3414, %v3954
  %v4125 = vadd.f32 %v3415, %v3959
  %v4126 = vadd.f32 %v3416, %v3964
  %v4127 = vadd.f32 %v3417, %v3969
  %v4128 = vadd.f32 %v3418, %v3974
  %v4129 = vadd.f32 %v3419, %v3979
  %v4130 = vadd.f32 %v3420, %v3984
  %v4131 = vadd.f32 %v3421, %v3989
  %v4132 = vadd.f32 %v3422, %v3994
  %v4133 = vadd.f32 %v3423, %v3999
  %v4134 = vadd.f32 %v3424, %v4004
  %v4135 = vadd.f32 %v3425, %v4009
  %v4136 = vadd.f32 %v3426, %v4014
  %v4137 = vadd.f32 %v3427, %v4019
  %v4138 = vadd.f32 %v3428, %v4024
  %v4139 = vadd.f32 %v3429, %v4029
  %v4140 = vadd.f32 %v3430, %v4034
  %v4141 = vadd.f32 %v3431, %v4039
  %v4142 = vadd.f32 %v3432, %v4044
  %v4143 = vadd.f32 %v3433, %v4049
  %v4144 = vadd.f32 %v3434, %v4054
  %v4145 = vadd.f32 %v3435, %v4059
  %v4146 = vadd.f32 %v3436, %v4064
  %v4147 = vadd.f32 %v3437, %v4069
  %v4148 = vadd.f32 %v3438, %v4074
  %v4149 = vadd.f32 %v3439, %v4079
  %v4150 = vadd.f32 %v3440, %v4084
  %s4151 = scalar_lea.vmem %s0, 48
  %v4152 = vld [vmem:[%s4151] sm:$0xff]
  %v4153 = vld [vmem:[%s4151 + $0x8] sm:$0xff]
  %v4154 = vld [vmem:[%s4151 + $0x18] sm:$0xff]
  %v4155 = vld [vmem:[%s4151 + $0x20] sm:$0xff]
  %v4156 = vld [vmem:[%s4151 + $0x30] sm:$0xff]
  %v4157 = vld [vmem:[%s4151 + $0x38] sm:$0xff]
  %v4158 = vld [vmem:[%s4151 + $0x48] sm:$0xff]
  %v4159 = vld [vmem:[%s4151 + $0x50] sm:$0xff]
  %v4160 = vld [vmem:[%s4151 + $0x60] sm:$0xff]
  %v4161 = vld [vmem:[%s4151 + $0x68] sm:$0xff]
  %v4162 = vld [vmem:[%s4151 + $0x78] sm:$0xff]
  %v4163 = vld [vmem:[%s4151 + $0x80] sm:$0xff]
  %v4164 = vld [vmem:[%s4151 + $0x90] sm:$0xff]
  %v4165 = vld [vmem:[%s4151 + $0x98] sm:$0xff]
  %v4166 = vld [vmem:[%s4151 + $0xa8] sm:$0xff]
  %v4167 = vld [vmem:[%s4151 + $0xb0] sm:$0xff]
  %v4168 = vld [vmem:[%s4151 + $0xc0] sm:$0xff]
  %v4169 = vld [vmem:[%s4151 + $0xc8] sm:$0xff]
  %v4170 = vld [vmem:[%s4151 + $0xd8] sm:$0xff]
  %v4171 = vld [vmem:[%s4151 + $0xe0] sm:$0xff]
  %v4172 = vld [vmem:[%s4151 + $0xf0] sm:$0xff]
  %v4173 = vld [vmem:[%s4151 + $0xf8] sm:$0xff]
  %v4174 = vld [vmem:[%s4151 + $0x108] sm:$0xff]
  %v4175 = vld [vmem:[%s4151 + $0x110] sm:$0xff]
  %v4176 = vld [vmem:[%s4151 + $0x120] sm:$0xff]
  %v4177 = vld [vmem:[%s4151 + $0x128] sm:$0xff]
  %v4178 = vld [vmem:[%s4151 + $0x138] sm:$0xff]
  %v4179 = vld [vmem:[%s4151 + $0x140] sm:$0xff]
  %v4180 = vld [vmem:[%s4151 + $0x150] sm:$0xff]
  %v4181 = vld [vmem:[%s4151 + $0x158] sm:$0xff]
  %v4182 = vld [vmem:[%s4151 + $0x168] sm:$0xff]
  %v4183 = vld [vmem:[%s4151 + $0x170] sm:$0xff]
  %v4184 = vld [vmem:[%s4151 + $0x1b0] sm:$0xff]
  %v4185 = vld [vmem:[%s4151 + $0x1b8] sm:$0xff]
  %v4186 = vld [vmem:[%s4151 + $0x1c8] sm:$0xff]
  %v4187 = vld [vmem:[%s4151 + $0x1d0] sm:$0xff]
  %v4188 = vld [vmem:[%s4151 + $0x1e0] sm:$0xff]
  %v4189 = vld [vmem:[%s4151 + $0x1e8] sm:$0xff]
  %v4190 = vld [vmem:[%s4151 + $0x1f8] sm:$0xff]
  %v4191 = vld [vmem:[%s4151 + $0x200] sm:$0xff]
  %v4192 = vld [vmem:[%s4151 + $0x210] sm:$0xff]
  %v4193 = vld [vmem:[%s4151 + $0x218] sm:$0xff]
  %v4194 = vld [vmem:[%s4151 + $0x228] sm:$0xff]
  %v4195 = vld [vmem:[%s4151 + $0x230] sm:$0xff]
  %v4196 = vld [vmem:[%s4151 + $0x240] sm:$0xff]
  %v4197 = vld [vmem:[%s4151 + $0x248] sm:$0xff]
  %v4198 = vld [vmem:[%s4151 + $0x258] sm:$0xff]
  %v4199 = vld [vmem:[%s4151 + $0x260] sm:$0xff]
  %v4200 = vld [vmem:[%s4151 + $0x270] sm:$0xff]
  %v4201 = vld [vmem:[%s4151 + $0x278] sm:$0xff]
  %v4202 = vld [vmem:[%s4151 + $0x288] sm:$0xff]
  %v4203 = vld [vmem:[%s4151 + $0x290] sm:$0xff]
  %v4204 = vld [vmem:[%s4151 + $0x2a0] sm:$0xff]
  %v4205 = vld [vmem:[%s4151 + $0x2a8] sm:$0xff]
  %v4206 = vld [vmem:[%s4151 + $0x2b8] sm:$0xff]
  %v4207 = vld [vmem:[%s4151 + $0x2c0] sm:$0xff]
  %v4208 = vld [vmem:[%s4151 + $0x2d0] sm:$0xff]
  %v4209 = vld [vmem:[%s4151 + $0x2d8] sm:$0xff]
  %v4210 = vld [vmem:[%s4151 + $0x2e8] sm:$0xff]
  %v4211 = vld [vmem:[%s4151 + $0x2f0] sm:$0xff]
  %v4212 = vld [vmem:[%s4151 + $0x300] sm:$0xff]
  %v4213 = vld [vmem:[%s4151 + $0x308] sm:$0xff]
  %v4214 = vld [vmem:[%s4151 + $0x318] sm:$0xff]
  %v4215 = vld [vmem:[%s4151 + $0x320] sm:$0xff]
  %s4216 = scalar_lea.vmem %s1, 24
  %v4217 = vld [vmem:[%s4216] sm:$0xf]
  %v4219 = vsel %vm148, %v4152, 0
  %v4222 = vsel %vm148, %v4153, 0
  %v4225 = vsel %vm148, %v4154, 0
  %v4228 = vsel %vm148, %v4155, 0
  %v4231 = vsel %vm148, %v4156, 0
  %v4234 = vsel %vm148, %v4157, 0
  %v4237 = vsel %vm148, %v4158, 0
  %v4240 = vsel %vm148, %v4159, 0
  %v4243 = vsel %vm148, %v4160, 0
  %v4246 = vsel %vm148, %v4161, 0
  %v4249 = vsel %vm148, %v4162, 0
  %v4252 = vsel %vm148, %v4163, 0
  %v4255 = vsel %vm148, %v4164, 0
  %v4258 = vsel %vm148, %v4165, 0
  %v4261 = vsel %vm148, %v4166, 0
  %v4264 = vsel %vm148, %v4167, 0
  %v4267 = vsel %vm148, %v4168, 0
  %v4270 = vsel %vm148, %v4169, 0
  %v4273 = vsel %vm148, %v4170, 0
  %v4276 = vsel %vm148, %v4171, 0
  %v4279 = vsel %vm148, %v4172, 0
  %v4282 = vsel %vm148, %v4173, 0
  %v4285 = vsel %vm148, %v4174, 0
  %v4288 = vsel %vm148, %v4175, 0
  %v4291 = vsel %vm148, %v4176, 0
  %v4294 = vsel %vm148, %v4177, 0
  %v4297 = vsel %vm148, %v4178, 0
  %v4300 = vsel %vm148, %v4179, 0
  %v4303 = vsel %vm148, %v4180, 0
  %v4306 = vsel %vm148, %v4181, 0
  %v4309 = vsel %vm148, %v4182, 0
  %v4312 = vsel %vm148, %v4183, 0
  %v4315 = vsel %vm148, %v4184, 0
  %v4318 = vsel %vm148, %v4185, 0
  %v4321 = vsel %vm148, %v4186, 0
  %v4324 = vsel %vm148, %v4187, 0
  %v4327 = vsel %vm148, %v4188, 0
  %v4330 = vsel %vm148, %v4189, 0
  %v4333 = vsel %vm148, %v4190, 0
  %v4336 = vsel %vm148, %v4191, 0
  %v4339 = vsel %vm148, %v4192, 0
  %v4342 = vsel %vm148, %v4193, 0
  %v4345 = vsel %vm148, %v4194, 0
  %v4348 = vsel %vm148, %v4195, 0
  %v4351 = vsel %vm148, %v4196, 0
  %v4354 = vsel %vm148, %v4197, 0
  %v4357 = vsel %vm148, %v4198, 0
  %v4360 = vsel %vm148, %v4199, 0
  %v4363 = vsel %vm148, %v4200, 0
  %v4366 = vsel %vm148, %v4201, 0
  %v4369 = vsel %vm148, %v4202, 0
  %v4372 = vsel %vm148, %v4203, 0
  %v4375 = vsel %vm148, %v4204, 0
  %v4378 = vsel %vm148, %v4205, 0
  %v4381 = vsel %vm148, %v4206, 0
  %v4384 = vsel %vm148, %v4207, 0
  %v4387 = vsel %vm148, %v4208, 0
  %v4390 = vsel %vm148, %v4209, 0
  %v4393 = vsel %vm148, %v4210, 0
  %v4396 = vsel %vm148, %v4211, 0
  %v4399 = vsel %vm148, %v4212, 0
  %v4402 = vsel %vm148, %v4213, 0
  %v4405 = vsel %vm148, %v4214, 0
  %v4408 = vsel %vm148, %v4215, 0
  %v4411 = vsel %vm341, %v4217, 0
  %4413 = vmatprep.subr.mxu0 0.0
  %4414 = vmatpush1.msra.mxu0 %v4411
  %4415 = vmatprep.subr.mxu0 0.0
  %4416 = vmatpush1.msra.mxu0 0.0
  %4417 = vmatprep.subr.mxu0 0.0
  %4418 = vmatpush1.msra.mxu0 0.0
  %4419 = vmatprep.subr.mxu0 0.0
  %4420 = vmatpush1.msra.mxu0 0.0
  %4421 = vmatprep.subr.mxu0 0.0
  %4422 = vmatpush1.msra.mxu0 0.0
  %4423 = vmatprep.subr.mxu0 0.0
  %4424 = vmatpush1.msra.mxu0 0.0
  %4425 = vmatprep.subr.mxu0 0.0
  %4426 = vmatpush1.msra.mxu0 0.0
  %4427 = vmatprep.subr.mxu0 0.0
  %4428 = vmatpush1.msra.mxu0 0.0
  %4429 = vmatprep.subr.mxu0 0.0
  %4430 = vmatpush1.msra.mxu0 0.0
  %4431 = vmatprep.subr.mxu0 0.0
  %4432 = vmatpush1.msra.mxu0 0.0
  %4433 = vmatprep.subr.mxu0 0.0
  %4434 = vmatpush1.msra.mxu0 0.0
  %4435 = vmatprep.subr.mxu0 0.0
  %4436 = vmatpush1.msra.mxu0 0.0
  %4437 = vmatprep.subr.mxu0 0.0
  %4438 = vmatpush1.msra.mxu0 0.0
  %4439 = vmatprep.subr.mxu0 0.0
  %4440 = vmatpush1.msra.mxu0 0.0
  %4441 = vmatprep.subr.mxu0 0.0
  %4442 = vmatpush1.msra.mxu0 0.0
  %4443 = vmatprep.subr.mxu0 0.0
  %4444 = vmatpush1.msra.mxu0 0.0
  %4445 = vmatprep.subr.mxu0 0.0
  %4446 = vmatpush1.msra.mxu0 0.0
  %4447 = vmatprep.subr.mxu0 0.0
  %4448 = vmatpush1.msra.mxu0 0.0
  %4449 = vmatprep.subr.mxu0 0.0
  %4450 = vmatpush1.msra.mxu0 0.0
  %4451 = vmatprep.subr.mxu0 0.0
  %4452 = vmatpush1.msra.mxu0 0.0
  %4453 = vmatprep.subr.mxu0 0.0
  %4454 = vmatpush1.msra.mxu0 0.0
  %4455 = vmatprep.subr.mxu0 0.0
  %4456 = vmatpush1.msra.mxu0 0.0
  %4457 = vmatprep.subr.mxu0 0.0
  %4458 = vmatpush1.msra.mxu0 0.0
  %4459 = vmatprep.subr.mxu0 0.0
  %4460 = vmatpush1.msra.mxu0 0.0
  %4461 = vmatprep.subr.mxu0 0.0
  %4462 = vmatpush1.msra.mxu0 0.0
  %4463 = vmatprep.subr.mxu0 0.0
  %4464 = vmatpush1.msra.mxu0 0.0
  %4465 = vmatprep.subr.mxu0 0.0
  %4466 = vmatpush1.msra.mxu0 0.0
  %4467 = vmatprep.subr.mxu0 0.0
  %4468 = vmatpush1.msra.mxu0 0.0
  %4469 = vmatprep.subr.mxu0 0.0
  %4470 = vmatpush1.msra.mxu0 0.0
  %4471 = vmatprep.subr.mxu0 0.0
  %4472 = vmatpush1.msra.mxu0 0.0
  %4473 = vmatprep.subr.mxu0 0.0
  %4474 = vmatpush1.msra.mxu0 0.0
  %4475 = vmatprep.subr.mxu0 0.0
  %4476 = vmatpush1.msra.mxu0 0.0
  %4477 = vmatprep.mubr.f32.mxu0 0.0
  %4478 = vmatmul.mubr.f32.gmra.mrb[0].mxu0 %v4219
  %v4479 = vpop.f32.mrb[0].mxu0
  %v4480 = vadd.f32 0.0, %v4479
  %v4481 = vpop.f32.mrb[0].mxu0
  %4482 = vmatprep.mubr.f32.mxu0 0.0
  %4483 = vmatmul.mubr.f32.gmra.mrb[0].mxu0 %v4222
  %v4484 = vpop.f32.mrb[0].mxu0
  %v4485 = vadd.f32 0.0, %v4484
  %v4486 = vpop.f32.mrb[0].mxu0
  %4487 = vmatprep.mubr.f32.mxu0 0.0
  %4488 = vmatmul.mubr.f32.gmra.mrb[0].mxu0 %v4225
  %v4489 = vpop.f32.mrb[0].mxu0
  %v4490 = vadd.f32 0.0, %v4489
  %v4491 = vpop.f32.mrb[0].mxu0
  %4492 = vmatprep.mubr.f32.mxu0 0.0
  %4493 = vmatmul.mubr.f32.gmra.mrb[0].mxu0 %v4228
  %v4494 = vpop.f32.mrb[0].mxu0
  %v4495 = vadd.f32 0.0, %v4494
  %v4496 = vpop.f32.mrb[0].mxu0
  %4497 = vmatprep.mubr.f32.mxu0 0.0
  %4498 = vmatmul.mubr.f32.gmra.mrb[0].mxu0 %v4231
  %v4499 = vpop.f32.mrb[0].mxu0
  %v4500 = vadd.f32 0.0, %v4499
  %v4501 = vpop.f32.mrb[0].mxu0
  %4502 = vmatprep.mubr.f32.mxu0 0.0
  %4503 = vmatmul.mubr.f32.gmra.mrb[0].mxu0 %v4234
  %v4504 = vpop.f32.mrb[0].mxu0
  %v4505 = vadd.f32 0.0, %v4504
  %v4506 = vpop.f32.mrb[0].mxu0
  %4507 = vmatprep.mubr.f32.mxu0 0.0
  %4508 = vmatmul.mubr.f32.gmra.mrb[0].mxu0 %v4237
  %v4509 = vpop.f32.mrb[0].mxu0
  %v4510 = vadd.f32 0.0, %v4509
  %v4511 = vpop.f32.mrb[0].mxu0
  %4512 = vmatprep.mubr.f32.mxu0 0.0
  %4513 = vmatmul.mubr.f32.gmra.mrb[0].mxu0 %v4240
  %v4514 = vpop.f32.mrb[0].mxu0
  %v4515 = vadd.f32 0.0, %v4514
  %v4516 = vpop.f32.mrb[0].mxu0
  %4517 = vmatprep.mubr.f32.mxu0 0.0
  %4518 = vmatmul.mubr.f32.gmra.mrb[0].mxu0 %v4243
  %v4519 = vpop.f32.mrb[0].mxu0
  %v4520 = vadd.f32 0.0, %v4519
  %v4521 = vpop.f32.mrb[0].mxu0
  %4522 = vmatprep.mubr.f32.mxu0 0.0
  %4523 = vmatmul.mubr.f32.gmra.mrb[0].mxu0 %v4246
  %v4524 = vpop.f32.mrb[0].mxu0
  %v4525 = vadd.f32 0.0, %v4524
  %v4526 = vpop.f32.mrb[0].mxu0
  %4527 = vmatprep.mubr.f32.mxu0 0.0
  %4528 = vmatmul.mubr.f32.gmra.mrb[0].mxu0 %v4249
  %v4529 = vpop.f32.mrb[0].mxu0
  %v4530 = vadd.f32 0.0, %v4529
  %v4531 = vpop.f32.mrb[0].mxu0
  %4532 = vmatprep.mubr.f32.mxu0 0.0
  %4533 = vmatmul.mubr.f32.gmra.mrb[0].mxu0 %v4252
  %v4534 = vpop.f32.mrb[0].mxu0
  %v4535 = vadd.f32 0.0, %v4534
  %v4536 = vpop.f32.mrb[0].mxu0
  %4537 = vmatprep.mubr.f32.mxu0 0.0
  %4538 = vmatmul.mubr.f32.gmra.mrb[0].mxu0 %v4255
  %v4539 = vpop.f32.mrb[0].mxu0
  %v4540 = vadd.f32 0.0, %v4539
  %v4541 = vpop.f32.mrb[0].mxu0
  %4542 = vmatprep.mubr.f32.mxu0 0.0
  %4543 = vmatmul.mubr.f32.gmra.mrb[0].mxu0 %v4258
  %v4544 = vpop.f32.mrb[0].mxu0
  %v4545 = vadd.f32 0.0, %v4544
  %v4546 = vpop.f32.mrb[0].mxu0
  %4547 = vmatprep.mubr.f32.mxu0 0.0
  %4548 = vmatmul.mubr.f32.gmra.mrb[0].mxu0 %v4261
  %v4549 = vpop.f32.mrb[0].mxu0
  %v4550 = vadd.f32 0.0, %v4549
  %v4551 = vpop.f32.mrb[0].mxu0
  %4552 = vmatprep.mubr.f32.mxu0 0.0
  %4553 = vmatmul.mubr.f32.gmra.mrb[0].mxu0 %v4264
  %v4554 = vpop.f32.mrb[0].mxu0
  %v4555 = vadd.f32 0.0, %v4554
  %v4556 = vpop.f32.mrb[0].mxu0
  %4557 = vmatprep.mubr.f32.mxu0 0.0
  %4558 = vmatmul.mubr.f32.gmra.mrb[0].mxu0 %v4267
  %v4559 = vpop.f32.mrb[0].mxu0
  %v4560 = vadd.f32 0.0, %v4559
  %v4561 = vpop.f32.mrb[0].mxu0
  %4562 = vmatprep.mubr.f32.mxu0 0.0
  %4563 = vmatmul.mubr.f32.gmra.mrb[0].mxu0 %v4270
  %v4564 = vpop.f32.mrb[0].mxu0
  %v4565 = vadd.f32 0.0, %v4564
  %v4566 = vpop.f32.mrb[0].mxu0
  %4567 = vmatprep.mubr.f32.mxu0 0.0
  %4568 = vmatmul.mubr.f32.gmra.mrb[0].mxu0 %v4273
  %v4569 = vpop.f32.mrb[0].mxu0
  %v4570 = vadd.f32 0.0, %v4569
  %v4571 = vpop.f32.mrb[0].mxu0
  %4572 = vmatprep.mubr.f32.mxu0 0.0
  %4573 = vmatmul.mubr.f32.gmra.mrb[0].mxu0 %v4276
  %v4574 = vpop.f32.mrb[0].mxu0
  %v4575 = vadd.f32 0.0, %v4574
  %v4576 = vpop.f32.mrb[0].mxu0
  %4577 = vmatprep.mubr.f32.mxu0 0.0
  %4578 = vmatmul.mubr.f32.gmra.mrb[0].mxu0 %v4279
  %v4579 = vpop.f32.mrb[0].mxu0
  %v4580 = vadd.f32 0.0, %v4579
  %v4581 = vpop.f32.mrb[0].mxu0
  %4582 = vmatprep.mubr.f32.mxu0 0.0
  %4583 = vmatmul.mubr.f32.gmra.mrb[0].mxu0 %v4282
  %v4584 = vpop.f32.mrb[0].mxu0
  %v4585 = vadd.f32 0.0, %v4584
  %v4586 = vpop.f32.mrb[0].mxu0
  %4587 = vmatprep.mubr.f32.mxu0 0.0
  %4588 = vmatmul.mubr.f32.gmra.mrb[0].mxu0 %v4285
  %v4589 = vpop.f32.mrb[0].mxu0
  %v4590 = vadd.f32 0.0, %v4589
  %v4591 = vpop.f32.mrb[0].mxu0
  %4592 = vmatprep.mubr.f32.mxu0 0.0
  %4593 = vmatmul.mubr.f32.gmra.mrb[0].mxu0 %v4288
  %v4594 = vpop.f32.mrb[0].mxu0
  %v4595 = vadd.f32 0.0, %v4594
  %v4596 = vpop.f32.mrb[0].mxu0
  %4597 = vmatprep.mubr.f32.mxu0 0.0
  %4598 = vmatmul.mubr.f32.gmra.mrb[0].mxu0 %v4291
  %v4599 = vpop.f32.mrb[0].mxu0
  %v4600 = vadd.f32 0.0, %v4599
  %v4601 = vpop.f32.mrb[0].mxu0
  %4602 = vmatprep.mubr.f32.mxu0 0.0
  %4603 = vmatmul.mubr.f32.gmra.mrb[0].mxu0 %v4294
  %v4604 = vpop.f32.mrb[0].mxu0
  %v4605 = vadd.f32 0.0, %v4604
  %v4606 = vpop.f32.mrb[0].mxu0
  %4607 = vmatprep.mubr.f32.mxu0 0.0
  %4608 = vmatmul.mubr.f32.gmra.mrb[0].mxu0 %v4297
  %v4609 = vpop.f32.mrb[0].mxu0
  %v4610 = vadd.f32 0.0, %v4609
  %v4611 = vpop.f32.mrb[0].mxu0
  %4612 = vmatprep.mubr.f32.mxu0 0.0
  %4613 = vmatmul.mubr.f32.gmra.mrb[0].mxu0 %v4300
  %v4614 = vpop.f32.mrb[0].mxu0
  %v4615 = vadd.f32 0.0, %v4614
  %v4616 = vpop.f32.mrb[0].mxu0
  %4617 = vmatprep.mubr.f32.mxu0 0.0
  %4618 = vmatmul.mubr.f32.gmra.mrb[0].mxu0 %v4303
  %v4619 = vpop.f32.mrb[0].mxu0
  %v4620 = vadd.f32 0.0, %v4619
  %v4621 = vpop.f32.mrb[0].mxu0
  %4622 = vmatprep.mubr.f32.mxu0 0.0
  %4623 = vmatmul.mubr.f32.gmra.mrb[0].mxu0 %v4306
  %v4624 = vpop.f32.mrb[0].mxu0
  %v4625 = vadd.f32 0.0, %v4624
  %v4626 = vpop.f32.mrb[0].mxu0
  %4627 = vmatprep.mubr.f32.mxu0 0.0
  %4628 = vmatmul.mubr.f32.gmra.mrb[0].mxu0 %v4309
  %v4629 = vpop.f32.mrb[0].mxu0
  %v4630 = vadd.f32 0.0, %v4629
  %v4631 = vpop.f32.mrb[0].mxu0
  %4632 = vmatprep.mubr.f32.mxu0 0.0
  %4633 = vmatmul.mubr.f32.gmra.mrb[0].mxu0 %v4312
  %v4634 = vpop.f32.mrb[0].mxu0
  %v4635 = vadd.f32 0.0, %v4634
  %v4636 = vpop.f32.mrb[0].mxu0
  %4637 = vmatprep.mubr.f32.mxu0 0.0
  %4638 = vmatmul.mubr.f32.gmra.mrb[0].mxu0 %v4315
  %v4639 = vpop.f32.mrb[0].mxu0
  %v4640 = vadd.f32 0.0, %v4639
  %v4641 = vpop.f32.mrb[0].mxu0
  %4642 = vmatprep.mubr.f32.mxu0 0.0
  %4643 = vmatmul.mubr.f32.gmra.mrb[0].mxu0 %v4318
  %v4644 = vpop.f32.mrb[0].mxu0
  %v4645 = vadd.f32 0.0, %v4644
  %v4646 = vpop.f32.mrb[0].mxu0
  %4647 = vmatprep.mubr.f32.mxu0 0.0
  %4648 = vmatmul.mubr.f32.gmra.mrb[0].mxu0 %v4321
  %v4649 = vpop.f32.mrb[0].mxu0
  %v4650 = vadd.f32 0.0, %v4649
  %v4651 = vpop.f32.mrb[0].mxu0
  %4652 = vmatprep.mubr.f32.mxu0 0.0
  %4653 = vmatmul.mubr.f32.gmra.mrb[0].mxu0 %v4324
  %v4654 = vpop.f32.mrb[0].mxu0
  %v4655 = vadd.f32 0.0, %v4654
  %v4656 = vpop.f32.mrb[0].mxu0
  %4657 = vmatprep.mubr.f32.mxu0 0.0
  %4658 = vmatmul.mubr.f32.gmra.mrb[0].mxu0 %v4327
  %v4659 = vpop.f32.mrb[0].mxu0
  %v4660 = vadd.f32 0.0, %v4659
  %v4661 = vpop.f32.mrb[0].mxu0
  %4662 = vmatprep.mubr.f32.mxu0 0.0
  %4663 = vmatmul.mubr.f32.gmra.mrb[0].mxu0 %v4330
  %v4664 = vpop.f32.mrb[0].mxu0
  %v4665 = vadd.f32 0.0, %v4664
  %v4666 = vpop.f32.mrb[0].mxu0
  %4667 = vmatprep.mubr.f32.mxu0 0.0
  %4668 = vmatmul.mubr.f32.gmra.mrb[0].mxu0 %v4333
  %v4669 = vpop.f32.mrb[0].mxu0
  %v4670 = vadd.f32 0.0, %v4669
  %v4671 = vpop.f32.mrb[0].mxu0
  %4672 = vmatprep.mubr.f32.mxu0 0.0
  %4673 = vmatmul.mubr.f32.gmra.mrb[0].mxu0 %v4336
  %v4674 = vpop.f32.mrb[0].mxu0
  %v4675 = vadd.f32 0.0, %v4674
  %v4676 = vpop.f32.mrb[0].mxu0
  %4677 = vmatprep.mubr.f32.mxu0 0.0
  %4678 = vmatmul.mubr.f32.gmra.mrb[0].mxu0 %v4339
  %v4679 = vpop.f32.mrb[0].mxu0
  %v4680 = vadd.f32 0.0, %v4679
  %v4681 = vpop.f32.mrb[0].mxu0
  %4682 = vmatprep.mubr.f32.mxu0 0.0
  %4683 = vmatmul.mubr.f32.gmra.mrb[0].mxu0 %v4342
  %v4684 = vpop.f32.mrb[0].mxu0
  %v4685 = vadd.f32 0.0, %v4684
  %v4686 = vpop.f32.mrb[0].mxu0
  %4687 = vmatprep.mubr.f32.mxu0 0.0
  %4688 = vmatmul.mubr.f32.gmra.mrb[0].mxu0 %v4345
  %v4689 = vpop.f32.mrb[0].mxu0
  %v4690 = vadd.f32 0.0, %v4689
  %v4691 = vpop.f32.mrb[0].mxu0
  %4692 = vmatprep.mubr.f32.mxu0 0.0
  %4693 = vmatmul.mubr.f32.gmra.mrb[0].mxu0 %v4348
  %v4694 = vpop.f32.mrb[0].mxu0
  %v4695 = vadd.f32 0.0, %v4694
  %v4696 = vpop.f32.mrb[0].mxu0
  %4697 = vmatprep.mubr.f32.mxu0 0.0
  %4698 = vmatmul.mubr.f32.gmra.mrb[0].mxu0 %v4351
  %v4699 = vpop.f32.mrb[0].mxu0
  %v4700 = vadd.f32 0.0, %v4699
  %v4701 = vpop.f32.mrb[0].mxu0
  %4702 = vmatprep.mubr.f32.mxu0 0.0
  %4703 = vmatmul.mubr.f32.gmra.mrb[0].mxu0 %v4354
  %v4704 = vpop.f32.mrb[0].mxu0
  %v4705 = vadd.f32 0.0, %v4704
  %v4706 = vpop.f32.mrb[0].mxu0
  %4707 = vmatprep.mubr.f32.mxu0 0.0
  %4708 = vmatmul.mubr.f32.gmra.mrb[0].mxu0 %v4357
  %v4709 = vpop.f32.mrb[0].mxu0
  %v4710 = vadd.f32 0.0, %v4709
  %v4711 = vpop.f32.mrb[0].mxu0
  %4712 = vmatprep.mubr.f32.mxu0 0.0
  %4713 = vmatmul.mubr.f32.gmra.mrb[0].mxu0 %v4360
  %v4714 = vpop.f32.mrb[0].mxu0
  %v4715 = vadd.f32 0.0, %v4714
  %v4716 = vpop.f32.mrb[0].mxu0
  %4717 = vmatprep.mubr.f32.mxu0 0.0
  %4718 = vmatmul.mubr.f32.gmra.mrb[0].mxu0 %v4363
  %v4719 = vpop.f32.mrb[0].mxu0
  %v4720 = vadd.f32 0.0, %v4719
  %v4721 = vpop.f32.mrb[0].mxu0
  %4722 = vmatprep.mubr.f32.mxu0 0.0
  %4723 = vmatmul.mubr.f32.gmra.mrb[0].mxu0 %v4366
  %v4724 = vpop.f32.mrb[0].mxu0
  %v4725 = vadd.f32 0.0, %v4724
  %v4726 = vpop.f32.mrb[0].mxu0
  %4727 = vmatprep.mubr.f32.mxu0 0.0
  %4728 = vmatmul.mubr.f32.gmra.mrb[0].mxu0 %v4369
  %v4729 = vpop.f32.mrb[0].mxu0
  %v4730 = vadd.f32 0.0, %v4729
  %v4731 = vpop.f32.mrb[0].mxu0
  %4732 = vmatprep.mubr.f32.mxu0 0.0
  %4733 = vmatmul.mubr.f32.gmra.mrb[0].mxu0 %v4372
  %v4734 = vpop.f32.mrb[0].mxu0
  %v4735 = vadd.f32 0.0, %v4734
  %v4736 = vpop.f32.mrb[0].mxu0
  %4737 = vmatprep.mubr.f32.mxu0 0.0
  %4738 = vmatmul.mubr.f32.gmra.mrb[0].mxu0 %v4375
  %v4739 = vpop.f32.mrb[0].mxu0
  %v4740 = vadd.f32 0.0, %v4739
  %v4741 = vpop.f32.mrb[0].mxu0
  %4742 = vmatprep.mubr.f32.mxu0 0.0
  %4743 = vmatmul.mubr.f32.gmra.mrb[0].mxu0 %v4378
  %v4744 = vpop.f32.mrb[0].mxu0
  %v4745 = vadd.f32 0.0, %v4744
  %v4746 = vpop.f32.mrb[0].mxu0
  %4747 = vmatprep.mubr.f32.mxu0 0.0
  %4748 = vmatmul.mubr.f32.gmra.mrb[0].mxu0 %v4381
  %v4749 = vpop.f32.mrb[0].mxu0
  %v4750 = vadd.f32 0.0, %v4749
  %v4751 = vpop.f32.mrb[0].mxu0
  %4752 = vmatprep.mubr.f32.mxu0 0.0
  %4753 = vmatmul.mubr.f32.gmra.mrb[0].mxu0 %v4384
  %v4754 = vpop.f32.mrb[0].mxu0
  %v4755 = vadd.f32 0.0, %v4754
  %v4756 = vpop.f32.mrb[0].mxu0
  %4757 = vmatprep.mubr.f32.mxu0 0.0
  %4758 = vmatmul.mubr.f32.gmra.mrb[0].mxu0 %v4387
  %v4759 = vpop.f32.mrb[0].mxu0
  %v4760 = vadd.f32 0.0, %v4759
  %v4761 = vpop.f32.mrb[0].mxu0
  %4762 = vmatprep.mubr.f32.mxu0 0.0
  %4763 = vmatmul.mubr.f32.gmra.mrb[0].mxu0 %v4390
  %v4764 = vpop.f32.mrb[0].mxu0
  %v4765 = vadd.f32 0.0, %v4764
  %v4766 = vpop.f32.mrb[0].mxu0
  %4767 = vmatprep.mubr.f32.mxu0 0.0
  %4768 = vmatmul.mubr.f32.gmra.mrb[0].mxu0 %v4393
  %v4769 = vpop.f32.mrb[0].mxu0
  %v4770 = vadd.f32 0.0, %v4769
  %v4771 = vpop.f32.mrb[0].mxu0
  %4772 = vmatprep.mubr.f32.mxu0 0.0
  %4773 = vmatmul.mubr.f32.gmra.mrb[0].mxu0 %v4396
  %v4774 = vpop.f32.mrb[0].mxu0
  %v4775 = vadd.f32 0.0, %v4774
  %v4776 = vpop.f32.mrb[0].mxu0
  %4777 = vmatprep.mubr.f32.mxu0 0.0
  %4778 = vmatmul.mubr.f32.gmra.mrb[0].mxu0 %v4399
  %v4779 = vpop.f32.mrb[0].mxu0
  %v4780 = vadd.f32 0.0, %v4779
  %v4781 = vpop.f32.mrb[0].mxu0
  %4782 = vmatprep.mubr.f32.mxu0 0.0
  %4783 = vmatmul.mubr.f32.gmra.mrb[0].mxu0 %v4402
  %v4784 = vpop.f32.mrb[0].mxu0
  %v4785 = vadd.f32 0.0, %v4784
  %v4786 = vpop.f32.mrb[0].mxu0
  %4787 = vmatprep.mubr.f32.mxu0 0.0
  %4788 = vmatmul.mubr.f32.gmra.mrb[0].mxu0 %v4405
  %v4789 = vpop.f32.mrb[0].mxu0
  %v4790 = vadd.f32 0.0, %v4789
  %v4791 = vpop.f32.mrb[0].mxu0
  %4792 = vmatprep.mubr.f32.mxu0 0.0
  %4793 = vmatmul.mubr.f32.gmra.mrb[0].mxu0 %v4408
  %v4794 = vpop.f32.mrb[0].mxu0
  %v4795 = vadd.f32 0.0, %v4794
  %v4796 = vpop.f32.mrb[0].mxu0
  %4797 = vdwg.mxu0
  %v4798 = vadd.f32 %v4087, %v4480
  %v4799 = vadd.f32 %v4088, %v4485
  %v4800 = vadd.f32 %v4089, %v4490
  %v4801 = vadd.f32 %v4090, %v4495
  %v4802 = vadd.f32 %v4091, %v4500
  %v4803 = vadd.f32 %v4092, %v4505
  %v4804 = vadd.f32 %v4093, %v4510
  %v4805 = vadd.f32 %v4094, %v4515
  %v4806 = vadd.f32 %v4095, %v4520
  %v4807 = vadd.f32 %v4096, %v4525
  %v4808 = vadd.f32 %v4097, %v4530
  %v4809 = vadd.f32 %v4098, %v4535
  %v4810 = vadd.f32 %v4099, %v4540
  %v4811 = vadd.f32 %v4100, %v4545
  %v4812 = vadd.f32 %v4101, %v4550
  %v4813 = vadd.f32 %v4102, %v4555
  %v4814 = vadd.f32 %v4103, %v4560
  %v4815 = vadd.f32 %v4104, %v4565
  %v4816 = vadd.f32 %v4105, %v4570
  %v4817 = vadd.f32 %v4106, %v4575
  %v4818 = vadd.f32 %v4107, %v4580
  %v4819 = vadd.f32 %v4108, %v4585
  %v4820 = vadd.f32 %v4109, %v4590
  %v4821 = vadd.f32 %v4110, %v4595
  %v4822 = vadd.f32 %v4111, %v4600
  %v4823 = vadd.f32 %v4112, %v4605
  %v4824 = vadd.f32 %v4113, %v4610
  %v4825 = vadd.f32 %v4114, %v4615
  %v4826 = vadd.f32 %v4115, %v4620
  %v4827 = vadd.f32 %v4116, %v4625
  %v4828 = vadd.f32 %v4117, %v4630
  %v4829 = vadd.f32 %v4118, %v4635
  %v4830 = vadd.f32 %v4119, %v4640
  %v4831 = vadd.f32 %v4120, %v4645
  %v4832 = vadd.f32 %v4121, %v4650
  %v4833 = vadd.f32 %v4122, %v4655
  %v4834 = vadd.f32 %v4123, %v4660
  %v4835 = vadd.f32 %v4124, %v4665
  %v4836 = vadd.f32 %v4125, %v4670
  %v4837 = vadd.f32 %v4126, %v4675
  %v4838 = vadd.f32 %v4127, %v4680
  %v4839 = vadd.f32 %v4128, %v4685
  %v4840 = vadd.f32 %v4129, %v4690
  %v4841 = vadd.f32 %v4130, %v4695
  %v4842 = vadd.f32 %v4131, %v4700
  %v4843 = vadd.f32 %v4132, %v4705
  %v4844 = vadd.f32 %v4133, %v4710
  %v4845 = vadd.f32 %v4134, %v4715
  %v4846 = vadd.f32 %v4135, %v4720
  %v4847 = vadd.f32 %v4136, %v4725
  %v4848 = vadd.f32 %v4137, %v4730
  %v4849 = vadd.f32 %v4138, %v4735
  %v4850 = vadd.f32 %v4139, %v4740
  %v4851 = vadd.f32 %v4140, %v4745
  %v4852 = vadd.f32 %v4141, %v4750
  %v4853 = vadd.f32 %v4142, %v4755
  %v4854 = vadd.f32 %v4143, %v4760
  %v4855 = vadd.f32 %v4144, %v4765
  %v4856 = vadd.f32 %v4145, %v4770
  %v4857 = vadd.f32 %v4146, %v4775
  %v4858 = vadd.f32 %v4147, %v4780
  %v4859 = vadd.f32 %v4148, %v4785
  %v4860 = vadd.f32 %v4149, %v4790
  %v4861 = vadd.f32 %v4150, %v4795
  %v4862 = vld [vmem:[%s4151 + $0x1] sm:$0xff]
  %v4863 = vld [vmem:[%s4151 + $0x9] sm:$0xff]
  %v4864 = vld [vmem:[%s4151 + $0x19] sm:$0xff]
  %v4865 = vld [vmem:[%s4151 + $0x21] sm:$0xff]
  %v4866 = vld [vmem:[%s4151 + $0x31] sm:$0xff]
  %v4867 = vld [vmem:[%s4151 + $0x39] sm:$0xff]
  %v4868 = vld [vmem:[%s4151 + $0x49] sm:$0xff]
  %v4869 = vld [vmem:[%s4151 + $0x51] sm:$0xff]
  %v4870 = vld [vmem:[%s4151 + $0x61] sm:$0xff]
  %v4871 = vld [vmem:[%s4151 + $0x69] sm:$0xff]
  %v4872 = vld [vmem:[%s4151 + $0x79] sm:$0xff]
  %v4873 = vld [vmem:[%s4151 + $0x81] sm:$0xff]
  %v4874 = vld [vmem:[%s4151 + $0x91] sm:$0xff]
  %v4875 = vld [vmem:[%s4151 + $0x99] sm:$0xff]
  %v4876 = vld [vmem:[%s4151 + $0xa9] sm:$0xff]
  %v4877 = vld [vmem:[%s4151 + $0xb1] sm:$0xff]
  %v4878 = vld [vmem:[%s4151 + $0xc1] sm:$0xff]
  %v4879 = vld [vmem:[%s4151 + $0xc9] sm:$0xff]
  %v4880 = vld [vmem:[%s4151 + $0xd9] sm:$0xff]
  %v4881 = vld [vmem:[%s4151 + $0xe1] sm:$0xff]
  %v4882 = vld [vmem:[%s4151 + $0xf1] sm:$0xff]
  %v4883 = vld [vmem:[%s4151 + $0xf9] sm:$0xff]
  %v4884 = vld [vmem:[%s4151 + $0x109] sm:$0xff]
  %v4885 = vld [vmem:[%s4151 + $0x111] sm:$0xff]
  %v4886 = vld [vmem:[%s4151 + $0x121] sm:$0xff]
  %v4887 = vld [vmem:[%s4151 + $0x129] sm:$0xff]
  %v4888 = vld [vmem:[%s4151 + $0x139] sm:$0xff]
  %v4889 = vld [vmem:[%s4151 + $0x141] sm:$0xff]
  %v4890 = vld [vmem:[%s4151 + $0x151] sm:$0xff]
  %v4891 = vld [vmem:[%s4151 + $0x159] sm:$0xff]
  %v4892 = vld [vmem:[%s4151 + $0x169] sm:$0xff]
  %v4893 = vld [vmem:[%s4151 + $0x171] sm:$0xff]
  %v4894 = vld [vmem:[%s4151 + $0x1b1] sm:$0xff]
  %v4895 = vld [vmem:[%s4151 + $0x1b9] sm:$0xff]
  %v4896 = vld [vmem:[%s4151 + $0x1c9] sm:$0xff]
  %v4897 = vld [vmem:[%s4151 + $0x1d1] sm:$0xff]
  %v4898 = vld [vmem:[%s4151 + $0x1e1] sm:$0xff]
  %v4899 = vld [vmem:[%s4151 + $0x1e9] sm:$0xff]
  %v4900 = vld [vmem:[%s4151 + $0x1f9] sm:$0xff]
  %v4901 = vld [vmem:[%s4151 + $0x201] sm:$0xff]
  %v4902 = vld [vmem:[%s4151 + $0x211] sm:$0xff]
  %v4903 = vld [vmem:[%s4151 + $0x219] sm:$0xff]
  %v4904 = vld [vmem:[%s4151 + $0x229] sm:$0xff]
  %v4905 = vld [vmem:[%s4151 + $0x231] sm:$0xff]
  %v4906 = vld [vmem:[%s4151 + $0x241] sm:$0xff]
  %v4907 = vld [vmem:[%s4151 + $0x249] sm:$0xff]
  %v4908 = vld [vmem:[%s4151 + $0x259] sm:$0xff]
  %v4909 = vld [vmem:[%s4151 + $0x261] sm:$0xff]
  %v4910 = vld [vmem:[%s4151 + $0x271] sm:$0xff]
  %v4911 = vld [vmem:[%s4151 + $0x279] sm:$0xff]
  %v4912 = vld [vmem:[%s4151 + $0x289] sm:$0xff]
  %v4913 = vld [vmem:[%s4151 + $0x291] sm:$0xff]
  %v4914 = vld [vmem:[%s4151 + $0x2a1] sm:$0xff]
  %v4915 = vld [vmem:[%s4151 + $0x2a9] sm:$0xff]
  %v4916 = vld [vmem:[%s4151 + $0x2b9] sm:$0xff]
  %v4917 = vld [vmem:[%s4151 + $0x2c1] sm:$0xff]
  %v4918 = vld [vmem:[%s4151 + $0x2d1] sm:$0xff]
  %v4919 = vld [vmem:[%s4151 + $0x2d9] sm:$0xff]
  %v4920 = vld [vmem:[%s4151 + $0x2e9] sm:$0xff]
  %v4921 = vld [vmem:[%s4151 + $0x2f1] sm:$0xff]
  %v4922 = vld [vmem:[%s4151 + $0x301] sm:$0xff]
  %v4923 = vld [vmem:[%s4151 + $0x309] sm:$0xff]
  %v4924 = vld [vmem:[%s4151 + $0x319] sm:$0xff]
  %v4925 = vld [vmem:[%s4151 + $0x321] sm:$0xff]
  %s4926 = scalar_lea.vmem %s1, 28
  %v4927 = vld [vmem:[%s4926] sm:$0xf]
  %v4929 = vsel %vm148, %v4862, 0
  %v4932 = vsel %vm148, %v4863, 0
  %v4935 = vsel %vm148, %v4864, 0
  %v4938 = vsel %vm148, %v4865, 0
  %v4941 = vsel %vm148, %v4866, 0
  %v4944 = vsel %vm148, %v4867, 0
  %v4947 = vsel %vm148, %v4868, 0
  %v4950 = vsel %vm148, %v4869, 0
  %v4953 = vsel %vm148, %v4870, 0
  %v4956 = vsel %vm148, %v4871, 0
  %v4959 = vsel %vm148, %v4872, 0
  %v4962 = vsel %vm148, %v4873, 0
  %v4965 = vsel %vm148, %v4874, 0
  %v4968 = vsel %vm148, %v4875, 0
  %v4971 = vsel %vm148, %v4876, 0
  %v4974 = vsel %vm148, %v4877, 0
  %v4977 = vsel %vm148, %v4878, 0
  %v4980 = vsel %vm148, %v4879, 0
  %v4983 = vsel %vm148, %v4880, 0
  %v4986 = vsel %vm148, %v4881, 0
  %v4989 = vsel %vm148, %v4882, 0
  %v4992 = vsel %vm148, %v4883, 0
  %v4995 = vsel %vm148, %v4884, 0
  %v4998 = vsel %vm148, %v4885, 0
  %v5001 = vsel %vm148, %v4886, 0
  %v5004 = vsel %vm148, %v4887, 0
  %v5007 = vsel %vm148, %v4888, 0
  %v5010 = vsel %vm148, %v4889, 0
  %v5013 = vsel %vm148, %v4890, 0
  %v5016 = vsel %vm148, %v4891, 0
  %v5019 = vsel %vm148, %v4892, 0
  %v5022 = vsel %vm148, %v4893, 0
  %v5025 = vsel %vm148, %v4894, 0
  %v5028 = vsel %vm148, %v4895, 0
  %v5031 = vsel %vm148, %v4896, 0
  %v5034 = vsel %vm148, %v4897, 0
  %v5037 = vsel %vm148, %v4898, 0
  %v5040 = vsel %vm148, %v4899, 0
  %v5043 = vsel %vm148, %v4900, 0
  %v5046 = vsel %vm148, %v4901, 0
  %v5049 = vsel %vm148, %v4902, 0
  %v5052 = vsel %vm148, %v4903, 0
  %v5055 = vsel %vm148, %v4904, 0
  %v5058 = vsel %vm148, %v4905, 0
  %v5061 = vsel %vm148, %v4906, 0
  %v5064 = vsel %vm148, %v4907, 0
  %v5067 = vsel %vm148, %v4908, 0
  %v5070 = vsel %vm148, %v4909, 0
  %v5073 = vsel %vm148, %v4910, 0
  %v5076 = vsel %vm148, %v4911, 0
  %v5079 = vsel %vm148, %v4912, 0
  %v5082 = vsel %vm148, %v4913, 0
  %v5085 = vsel %vm148, %v4914, 0
  %v5088 = vsel %vm148, %v4915, 0
  %v5091 = vsel %vm148, %v4916, 0
  %v5094 = vsel %vm148, %v4917, 0
  %v5097 = vsel %vm148, %v4918, 0
  %v5100 = vsel %vm148, %v4919, 0
  %v5103 = vsel %vm148, %v4920, 0
  %v5106 = vsel %vm148, %v4921, 0
  %v5109 = vsel %vm148, %v4922, 0
  %v5112 = vsel %vm148, %v4923, 0
  %v5115 = vsel %vm148, %v4924, 0
  %v5118 = vsel %vm148, %v4925, 0
  %v5121 = vsel %vm341, %v4927, 0
  %5123 = vmatprep.subr.mxu0 0.0
  %5124 = vmatpush1.msra.mxu0 %v5121
  %5125 = vmatprep.subr.mxu0 0.0
  %5126 = vmatpush1.msra.mxu0 0.0
  %5127 = vmatprep.subr.mxu0 0.0
  %5128 = vmatpush1.msra.mxu0 0.0
  %5129 = vmatprep.subr.mxu0 0.0
  %5130 = vmatpush1.msra.mxu0 0.0
  %5131 = vmatprep.subr.mxu0 0.0
  %5132 = vmatpush1.msra.mxu0 0.0
  %5133 = vmatprep.subr.mxu0 0.0
  %5134 = vmatpush1.msra.mxu0 0.0
  %5135 = vmatprep.subr.mxu0 0.0
  %5136 = vmatpush1.msra.mxu0 0.0
  %5137 = vmatprep.subr.mxu0 0.0
  %5138 = vmatpush1.msra.mxu0 0.0
  %5139 = vmatprep.subr.mxu0 0.0
  %5140 = vmatpush1.msra.mxu0 0.0
  %5141 = vmatprep.subr.mxu0 0.0
  %5142 = vmatpush1.msra.mxu0 0.0
  %5143 = vmatprep.subr.mxu0 0.0
  %5144 = vmatpush1.msra.mxu0 0.0
  %5145 = vmatprep.subr.mxu0 0.0
  %5146 = vmatpush1.msra.mxu0 0.0
  %5147 = vmatprep.subr.mxu0 0.0
  %5148 = vmatpush1.msra.mxu0 0.0
  %5149 = vmatprep.subr.mxu0 0.0
  %5150 = vmatpush1.msra.mxu0 0.0
  %5151 = vmatprep.subr.mxu0 0.0
  %5152 = vmatpush1.msra.mxu0 0.0
  %5153 = vmatprep.subr.mxu0 0.0
  %5154 = vmatpush1.msra.mxu0 0.0
  %5155 = vmatprep.subr.mxu0 0.0
  %5156 = vmatpush1.msra.mxu0 0.0
  %5157 = vmatprep.subr.mxu0 0.0
  %5158 = vmatpush1.msra.mxu0 0.0
  %5159 = vmatprep.subr.mxu0 0.0
  %5160 = vmatpush1.msra.mxu0 0.0
  %5161 = vmatprep.subr.mxu0 0.0
  %5162 = vmatpush1.msra.mxu0 0.0
  %5163 = vmatprep.subr.mxu0 0.0
  %5164 = vmatpush1.msra.mxu0 0.0
  %5165 = vmatprep.subr.mxu0 0.0
  %5166 = vmatpush1.msra.mxu0 0.0
  %5167 = vmatprep.subr.mxu0 0.0
  %5168 = vmatpush1.msra.mxu0 0.0
  %5169 = vmatprep.subr.mxu0 0.0
  %5170 = vmatpush1.msra.mxu0 0.0
  %5171 = vmatprep.subr.mxu0 0.0
  %5172 = vmatpush1.msra.mxu0 0.0
  %5173 = vmatprep.subr.mxu0 0.0
  %5174 = vmatpush1.msra.mxu0 0.0
  %5175 = vmatprep.subr.mxu0 0.0
  %5176 = vmatpush1.msra.mxu0 0.0
  %5177 = vmatprep.subr.mxu0 0.0
  %5178 = vmatpush1.msra.mxu0 0.0
  %5179 = vmatprep.subr.mxu0 0.0
  %5180 = vmatpush1.msra.mxu0 0.0
  %5181 = vmatprep.subr.mxu0 0.0
  %5182 = vmatpush1.msra.mxu0 0.0
  %5183 = vmatprep.subr.mxu0 0.0
  %5184 = vmatpush1.msra.mxu0 0.0
  %5185 = vmatprep.subr.mxu0 0.0
  %5186 = vmatpush1.msra.mxu0 0.0
  %5187 = vmatprep.mubr.f32.mxu0 0.0
  %5188 = vmatmul.mubr.f32.gmra.mrb[0].mxu0 %v4929
  %v5189 = vpop.f32.mrb[0].mxu0
  %v5190 = vadd.f32 0.0, %v5189
  %v5191 = vpop.f32.mrb[0].mxu0
  %5192 = vmatprep.mubr.f32.mxu0 0.0
  %5193 = vmatmul.mubr.f32.gmra.mrb[0].mxu0 %v4932
  %v5194 = vpop.f32.mrb[0].mxu0
  %v5195 = vadd.f32 0.0, %v5194
  %v5196 = vpop.f32.mrb[0].mxu0
  %5197 = vmatprep.mubr.f32.mxu0 0.0
  %5198 = vmatmul.mubr.f32.gmra.mrb[0].mxu0 %v4935
  %v5199 = vpop.f32.mrb[0].mxu0
  %v5200 = vadd.f32 0.0, %v5199
  %v5201 = vpop.f32.mrb[0].mxu0
  %5202 = vmatprep.mubr.f32.mxu0 0.0
  %5203 = vmatmul.mubr.f32.gmra.mrb[0].mxu0 %v4938
  %v5204 = vpop.f32.mrb[0].mxu0
  %v5205 = vadd.f32 0.0, %v5204
  %v5206 = vpop.f32.mrb[0].mxu0
  %5207 = vmatprep.mubr.f32.mxu0 0.0
  %5208 = vmatmul.mubr.f32.gmra.mrb[0].mxu0 %v4941
  %v5209 = vpop.f32.mrb[0].mxu0
  %v5210 = vadd.f32 0.0, %v5209
  %v5211 = vpop.f32.mrb[0].mxu0
  %5212 = vmatprep.mubr.f32.mxu0 0.0
  %5213 = vmatmul.mubr.f32.gmra.mrb[0].mxu0 %v4944
  %v5214 = vpop.f32.mrb[0].mxu0
  %v5215 = vadd.f32 0.0, %v5214
  %v5216 = vpop.f32.mrb[0].mxu0
  %5217 = vmatprep.mubr.f32.mxu0 0.0
  %5218 = vmatmul.mubr.f32.gmra.mrb[0].mxu0 %v4947
  %v5219 = vpop.f32.mrb[0].mxu0
  %v5220 = vadd.f32 0.0, %v5219
  %v5221 = vpop.f32.mrb[0].mxu0
  %5222 = vmatprep.mubr.f32.mxu0 0.0
  %5223 = vmatmul.mubr.f32.gmra.mrb[0].mxu0 %v4950
  %v5224 = vpop.f32.mrb[0].mxu0
  %v5225 = vadd.f32 0.0, %v5224
  %v5226 = vpop.f32.mrb[0].mxu0
  %5227 = vmatprep.mubr.f32.mxu0 0.0
  %5228 = vmatmul.mubr.f32.gmra.mrb[0].mxu0 %v4953
  %v5229 = vpop.f32.mrb[0].mxu0
  %v5230 = vadd.f32 0.0, %v5229
  %v5231 = vpop.f32.mrb[0].mxu0
  %5232 = vmatprep.mubr.f32.mxu0 0.0
  %5233 = vmatmul.mubr.f32.gmra.mrb[0].mxu0 %v4956
  %v5234 = vpop.f32.mrb[0].mxu0
  %v5235 = vadd.f32 0.0, %v5234
  %v5236 = vpop.f32.mrb[0].mxu0
  %5237 = vmatprep.mubr.f32.mxu0 0.0
  %5238 = vmatmul.mubr.f32.gmra.mrb[0].mxu0 %v4959
  %v5239 = vpop.f32.mrb[0].mxu0
  %v5240 = vadd.f32 0.0, %v5239
  %v5241 = vpop.f32.mrb[0].mxu0
  %5242 = vmatprep.mubr.f32.mxu0 0.0
  %5243 = vmatmul.mubr.f32.gmra.mrb[0].mxu0 %v4962
  %v5244 = vpop.f32.mrb[0].mxu0
  %v5245 = vadd.f32 0.0, %v5244
  %v5246 = vpop.f32.mrb[0].mxu0
  %5247 = vmatprep.mubr.f32.mxu0 0.0
  %5248 = vmatmul.mubr.f32.gmra.mrb[0].mxu0 %v4965
  %v5249 = vpop.f32.mrb[0].mxu0
  %v5250 = vadd.f32 0.0, %v5249
  %v5251 = vpop.f32.mrb[0].mxu0
  %5252 = vmatprep.mubr.f32.mxu0 0.0
  %5253 = vmatmul.mubr.f32.gmra.mrb[0].mxu0 %v4968
  %v5254 = vpop.f32.mrb[0].mxu0
  %v5255 = vadd.f32 0.0, %v5254
  %v5256 = vpop.f32.mrb[0].mxu0
  %5257 = vmatprep.mubr.f32.mxu0 0.0
  %5258 = vmatmul.mubr.f32.gmra.mrb[0].mxu0 %v4971
  %v5259 = vpop.f32.mrb[0].mxu0
  %v5260 = vadd.f32 0.0, %v5259
  %v5261 = vpop.f32.mrb[0].mxu0
  %5262 = vmatprep.mubr.f32.mxu0 0.0
  %5263 = vmatmul.mubr.f32.gmra.mrb[0].mxu0 %v4974
  %v5264 = vpop.f32.mrb[0].mxu0
  %v5265 = vadd.f32 0.0, %v5264
  %v5266 = vpop.f32.mrb[0].mxu0
  %5267 = vmatprep.mubr.f32.mxu0 0.0
  %5268 = vmatmul.mubr.f32.gmra.mrb[0].mxu0 %v4977
  %v5269 = vpop.f32.mrb[0].mxu0
  %v5270 = vadd.f32 0.0, %v5269
  %v5271 = vpop.f32.mrb[0].mxu0
  %5272 = vmatprep.mubr.f32.mxu0 0.0
  %5273 = vmatmul.mubr.f32.gmra.mrb[0].mxu0 %v4980
  %v5274 = vpop.f32.mrb[0].mxu0
  %v5275 = vadd.f32 0.0, %v5274
  %v5276 = vpop.f32.mrb[0].mxu0
  %5277 = vmatprep.mubr.f32.mxu0 0.0
  %5278 = vmatmul.mubr.f32.gmra.mrb[0].mxu0 %v4983
  %v5279 = vpop.f32.mrb[0].mxu0
  %v5280 = vadd.f32 0.0, %v5279
  %v5281 = vpop.f32.mrb[0].mxu0
  %5282 = vmatprep.mubr.f32.mxu0 0.0
  %5283 = vmatmul.mubr.f32.gmra.mrb[0].mxu0 %v4986
  %v5284 = vpop.f32.mrb[0].mxu0
  %v5285 = vadd.f32 0.0, %v5284
  %v5286 = vpop.f32.mrb[0].mxu0
  %5287 = vmatprep.mubr.f32.mxu0 0.0
  %5288 = vmatmul.mubr.f32.gmra.mrb[0].mxu0 %v4989
  %v5289 = vpop.f32.mrb[0].mxu0
  %v5290 = vadd.f32 0.0, %v5289
  %v5291 = vpop.f32.mrb[0].mxu0
  %5292 = vmatprep.mubr.f32.mxu0 0.0
  %5293 = vmatmul.mubr.f32.gmra.mrb[0].mxu0 %v4992
  %v5294 = vpop.f32.mrb[0].mxu0
  %v5295 = vadd.f32 0.0, %v5294
  %v5296 = vpop.f32.mrb[0].mxu0
  %5297 = vmatprep.mubr.f32.mxu0 0.0
  %5298 = vmatmul.mubr.f32.gmra.mrb[0].mxu0 %v4995
  %v5299 = vpop.f32.mrb[0].mxu0
  %v5300 = vadd.f32 0.0, %v5299
  %v5301 = vpop.f32.mrb[0].mxu0
  %5302 = vmatprep.mubr.f32.mxu0 0.0
  %5303 = vmatmul.mubr.f32.gmra.mrb[0].mxu0 %v4998
  %v5304 = vpop.f32.mrb[0].mxu0
  %v5305 = vadd.f32 0.0, %v5304
  %v5306 = vpop.f32.mrb[0].mxu0
  %5307 = vmatprep.mubr.f32.mxu0 0.0
  %5308 = vmatmul.mubr.f32.gmra.mrb[0].mxu0 %v5001
  %v5309 = vpop.f32.mrb[0].mxu0
  %v5310 = vadd.f32 0.0, %v5309
  %v5311 = vpop.f32.mrb[0].mxu0
  %5312 = vmatprep.mubr.f32.mxu0 0.0
  %5313 = vmatmul.mubr.f32.gmra.mrb[0].mxu0 %v5004
  %v5314 = vpop.f32.mrb[0].mxu0
  %v5315 = vadd.f32 0.0, %v5314
  %v5316 = vpop.f32.mrb[0].mxu0
  %5317 = vmatprep.mubr.f32.mxu0 0.0
  %5318 = vmatmul.mubr.f32.gmra.mrb[0].mxu0 %v5007
  %v5319 = vpop.f32.mrb[0].mxu0
  %v5320 = vadd.f32 0.0, %v5319
  %v5321 = vpop.f32.mrb[0].mxu0
  %5322 = vmatprep.mubr.f32.mxu0 0.0
  %5323 = vmatmul.mubr.f32.gmra.mrb[0].mxu0 %v5010
  %v5324 = vpop.f32.mrb[0].mxu0
  %v5325 = vadd.f32 0.0, %v5324
  %v5326 = vpop.f32.mrb[0].mxu0
  %5327 = vmatprep.mubr.f32.mxu0 0.0
  %5328 = vmatmul.mubr.f32.gmra.mrb[0].mxu0 %v5013
  %v5329 = vpop.f32.mrb[0].mxu0
  %v5330 = vadd.f32 0.0, %v5329
  %v5331 = vpop.f32.mrb[0].mxu0
  %5332 = vmatprep.mubr.f32.mxu0 0.0
  %5333 = vmatmul.mubr.f32.gmra.mrb[0].mxu0 %v5016
  %v5334 = vpop.f32.mrb[0].mxu0
  %v5335 = vadd.f32 0.0, %v5334
  %v5336 = vpop.f32.mrb[0].mxu0
  %5337 = vmatprep.mubr.f32.mxu0 0.0
  %5338 = vmatmul.mubr.f32.gmra.mrb[0].mxu0 %v5019
  %v5339 = vpop.f32.mrb[0].mxu0
  %v5340 = vadd.f32 0.0, %v5339
  %v5341 = vpop.f32.mrb[0].mxu0
  %5342 = vmatprep.mubr.f32.mxu0 0.0
  %5343 = vmatmul.mubr.f32.gmra.mrb[0].mxu0 %v5022
  %v5344 = vpop.f32.mrb[0].mxu0
  %v5345 = vadd.f32 0.0, %v5344
  %v5346 = vpop.f32.mrb[0].mxu0
  %5347 = vmatprep.mubr.f32.mxu0 0.0
  %5348 = vmatmul.mubr.f32.gmra.mrb[0].mxu0 %v5025
  %v5349 = vpop.f32.mrb[0].mxu0
  %v5350 = vadd.f32 0.0, %v5349
  %v5351 = vpop.f32.mrb[0].mxu0
  %5352 = vmatprep.mubr.f32.mxu0 0.0
  %5353 = vmatmul.mubr.f32.gmra.mrb[0].mxu0 %v5028
  %v5354 = vpop.f32.mrb[0].mxu0
  %v5355 = vadd.f32 0.0, %v5354
  %v5356 = vpop.f32.mrb[0].mxu0
  %5357 = vmatprep.mubr.f32.mxu0 0.0
  %5358 = vmatmul.mubr.f32.gmra.mrb[0].mxu0 %v5031
  %v5359 = vpop.f32.mrb[0].mxu0
  %v5360 = vadd.f32 0.0, %v5359
  %v5361 = vpop.f32.mrb[0].mxu0
  %5362 = vmatprep.mubr.f32.mxu0 0.0
  %5363 = vmatmul.mubr.f32.gmra.mrb[0].mxu0 %v5034
  %v5364 = vpop.f32.mrb[0].mxu0
  %v5365 = vadd.f32 0.0, %v5364
  %v5366 = vpop.f32.mrb[0].mxu0
  %5367 = vmatprep.mubr.f32.mxu0 0.0
  %5368 = vmatmul.mubr.f32.gmra.mrb[0].mxu0 %v5037
  %v5369 = vpop.f32.mrb[0].mxu0
  %v5370 = vadd.f32 0.0, %v5369
  %v5371 = vpop.f32.mrb[0].mxu0
  %5372 = vmatprep.mubr.f32.mxu0 0.0
  %5373 = vmatmul.mubr.f32.gmra.mrb[0].mxu0 %v5040
  %v5374 = vpop.f32.mrb[0].mxu0
  %v5375 = vadd.f32 0.0, %v5374
  %v5376 = vpop.f32.mrb[0].mxu0
  %5377 = vmatprep.mubr.f32.mxu0 0.0
  %5378 = vmatmul.mubr.f32.gmra.mrb[0].mxu0 %v5043
  %v5379 = vpop.f32.mrb[0].mxu0
  %v5380 = vadd.f32 0.0, %v5379
  %v5381 = vpop.f32.mrb[0].mxu0
  %5382 = vmatprep.mubr.f32.mxu0 0.0
  %5383 = vmatmul.mubr.f32.gmra.mrb[0].mxu0 %v5046
  %v5384 = vpop.f32.mrb[0].mxu0
  %v5385 = vadd.f32 0.0, %v5384
  %v5386 = vpop.f32.mrb[0].mxu0
  %5387 = vmatprep.mubr.f32.mxu0 0.0
  %5388 = vmatmul.mubr.f32.gmra.mrb[0].mxu0 %v5049
  %v5389 = vpop.f32.mrb[0].mxu0
  %v5390 = vadd.f32 0.0, %v5389
  %v5391 = vpop.f32.mrb[0].mxu0
  %5392 = vmatprep.mubr.f32.mxu0 0.0
  %5393 = vmatmul.mubr.f32.gmra.mrb[0].mxu0 %v5052
  %v5394 = vpop.f32.mrb[0].mxu0
  %v5395 = vadd.f32 0.0, %v5394
  %v5396 = vpop.f32.mrb[0].mxu0
  %5397 = vmatprep.mubr.f32.mxu0 0.0
  %5398 = vmatmul.mubr.f32.gmra.mrb[0].mxu0 %v5055
  %v5399 = vpop.f32.mrb[0].mxu0
  %v5400 = vadd.f32 0.0, %v5399
  %v5401 = vpop.f32.mrb[0].mxu0
  %5402 = vmatprep.mubr.f32.mxu0 0.0
  %5403 = vmatmul.mubr.f32.gmra.mrb[0].mxu0 %v5058
  %v5404 = vpop.f32.mrb[0].mxu0
  %v5405 = vadd.f32 0.0, %v5404
  %v5406 = vpop.f32.mrb[0].mxu0
  %5407 = vmatprep.mubr.f32.mxu0 0.0
  %5408 = vmatmul.mubr.f32.gmra.mrb[0].mxu0 %v5061
  %v5409 = vpop.f32.mrb[0].mxu0
  %v5410 = vadd.f32 0.0, %v5409
  %v5411 = vpop.f32.mrb[0].mxu0
  %5412 = vmatprep.mubr.f32.mxu0 0.0
  %5413 = vmatmul.mubr.f32.gmra.mrb[0].mxu0 %v5064
  %v5414 = vpop.f32.mrb[0].mxu0
  %v5415 = vadd.f32 0.0, %v5414
  %v5416 = vpop.f32.mrb[0].mxu0
  %5417 = vmatprep.mubr.f32.mxu0 0.0
  %5418 = vmatmul.mubr.f32.gmra.mrb[0].mxu0 %v5067
  %v5419 = vpop.f32.mrb[0].mxu0
  %v5420 = vadd.f32 0.0, %v5419
  %v5421 = vpop.f32.mrb[0].mxu0
  %5422 = vmatprep.mubr.f32.mxu0 0.0
  %5423 = vmatmul.mubr.f32.gmra.mrb[0].mxu0 %v5070
  %v5424 = vpop.f32.mrb[0].mxu0
  %v5425 = vadd.f32 0.0, %v5424
  %v5426 = vpop.f32.mrb[0].mxu0
  %5427 = vmatprep.mubr.f32.mxu0 0.0
  %5428 = vmatmul.mubr.f32.gmra.mrb[0].mxu0 %v5073
  %v5429 = vpop.f32.mrb[0].mxu0
  %v5430 = vadd.f32 0.0, %v5429
  %v5431 = vpop.f32.mrb[0].mxu0
  %5432 = vmatprep.mubr.f32.mxu0 0.0
  %5433 = vmatmul.mubr.f32.gmra.mrb[0].mxu0 %v5076
  %v5434 = vpop.f32.mrb[0].mxu0
  %v5435 = vadd.f32 0.0, %v5434
  %v5436 = vpop.f32.mrb[0].mxu0
  %5437 = vmatprep.mubr.f32.mxu0 0.0
  %5438 = vmatmul.mubr.f32.gmra.mrb[0].mxu0 %v5079
  %v5439 = vpop.f32.mrb[0].mxu0
  %v5440 = vadd.f32 0.0, %v5439
  %v5441 = vpop.f32.mrb[0].mxu0
  %5442 = vmatprep.mubr.f32.mxu0 0.0
  %5443 = vmatmul.mubr.f32.gmra.mrb[0].mxu0 %v5082
  %v5444 = vpop.f32.mrb[0].mxu0
  %v5445 = vadd.f32 0.0, %v5444
  %v5446 = vpop.f32.mrb[0].mxu0
  %5447 = vmatprep.mubr.f32.mxu0 0.0
  %5448 = vmatmul.mubr.f32.gmra.mrb[0].mxu0 %v5085
  %v5449 = vpop.f32.mrb[0].mxu0
  %v5450 = vadd.f32 0.0, %v5449
  %v5451 = vpop.f32.mrb[0].mxu0
  %5452 = vmatprep.mubr.f32.mxu0 0.0
  %5453 = vmatmul.mubr.f32.gmra.mrb[0].mxu0 %v5088
  %v5454 = vpop.f32.mrb[0].mxu0
  %v5455 = vadd.f32 0.0, %v5454
  %v5456 = vpop.f32.mrb[0].mxu0
  %5457 = vmatprep.mubr.f32.mxu0 0.0
  %5458 = vmatmul.mubr.f32.gmra.mrb[0].mxu0 %v5091
  %v5459 = vpop.f32.mrb[0].mxu0
  %v5460 = vadd.f32 0.0, %v5459
  %v5461 = vpop.f32.mrb[0].mxu0
  %5462 = vmatprep.mubr.f32.mxu0 0.0
  %5463 = vmatmul.mubr.f32.gmra.mrb[0].mxu0 %v5094
  %v5464 = vpop.f32.mrb[0].mxu0
  %v5465 = vadd.f32 0.0, %v5464
  %v5466 = vpop.f32.mrb[0].mxu0
  %5467 = vmatprep.mubr.f32.mxu0 0.0
  %5468 = vmatmul.mubr.f32.gmra.mrb[0].mxu0 %v5097
  %v5469 = vpop.f32.mrb[0].mxu0
  %v5470 = vadd.f32 0.0, %v5469
  %v5471 = vpop.f32.mrb[0].mxu0
  %5472 = vmatprep.mubr.f32.mxu0 0.0
  %5473 = vmatmul.mubr.f32.gmra.mrb[0].mxu0 %v5100
  %v5474 = vpop.f32.mrb[0].mxu0
  %v5475 = vadd.f32 0.0, %v5474
  %v5476 = vpop.f32.mrb[0].mxu0
  %5477 = vmatprep.mubr.f32.mxu0 0.0
  %5478 = vmatmul.mubr.f32.gmra.mrb[0].mxu0 %v5103
  %v5479 = vpop.f32.mrb[0].mxu0
  %v5480 = vadd.f32 0.0, %v5479
  %v5481 = vpop.f32.mrb[0].mxu0
  %5482 = vmatprep.mubr.f32.mxu0 0.0
  %5483 = vmatmul.mubr.f32.gmra.mrb[0].mxu0 %v5106
  %v5484 = vpop.f32.mrb[0].mxu0
  %v5485 = vadd.f32 0.0, %v5484
  %v5486 = vpop.f32.mrb[0].mxu0
  %5487 = vmatprep.mubr.f32.mxu0 0.0
  %5488 = vmatmul.mubr.f32.gmra.mrb[0].mxu0 %v5109
  %v5489 = vpop.f32.mrb[0].mxu0
  %v5490 = vadd.f32 0.0, %v5489
  %v5491 = vpop.f32.mrb[0].mxu0
  %5492 = vmatprep.mubr.f32.mxu0 0.0
  %5493 = vmatmul.mubr.f32.gmra.mrb[0].mxu0 %v5112
  %v5494 = vpop.f32.mrb[0].mxu0
  %v5495 = vadd.f32 0.0, %v5494
  %v5496 = vpop.f32.mrb[0].mxu0
  %5497 = vmatprep.mubr.f32.mxu0 0.0
  %5498 = vmatmul.mubr.f32.gmra.mrb[0].mxu0 %v5115
  %v5499 = vpop.f32.mrb[0].mxu0
  %v5500 = vadd.f32 0.0, %v5499
  %v5501 = vpop.f32.mrb[0].mxu0
  %5502 = vmatprep.mubr.f32.mxu0 0.0
  %5503 = vmatmul.mubr.f32.gmra.mrb[0].mxu0 %v5118
  %v5504 = vpop.f32.mrb[0].mxu0
  %v5505 = vadd.f32 0.0, %v5504
  %v5506 = vpop.f32.mrb[0].mxu0
  %5507 = vdwg.mxu0
  %v5508 = vadd.f32 %v4798, %v5190
  %v5509 = vadd.f32 %v4799, %v5195
  %v5510 = vadd.f32 %v4800, %v5200
  %v5511 = vadd.f32 %v4801, %v5205
  %v5512 = vadd.f32 %v4802, %v5210
  %v5513 = vadd.f32 %v4803, %v5215
  %v5514 = vadd.f32 %v4804, %v5220
  %v5515 = vadd.f32 %v4805, %v5225
  %v5516 = vadd.f32 %v4806, %v5230
  %v5517 = vadd.f32 %v4807, %v5235
  %v5518 = vadd.f32 %v4808, %v5240
  %v5519 = vadd.f32 %v4809, %v5245
  %v5520 = vadd.f32 %v4810, %v5250
  %v5521 = vadd.f32 %v4811, %v5255
  %v5522 = vadd.f32 %v4812, %v5260
  %v5523 = vadd.f32 %v4813, %v5265
  %v5524 = vadd.f32 %v4814, %v5270
  %v5525 = vadd.f32 %v4815, %v5275
  %v5526 = vadd.f32 %v4816, %v5280
  %v5527 = vadd.f32 %v4817, %v5285
  %v5528 = vadd.f32 %v4818, %v5290
  %v5529 = vadd.f32 %v4819, %v5295
  %v5530 = vadd.f32 %v4820, %v5300
  %v5531 = vadd.f32 %v4821, %v5305
  %v5532 = vadd.f32 %v4822, %v5310
  %v5533 = vadd.f32 %v4823, %v5315
  %v5534 = vadd.f32 %v4824, %v5320
  %v5535 = vadd.f32 %v4825, %v5325
  %v5536 = vadd.f32 %v4826, %v5330
  %v5537 = vadd.f32 %v4827, %v5335
  %v5538 = vadd.f32 %v4828, %v5340
  %v5539 = vadd.f32 %v4829, %v5345
  %v5540 = vadd.f32 %v4830, %v5350
  %v5541 = vadd.f32 %v4831, %v5355
  %v5542 = vadd.f32 %v4832, %v5360
  %v5543 = vadd.f32 %v4833, %v5365
  %v5544 = vadd.f32 %v4834, %v5370
  %v5545 = vadd.f32 %v4835, %v5375
  %v5546 = vadd.f32 %v4836, %v5380
  %v5547 = vadd.f32 %v4837, %v5385
  %v5548 = vadd.f32 %v4838, %v5390
  %v5549 = vadd.f32 %v4839, %v5395
  %v5550 = vadd.f32 %v4840, %v5400
  %v5551 = vadd.f32 %v4841, %v5405
  %v5552 = vadd.f32 %v4842, %v5410
  %v5553 = vadd.f32 %v4843, %v5415
  %v5554 = vadd.f32 %v4844, %v5420
  %v5555 = vadd.f32 %v4845, %v5425
  %v5556 = vadd.f32 %v4846, %v5430
  %v5557 = vadd.f32 %v4847, %v5435
  %v5558 = vadd.f32 %v4848, %v5440
  %v5559 = vadd.f32 %v4849, %v5445
  %v5560 = vadd.f32 %v4850, %v5450
  %v5561 = vadd.f32 %v4851, %v5455
  %v5562 = vadd.f32 %v4852, %v5460
  %v5563 = vadd.f32 %v4853, %v5465
  %v5564 = vadd.f32 %v4854, %v5470
  %v5565 = vadd.f32 %v4855, %v5475
  %v5566 = vadd.f32 %v4856, %v5480
  %v5567 = vadd.f32 %v4857, %v5485
  %v5568 = vadd.f32 %v4858, %v5490
  %v5569 = vadd.f32 %v4859, %v5495
  %v5570 = vadd.f32 %v4860, %v5500
  %v5571 = vadd.f32 %v4861, %v5505
  %v5572 = vld [vmem:[%s4151 + $0x2] sm:$0xff]
  %v5573 = vld [vmem:[%s4151 + $0xa] sm:$0xff]
  %v5574 = vld [vmem:[%s4151 + $0x1a] sm:$0xff]
  %v5575 = vld [vmem:[%s4151 + $0x22] sm:$0xff]
  %v5576 = vld [vmem:[%s4151 + $0x32] sm:$0xff]
  %v5577 = vld [vmem:[%s4151 + $0x3a] sm:$0xff]
  %v5578 = vld [vmem:[%s4151 + $0x4a] sm:$0xff]
  %v5579 = vld [vmem:[%s4151 + $0x52] sm:$0xff]
  %v5580 = vld [vmem:[%s4151 + $0x62] sm:$0xff]
  %v5581 = vld [vmem:[%s4151 + $0x6a] sm:$0xff]
  %v5582 = vld [vmem:[%s4151 + $0x7a] sm:$0xff]
  %v5583 = vld [vmem:[%s4151 + $0x82] sm:$0xff]
  %v5584 = vld [vmem:[%s4151 + $0x92] sm:$0xff]
  %v5585 = vld [vmem:[%s4151 + $0x9a] sm:$0xff]
  %v5586 = vld [vmem:[%s4151 + $0xaa] sm:$0xff]
  %v5587 = vld [vmem:[%s4151 + $0xb2] sm:$0xff]
  %v5588 = vld [vmem:[%s4151 + $0xc2] sm:$0xff]
  %v5589 = vld [vmem:[%s4151 + $0xca] sm:$0xff]
  %v5590 = vld [vmem:[%s4151 + $0xda] sm:$0xff]
  %v5591 = vld [vmem:[%s4151 + $0xe2] sm:$0xff]
  %v5592 = vld [vmem:[%s4151 + $0xf2] sm:$0xff]
  %v5593 = vld [vmem:[%s4151 + $0xfa] sm:$0xff]
  %v5594 = vld [vmem:[%s4151 + $0x10a] sm:$0xff]
  %v5595 = vld [vmem:[%s4151 + $0x112] sm:$0xff]
  %v5596 = vld [vmem:[%s4151 + $0x122] sm:$0xff]
  %v5597 = vld [vmem:[%s4151 + $0x12a] sm:$0xff]
  %v5598 = vld [vmem:[%s4151 + $0x13a] sm:$0xff]
  %v5599 = vld [vmem:[%s4151 + $0x142] sm:$0xff]
  %v5600 = vld [vmem:[%s4151 + $0x152] sm:$0xff]
  %v5601 = vld [vmem:[%s4151 + $0x15a] sm:$0xff]
  %v5602 = vld [vmem:[%s4151 + $0x16a] sm:$0xff]
  %v5603 = vld [vmem:[%s4151 + $0x172] sm:$0xff]
  %v5604 = vld [vmem:[%s4151 + $0x1b2] sm:$0xff]
  %v5605 = vld [vmem:[%s4151 + $0x1ba] sm:$0xff]
  %v5606 = vld [vmem:[%s4151 + $0x1ca] sm:$0xff]
  %v5607 = vld [vmem:[%s4151 + $0x1d2] sm:$0xff]
  %v5608 = vld [vmem:[%s4151 + $0x1e2] sm:$0xff]
  %v5609 = vld [vmem:[%s4151 + $0x1ea] sm:$0xff]
  %v5610 = vld [vmem:[%s4151 + $0x1fa] sm:$0xff]
  %v5611 = vld [vmem:[%s4151 + $0x202] sm:$0xff]
  %v5612 = vld [vmem:[%s4151 + $0x212] sm:$0xff]
  %v5613 = vld [vmem:[%s4151 + $0x21a] sm:$0xff]
  %v5614 = vld [vmem:[%s4151 + $0x22a] sm:$0xff]
  %v5615 = vld [vmem:[%s4151 + $0x232] sm:$0xff]
  %v5616 = vld [vmem:[%s4151 + $0x242] sm:$0xff]
  %v5617 = vld [vmem:[%s4151 + $0x24a] sm:$0xff]
  %v5618 = vld [vmem:[%s4151 + $0x25a] sm:$0xff]
  %v5619 = vld [vmem:[%s4151 + $0x262] sm:$0xff]
  %v5620 = vld [vmem:[%s4151 + $0x272] sm:$0xff]
  %v5621 = vld [vmem:[%s4151 + $0x27a] sm:$0xff]
  %v5622 = vld [vmem:[%s4151 + $0x28a] sm:$0xff]
  %v5623 = vld [vmem:[%s4151 + $0x292] sm:$0xff]
  %v5624 = vld [vmem:[%s4151 + $0x2a2] sm:$0xff]
  %v5625 = vld [vmem:[%s4151 + $0x2aa] sm:$0xff]
  %v5626 = vld [vmem:[%s4151 + $0x2ba] sm:$0xff]
  %v5627 = vld [vmem:[%s4151 + $0x2c2] sm:$0xff]
  %v5628 = vld [vmem:[%s4151 + $0x2d2] sm:$0xff]
  %v5629 = vld [vmem:[%s4151 + $0x2da] sm:$0xff]
  %v5630 = vld [vmem:[%s4151 + $0x2ea] sm:$0xff]
  %v5631 = vld [vmem:[%s4151 + $0x2f2] sm:$0xff]
  %v5632 = vld [vmem:[%s4151 + $0x302] sm:$0xff]
  %v5633 = vld [vmem:[%s4151 + $0x30a] sm:$0xff]
  %v5634 = vld [vmem:[%s4151 + $0x31a] sm:$0xff]
  %v5635 = vld [vmem:[%s4151 + $0x322] sm:$0xff]
  %s5636 = scalar_lea.vmem %s1, 32
  %v5637 = vld [vmem:[%s5636] sm:$0xf]
  %v5639 = vsel %vm148, %v5572, 0
  %v5642 = vsel %vm148, %v5573, 0
  %v5645 = vsel %vm148, %v5574, 0
  %v5648 = vsel %vm148, %v5575, 0
  %v5651 = vsel %vm148, %v5576, 0
  %v5654 = vsel %vm148, %v5577, 0
  %v5657 = vsel %vm148, %v5578, 0
  %v5660 = vsel %vm148, %v5579, 0
  %v5663 = vsel %vm148, %v5580, 0
  %v5666 = vsel %vm148, %v5581, 0
  %v5669 = vsel %vm148, %v5582, 0
  %v5672 = vsel %vm148, %v5583, 0
  %v5675 = vsel %vm148, %v5584, 0
  %v5678 = vsel %vm148, %v5585, 0
  %v5681 = vsel %vm148, %v5586, 0
  %v5684 = vsel %vm148, %v5587, 0
  %v5687 = vsel %vm148, %v5588, 0
  %v5690 = vsel %vm148, %v5589, 0
  %v5693 = vsel %vm148, %v5590, 0
  %v5696 = vsel %vm148, %v5591, 0
  %v5699 = vsel %vm148, %v5592, 0
  %v5702 = vsel %vm148, %v5593, 0
  %v5705 = vsel %vm148, %v5594, 0
  %v5708 = vsel %vm148, %v5595, 0
  %v5711 = vsel %vm148, %v5596, 0
  %v5714 = vsel %vm148, %v5597, 0
  %v5717 = vsel %vm148, %v5598, 0
  %v5720 = vsel %vm148, %v5599, 0
  %v5723 = vsel %vm148, %v5600, 0
  %v5726 = vsel %vm148, %v5601, 0
  %v5729 = vsel %vm148, %v5602, 0
  %v5732 = vsel %vm148, %v5603, 0
  %v5735 = vsel %vm148, %v5604, 0
  %v5738 = vsel %vm148, %v5605, 0
  %v5741 = vsel %vm148, %v5606, 0
  %v5744 = vsel %vm148, %v5607, 0
  %v5747 = vsel %vm148, %v5608, 0
  %v5750 = vsel %vm148, %v5609, 0
  %v5753 = vsel %vm148, %v5610, 0
  %v5756 = vsel %vm148, %v5611, 0
  %v5759 = vsel %vm148, %v5612, 0
  %v5762 = vsel %vm148, %v5613, 0
  %v5765 = vsel %vm148, %v5614, 0
  %v5768 = vsel %vm148, %v5615, 0
  %v5771 = vsel %vm148, %v5616, 0
  %v5774 = vsel %vm148, %v5617, 0
  %v5777 = vsel %vm148, %v5618, 0
  %v5780 = vsel %vm148, %v5619, 0
  %v5783 = vsel %vm148, %v5620, 0
  %v5786 = vsel %vm148, %v5621, 0
  %v5789 = vsel %vm148, %v5622, 0
  %v5792 = vsel %vm148, %v5623, 0
  %v5795 = vsel %vm148, %v5624, 0
  %v5798 = vsel %vm148, %v5625, 0
  %v5801 = vsel %vm148, %v5626, 0
  %v5804 = vsel %vm148, %v5627, 0
  %v5807 = vsel %vm148, %v5628, 0
  %v5810 = vsel %vm148, %v5629, 0
  %v5813 = vsel %vm148, %v5630, 0
  %v5816 = vsel %vm148, %v5631, 0
  %v5819 = vsel %vm148, %v5632, 0
  %v5822 = vsel %vm148, %v5633, 0
  %v5825 = vsel %vm148, %v5634, 0
  %v5828 = vsel %vm148, %v5635, 0
  %v5831 = vsel %vm341, %v5637, 0
  %5833 = vmatprep.subr.mxu0 0.0
  %5834 = vmatpush1.msra.mxu0 %v5831
  %5835 = vmatprep.subr.mxu0 0.0
  %5836 = vmatpush1.msra.mxu0 0.0
  %5837 = vmatprep.subr.mxu0 0.0
  %5838 = vmatpush1.msra.mxu0 0.0
  %5839 = vmatprep.subr.mxu0 0.0
  %5840 = vmatpush1.msra.mxu0 0.0
  %5841 = vmatprep.subr.mxu0 0.0
  %5842 = vmatpush1.msra.mxu0 0.0
  %5843 = vmatprep.subr.mxu0 0.0
  %5844 = vmatpush1.msra.mxu0 0.0
  %5845 = vmatprep.subr.mxu0 0.0
  %5846 = vmatpush1.msra.mxu0 0.0
  %5847 = vmatprep.subr.mxu0 0.0
  %5848 = vmatpush1.msra.mxu0 0.0
  %5849 = vmatprep.subr.mxu0 0.0
  %5850 = vmatpush1.msra.mxu0 0.0
  %5851 = vmatprep.subr.mxu0 0.0
  %5852 = vmatpush1.msra.mxu0 0.0
  %5853 = vmatprep.subr.mxu0 0.0
  %5854 = vmatpush1.msra.mxu0 0.0
  %5855 = vmatprep.subr.mxu0 0.0
  %5856 = vmatpush1.msra.mxu0 0.0
  %5857 = vmatprep.subr.mxu0 0.0
  %5858 = vmatpush1.msra.mxu0 0.0
  %5859 = vmatprep.subr.mxu0 0.0
  %5860 = vmatpush1.msra.mxu0 0.0
  %5861 = vmatprep.subr.mxu0 0.0
  %5862 = vmatpush1.msra.mxu0 0.0
  %5863 = vmatprep.subr.mxu0 0.0
  %5864 = vmatpush1.msra.mxu0 0.0
  %5865 = vmatprep.subr.mxu0 0.0
  %5866 = vmatpush1.msra.mxu0 0.0
  %5867 = vmatprep.subr.mxu0 0.0
  %5868 = vmatpush1.msra.mxu0 0.0
  %5869 = vmatprep.subr.mxu0 0.0
  %5870 = vmatpush1.msra.mxu0 0.0
  %5871 = vmatprep.subr.mxu0 0.0
  %5872 = vmatpush1.msra.mxu0 0.0
  %5873 = vmatprep.subr.mxu0 0.0
  %5874 = vmatpush1.msra.mxu0 0.0
  %5875 = vmatprep.subr.mxu0 0.0
  %5876 = vmatpush1.msra.mxu0 0.0
  %5877 = vmatprep.subr.mxu0 0.0
  %5878 = vmatpush1.msra.mxu0 0.0
  %5879 = vmatprep.subr.mxu0 0.0
  %5880 = vmatpush1.msra.mxu0 0.0
  %5881 = vmatprep.subr.mxu0 0.0
  %5882 = vmatpush1.msra.mxu0 0.0
  %5883 = vmatprep.subr.mxu0 0.0
  %5884 = vmatpush1.msra.mxu0 0.0
  %5885 = vmatprep.subr.mxu0 0.0
  %5886 = vmatpush1.msra.mxu0 0.0
  %5887 = vmatprep.subr.mxu0 0.0
  %5888 = vmatpush1.msra.mxu0 0.0
  %5889 = vmatprep.subr.mxu0 0.0
  %5890 = vmatpush1.msra.mxu0 0.0
  %5891 = vmatprep.subr.mxu0 0.0
  %5892 = vmatpush1.msra.mxu0 0.0
  %5893 = vmatprep.subr.mxu0 0.0
  %5894 = vmatpush1.msra.mxu0 0.0
  %5895 = vmatprep.subr.mxu0 0.0
  %5896 = vmatpush1.msra.mxu0 0.0
  %5897 = vmatprep.mubr.f32.mxu0 0.0
  %5898 = vmatmul.mubr.f32.gmra.mrb[0].mxu0 %v5639
  %v5899 = vpop.f32.mrb[0].mxu0
  %v5900 = vadd.f32 0.0, %v5899
  %v5901 = vpop.f32.mrb[0].mxu0
  %5902 = vmatprep.mubr.f32.mxu0 0.0
  %5903 = vmatmul.mubr.f32.gmra.mrb[0].mxu0 %v5642
  %v5904 = vpop.f32.mrb[0].mxu0
  %v5905 = vadd.f32 0.0, %v5904
  %v5906 = vpop.f32.mrb[0].mxu0
  %5907 = vmatprep.mubr.f32.mxu0 0.0
  %5908 = vmatmul.mubr.f32.gmra.mrb[0].mxu0 %v5645
  %v5909 = vpop.f32.mrb[0].mxu0
  %v5910 = vadd.f32 0.0, %v5909
  %v5911 = vpop.f32.mrb[0].mxu0
  %5912 = vmatprep.mubr.f32.mxu0 0.0
  %5913 = vmatmul.mubr.f32.gmra.mrb[0].mxu0 %v5648
  %v5914 = vpop.f32.mrb[0].mxu0
  %v5915 = vadd.f32 0.0, %v5914
  %v5916 = vpop.f32.mrb[0].mxu0
  %5917 = vmatprep.mubr.f32.mxu0 0.0
  %5918 = vmatmul.mubr.f32.gmra.mrb[0].mxu0 %v5651
  %v5919 = vpop.f32.mrb[0].mxu0
  %v5920 = vadd.f32 0.0, %v5919
  %v5921 = vpop.f32.mrb[0].mxu0
  %5922 = vmatprep.mubr.f32.mxu0 0.0
  %5923 = vmatmul.mubr.f32.gmra.mrb[0].mxu0 %v5654
  %v5924 = vpop.f32.mrb[0].mxu0
  %v5925 = vadd.f32 0.0, %v5924
  %v5926 = vpop.f32.mrb[0].mxu0
  %5927 = vmatprep.mubr.f32.mxu0 0.0
  %5928 = vmatmul.mubr.f32.gmra.mrb[0].mxu0 %v5657
  %v5929 = vpop.f32.mrb[0].mxu0
  %v5930 = vadd.f32 0.0, %v5929
  %v5931 = vpop.f32.mrb[0].mxu0
  %5932 = vmatprep.mubr.f32.mxu0 0.0
  %5933 = vmatmul.mubr.f32.gmra.mrb[0].mxu0 %v5660
  %v5934 = vpop.f32.mrb[0].mxu0
  %v5935 = vadd.f32 0.0, %v5934
  %v5936 = vpop.f32.mrb[0].mxu0
  %5937 = vmatprep.mubr.f32.mxu0 0.0
  %5938 = vmatmul.mubr.f32.gmra.mrb[0].mxu0 %v5663
  %v5939 = vpop.f32.mrb[0].mxu0
  %v5940 = vadd.f32 0.0, %v5939
  %v5941 = vpop.f32.mrb[0].mxu0
  %5942 = vmatprep.mubr.f32.mxu0 0.0
  %5943 = vmatmul.mubr.f32.gmra.mrb[0].mxu0 %v5666
  %v5944 = vpop.f32.mrb[0].mxu0
  %v5945 = vadd.f32 0.0, %v5944
  %v5946 = vpop.f32.mrb[0].mxu0
  %5947 = vmatprep.mubr.f32.mxu0 0.0
  %5948 = vmatmul.mubr.f32.gmra.mrb[0].mxu0 %v5669
  %v5949 = vpop.f32.mrb[0].mxu0
  %v5950 = vadd.f32 0.0, %v5949
  %v5951 = vpop.f32.mrb[0].mxu0
  %5952 = vmatprep.mubr.f32.mxu0 0.0
  %5953 = vmatmul.mubr.f32.gmra.mrb[0].mxu0 %v5672
  %v5954 = vpop.f32.mrb[0].mxu0
  %v5955 = vadd.f32 0.0, %v5954
  %v5956 = vpop.f32.mrb[0].mxu0
  %5957 = vmatprep.mubr.f32.mxu0 0.0
  %5958 = vmatmul.mubr.f32.gmra.mrb[0].mxu0 %v5675
  %v5959 = vpop.f32.mrb[0].mxu0
  %v5960 = vadd.f32 0.0, %v5959
  %v5961 = vpop.f32.mrb[0].mxu0
  %5962 = vmatprep.mubr.f32.mxu0 0.0
  %5963 = vmatmul.mubr.f32.gmra.mrb[0].mxu0 %v5678
  %v5964 = vpop.f32.mrb[0].mxu0
  %v5965 = vadd.f32 0.0, %v5964
  %v5966 = vpop.f32.mrb[0].mxu0
  %5967 = vmatprep.mubr.f32.mxu0 0.0
  %5968 = vmatmul.mubr.f32.gmra.mrb[0].mxu0 %v5681
  %v5969 = vpop.f32.mrb[0].mxu0
  %v5970 = vadd.f32 0.0, %v5969
  %v5971 = vpop.f32.mrb[0].mxu0
  %5972 = vmatprep.mubr.f32.mxu0 0.0
  %5973 = vmatmul.mubr.f32.gmra.mrb[0].mxu0 %v5684
  %v5974 = vpop.f32.mrb[0].mxu0
  %v5975 = vadd.f32 0.0, %v5974
  %v5976 = vpop.f32.mrb[0].mxu0
  %5977 = vmatprep.mubr.f32.mxu0 0.0
  %5978 = vmatmul.mubr.f32.gmra.mrb[0].mxu0 %v5687
  %v5979 = vpop.f32.mrb[0].mxu0
  %v5980 = vadd.f32 0.0, %v5979
  %v5981 = vpop.f32.mrb[0].mxu0
  %5982 = vmatprep.mubr.f32.mxu0 0.0
  %5983 = vmatmul.mubr.f32.gmra.mrb[0].mxu0 %v5690
  %v5984 = vpop.f32.mrb[0].mxu0
  %v5985 = vadd.f32 0.0, %v5984
  %v5986 = vpop.f32.mrb[0].mxu0
  %5987 = vmatprep.mubr.f32.mxu0 0.0
  %5988 = vmatmul.mubr.f32.gmra.mrb[0].mxu0 %v5693
  %v5989 = vpop.f32.mrb[0].mxu0
  %v5990 = vadd.f32 0.0, %v5989
  %v5991 = vpop.f32.mrb[0].mxu0
  %5992 = vmatprep.mubr.f32.mxu0 0.0
  %5993 = vmatmul.mubr.f32.gmra.mrb[0].mxu0 %v5696
  %v5994 = vpop.f32.mrb[0].mxu0
  %v5995 = vadd.f32 0.0, %v5994
  %v5996 = vpop.f32.mrb[0].mxu0
  %5997 = vmatprep.mubr.f32.mxu0 0.0
  %5998 = vmatmul.mubr.f32.gmra.mrb[0].mxu0 %v5699
  %v5999 = vpop.f32.mrb[0].mxu0
  %v6000 = vadd.f32 0.0, %v5999
  %v6001 = vpop.f32.mrb[0].mxu0
  %6002 = vmatprep.mubr.f32.mxu0 0.0
  %6003 = vmatmul.mubr.f32.gmra.mrb[0].mxu0 %v5702
  %v6004 = vpop.f32.mrb[0].mxu0
  %v6005 = vadd.f32 0.0, %v6004
  %v6006 = vpop.f32.mrb[0].mxu0
  %6007 = vmatprep.mubr.f32.mxu0 0.0
  %6008 = vmatmul.mubr.f32.gmra.mrb[0].mxu0 %v5705
  %v6009 = vpop.f32.mrb[0].mxu0
  %v6010 = vadd.f32 0.0, %v6009
  %v6011 = vpop.f32.mrb[0].mxu0
  %6012 = vmatprep.mubr.f32.mxu0 0.0
  %6013 = vmatmul.mubr.f32.gmra.mrb[0].mxu0 %v5708
  %v6014 = vpop.f32.mrb[0].mxu0
  %v6015 = vadd.f32 0.0, %v6014
  %v6016 = vpop.f32.mrb[0].mxu0
  %6017 = vmatprep.mubr.f32.mxu0 0.0
  %6018 = vmatmul.mubr.f32.gmra.mrb[0].mxu0 %v5711
  %v6019 = vpop.f32.mrb[0].mxu0
  %v6020 = vadd.f32 0.0, %v6019
  %v6021 = vpop.f32.mrb[0].mxu0
  %6022 = vmatprep.mubr.f32.mxu0 0.0
  %6023 = vmatmul.mubr.f32.gmra.mrb[0].mxu0 %v5714
  %v6024 = vpop.f32.mrb[0].mxu0
  %v6025 = vadd.f32 0.0, %v6024
  %v6026 = vpop.f32.mrb[0].mxu0
  %6027 = vmatprep.mubr.f32.mxu0 0.0
  %6028 = vmatmul.mubr.f32.gmra.mrb[0].mxu0 %v5717
  %v6029 = vpop.f32.mrb[0].mxu0
  %v6030 = vadd.f32 0.0, %v6029
  %v6031 = vpop.f32.mrb[0].mxu0
  %6032 = vmatprep.mubr.f32.mxu0 0.0
  %6033 = vmatmul.mubr.f32.gmra.mrb[0].mxu0 %v5720
  %v6034 = vpop.f32.mrb[0].mxu0
  %v6035 = vadd.f32 0.0, %v6034
  %v6036 = vpop.f32.mrb[0].mxu0
  %6037 = vmatprep.mubr.f32.mxu0 0.0
  %6038 = vmatmul.mubr.f32.gmra.mrb[0].mxu0 %v5723
  %v6039 = vpop.f32.mrb[0].mxu0
  %v6040 = vadd.f32 0.0, %v6039
  %v6041 = vpop.f32.mrb[0].mxu0
  %6042 = vmatprep.mubr.f32.mxu0 0.0
  %6043 = vmatmul.mubr.f32.gmra.mrb[0].mxu0 %v5726
  %v6044 = vpop.f32.mrb[0].mxu0
  %v6045 = vadd.f32 0.0, %v6044
  %v6046 = vpop.f32.mrb[0].mxu0
  %6047 = vmatprep.mubr.f32.mxu0 0.0
  %6048 = vmatmul.mubr.f32.gmra.mrb[0].mxu0 %v5729
  %v6049 = vpop.f32.mrb[0].mxu0
  %v6050 = vadd.f32 0.0, %v6049
  %v6051 = vpop.f32.mrb[0].mxu0
  %6052 = vmatprep.mubr.f32.mxu0 0.0
  %6053 = vmatmul.mubr.f32.gmra.mrb[0].mxu0 %v5732
  %v6054 = vpop.f32.mrb[0].mxu0
  %v6055 = vadd.f32 0.0, %v6054
  %v6056 = vpop.f32.mrb[0].mxu0
  %6057 = vmatprep.mubr.f32.mxu0 0.0
  %6058 = vmatmul.mubr.f32.gmra.mrb[0].mxu0 %v5735
  %v6059 = vpop.f32.mrb[0].mxu0
  %v6060 = vadd.f32 0.0, %v6059
  %v6061 = vpop.f32.mrb[0].mxu0
  %6062 = vmatprep.mubr.f32.mxu0 0.0
  %6063 = vmatmul.mubr.f32.gmra.mrb[0].mxu0 %v5738
  %v6064 = vpop.f32.mrb[0].mxu0
  %v6065 = vadd.f32 0.0, %v6064
  %v6066 = vpop.f32.mrb[0].mxu0
  %6067 = vmatprep.mubr.f32.mxu0 0.0
  %6068 = vmatmul.mubr.f32.gmra.mrb[0].mxu0 %v5741
  %v6069 = vpop.f32.mrb[0].mxu0
  %v6070 = vadd.f32 0.0, %v6069
  %v6071 = vpop.f32.mrb[0].mxu0
  %6072 = vmatprep.mubr.f32.mxu0 0.0
  %6073 = vmatmul.mubr.f32.gmra.mrb[0].mxu0 %v5744
  %v6074 = vpop.f32.mrb[0].mxu0
  %v6075 = vadd.f32 0.0, %v6074
  %v6076 = vpop.f32.mrb[0].mxu0
  %6077 = vmatprep.mubr.f32.mxu0 0.0
  %6078 = vmatmul.mubr.f32.gmra.mrb[0].mxu0 %v5747
  %v6079 = vpop.f32.mrb[0].mxu0
  %v6080 = vadd.f32 0.0, %v6079
  %v6081 = vpop.f32.mrb[0].mxu0
  %6082 = vmatprep.mubr.f32.mxu0 0.0
  %6083 = vmatmul.mubr.f32.gmra.mrb[0].mxu0 %v5750
  %v6084 = vpop.f32.mrb[0].mxu0
  %v6085 = vadd.f32 0.0, %v6084
  %v6086 = vpop.f32.mrb[0].mxu0
  %6087 = vmatprep.mubr.f32.mxu0 0.0
  %6088 = vmatmul.mubr.f32.gmra.mrb[0].mxu0 %v5753
  %v6089 = vpop.f32.mrb[0].mxu0
  %v6090 = vadd.f32 0.0, %v6089
  %v6091 = vpop.f32.mrb[0].mxu0
  %6092 = vmatprep.mubr.f32.mxu0 0.0
  %6093 = vmatmul.mubr.f32.gmra.mrb[0].mxu0 %v5756
  %v6094 = vpop.f32.mrb[0].mxu0
  %v6095 = vadd.f32 0.0, %v6094
  %v6096 = vpop.f32.mrb[0].mxu0
  %6097 = vmatprep.mubr.f32.mxu0 0.0
  %6098 = vmatmul.mubr.f32.gmra.mrb[0].mxu0 %v5759
  %v6099 = vpop.f32.mrb[0].mxu0
  %v6100 = vadd.f32 0.0, %v6099
  %v6101 = vpop.f32.mrb[0].mxu0
  %6102 = vmatprep.mubr.f32.mxu0 0.0
  %6103 = vmatmul.mubr.f32.gmra.mrb[0].mxu0 %v5762
  %v6104 = vpop.f32.mrb[0].mxu0
  %v6105 = vadd.f32 0.0, %v6104
  %v6106 = vpop.f32.mrb[0].mxu0
  %6107 = vmatprep.mubr.f32.mxu0 0.0
  %6108 = vmatmul.mubr.f32.gmra.mrb[0].mxu0 %v5765
  %v6109 = vpop.f32.mrb[0].mxu0
  %v6110 = vadd.f32 0.0, %v6109
  %v6111 = vpop.f32.mrb[0].mxu0
  %6112 = vmatprep.mubr.f32.mxu0 0.0
  %6113 = vmatmul.mubr.f32.gmra.mrb[0].mxu0 %v5768
  %v6114 = vpop.f32.mrb[0].mxu0
  %v6115 = vadd.f32 0.0, %v6114
  %v6116 = vpop.f32.mrb[0].mxu0
  %6117 = vmatprep.mubr.f32.mxu0 0.0
  %6118 = vmatmul.mubr.f32.gmra.mrb[0].mxu0 %v5771
  %v6119 = vpop.f32.mrb[0].mxu0
  %v6120 = vadd.f32 0.0, %v6119
  %v6121 = vpop.f32.mrb[0].mxu0
  %6122 = vmatprep.mubr.f32.mxu0 0.0
  %6123 = vmatmul.mubr.f32.gmra.mrb[0].mxu0 %v5774
  %v6124 = vpop.f32.mrb[0].mxu0
  %v6125 = vadd.f32 0.0, %v6124
  %v6126 = vpop.f32.mrb[0].mxu0
  %6127 = vmatprep.mubr.f32.mxu0 0.0
  %6128 = vmatmul.mubr.f32.gmra.mrb[0].mxu0 %v5777
  %v6129 = vpop.f32.mrb[0].mxu0
  %v6130 = vadd.f32 0.0, %v6129
  %v6131 = vpop.f32.mrb[0].mxu0
  %6132 = vmatprep.mubr.f32.mxu0 0.0
  %6133 = vmatmul.mubr.f32.gmra.mrb[0].mxu0 %v5780
  %v6134 = vpop.f32.mrb[0].mxu0
  %v6135 = vadd.f32 0.0, %v6134
  %v6136 = vpop.f32.mrb[0].mxu0
  %6137 = vmatprep.mubr.f32.mxu0 0.0
  %6138 = vmatmul.mubr.f32.gmra.mrb[0].mxu0 %v5783
  %v6139 = vpop.f32.mrb[0].mxu0
  %v6140 = vadd.f32 0.0, %v6139
  %v6141 = vpop.f32.mrb[0].mxu0
  %6142 = vmatprep.mubr.f32.mxu0 0.0
  %6143 = vmatmul.mubr.f32.gmra.mrb[0].mxu0 %v5786
  %v6144 = vpop.f32.mrb[0].mxu0
  %v6145 = vadd.f32 0.0, %v6144
  %v6146 = vpop.f32.mrb[0].mxu0
  %6147 = vmatprep.mubr.f32.mxu0 0.0
  %6148 = vmatmul.mubr.f32.gmra.mrb[0].mxu0 %v5789
  %v6149 = vpop.f32.mrb[0].mxu0
  %v6150 = vadd.f32 0.0, %v6149
  %v6151 = vpop.f32.mrb[0].mxu0
  %6152 = vmatprep.mubr.f32.mxu0 0.0
  %6153 = vmatmul.mubr.f32.gmra.mrb[0].mxu0 %v5792
  %v6154 = vpop.f32.mrb[0].mxu0
  %v6155 = vadd.f32 0.0, %v6154
  %v6156 = vpop.f32.mrb[0].mxu0
  %6157 = vmatprep.mubr.f32.mxu0 0.0
  %6158 = vmatmul.mubr.f32.gmra.mrb[0].mxu0 %v5795
  %v6159 = vpop.f32.mrb[0].mxu0
  %v6160 = vadd.f32 0.0, %v6159
  %v6161 = vpop.f32.mrb[0].mxu0
  %6162 = vmatprep.mubr.f32.mxu0 0.0
  %6163 = vmatmul.mubr.f32.gmra.mrb[0].mxu0 %v5798
  %v6164 = vpop.f32.mrb[0].mxu0
  %v6165 = vadd.f32 0.0, %v6164
  %v6166 = vpop.f32.mrb[0].mxu0
  %6167 = vmatprep.mubr.f32.mxu0 0.0
  %6168 = vmatmul.mubr.f32.gmra.mrb[0].mxu0 %v5801
  %v6169 = vpop.f32.mrb[0].mxu0
  %v6170 = vadd.f32 0.0, %v6169
  %v6171 = vpop.f32.mrb[0].mxu0
  %6172 = vmatprep.mubr.f32.mxu0 0.0
  %6173 = vmatmul.mubr.f32.gmra.mrb[0].mxu0 %v5804
  %v6174 = vpop.f32.mrb[0].mxu0
  %v6175 = vadd.f32 0.0, %v6174
  %v6176 = vpop.f32.mrb[0].mxu0
  %6177 = vmatprep.mubr.f32.mxu0 0.0
  %6178 = vmatmul.mubr.f32.gmra.mrb[0].mxu0 %v5807
  %v6179 = vpop.f32.mrb[0].mxu0
  %v6180 = vadd.f32 0.0, %v6179
  %v6181 = vpop.f32.mrb[0].mxu0
  %6182 = vmatprep.mubr.f32.mxu0 0.0
  %6183 = vmatmul.mubr.f32.gmra.mrb[0].mxu0 %v5810
  %v6184 = vpop.f32.mrb[0].mxu0
  %v6185 = vadd.f32 0.0, %v6184
  %v6186 = vpop.f32.mrb[0].mxu0
  %6187 = vmatprep.mubr.f32.mxu0 0.0
  %6188 = vmatmul.mubr.f32.gmra.mrb[0].mxu0 %v5813
  %v6189 = vpop.f32.mrb[0].mxu0
  %v6190 = vadd.f32 0.0, %v6189
  %v6191 = vpop.f32.mrb[0].mxu0
  %6192 = vmatprep.mubr.f32.mxu0 0.0
  %6193 = vmatmul.mubr.f32.gmra.mrb[0].mxu0 %v5816
  %v6194 = vpop.f32.mrb[0].mxu0
  %v6195 = vadd.f32 0.0, %v6194
  %v6196 = vpop.f32.mrb[0].mxu0
  %6197 = vmatprep.mubr.f32.mxu0 0.0
  %6198 = vmatmul.mubr.f32.gmra.mrb[0].mxu0 %v5819
  %v6199 = vpop.f32.mrb[0].mxu0
  %v6200 = vadd.f32 0.0, %v6199
  %v6201 = vpop.f32.mrb[0].mxu0
  %6202 = vmatprep.mubr.f32.mxu0 0.0
  %6203 = vmatmul.mubr.f32.gmra.mrb[0].mxu0 %v5822
  %v6204 = vpop.f32.mrb[0].mxu0
  %v6205 = vadd.f32 0.0, %v6204
  %v6206 = vpop.f32.mrb[0].mxu0
  %6207 = vmatprep.mubr.f32.mxu0 0.0
  %6208 = vmatmul.mubr.f32.gmra.mrb[0].mxu0 %v5825
  %v6209 = vpop.f32.mrb[0].mxu0
  %v6210 = vadd.f32 0.0, %v6209
  %v6211 = vpop.f32.mrb[0].mxu0
  %6212 = vmatprep.mubr.f32.mxu0 0.0
  %6213 = vmatmul.mubr.f32.gmra.mrb[0].mxu0 %v5828
  %v6214 = vpop.f32.mrb[0].mxu0
  %v6215 = vadd.f32 0.0, %v6214
  %v6216 = vpop.f32.mrb[0].mxu0
  %6217 = vdwg.mxu0
  %v6218 = vadd.f32 %v5508, %v5900
  %v6219 = vadd.f32 %v5509, %v5905
  %v6220 = vadd.f32 %v5510, %v5910
  %v6221 = vadd.f32 %v5511, %v5915
  %v6222 = vadd.f32 %v5512, %v5920
  %v6223 = vadd.f32 %v5513, %v5925
  %v6224 = vadd.f32 %v5514, %v5930
  %v6225 = vadd.f32 %v5515, %v5935
  %v6226 = vadd.f32 %v5516, %v5940
  %v6227 = vadd.f32 %v5517, %v5945
  %v6228 = vadd.f32 %v5518, %v5950
  %v6229 = vadd.f32 %v5519, %v5955
  %v6230 = vadd.f32 %v5520, %v5960
  %v6231 = vadd.f32 %v5521, %v5965
  %v6232 = vadd.f32 %v5522, %v5970
  %v6233 = vadd.f32 %v5523, %v5975
  %v6234 = vadd.f32 %v5524, %v5980
  %v6235 = vadd.f32 %v5525, %v5985
  %v6236 = vadd.f32 %v5526, %v5990
  %v6237 = vadd.f32 %v5527, %v5995
  %v6238 = vadd.f32 %v5528, %v6000
  %v6239 = vadd.f32 %v5529, %v6005
  %v6240 = vadd.f32 %v5530, %v6010
  %v6241 = vadd.f32 %v5531, %v6015
  %v6242 = vadd.f32 %v5532, %v6020
  %v6243 = vadd.f32 %v5533, %v6025
  %v6244 = vadd.f32 %v5534, %v6030
  %v6245 = vadd.f32 %v5535, %v6035
  %v6246 = vadd.f32 %v5536, %v6040
  %v6247 = vadd.f32 %v5537, %v6045
  %v6248 = vadd.f32 %v5538, %v6050
  %v6249 = vadd.f32 %v5539, %v6055
  %v6250 = vadd.f32 %v5540, %v6060
  %v6251 = vadd.f32 %v5541, %v6065
  %v6252 = vadd.f32 %v5542, %v6070
  %v6253 = vadd.f32 %v5543, %v6075
  %v6254 = vadd.f32 %v5544, %v6080
  %v6255 = vadd.f32 %v5545, %v6085
  %v6256 = vadd.f32 %v5546, %v6090
  %v6257 = vadd.f32 %v5547, %v6095
  %v6258 = vadd.f32 %v5548, %v6100
  %v6259 = vadd.f32 %v5549, %v6105
  %v6260 = vadd.f32 %v5550, %v6110
  %v6261 = vadd.f32 %v5551, %v6115
  %v6262 = vadd.f32 %v5552, %v6120
  %v6263 = vadd.f32 %v5553, %v6125
  %v6264 = vadd.f32 %v5554, %v6130
  %v6265 = vadd.f32 %v5555, %v6135
  %v6266 = vadd.f32 %v5556, %v6140
  %v6267 = vadd.f32 %v5557, %v6145
  %v6268 = vadd.f32 %v5558, %v6150
  %v6269 = vadd.f32 %v5559, %v6155
  %v6270 = vadd.f32 %v5560, %v6160
  %v6271 = vadd.f32 %v5561, %v6165
  %v6272 = vadd.f32 %v5562, %v6170
  %v6273 = vadd.f32 %v5563, %v6175
  %v6274 = vadd.f32 %v5564, %v6180
  %v6275 = vadd.f32 %v5565, %v6185
  %v6276 = vadd.f32 %v5566, %v6190
  %v6277 = vadd.f32 %v5567, %v6195
  %v6278 = vadd.f32 %v5568, %v6200
  %v6279 = vadd.f32 %v5569, %v6205
  %v6280 = vadd.f32 %v5570, %v6210
  %v6281 = vadd.f32 %v5571, %v6215
  %v6282 = vld [vmem:[%s2 + $0x8] sm:$0x1]
  %v6283 = vlaneseq
  %v6284 = vshrl.u32 %v6283, 7
  %v6285 = vsub.s32 0, %v6284
  %v6286 = vrot.slane %v6282, %v6285
  %v6287 = vadd.f32 %v6218, %v6286
  %v6288 = vadd.f32 %v6219, %v6286
  %v6289 = vadd.f32 %v6220, %v6286
  %v6290 = vadd.f32 %v6221, %v6286
  %v6291 = vadd.f32 %v6222, %v6286
  %v6292 = vadd.f32 %v6223, %v6286
  %v6293 = vadd.f32 %v6224, %v6286
  %v6294 = vadd.f32 %v6225, %v6286
  %v6295 = vadd.f32 %v6226, %v6286
  %v6296 = vadd.f32 %v6227, %v6286
  %v6297 = vadd.f32 %v6228, %v6286
  %v6298 = vadd.f32 %v6229, %v6286
  %v6299 = vadd.f32 %v6230, %v6286
  %v6300 = vadd.f32 %v6231, %v6286
  %v6301 = vadd.f32 %v6232, %v6286
  %v6302 = vadd.f32 %v6233, %v6286
  %v6303 = vadd.f32 %v6234, %v6286
  %v6304 = vadd.f32 %v6235, %v6286
  %v6305 = vadd.f32 %v6236, %v6286
  %v6306 = vadd.f32 %v6237, %v6286
  %v6307 = vadd.f32 %v6238, %v6286
  %v6308 = vadd.f32 %v6239, %v6286
  %v6309 = vadd.f32 %v6240, %v6286
  %v6310 = vadd.f32 %v6241, %v6286
  %v6311 = vadd.f32 %v6242, %v6286
  %v6312 = vadd.f32 %v6243, %v6286
  %v6313 = vadd.f32 %v6244, %v6286
  %v6314 = vadd.f32 %v6245, %v6286
  %v6315 = vadd.f32 %v6246, %v6286
  %v6316 = vadd.f32 %v6247, %v6286
  %v6317 = vadd.f32 %v6248, %v6286
  %v6318 = vadd.f32 %v6249, %v6286
  %v6319 = vadd.f32 %v6250, %v6286
  %v6320 = vadd.f32 %v6251, %v6286
  %v6321 = vadd.f32 %v6252, %v6286
  %v6322 = vadd.f32 %v6253, %v6286
  %v6323 = vadd.f32 %v6254, %v6286
  %v6324 = vadd.f32 %v6255, %v6286
  %v6325 = vadd.f32 %v6256, %v6286
  %v6326 = vadd.f32 %v6257, %v6286
  %v6327 = vadd.f32 %v6258, %v6286
  %v6328 = vadd.f32 %v6259, %v6286
  %v6329 = vadd.f32 %v6260, %v6286
  %v6330 = vadd.f32 %v6261, %v6286
  %v6331 = vadd.f32 %v6262, %v6286
  %v6332 = vadd.f32 %v6263, %v6286
  %v6333 = vadd.f32 %v6264, %v6286
  %v6334 = vadd.f32 %v6265, %v6286
  %v6335 = vadd.f32 %v6266, %v6286
  %v6336 = vadd.f32 %v6267, %v6286
  %v6337 = vadd.f32 %v6268, %v6286
  %v6338 = vadd.f32 %v6269, %v6286
  %v6339 = vadd.f32 %v6270, %v6286
  %v6340 = vadd.f32 %v6271, %v6286
  %v6341 = vadd.f32 %v6272, %v6286
  %v6342 = vadd.f32 %v6273, %v6286
  %v6343 = vadd.f32 %v6274, %v6286
  %v6344 = vadd.f32 %v6275, %v6286
  %v6345 = vadd.f32 %v6276, %v6286
  %v6346 = vadd.f32 %v6277, %v6286
  %v6347 = vadd.f32 %v6278, %v6286
  %v6348 = vadd.f32 %v6279, %v6286
  %v6349 = vadd.f32 %v6280, %v6286
  %v6350 = vadd.f32 %v6281, %v6286
  %vm6351 = vcmp.gt.f32.partialorder %v6287, 0.0
  %vm6352 = vcmp.gt.f32.partialorder %v6288, 0.0
  %vm6353 = vcmp.gt.f32.partialorder %v6289, 0.0
  %vm6354 = vcmp.gt.f32.partialorder %v6290, 0.0
  %vm6355 = vcmp.gt.f32.partialorder %v6291, 0.0
  %vm6356 = vcmp.gt.f32.partialorder %v6292, 0.0
  %vm6357 = vcmp.gt.f32.partialorder %v6293, 0.0
  %vm6358 = vcmp.gt.f32.partialorder %v6294, 0.0
  %vm6359 = vcmp.gt.f32.partialorder %v6295, 0.0
  %vm6360 = vcmp.gt.f32.partialorder %v6296, 0.0
  %vm6361 = vcmp.gt.f32.partialorder %v6297, 0.0
  %vm6362 = vcmp.gt.f32.partialorder %v6298, 0.0
  %vm6363 = vcmp.gt.f32.partialorder %v6299, 0.0
  %vm6364 = vcmp.gt.f32.partialorder %v6300, 0.0
  %vm6365 = vcmp.gt.f32.partialorder %v6301, 0.0
  %vm6366 = vcmp.gt.f32.partialorder %v6302, 0.0
  %vm6367 = vcmp.gt.f32.partialorder %v6303, 0.0
  %vm6368 = vcmp.gt.f32.partialorder %v6304, 0.0
  %vm6369 = vcmp.gt.f32.partialorder %v6305, 0.0
  %vm6370 = vcmp.gt.f32.partialorder %v6306, 0.0
  %vm6371 = vcmp.gt.f32.partialorder %v6307, 0.0
  %vm6372 = vcmp.gt.f32.partialorder %v6308, 0.0
  %vm6373 = vcmp.gt.f32.partialorder %v6309, 0.0
  %vm6374 = vcmp.gt.f32.partialorder %v6310, 0.0
  %vm6375 = vcmp.gt.f32.partialorder %v6311, 0.0
  %vm6376 = vcmp.gt.f32.partialorder %v6312, 0.0
  %vm6377 = vcmp.gt.f32.partialorder %v6313, 0.0
  %vm6378 = vcmp.gt.f32.partialorder %v6314, 0.0
  %vm6379 = vcmp.gt.f32.partialorder %v6315, 0.0
  %vm6380 = vcmp.gt.f32.partialorder %v6316, 0.0
  %vm6381 = vcmp.gt.f32.partialorder %v6317, 0.0
  %vm6382 = vcmp.gt.f32.partialorder %v6318, 0.0
  %vm6383 = vcmp.gt.f32.partialorder %v6319, 0.0
  %vm6384 = vcmp.gt.f32.partialorder %v6320, 0.0
  %vm6385 = vcmp.gt.f32.partialorder %v6321, 0.0
  %vm6386 = vcmp.gt.f32.partialorder %v6322, 0.0
  %vm6387 = vcmp.gt.f32.partialorder %v6323, 0.0
  %vm6388 = vcmp.gt.f32.partialorder %v6324, 0.0
  %vm6389 = vcmp.gt.f32.partialorder %v6325, 0.0
  %vm6390 = vcmp.gt.f32.partialorder %v6326, 0.0
  %vm6391 = vcmp.gt.f32.partialorder %v6327, 0.0
  %vm6392 = vcmp.gt.f32.partialorder %v6328, 0.0
  %vm6393 = vcmp.gt.f32.partialorder %v6329, 0.0
  %vm6394 = vcmp.gt.f32.partialorder %v6330, 0.0
  %vm6395 = vcmp.gt.f32.partialorder %v6331, 0.0
  %vm6396 = vcmp.gt.f32.partialorder %v6332, 0.0
  %vm6397 = vcmp.gt.f32.partialorder %v6333, 0.0
  %vm6398 = vcmp.gt.f32.partialorder %v6334, 0.0
  %vm6399 = vcmp.gt.f32.partialorder %v6335, 0.0
  %vm6400 = vcmp.gt.f32.partialorder %v6336, 0.0
  %vm6401 = vcmp.gt.f32.partialorder %v6337, 0.0
  %vm6402 = vcmp.gt.f32.partialorder %v6338, 0.0
  %vm6403 = vcmp.gt.f32.partialorder %v6339, 0.0
  %vm6404 = vcmp.gt.f32.partialorder %v6340, 0.0
  %vm6405 = vcmp.gt.f32.partialorder %v6341, 0.0
  %vm6406 = vcmp.gt.f32.partialorder %v6342, 0.0
  %vm6407 = vcmp.gt.f32.partialorder %v6343, 0.0
  %vm6408 = vcmp.gt.f32.partialorder %v6344, 0.0
  %vm6409 = vcmp.gt.f32.partialorder %v6345, 0.0
  %vm6410 = vcmp.gt.f32.partialorder %v6346, 0.0
  %vm6411 = vcmp.gt.f32.partialorder %v6347, 0.0
  %vm6412 = vcmp.gt.f32.partialorder %v6348, 0.0
  %vm6413 = vcmp.gt.f32.partialorder %v6349, 0.0
  %vm6414 = vcmp.gt.f32.partialorder %v6350, 0.0
  %v6415 = vmul.f32 %v6287, 0.1
  %v6416 = vmul.f32 %v6288, 0.1
  %v6417 = vmul.f32 %v6289, 0.1
  %v6418 = vmul.f32 %v6290, 0.1
  %v6419 = vmul.f32 %v6291, 0.1
  %v6420 = vmul.f32 %v6292, 0.1
  %v6421 = vmul.f32 %v6293, 0.1
  %v6422 = vmul.f32 %v6294, 0.1
  %v6423 = vmul.f32 %v6295, 0.1
  %v6424 = vmul.f32 %v6296, 0.1
  %v6425 = vmul.f32 %v6297, 0.1
  %v6426 = vmul.f32 %v6298, 0.1
  %v6427 = vmul.f32 %v6299, 0.1
  %v6428 = vmul.f32 %v6300, 0.1
  %v6429 = vmul.f32 %v6301, 0.1
  %v6430 = vmul.f32 %v6302, 0.1
  %v6431 = vmul.f32 %v6303, 0.1
  %v6432 = vmul.f32 %v6304, 0.1
  %v6433 = vmul.f32 %v6305, 0.1
  %v6434 = vmul.f32 %v6306, 0.1
  %v6435 = vmul.f32 %v6307, 0.1
  %v6436 = vmul.f32 %v6308, 0.1
  %v6437 = vmul.f32 %v6309, 0.1
  %v6438 = vmul.f32 %v6310, 0.1
  %v6439 = vmul.f32 %v6311, 0.1
  %v6440 = vmul.f32 %v6312, 0.1
  %v6441 = vmul.f32 %v6313, 0.1
  %v6442 = vmul.f32 %v6314, 0.1
  %v6443 = vmul.f32 %v6315, 0.1
  %v6444 = vmul.f32 %v6316, 0.1
  %v6445 = vmul.f32 %v6317, 0.1
  %v6446 = vmul.f32 %v6318, 0.1
  %v6447 = vmul.f32 %v6319, 0.1
  %v6448 = vmul.f32 %v6320, 0.1
  %v6449 = vmul.f32 %v6321, 0.1
  %v6450 = vmul.f32 %v6322, 0.1
  %v6451 = vmul.f32 %v6323, 0.1
  %v6452 = vmul.f32 %v6324, 0.1
  %v6453 = vmul.f32 %v6325, 0.1
  %v6454 = vmul.f32 %v6326, 0.1
  %v6455 = vmul.f32 %v6327, 0.1
  %v6456 = vmul.f32 %v6328, 0.1
  %v6457 = vmul.f32 %v6329, 0.1
  %v6458 = vmul.f32 %v6330, 0.1
  %v6459 = vmul.f32 %v6331, 0.1
  %v6460 = vmul.f32 %v6332, 0.1
  %v6461 = vmul.f32 %v6333, 0.1
  %v6462 = vmul.f32 %v6334, 0.1
  %v6463 = vmul.f32 %v6335, 0.1
  %v6464 = vmul.f32 %v6336, 0.1
  %v6465 = vmul.f32 %v6337, 0.1
  %v6466 = vmul.f32 %v6338, 0.1
  %v6467 = vmul.f32 %v6339, 0.1
  %v6468 = vmul.f32 %v6340, 0.1
  %v6469 = vmul.f32 %v6341, 0.1
  %v6470 = vmul.f32 %v6342, 0.1
  %v6471 = vmul.f32 %v6343, 0.1
  %v6472 = vmul.f32 %v6344, 0.1
  %v6473 = vmul.f32 %v6345, 0.1
  %v6474 = vmul.f32 %v6346, 0.1
  %v6475 = vmul.f32 %v6347, 0.1
  %v6476 = vmul.f32 %v6348, 0.1
  %v6477 = vmul.f32 %v6349, 0.1
  %v6478 = vmul.f32 %v6350, 0.1
  %v6479 = vsel %vm6351, %v6287, %v6415
  %v6480 = vsel %vm6352, %v6288, %v6416
  %v6481 = vsel %vm6353, %v6289, %v6417
  %v6482 = vsel %vm6354, %v6290, %v6418
  %v6483 = vsel %vm6355, %v6291, %v6419
  %v6484 = vsel %vm6356, %v6292, %v6420
  %v6485 = vsel %vm6357, %v6293, %v6421
  %v6486 = vsel %vm6358, %v6294, %v6422
  %v6487 = vsel %vm6359, %v6295, %v6423
  %v6488 = vsel %vm6360, %v6296, %v6424
  %v6489 = vsel %vm6361, %v6297, %v6425
  %v6490 = vsel %vm6362, %v6298, %v6426
  %v6491 = vsel %vm6363, %v6299, %v6427
  %v6492 = vsel %vm6364, %v6300, %v6428
  %v6493 = vsel %vm6365, %v6301, %v6429
  %v6494 = vsel %vm6366, %v6302, %v6430
  %v6495 = vsel %vm6367, %v6303, %v6431
  %v6496 = vsel %vm6368, %v6304, %v6432
  %v6497 = vsel %vm6369, %v6305, %v6433
  %v6498 = vsel %vm6370, %v6306, %v6434
  %v6499 = vsel %vm6371, %v6307, %v6435
  %v6500 = vsel %vm6372, %v6308, %v6436
  %v6501 = vsel %vm6373, %v6309, %v6437
  %v6502 = vsel %vm6374, %v6310, %v6438
  %v6503 = vsel %vm6375, %v6311, %v6439
  %v6504 = vsel %vm6376, %v6312, %v6440
  %v6505 = vsel %vm6377, %v6313, %v6441
  %v6506 = vsel %vm6378, %v6314, %v6442
  %v6507 = vsel %vm6379, %v6315, %v6443
  %v6508 = vsel %vm6380, %v6316, %v6444
  %v6509 = vsel %vm6381, %v6317, %v6445
  %v6510 = vsel %vm6382, %v6318, %v6446
  %v6511 = vsel %vm6383, %v6319, %v6447
  %v6512 = vsel %vm6384, %v6320, %v6448
  %v6513 = vsel %vm6385, %v6321, %v6449
  %v6514 = vsel %vm6386, %v6322, %v6450
  %v6515 = vsel %vm6387, %v6323, %v6451
  %v6516 = vsel %vm6388, %v6324, %v6452
  %v6517 = vsel %vm6389, %v6325, %v6453
  %v6518 = vsel %vm6390, %v6326, %v6454
  %v6519 = vsel %vm6391, %v6327, %v6455
  %v6520 = vsel %vm6392, %v6328, %v6456
  %v6521 = vsel %vm6393, %v6329, %v6457
  %v6522 = vsel %vm6394, %v6330, %v6458
  %v6523 = vsel %vm6395, %v6331, %v6459
  %v6524 = vsel %vm6396, %v6332, %v6460
  %v6525 = vsel %vm6397, %v6333, %v6461
  %v6526 = vsel %vm6398, %v6334, %v6462
  %v6527 = vsel %vm6399, %v6335, %v6463
  %v6528 = vsel %vm6400, %v6336, %v6464
  %v6529 = vsel %vm6401, %v6337, %v6465
  %v6530 = vsel %vm6402, %v6338, %v6466
  %v6531 = vsel %vm6403, %v6339, %v6467
  %v6532 = vsel %vm6404, %v6340, %v6468
  %v6533 = vsel %vm6405, %v6341, %v6469
  %v6534 = vsel %vm6406, %v6342, %v6470
  %v6535 = vsel %vm6407, %v6343, %v6471
  %v6536 = vsel %vm6408, %v6344, %v6472
  %v6537 = vsel %vm6409, %v6345, %v6473
  %v6538 = vsel %vm6410, %v6346, %v6474
  %v6539 = vsel %vm6411, %v6347, %v6475
  %v6540 = vsel %vm6412, %v6348, %v6476
  %v6541 = vsel %vm6413, %v6349, %v6477
  %v6542 = vsel %vm6414, %v6350, %v6478
  %v6543 = vld [vmem:[%s2] sm:$0xff]
  %v6544 = vld [vmem:[%s2 + $0x9] sm:$0x1]
  %v6545 = vlaneseq
  %v6546 = vshrl.u32 %v6545, 7
  %v6547 = vsub.s32 0, %v6546
  %v6548 = vrot.slane %v6544, %v6547
  %vm6549 = vcmask 64512
  %v6551 = vsel %vm6549, %v6479, 0
  %v6554 = vsel %vm6549, %v6480, 0
  %v6557 = vsel %vm6549, %v6481, 0
  %v6560 = vsel %vm6549, %v6482, 0
  %v6563 = vsel %vm6549, %v6483, 0
  %v6566 = vsel %vm6549, %v6484, 0
  %v6569 = vsel %vm6549, %v6485, 0
  %v6572 = vsel %vm6549, %v6486, 0
  %v6575 = vsel %vm6549, %v6487, 0
  %v6578 = vsel %vm6549, %v6488, 0
  %v6581 = vsel %vm6549, %v6489, 0
  %v6584 = vsel %vm6549, %v6490, 0
  %v6587 = vsel %vm6549, %v6491, 0
  %v6590 = vsel %vm6549, %v6492, 0
  %v6593 = vsel %vm6549, %v6493, 0
  %v6596 = vsel %vm6549, %v6494, 0
  %v6599 = vsel %vm6549, %v6495, 0
  %v6602 = vsel %vm6549, %v6496, 0
  %v6605 = vsel %vm6549, %v6497, 0
  %v6608 = vsel %vm6549, %v6498, 0
  %v6611 = vsel %vm6549, %v6499, 0
  %v6614 = vsel %vm6549, %v6500, 0
  %v6617 = vsel %vm6549, %v6501, 0
  %v6620 = vsel %vm6549, %v6502, 0
  %v6623 = vsel %vm6549, %v6503, 0
  %v6626 = vsel %vm6549, %v6504, 0
  %v6629 = vsel %vm6549, %v6505, 0
  %v6632 = vsel %vm6549, %v6506, 0
  %v6635 = vsel %vm6549, %v6507, 0
  %v6638 = vsel %vm6549, %v6508, 0
  %v6641 = vsel %vm6549, %v6509, 0
  %v6644 = vsel %vm6549, %v6510, 0
  %v6647 = vsel %vm6549, %v6511, 0
  %v6650 = vsel %vm6549, %v6512, 0
  %v6653 = vsel %vm6549, %v6513, 0
  %v6656 = vsel %vm6549, %v6514, 0
  %v6659 = vsel %vm6549, %v6515, 0
  %v6662 = vsel %vm6549, %v6516, 0
  %v6665 = vsel %vm6549, %v6517, 0
  %v6668 = vsel %vm6549, %v6518, 0
  %v6671 = vsel %vm6549, %v6519, 0
  %v6674 = vsel %vm6549, %v6520, 0
  %v6677 = vsel %vm6549, %v6521, 0
  %v6680 = vsel %vm6549, %v6522, 0
  %v6683 = vsel %vm6549, %v6523, 0
  %v6686 = vsel %vm6549, %v6524, 0
  %v6689 = vsel %vm6549, %v6525, 0
  %v6692 = vsel %vm6549, %v6526, 0
  %v6695 = vsel %vm6549, %v6527, 0
  %v6698 = vsel %vm6549, %v6528, 0
  %v6701 = vsel %vm6549, %v6529, 0
  %v6704 = vsel %vm6549, %v6530, 0
  %v6707 = vsel %vm6549, %v6531, 0
  %v6710 = vsel %vm6549, %v6532, 0
  %v6713 = vsel %vm6549, %v6533, 0
  %v6716 = vsel %vm6549, %v6534, 0
  %v6719 = vsel %vm6549, %v6535, 0
  %v6722 = vsel %vm6549, %v6536, 0
  %v6725 = vsel %vm6549, %v6537, 0
  %v6728 = vsel %vm6549, %v6538, 0
  %v6731 = vsel %vm6549, %v6539, 0
  %v6734 = vsel %vm6549, %v6540, 0
  %v6737 = vsel %vm6549, %v6541, 0
  %v6740 = vsel %vm6549, %v6542, 0
  %6742 = vmatprep.subr.mxu0 0.0
  %6743 = vmatpush1.msra.mxu0 %v6543
  %6744 = vmatprep.subr.mxu0 0.0
  %6745 = vmatpush1.msra.mxu0 0.0
  %6746 = vmatprep.subr.mxu0 0.0
  %6747 = vmatpush1.msra.mxu0 0.0
  %6748 = vmatprep.subr.mxu0 0.0
  %6749 = vmatpush1.msra.mxu0 0.0
  %6750 = vmatprep.subr.mxu0 0.0
  %6751 = vmatpush1.msra.mxu0 0.0
  %6752 = vmatprep.subr.mxu0 0.0
  %6753 = vmatpush1.msra.mxu0 0.0
  %6754 = vmatprep.subr.mxu0 0.0
  %6755 = vmatpush1.msra.mxu0 0.0
  %6756 = vmatprep.subr.mxu0 0.0
  %6757 = vmatpush1.msra.mxu0 0.0
  %6758 = vmatprep.subr.mxu0 0.0
  %6759 = vmatpush1.msra.mxu0 0.0
  %6760 = vmatprep.subr.mxu0 0.0
  %6761 = vmatpush1.msra.mxu0 0.0
  %6762 = vmatprep.subr.mxu0 0.0
  %6763 = vmatpush1.msra.mxu0 0.0
  %6764 = vmatprep.subr.mxu0 0.0
  %6765 = vmatpush1.msra.mxu0 0.0
  %6766 = vmatprep.subr.mxu0 0.0
  %6767 = vmatpush1.msra.mxu0 0.0
  %6768 = vmatprep.subr.mxu0 0.0
  %6769 = vmatpush1.msra.mxu0 0.0
  %6770 = vmatprep.subr.mxu0 0.0
  %6771 = vmatpush1.msra.mxu0 0.0
  %6772 = vmatprep.subr.mxu0 0.0
  %6773 = vmatpush1.msra.mxu0 0.0
  %6774 = vmatprep.subr.mxu0 0.0
  %6775 = vmatpush1.msra.mxu0 0.0
  %6776 = vmatprep.subr.mxu0 0.0
  %6777 = vmatpush1.msra.mxu0 0.0
  %6778 = vmatprep.subr.mxu0 0.0
  %6779 = vmatpush1.msra.mxu0 0.0
  %6780 = vmatprep.subr.mxu0 0.0
  %6781 = vmatpush1.msra.mxu0 0.0
  %6782 = vmatprep.subr.mxu0 0.0
  %6783 = vmatpush1.msra.mxu0 0.0
  %6784 = vmatprep.subr.mxu0 0.0
  %6785 = vmatpush1.msra.mxu0 0.0
  %6786 = vmatprep.subr.mxu0 0.0
  %6787 = vmatpush1.msra.mxu0 0.0
  %6788 = vmatprep.subr.mxu0 0.0
  %6789 = vmatpush1.msra.mxu0 0.0
  %6790 = vmatprep.subr.mxu0 0.0
  %6791 = vmatpush1.msra.mxu0 0.0
  %6792 = vmatprep.subr.mxu0 0.0
  %6793 = vmatpush1.msra.mxu0 0.0
  %6794 = vmatprep.subr.mxu0 0.0
  %6795 = vmatpush1.msra.mxu0 0.0
  %6796 = vmatprep.subr.mxu0 0.0
  %6797 = vmatpush1.msra.mxu0 0.0
  %6798 = vmatprep.subr.mxu0 0.0
  %6799 = vmatpush1.msra.mxu0 0.0
  %6800 = vmatprep.subr.mxu0 0.0
  %6801 = vmatpush1.msra.mxu0 0.0
  %6802 = vmatprep.subr.mxu0 0.0
  %6803 = vmatpush1.msra.mxu0 0.0
  %6804 = vmatprep.subr.mxu0 0.0
  %6805 = vmatpush1.msra.mxu0 0.0
  %6806 = vmatprep.mubr.f32.mxu0 0.0
  %6807 = vmatmul.mubr.f32.gmra.mrb[0].mxu0 %v6551
  %v6808 = vpop.f32.mrb[0].mxu0
  %v6809 = vadd.f32 %v6548, %v6808
  %v6810 = vpop.f32.mrb[0].mxu0
  %6811 = vmatprep.mubr.f32.mxu0 0.0
  %6812 = vmatmul.mubr.f32.gmra.mrb[0].mxu0 %v6554
  %v6813 = vpop.f32.mrb[0].mxu0
  %v6814 = vadd.f32 %v6548, %v6813
  %v6815 = vpop.f32.mrb[0].mxu0
  %6816 = vmatprep.mubr.f32.mxu0 0.0
  %6817 = vmatmul.mubr.f32.gmra.mrb[0].mxu0 %v6557
  %v6818 = vpop.f32.mrb[0].mxu0
  %v6819 = vadd.f32 %v6548, %v6818
  %v6820 = vpop.f32.mrb[0].mxu0
  %6821 = vmatprep.mubr.f32.mxu0 0.0
  %6822 = vmatmul.mubr.f32.gmra.mrb[0].mxu0 %v6560
  %v6823 = vpop.f32.mrb[0].mxu0
  %v6824 = vadd.f32 %v6548, %v6823
  %v6825 = vpop.f32.mrb[0].mxu0
  %6826 = vmatprep.mubr.f32.mxu0 0.0
  %6827 = vmatmul.mubr.f32.gmra.mrb[0].mxu0 %v6563
  %v6828 = vpop.f32.mrb[0].mxu0
  %v6829 = vadd.f32 %v6548, %v6828
  %v6830 = vpop.f32.mrb[0].mxu0
  %6831 = vmatprep.mubr.f32.mxu0 0.0
  %6832 = vmatmul.mubr.f32.gmra.mrb[0].mxu0 %v6566
  %v6833 = vpop.f32.mrb[0].mxu0
  %v6834 = vadd.f32 %v6548, %v6833
  %v6835 = vpop.f32.mrb[0].mxu0
  %6836 = vmatprep.mubr.f32.mxu0 0.0
  %6837 = vmatmul.mubr.f32.gmra.mrb[0].mxu0 %v6569
  %v6838 = vpop.f32.mrb[0].mxu0
  %v6839 = vadd.f32 %v6548, %v6838
  %v6840 = vpop.f32.mrb[0].mxu0
  %6841 = vmatprep.mubr.f32.mxu0 0.0
  %6842 = vmatmul.mubr.f32.gmra.mrb[0].mxu0 %v6572
  %v6843 = vpop.f32.mrb[0].mxu0
  %v6844 = vadd.f32 %v6548, %v6843
  %v6845 = vpop.f32.mrb[0].mxu0
  %6846 = vmatprep.mubr.f32.mxu0 0.0
  %6847 = vmatmul.mubr.f32.gmra.mrb[0].mxu0 %v6575
  %v6848 = vpop.f32.mrb[0].mxu0
  %v6849 = vadd.f32 %v6548, %v6848
  %v6850 = vpop.f32.mrb[0].mxu0
  %6851 = vmatprep.mubr.f32.mxu0 0.0
  %6852 = vmatmul.mubr.f32.gmra.mrb[0].mxu0 %v6578
  %v6853 = vpop.f32.mrb[0].mxu0
  %v6854 = vadd.f32 %v6548, %v6853
  %v6855 = vpop.f32.mrb[0].mxu0
  %6856 = vmatprep.mubr.f32.mxu0 0.0
  %6857 = vmatmul.mubr.f32.gmra.mrb[0].mxu0 %v6581
  %v6858 = vpop.f32.mrb[0].mxu0
  %v6859 = vadd.f32 %v6548, %v6858
  %v6860 = vpop.f32.mrb[0].mxu0
  %6861 = vmatprep.mubr.f32.mxu0 0.0
  %6862 = vmatmul.mubr.f32.gmra.mrb[0].mxu0 %v6584
  %v6863 = vpop.f32.mrb[0].mxu0
  %v6864 = vadd.f32 %v6548, %v6863
  %v6865 = vpop.f32.mrb[0].mxu0
  %6866 = vmatprep.mubr.f32.mxu0 0.0
  %6867 = vmatmul.mubr.f32.gmra.mrb[0].mxu0 %v6587
  %v6868 = vpop.f32.mrb[0].mxu0
  %v6869 = vadd.f32 %v6548, %v6868
  %v6870 = vpop.f32.mrb[0].mxu0
  %6871 = vmatprep.mubr.f32.mxu0 0.0
  %6872 = vmatmul.mubr.f32.gmra.mrb[0].mxu0 %v6590
  %v6873 = vpop.f32.mrb[0].mxu0
  %v6874 = vadd.f32 %v6548, %v6873
  %v6875 = vpop.f32.mrb[0].mxu0
  %6876 = vmatprep.mubr.f32.mxu0 0.0
  %6877 = vmatmul.mubr.f32.gmra.mrb[0].mxu0 %v6593
  %v6878 = vpop.f32.mrb[0].mxu0
  %v6879 = vadd.f32 %v6548, %v6878
  %v6880 = vpop.f32.mrb[0].mxu0
  %6881 = vmatprep.mubr.f32.mxu0 0.0
  %6882 = vmatmul.mubr.f32.gmra.mrb[0].mxu0 %v6596
  %v6883 = vpop.f32.mrb[0].mxu0
  %v6884 = vadd.f32 %v6548, %v6883
  %v6885 = vpop.f32.mrb[0].mxu0
  %6886 = vmatprep.mubr.f32.mxu0 0.0
  %6887 = vmatmul.mubr.f32.gmra.mrb[0].mxu0 %v6599
  %v6888 = vpop.f32.mrb[0].mxu0
  %v6889 = vadd.f32 %v6548, %v6888
  %v6890 = vpop.f32.mrb[0].mxu0
  %6891 = vmatprep.mubr.f32.mxu0 0.0
  %6892 = vmatmul.mubr.f32.gmra.mrb[0].mxu0 %v6602
  %v6893 = vpop.f32.mrb[0].mxu0
  %v6894 = vadd.f32 %v6548, %v6893
  %v6895 = vpop.f32.mrb[0].mxu0
  %6896 = vmatprep.mubr.f32.mxu0 0.0
  %6897 = vmatmul.mubr.f32.gmra.mrb[0].mxu0 %v6605
  %v6898 = vpop.f32.mrb[0].mxu0
  %v6899 = vadd.f32 %v6548, %v6898
  %v6900 = vpop.f32.mrb[0].mxu0
  %6901 = vmatprep.mubr.f32.mxu0 0.0
  %6902 = vmatmul.mubr.f32.gmra.mrb[0].mxu0 %v6608
  %v6903 = vpop.f32.mrb[0].mxu0
  %v6904 = vadd.f32 %v6548, %v6903
  %v6905 = vpop.f32.mrb[0].mxu0
  %6906 = vmatprep.mubr.f32.mxu0 0.0
  %6907 = vmatmul.mubr.f32.gmra.mrb[0].mxu0 %v6611
  %v6908 = vpop.f32.mrb[0].mxu0
  %v6909 = vadd.f32 %v6548, %v6908
  %v6910 = vpop.f32.mrb[0].mxu0
  %6911 = vmatprep.mubr.f32.mxu0 0.0
  %6912 = vmatmul.mubr.f32.gmra.mrb[0].mxu0 %v6614
  %v6913 = vpop.f32.mrb[0].mxu0
  %v6914 = vadd.f32 %v6548, %v6913
  %v6915 = vpop.f32.mrb[0].mxu0
  %6916 = vmatprep.mubr.f32.mxu0 0.0
  %6917 = vmatmul.mubr.f32.gmra.mrb[0].mxu0 %v6617
  %v6918 = vpop.f32.mrb[0].mxu0
  %v6919 = vadd.f32 %v6548, %v6918
  %v6920 = vpop.f32.mrb[0].mxu0
  %6921 = vmatprep.mubr.f32.mxu0 0.0
  %6922 = vmatmul.mubr.f32.gmra.mrb[0].mxu0 %v6620
  %v6923 = vpop.f32.mrb[0].mxu0
  %v6924 = vadd.f32 %v6548, %v6923
  %v6925 = vpop.f32.mrb[0].mxu0
  %6926 = vmatprep.mubr.f32.mxu0 0.0
  %6927 = vmatmul.mubr.f32.gmra.mrb[0].mxu0 %v6623
  %v6928 = vpop.f32.mrb[0].mxu0
  %v6929 = vadd.f32 %v6548, %v6928
  %v6930 = vpop.f32.mrb[0].mxu0
  %6931 = vmatprep.mubr.f32.mxu0 0.0
  %6932 = vmatmul.mubr.f32.gmra.mrb[0].mxu0 %v6626
  %v6933 = vpop.f32.mrb[0].mxu0
  %v6934 = vadd.f32 %v6548, %v6933
  %v6935 = vpop.f32.mrb[0].mxu0
  %6936 = vmatprep.mubr.f32.mxu0 0.0
  %6937 = vmatmul.mubr.f32.gmra.mrb[0].mxu0 %v6629
  %v6938 = vpop.f32.mrb[0].mxu0
  %v6939 = vadd.f32 %v6548, %v6938
  %v6940 = vpop.f32.mrb[0].mxu0
  %6941 = vmatprep.mubr.f32.mxu0 0.0
  %6942 = vmatmul.mubr.f32.gmra.mrb[0].mxu0 %v6632
  %v6943 = vpop.f32.mrb[0].mxu0
  %v6944 = vadd.f32 %v6548, %v6943
  %v6945 = vpop.f32.mrb[0].mxu0
  %6946 = vmatprep.mubr.f32.mxu0 0.0
  %6947 = vmatmul.mubr.f32.gmra.mrb[0].mxu0 %v6635
  %v6948 = vpop.f32.mrb[0].mxu0
  %v6949 = vadd.f32 %v6548, %v6948
  %v6950 = vpop.f32.mrb[0].mxu0
  %6951 = vmatprep.mubr.f32.mxu0 0.0
  %6952 = vmatmul.mubr.f32.gmra.mrb[0].mxu0 %v6638
  %v6953 = vpop.f32.mrb[0].mxu0
  %v6954 = vadd.f32 %v6548, %v6953
  %v6955 = vpop.f32.mrb[0].mxu0
  %6956 = vmatprep.mubr.f32.mxu0 0.0
  %6957 = vmatmul.mubr.f32.gmra.mrb[0].mxu0 %v6641
  %v6958 = vpop.f32.mrb[0].mxu0
  %v6959 = vadd.f32 %v6548, %v6958
  %v6960 = vpop.f32.mrb[0].mxu0
  %6961 = vmatprep.mubr.f32.mxu0 0.0
  %6962 = vmatmul.mubr.f32.gmra.mrb[0].mxu0 %v6644
  %v6963 = vpop.f32.mrb[0].mxu0
  %v6964 = vadd.f32 %v6548, %v6963
  %v6965 = vpop.f32.mrb[0].mxu0
  %6966 = vmatprep.mubr.f32.mxu0 0.0
  %6967 = vmatmul.mubr.f32.gmra.mrb[0].mxu0 %v6647
  %v6968 = vpop.f32.mrb[0].mxu0
  %v6969 = vadd.f32 %v6548, %v6968
  %v6970 = vpop.f32.mrb[0].mxu0
  %6971 = vmatprep.mubr.f32.mxu0 0.0
  %6972 = vmatmul.mubr.f32.gmra.mrb[0].mxu0 %v6650
  %v6973 = vpop.f32.mrb[0].mxu0
  %v6974 = vadd.f32 %v6548, %v6973
  %v6975 = vpop.f32.mrb[0].mxu0
  %6976 = vmatprep.mubr.f32.mxu0 0.0
  %6977 = vmatmul.mubr.f32.gmra.mrb[0].mxu0 %v6653
  %v6978 = vpop.f32.mrb[0].mxu0
  %v6979 = vadd.f32 %v6548, %v6978
  %v6980 = vpop.f32.mrb[0].mxu0
  %6981 = vmatprep.mubr.f32.mxu0 0.0
  %6982 = vmatmul.mubr.f32.gmra.mrb[0].mxu0 %v6656
  %v6983 = vpop.f32.mrb[0].mxu0
  %v6984 = vadd.f32 %v6548, %v6983
  %v6985 = vpop.f32.mrb[0].mxu0
  %6986 = vmatprep.mubr.f32.mxu0 0.0
  %6987 = vmatmul.mubr.f32.gmra.mrb[0].mxu0 %v6659
  %v6988 = vpop.f32.mrb[0].mxu0
  %v6989 = vadd.f32 %v6548, %v6988
  %v6990 = vpop.f32.mrb[0].mxu0
  %6991 = vmatprep.mubr.f32.mxu0 0.0
  %6992 = vmatmul.mubr.f32.gmra.mrb[0].mxu0 %v6662
  %v6993 = vpop.f32.mrb[0].mxu0
  %v6994 = vadd.f32 %v6548, %v6993
  %v6995 = vpop.f32.mrb[0].mxu0
  %6996 = vmatprep.mubr.f32.mxu0 0.0
  %6997 = vmatmul.mubr.f32.gmra.mrb[0].mxu0 %v6665
  %v6998 = vpop.f32.mrb[0].mxu0
  %v6999 = vadd.f32 %v6548, %v6998
  %v7000 = vpop.f32.mrb[0].mxu0
  %7001 = vmatprep.mubr.f32.mxu0 0.0
  %7002 = vmatmul.mubr.f32.gmra.mrb[0].mxu0 %v6668
  %v7003 = vpop.f32.mrb[0].mxu0
  %v7004 = vadd.f32 %v6548, %v7003
  %v7005 = vpop.f32.mrb[0].mxu0
  %7006 = vmatprep.mubr.f32.mxu0 0.0
  %7007 = vmatmul.mubr.f32.gmra.mrb[0].mxu0 %v6671
  %v7008 = vpop.f32.mrb[0].mxu0
  %v7009 = vadd.f32 %v6548, %v7008
  %v7010 = vpop.f32.mrb[0].mxu0
  %7011 = vmatprep.mubr.f32.mxu0 0.0
  %7012 = vmatmul.mubr.f32.gmra.mrb[0].mxu0 %v6674
  %v7013 = vpop.f32.mrb[0].mxu0
  %v7014 = vadd.f32 %v6548, %v7013
  %v7015 = vpop.f32.mrb[0].mxu0
  %7016 = vmatprep.mubr.f32.mxu0 0.0
  %7017 = vmatmul.mubr.f32.gmra.mrb[0].mxu0 %v6677
  %v7018 = vpop.f32.mrb[0].mxu0
  %v7019 = vadd.f32 %v6548, %v7018
  %v7020 = vpop.f32.mrb[0].mxu0
  %7021 = vmatprep.mubr.f32.mxu0 0.0
  %7022 = vmatmul.mubr.f32.gmra.mrb[0].mxu0 %v6680
  %v7023 = vpop.f32.mrb[0].mxu0
  %v7024 = vadd.f32 %v6548, %v7023
  %v7025 = vpop.f32.mrb[0].mxu0
  %7026 = vmatprep.mubr.f32.mxu0 0.0
  %7027 = vmatmul.mubr.f32.gmra.mrb[0].mxu0 %v6683
  %v7028 = vpop.f32.mrb[0].mxu0
  %v7029 = vadd.f32 %v6548, %v7028
  %v7030 = vpop.f32.mrb[0].mxu0
  %7031 = vmatprep.mubr.f32.mxu0 0.0
  %7032 = vmatmul.mubr.f32.gmra.mrb[0].mxu0 %v6686
  %v7033 = vpop.f32.mrb[0].mxu0
  %v7034 = vadd.f32 %v6548, %v7033
  %v7035 = vpop.f32.mrb[0].mxu0
  %7036 = vmatprep.mubr.f32.mxu0 0.0
  %7037 = vmatmul.mubr.f32.gmra.mrb[0].mxu0 %v6689
  %v7038 = vpop.f32.mrb[0].mxu0
  %v7039 = vadd.f32 %v6548, %v7038
  %v7040 = vpop.f32.mrb[0].mxu0
  %7041 = vmatprep.mubr.f32.mxu0 0.0
  %7042 = vmatmul.mubr.f32.gmra.mrb[0].mxu0 %v6692
  %v7043 = vpop.f32.mrb[0].mxu0
  %v7044 = vadd.f32 %v6548, %v7043
  %v7045 = vpop.f32.mrb[0].mxu0
  %7046 = vmatprep.mubr.f32.mxu0 0.0
  %7047 = vmatmul.mubr.f32.gmra.mrb[0].mxu0 %v6695
  %v7048 = vpop.f32.mrb[0].mxu0
  %v7049 = vadd.f32 %v6548, %v7048
  %v7050 = vpop.f32.mrb[0].mxu0
  %7051 = vmatprep.mubr.f32.mxu0 0.0
  %7052 = vmatmul.mubr.f32.gmra.mrb[0].mxu0 %v6698
  %v7053 = vpop.f32.mrb[0].mxu0
  %v7054 = vadd.f32 %v6548, %v7053
  %v7055 = vpop.f32.mrb[0].mxu0
  %7056 = vmatprep.mubr.f32.mxu0 0.0
  %7057 = vmatmul.mubr.f32.gmra.mrb[0].mxu0 %v6701
  %v7058 = vpop.f32.mrb[0].mxu0
  %v7059 = vadd.f32 %v6548, %v7058
  %v7060 = vpop.f32.mrb[0].mxu0
  %7061 = vmatprep.mubr.f32.mxu0 0.0
  %7062 = vmatmul.mubr.f32.gmra.mrb[0].mxu0 %v6704
  %v7063 = vpop.f32.mrb[0].mxu0
  %v7064 = vadd.f32 %v6548, %v7063
  %v7065 = vpop.f32.mrb[0].mxu0
  %7066 = vmatprep.mubr.f32.mxu0 0.0
  %7067 = vmatmul.mubr.f32.gmra.mrb[0].mxu0 %v6707
  %v7068 = vpop.f32.mrb[0].mxu0
  %v7069 = vadd.f32 %v6548, %v7068
  %v7070 = vpop.f32.mrb[0].mxu0
  %7071 = vmatprep.mubr.f32.mxu0 0.0
  %7072 = vmatmul.mubr.f32.gmra.mrb[0].mxu0 %v6710
  %v7073 = vpop.f32.mrb[0].mxu0
  %v7074 = vadd.f32 %v6548, %v7073
  %v7075 = vpop.f32.mrb[0].mxu0
  %7076 = vmatprep.mubr.f32.mxu0 0.0
  %7077 = vmatmul.mubr.f32.gmra.mrb[0].mxu0 %v6713
  %v7078 = vpop.f32.mrb[0].mxu0
  %v7079 = vadd.f32 %v6548, %v7078
  %v7080 = vpop.f32.mrb[0].mxu0
  %7081 = vmatprep.mubr.f32.mxu0 0.0
  %7082 = vmatmul.mubr.f32.gmra.mrb[0].mxu0 %v6716
  %v7083 = vpop.f32.mrb[0].mxu0
  %v7084 = vadd.f32 %v6548, %v7083
  %v7085 = vpop.f32.mrb[0].mxu0
  %7086 = vmatprep.mubr.f32.mxu0 0.0
  %7087 = vmatmul.mubr.f32.gmra.mrb[0].mxu0 %v6719
  %v7088 = vpop.f32.mrb[0].mxu0
  %v7089 = vadd.f32 %v6548, %v7088
  %v7090 = vpop.f32.mrb[0].mxu0
  %7091 = vmatprep.mubr.f32.mxu0 0.0
  %7092 = vmatmul.mubr.f32.gmra.mrb[0].mxu0 %v6722
  %v7093 = vpop.f32.mrb[0].mxu0
  %v7094 = vadd.f32 %v6548, %v7093
  %v7095 = vpop.f32.mrb[0].mxu0
  %7096 = vmatprep.mubr.f32.mxu0 0.0
  %7097 = vmatmul.mubr.f32.gmra.mrb[0].mxu0 %v6725
  %v7098 = vpop.f32.mrb[0].mxu0
  %v7099 = vadd.f32 %v6548, %v7098
  %v7100 = vpop.f32.mrb[0].mxu0
  %7101 = vmatprep.mubr.f32.mxu0 0.0
  %7102 = vmatmul.mubr.f32.gmra.mrb[0].mxu0 %v6728
  %v7103 = vpop.f32.mrb[0].mxu0
  %v7104 = vadd.f32 %v6548, %v7103
  %v7105 = vpop.f32.mrb[0].mxu0
  %7106 = vmatprep.mubr.f32.mxu0 0.0
  %7107 = vmatmul.mubr.f32.gmra.mrb[0].mxu0 %v6731
  %v7108 = vpop.f32.mrb[0].mxu0
  %v7109 = vadd.f32 %v6548, %v7108
  %v7110 = vpop.f32.mrb[0].mxu0
  %7111 = vmatprep.mubr.f32.mxu0 0.0
  %7112 = vmatmul.mubr.f32.gmra.mrb[0].mxu0 %v6734
  %v7113 = vpop.f32.mrb[0].mxu0
  %v7114 = vadd.f32 %v6548, %v7113
  %v7115 = vpop.f32.mrb[0].mxu0
  %7116 = vmatprep.mubr.f32.mxu0 0.0
  %7117 = vmatmul.mubr.f32.gmra.mrb[0].mxu0 %v6737
  %v7118 = vpop.f32.mrb[0].mxu0
  %v7119 = vadd.f32 %v6548, %v7118
  %v7120 = vpop.f32.mrb[0].mxu0
  %7121 = vmatprep.mubr.f32.mxu0 0.0
  %7122 = vmatmul.mubr.f32.gmra.mrb[0].mxu0 %v6740
  %v7123 = vpop.f32.mrb[0].mxu0
  %v7124 = vadd.f32 %v6548, %v7123
  %v7125 = vpop.f32.mrb[0].mxu0
  %7126 = vdwg.mxu0
  %v7127 = vmul.f32 %v6809, 1.442695
  %v7128 = vpow.pop %v7127
  %v7129 = vmul.f32 %v6814, 1.442695
  %v7130 = vpow.pop %v7129
  %v7131 = vmul.f32 %v6819, 1.442695
  %v7132 = vpow.pop %v7131
  %v7133 = vmul.f32 %v6824, 1.442695
  %v7134 = vpow.pop %v7133
  %v7135 = vmul.f32 %v6829, 1.442695
  %v7136 = vpow.pop %v7135
  %v7137 = vmul.f32 %v6834, 1.442695
  %v7138 = vpow.pop %v7137
  %v7139 = vmul.f32 %v6839, 1.442695
  %v7140 = vpow.pop %v7139
  %v7141 = vmul.f32 %v6844, 1.442695
  %v7142 = vpow.pop %v7141
  %v7143 = vmul.f32 %v6849, 1.442695
  %v7144 = vpow.pop %v7143
  %v7145 = vmul.f32 %v6854, 1.442695
  %v7146 = vpow.pop %v7145
  %v7147 = vmul.f32 %v6859, 1.442695
  %v7148 = vpow.pop %v7147
  %v7149 = vmul.f32 %v6864, 1.442695
  %v7150 = vpow.pop %v7149
  %v7151 = vmul.f32 %v6869, 1.442695
  %v7152 = vpow.pop %v7151
  %v7153 = vmul.f32 %v6874, 1.442695
  %v7154 = vpow.pop %v7153
  %v7155 = vmul.f32 %v6879, 1.442695
  %v7156 = vpow.pop %v7155
  %v7157 = vmul.f32 %v6884, 1.442695
  %v7158 = vpow.pop %v7157
  %v7159 = vmul.f32 %v6889, 1.442695
  %v7160 = vpow.pop %v7159
  %v7161 = vmul.f32 %v6894, 1.442695
  %v7162 = vpow.pop %v7161
  %v7163 = vmul.f32 %v6899, 1.442695
  %v7164 = vpow.pop %v7163
  %v7165 = vmul.f32 %v6904, 1.442695
  %v7166 = vpow.pop %v7165
  %v7167 = vmul.f32 %v6909, 1.442695
  %v7168 = vpow.pop %v7167
  %v7169 = vmul.f32 %v6914, 1.442695
  %v7170 = vpow.pop %v7169
  %v7171 = vmul.f32 %v6919, 1.442695
  %v7172 = vpow.pop %v7171
  %v7173 = vmul.f32 %v6924, 1.442695
  %v7174 = vpow.pop %v7173
  %v7175 = vmul.f32 %v6929, 1.442695
  %v7176 = vpow.pop %v7175
  %v7177 = vmul.f32 %v6934, 1.442695
  %v7178 = vpow.pop %v7177
  %v7179 = vmul.f32 %v6939, 1.442695
  %v7180 = vpow.pop %v7179
  %v7181 = vmul.f32 %v6944, 1.442695
  %v7182 = vpow.pop %v7181
  %v7183 = vmul.f32 %v6949, 1.442695
  %v7184 = vpow.pop %v7183
  %v7185 = vmul.f32 %v6954, 1.442695
  %v7186 = vpow.pop %v7185
  %v7187 = vmul.f32 %v6959, 1.442695
  %v7188 = vpow.pop %v7187
  %v7189 = vmul.f32 %v6964, 1.442695
  %v7190 = vpow.pop %v7189
  %v7191 = vmul.f32 %v6969, 1.442695
  %v7192 = vpow.pop %v7191
  %v7193 = vmul.f32 %v6974, 1.442695
  %v7194 = vpow.pop %v7193
  %v7195 = vmul.f32 %v6979, 1.442695
  %v7196 = vpow.pop %v7195
  %v7197 = vmul.f32 %v6984, 1.442695
  %v7198 = vpow.pop %v7197
  %v7199 = vmul.f32 %v6989, 1.442695
  %v7200 = vpow.pop %v7199
  %v7201 = vmul.f32 %v6994, 1.442695
  %v7202 = vpow.pop %v7201
  %v7203 = vmul.f32 %v6999, 1.442695
  %v7204 = vpow.pop %v7203
  %v7205 = vmul.f32 %v7004, 1.442695
  %v7206 = vpow.pop %v7205
  %v7207 = vmul.f32 %v7009, 1.442695
  %v7208 = vpow.pop %v7207
  %v7209 = vmul.f32 %v7014, 1.442695
  %v7210 = vpow.pop %v7209
  %v7211 = vmul.f32 %v7019, 1.442695
  %v7212 = vpow.pop %v7211
  %v7213 = vmul.f32 %v7024, 1.442695
  %v7214 = vpow.pop %v7213
  %v7215 = vmul.f32 %v7029, 1.442695
  %v7216 = vpow.pop %v7215
  %v7217 = vmul.f32 %v7034, 1.442695
  %v7218 = vpow.pop %v7217
  %v7219 = vmul.f32 %v7039, 1.442695
  %v7220 = vpow.pop %v7219
  %v7221 = vmul.f32 %v7044, 1.442695
  %v7222 = vpow.pop %v7221
  %v7223 = vmul.f32 %v7049, 1.442695
  %v7224 = vpow.pop %v7223
  %v7225 = vmul.f32 %v7054, 1.442695
  %v7226 = vpow.pop %v7225
  %v7227 = vmul.f32 %v7059, 1.442695
  %v7228 = vpow.pop %v7227
  %v7229 = vmul.f32 %v7064, 1.442695
  %v7230 = vpow.pop %v7229
  %v7231 = vmul.f32 %v7069, 1.442695
  %v7232 = vpow.pop %v7231
  %v7233 = vmul.f32 %v7074, 1.442695
  %v7234 = vpow.pop %v7233
  %v7235 = vmul.f32 %v7079, 1.442695
  %v7236 = vpow.pop %v7235
  %v7237 = vmul.f32 %v7084, 1.442695
  %v7238 = vpow.pop %v7237
  %v7239 = vmul.f32 %v7089, 1.442695
  %v7240 = vpow.pop %v7239
  %v7241 = vmul.f32 %v7094, 1.442695
  %v7242 = vpow.pop %v7241
  %v7243 = vmul.f32 %v7099, 1.442695
  %v7244 = vpow.pop %v7243
  %v7245 = vmul.f32 %v7104, 1.442695
  %v7246 = vpow.pop %v7245
  %v7247 = vmul.f32 %v7109, 1.442695
  %v7248 = vpow.pop %v7247
  %v7249 = vmul.f32 %v7114, 1.442695
  %v7250 = vpow.pop %v7249
  %v7251 = vmul.f32 %v7119, 1.442695
  %v7252 = vpow.pop %v7251
  %v7253 = vmul.f32 %v7124, 1.442695
  %v7254 = vpow.pop %v7253
  %v7255 = vadd.f32 %v7128, 1.0
  %v7256 = vadd.f32 %v7130, 1.0
  %v7257 = vadd.f32 %v7132, 1.0
  %v7258 = vadd.f32 %v7134, 1.0
  %v7259 = vadd.f32 %v7136, 1.0
  %v7260 = vadd.f32 %v7138, 1.0
  %v7261 = vadd.f32 %v7140, 1.0
  %v7262 = vadd.f32 %v7142, 1.0
  %v7263 = vadd.f32 %v7144, 1.0
  %v7264 = vadd.f32 %v7146, 1.0
  %v7265 = vadd.f32 %v7148, 1.0
  %v7266 = vadd.f32 %v7150, 1.0
  %v7267 = vadd.f32 %v7152, 1.0
  %v7268 = vadd.f32 %v7154, 1.0
  %v7269 = vadd.f32 %v7156, 1.0
  %v7270 = vadd.f32 %v7158, 1.0
  %v7271 = vadd.f32 %v7160, 1.0
  %v7272 = vadd.f32 %v7162, 1.0
  %v7273 = vadd.f32 %v7164, 1.0
  %v7274 = vadd.f32 %v7166, 1.0
  %v7275 = vadd.f32 %v7168, 1.0
  %v7276 = vadd.f32 %v7170, 1.0
  %v7277 = vadd.f32 %v7172, 1.0
  %v7278 = vadd.f32 %v7174, 1.0
  %v7279 = vadd.f32 %v7176, 1.0
  %v7280 = vadd.f32 %v7178, 1.0
  %v7281 = vadd.f32 %v7180, 1.0
  %v7282 = vadd.f32 %v7182, 1.0
  %v7283 = vadd.f32 %v7184, 1.0
  %v7284 = vadd.f32 %v7186, 1.0
  %v7285 = vadd.f32 %v7188, 1.0
  %v7286 = vadd.f32 %v7190, 1.0
  %v7287 = vadd.f32 %v7192, 1.0
  %v7288 = vadd.f32 %v7194, 1.0
  %v7289 = vadd.f32 %v7196, 1.0
  %v7290 = vadd.f32 %v7198, 1.0
  %v7291 = vadd.f32 %v7200, 1.0
  %v7292 = vadd.f32 %v7202, 1.0
  %v7293 = vadd.f32 %v7204, 1.0
  %v7294 = vadd.f32 %v7206, 1.0
  %v7295 = vadd.f32 %v7208, 1.0
  %v7296 = vadd.f32 %v7210, 1.0
  %v7297 = vadd.f32 %v7212, 1.0
  %v7298 = vadd.f32 %v7214, 1.0
  %v7299 = vadd.f32 %v7216, 1.0
  %v7300 = vadd.f32 %v7218, 1.0
  %v7301 = vadd.f32 %v7220, 1.0
  %v7302 = vadd.f32 %v7222, 1.0
  %v7303 = vadd.f32 %v7224, 1.0
  %v7304 = vadd.f32 %v7226, 1.0
  %v7305 = vadd.f32 %v7228, 1.0
  %v7306 = vadd.f32 %v7230, 1.0
  %v7307 = vadd.f32 %v7232, 1.0
  %v7308 = vadd.f32 %v7234, 1.0
  %v7309 = vadd.f32 %v7236, 1.0
  %v7310 = vadd.f32 %v7238, 1.0
  %v7311 = vadd.f32 %v7240, 1.0
  %v7312 = vadd.f32 %v7242, 1.0
  %v7313 = vadd.f32 %v7244, 1.0
  %v7314 = vadd.f32 %v7246, 1.0
  %v7315 = vadd.f32 %v7248, 1.0
  %v7316 = vadd.f32 %v7250, 1.0
  %v7317 = vadd.f32 %v7252, 1.0
  %v7318 = vadd.f32 %v7254, 1.0
  %v7319 = vrcp.pop %v7255
  %v7320 = vrcp.pop %v7256
  %v7321 = vrcp.pop %v7257
  %v7322 = vrcp.pop %v7258
  %v7323 = vrcp.pop %v7259
  %v7324 = vrcp.pop %v7260
  %v7325 = vrcp.pop %v7261
  %v7326 = vrcp.pop %v7262
  %v7327 = vrcp.pop %v7263
  %v7328 = vrcp.pop %v7264
  %v7329 = vrcp.pop %v7265
  %v7330 = vrcp.pop %v7266
  %v7331 = vrcp.pop %v7267
  %v7332 = vrcp.pop %v7268
  %v7333 = vrcp.pop %v7269
  %v7334 = vrcp.pop %v7270
  %v7335 = vrcp.pop %v7271
  %v7336 = vrcp.pop %v7272
  %v7337 = vrcp.pop %v7273
  %v7338 = vrcp.pop %v7274
  %v7339 = vrcp.pop %v7275
  %v7340 = vrcp.pop %v7276
  %v7341 = vrcp.pop %v7277
  %v7342 = vrcp.pop %v7278
  %v7343 = vrcp.pop %v7279
  %v7344 = vrcp.pop %v7280
  %v7345 = vrcp.pop %v7281
  %v7346 = vrcp.pop %v7282
  %v7347 = vrcp.pop %v7283
  %v7348 = vrcp.pop %v7284
  %v7349 = vrcp.pop %v7285
  %v7350 = vrcp.pop %v7286
  %v7351 = vrcp.pop %v7287
  %v7352 = vrcp.pop %v7288
  %v7353 = vrcp.pop %v7289
  %v7354 = vrcp.pop %v7290
  %v7355 = vrcp.pop %v7291
  %v7356 = vrcp.pop %v7292
  %v7357 = vrcp.pop %v7293
  %v7358 = vrcp.pop %v7294
  %v7359 = vrcp.pop %v7295
  %v7360 = vrcp.pop %v7296
  %v7361 = vrcp.pop %v7297
  %v7362 = vrcp.pop %v7298
  %v7363 = vrcp.pop %v7299
  %v7364 = vrcp.pop %v7300
  %v7365 = vrcp.pop %v7301
  %v7366 = vrcp.pop %v7302
  %v7367 = vrcp.pop %v7303
  %v7368 = vrcp.pop %v7304
  %v7369 = vrcp.pop %v7305
  %v7370 = vrcp.pop %v7306
  %v7371 = vrcp.pop %v7307
  %v7372 = vrcp.pop %v7308
  %v7373 = vrcp.pop %v7309
  %v7374 = vrcp.pop %v7310
  %v7375 = vrcp.pop %v7311
  %v7376 = vrcp.pop %v7312
  %v7377 = vrcp.pop %v7313
  %v7378 = vrcp.pop %v7314
  %v7379 = vrcp.pop %v7315
  %v7380 = vrcp.pop %v7316
  %v7381 = vrcp.pop %v7317
  %v7382 = vrcp.pop %v7318
  %v7383 = vsub.f32 1.0, %v7319
  %v7384 = vsub.f32 1.0, %v7320
  %v7385 = vsub.f32 1.0, %v7321
  %v7386 = vsub.f32 1.0, %v7322
  %v7387 = vsub.f32 1.0, %v7323
  %v7388 = vsub.f32 1.0, %v7324
  %v7389 = vsub.f32 1.0, %v7325
  %v7390 = vsub.f32 1.0, %v7326
  %v7391 = vsub.f32 1.0, %v7327
  %v7392 = vsub.f32 1.0, %v7328
  %v7393 = vsub.f32 1.0, %v7329
  %v7394 = vsub.f32 1.0, %v7330
  %v7395 = vsub.f32 1.0, %v7331
  %v7396 = vsub.f32 1.0, %v7332
  %v7397 = vsub.f32 1.0, %v7333
  %v7398 = vsub.f32 1.0, %v7334
  %v7399 = vsub.f32 1.0, %v7335
  %v7400 = vsub.f32 1.0, %v7336
  %v7401 = vsub.f32 1.0, %v7337
  %v7402 = vsub.f32 1.0, %v7338
  %v7403 = vsub.f32 1.0, %v7339
  %v7404 = vsub.f32 1.0, %v7340
  %v7405 = vsub.f32 1.0, %v7341
  %v7406 = vsub.f32 1.0, %v7342
  %v7407 = vsub.f32 1.0, %v7343
  %v7408 = vsub.f32 1.0, %v7344
  %v7409 = vsub.f32 1.0, %v7345
  %v7410 = vsub.f32 1.0, %v7346
  %v7411 = vsub.f32 1.0, %v7347
  %v7412 = vsub.f32 1.0, %v7348
  %v7413 = vsub.f32 1.0, %v7349
  %v7414 = vsub.f32 1.0, %v7350
  %v7415 = vsub.f32 1.0, %v7351
  %v7416 = vsub.f32 1.0, %v7352
  %v7417 = vsub.f32 1.0, %v7353
  %v7418 = vsub.f32 1.0, %v7354
  %v7419 = vsub.f32 1.0, %v7355
  %v7420 = vsub.f32 1.0, %v7356
  %v7421 = vsub.f32 1.0, %v7357
  %v7422 = vsub.f32 1.0, %v7358
  %v7423 = vsub.f32 1.0, %v7359
  %v7424 = vsub.f32 1.0, %v7360
  %v7425 = vsub.f32 1.0, %v7361
  %v7426 = vsub.f32 1.0, %v7362
  %v7427 = vsub.f32 1.0, %v7363
  %v7428 = vsub.f32 1.0, %v7364
  %v7429 = vsub.f32 1.0, %v7365
  %v7430 = vsub.f32 1.0, %v7366
  %v7431 = vsub.f32 1.0, %v7367
  %v7432 = vsub.f32 1.0, %v7368
  %v7433 = vsub.f32 1.0, %v7369
  %v7434 = vsub.f32 1.0, %v7370
  %v7435 = vsub.f32 1.0, %v7371
  %v7436 = vsub.f32 1.0, %v7372
  %v7437 = vsub.f32 1.0, %v7373
  %v7438 = vsub.f32 1.0, %v7374
  %v7439 = vsub.f32 1.0, %v7375
  %v7440 = vsub.f32 1.0, %v7376
  %v7441 = vsub.f32 1.0, %v7377
  %v7442 = vsub.f32 1.0, %v7378
  %v7443 = vsub.f32 1.0, %v7379
  %v7444 = vsub.f32 1.0, %v7380
  %v7445 = vsub.f32 1.0, %v7381
  %v7446 = vsub.f32 1.0, %v7382
  %v7447 = vld [vmem:[%s2 + $0xa] sm:$0x1]
  %v7448 = vld [vmem:[%s2 + $0xb] sm:$0x1]
  %v7449 = vld [vmem:[%s2 + $0xc] sm:$0x1]
  %v7450 = vld [vmem:[%s2 + $0xd] sm:$0x1]
  %v7451 = vld [vmem:[%s2 + $0xe] sm:$0x1]
  %vm7452 = vcmp.ne.f32.partialorder %v7448, 0.0
  %v7453 = vlaneseq
  %v7454 = vshrl.u32 %v7453, 7
  %v7455 = vsub.s32 0, %v7454
  %v7456 = vrot.slane %v7448, %v7455
  %v7457 = vmul.f32 %v7128, %v7456
  %v7458 = vmul.f32 %v7130, %v7456
  %v7459 = vmul.f32 %v7132, %v7456
  %v7460 = vmul.f32 %v7134, %v7456
  %v7461 = vmul.f32 %v7136, %v7456
  %v7462 = vmul.f32 %v7138, %v7456
  %v7463 = vmul.f32 %v7140, %v7456
  %v7464 = vmul.f32 %v7142, %v7456
  %v7465 = vmul.f32 %v7144, %v7456
  %v7466 = vmul.f32 %v7146, %v7456
  %v7467 = vmul.f32 %v7148, %v7456
  %v7468 = vmul.f32 %v7150, %v7456
  %v7469 = vmul.f32 %v7152, %v7456
  %v7470 = vmul.f32 %v7154, %v7456
  %v7471 = vmul.f32 %v7156, %v7456
  %v7472 = vmul.f32 %v7158, %v7456
  %v7473 = vmul.f32 %v7160, %v7456
  %v7474 = vmul.f32 %v7162, %v7456
  %v7475 = vmul.f32 %v7164, %v7456
  %v7476 = vmul.f32 %v7166, %v7456
  %v7477 = vmul.f32 %v7168, %v7456
  %v7478 = vmul.f32 %v7170, %v7456
  %v7479 = vmul.f32 %v7172, %v7456
  %v7480 = vmul.f32 %v7174, %v7456
  %v7481 = vmul.f32 %v7176, %v7456
  %v7482 = vmul.f32 %v7178, %v7456
  %v7483 = vmul.f32 %v7180, %v7456
  %v7484 = vmul.f32 %v7182, %v7456
  %v7485 = vmul.f32 %v7184, %v7456
  %v7486 = vmul.f32 %v7186, %v7456
  %v7487 = vmul.f32 %v7188, %v7456
  %v7488 = vmul.f32 %v7190, %v7456
  %v7489 = vmul.f32 %v7192, %v7456
  %v7490 = vmul.f32 %v7194, %v7456
  %v7491 = vmul.f32 %v7196, %v7456
  %v7492 = vmul.f32 %v7198, %v7456
  %v7493 = vmul.f32 %v7200, %v7456
  %v7494 = vmul.f32 %v7202, %v7456
  %v7495 = vmul.f32 %v7204, %v7456
  %v7496 = vmul.f32 %v7206, %v7456
  %v7497 = vmul.f32 %v7208, %v7456
  %v7498 = vmul.f32 %v7210, %v7456
  %v7499 = vmul.f32 %v7212, %v7456
  %v7500 = vmul.f32 %v7214, %v7456
  %v7501 = vmul.f32 %v7216, %v7456
  %v7502 = vmul.f32 %v7218, %v7456
  %v7503 = vmul.f32 %v7220, %v7456
  %v7504 = vmul.f32 %v7222, %v7456
  %v7505 = vmul.f32 %v7224, %v7456
  %v7506 = vmul.f32 %v7226, %v7456
  %v7507 = vmul.f32 %v7228, %v7456
  %v7508 = vmul.f32 %v7230, %v7456
  %v7509 = vmul.f32 %v7232, %v7456
  %v7510 = vmul.f32 %v7234, %v7456
  %v7511 = vmul.f32 %v7236, %v7456
  %v7512 = vmul.f32 %v7238, %v7456
  %v7513 = vmul.f32 %v7240, %v7456
  %v7514 = vmul.f32 %v7242, %v7456
  %v7515 = vmul.f32 %v7244, %v7456
  %v7516 = vmul.f32 %v7246, %v7456
  %v7517 = vmul.f32 %v7248, %v7456
  %v7518 = vmul.f32 %v7250, %v7456
  %v7519 = vmul.f32 %v7252, %v7456
  %v7520 = vmul.f32 %v7254, %v7456
  %v7521 = vsel %vm7452, 1, 0
  %v7522 = vlaneseq
  %v7523 = vshrl.u32 %v7522, 7
  %v7524 = vsub.s32 0, %v7523
  %v7525 = vrot.slane %v7521, %v7524
  %vm7526 = vcmp.eq.s32.totalorder %v7525, 1
  %v7527 = vsel %vm7526, %v7457, 0.0
  %v7528 = vsel %vm7526, %v7458, 0.0
  %v7529 = vsel %vm7526, %v7459, 0.0
  %v7530 = vsel %vm7526, %v7460, 0.0
  %v7531 = vsel %vm7526, %v7461, 0.0
  %v7532 = vsel %vm7526, %v7462, 0.0
  %v7533 = vsel %vm7526, %v7463, 0.0
  %v7534 = vsel %vm7526, %v7464, 0.0
  %v7535 = vsel %vm7526, %v7465, 0.0
  %v7536 = vsel %vm7526, %v7466, 0.0
  %v7537 = vsel %vm7526, %v7467, 0.0
  %v7538 = vsel %vm7526, %v7468, 0.0
  %v7539 = vsel %vm7526, %v7469, 0.0
  %v7540 = vsel %vm7526, %v7470, 0.0
  %v7541 = vsel %vm7526, %v7471, 0.0
  %v7542 = vsel %vm7526, %v7472, 0.0
  %v7543 = vsel %vm7526, %v7473, 0.0
  %v7544 = vsel %vm7526, %v7474, 0.0
  %v7545 = vsel %vm7526, %v7475, 0.0
  %v7546 = vsel %vm7526, %v7476, 0.0
  %v7547 = vsel %vm7526, %v7477, 0.0
  %v7548 = vsel %vm7526, %v7478, 0.0
  %v7549 = vsel %vm7526, %v7479, 0.0
  %v7550 = vsel %vm7526, %v7480, 0.0
  %v7551 = vsel %vm7526, %v7481, 0.0
  %v7552 = vsel %vm7526, %v7482, 0.0
  %v7553 = vsel %vm7526, %v7483, 0.0
  %v7554 = vsel %vm7526, %v7484, 0.0
  %v7555 = vsel %vm7526, %v7485, 0.0
  %v7556 = vsel %vm7526, %v7486, 0.0
  %v7557 = vsel %vm7526, %v7487, 0.0
  %v7558 = vsel %vm7526, %v7488, 0.0
  %v7559 = vsel %vm7526, %v7489, 0.0
  %v7560 = vsel %vm7526, %v7490, 0.0
  %v7561 = vsel %vm7526, %v7491, 0.0
  %v7562 = vsel %vm7526, %v7492, 0.0
  %v7563 = vsel %vm7526, %v7493, 0.0
  %v7564 = vsel %vm7526, %v7494, 0.0
  %v7565 = vsel %vm7526, %v7495, 0.0
  %v7566 = vsel %vm7526, %v7496, 0.0
  %v7567 = vsel %vm7526, %v7497, 0.0
  %v7568 = vsel %vm7526, %v7498, 0.0
  %v7569 = vsel %vm7526, %v7499, 0.0
  %v7570 = vsel %vm7526, %v7500, 0.0
  %v7571 = vsel %vm7526, %v7501, 0.0
  %v7572 = vsel %vm7526, %v7502, 0.0
  %v7573 = vsel %vm7526, %v7503, 0.0
  %v7574 = vsel %vm7526, %v7504, 0.0
  %v7575 = vsel %vm7526, %v7505, 0.0
  %v7576 = vsel %vm7526, %v7506, 0.0
  %v7577 = vsel %vm7526, %v7507, 0.0
  %v7578 = vsel %vm7526, %v7508, 0.0
  %v7579 = vsel %vm7526, %v7509, 0.0
  %v7580 = vsel %vm7526, %v7510, 0.0
  %v7581 = vsel %vm7526, %v7511, 0.0
  %v7582 = vsel %vm7526, %v7512, 0.0
  %v7583 = vsel %vm7526, %v7513, 0.0
  %v7584 = vsel %vm7526, %v7514, 0.0
  %v7585 = vsel %vm7526, %v7515, 0.0
  %v7586 = vsel %vm7526, %v7516, 0.0
  %v7587 = vsel %vm7526, %v7517, 0.0
  %v7588 = vsel %vm7526, %v7518, 0.0
  %v7589 = vsel %vm7526, %v7519, 0.0
  %v7590 = vsel %vm7526, %v7520, 0.0
  %v7591 = vld [vmem:[%s3] sm:$0xff]
  %v7592 = vld [vmem:[%s3 + $0x8] sm:$0xff]
  %v7593 = vld [vmem:[%s3 + $0x10] sm:$0xff]
  %v7594 = vld [vmem:[%s3 + $0x18] sm:$0xff]
  %v7595 = vld [vmem:[%s3 + $0x20] sm:$0xff]
  %v7596 = vld [vmem:[%s3 + $0x28] sm:$0xff]
  %v7597 = vld [vmem:[%s3 + $0x30] sm:$0xff]
  %v7598 = vld [vmem:[%s3 + $0x38] sm:$0xff]
  %v7599 = vld [vmem:[%s3 + $0x40] sm:$0xff]
  %v7600 = vld [vmem:[%s3 + $0x48] sm:$0xff]
  %v7601 = vld [vmem:[%s3 + $0x50] sm:$0xff]
  %v7602 = vld [vmem:[%s3 + $0x58] sm:$0xff]
  %v7603 = vld [vmem:[%s3 + $0x60] sm:$0xff]
  %v7604 = vld [vmem:[%s3 + $0x68] sm:$0xff]
  %v7605 = vld [vmem:[%s3 + $0x70] sm:$0xff]
  %v7606 = vld [vmem:[%s3 + $0x78] sm:$0xff]
  %v7607 = vld [vmem:[%s3 + $0x80] sm:$0xff]
  %v7608 = vld [vmem:[%s3 + $0x88] sm:$0xff]
  %v7609 = vld [vmem:[%s3 + $0x90] sm:$0xff]
  %v7610 = vld [vmem:[%s3 + $0x98] sm:$0xff]
  %v7611 = vld [vmem:[%s3 + $0xa0] sm:$0xff]
  %v7612 = vld [vmem:[%s3 + $0xa8] sm:$0xff]
  %v7613 = vld [vmem:[%s3 + $0xb0] sm:$0xff]
  %v7614 = vld [vmem:[%s3 + $0xb8] sm:$0xff]
  %v7615 = vld [vmem:[%s3 + $0xc0] sm:$0xff]
  %v7616 = vld [vmem:[%s3 + $0xc8] sm:$0xff]
  %v7617 = vld [vmem:[%s3 + $0xd0] sm:$0xff]
  %v7618 = vld [vmem:[%s3 + $0xd8] sm:$0xff]
  %v7619 = vld [vmem:[%s3 + $0xe0] sm:$0xff]
  %v7620 = vld [vmem:[%s3 + $0xe8] sm:$0xff]
  %v7621 = vld [vmem:[%s3 + $0xf0] sm:$0xff]
  %v7622 = vld [vmem:[%s3 + $0xf8] sm:$0xff]
  %v7623 = vld [vmem:[%s3 + $0x100] sm:$0xff]
  %v7624 = vld [vmem:[%s3 + $0x108] sm:$0xff]
  %v7625 = vld [vmem:[%s3 + $0x110] sm:$0xff]
  %v7626 = vld [vmem:[%s3 + $0x118] sm:$0xff]
  %v7627 = vld [vmem:[%s3 + $0x120] sm:$0xff]
  %v7628 = vld [vmem:[%s3 + $0x128] sm:$0xff]
  %v7629 = vld [vmem:[%s3 + $0x130] sm:$0xff]
  %v7630 = vld [vmem:[%s3 + $0x138] sm:$0xff]
  %v7631 = vld [vmem:[%s3 + $0x140] sm:$0xff]
  %v7632 = vld [vmem:[%s3 + $0x148] sm:$0xff]
  %v7633 = vld [vmem:[%s3 + $0x150] sm:$0xff]
  %v7634 = vld [vmem:[%s3 + $0x158] sm:$0xff]
  %v7635 = vld [vmem:[%s3 + $0x160] sm:$0xff]
  %v7636 = vld [vmem:[%s3 + $0x168] sm:$0xff]
  %v7637 = vld [vmem:[%s3 + $0x170] sm:$0xff]
  %v7638 = vld [vmem:[%s3 + $0x178] sm:$0xff]
  %v7639 = vld [vmem:[%s3 + $0x180] sm:$0xff]
  %v7640 = vld [vmem:[%s3 + $0x188] sm:$0xff]
  %v7641 = vld [vmem:[%s3 + $0x190] sm:$0xff]
  %v7642 = vld [vmem:[%s3 + $0x198] sm:$0xff]
  %v7643 = vld [vmem:[%s3 + $0x1a0] sm:$0xff]
  %v7644 = vld [vmem:[%s3 + $0x1a8] sm:$0xff]
  %v7645 = vld [vmem:[%s3 + $0x1b0] sm:$0xff]
  %v7646 = vld [vmem:[%s3 + $0x1b8] sm:$0xff]
  %v7647 = vld [vmem:[%s3 + $0x1c0] sm:$0xff]
  %v7648 = vld [vmem:[%s3 + $0x1c8] sm:$0xff]
  %v7649 = vld [vmem:[%s3 + $0x1d0] sm:$0xff]
  %v7650 = vld [vmem:[%s3 + $0x1d8] sm:$0xff]
  %v7651 = vld [vmem:[%s3 + $0x1e0] sm:$0xff]
  %v7652 = vld [vmem:[%s3 + $0x1e8] sm:$0xff]
  %v7653 = vld [vmem:[%s3 + $0x1f0] sm:$0xff]
  %v7654 = vld [vmem:[%s3 + $0x1f8] sm:$0xff]
  %7656 = vset.pattern.permute.xlu0 0
  %7657 = vperm.xlu0 %7656, %v7591
  %v7658 = vpop.permute.xlu0 %7657
  %7661 = vset.pattern.permute.xlu0 0
  %7662 = vperm.xlu0 %7661, %v7592
  %v7663 = vpop.permute.xlu0 %7662
  %7666 = vset.pattern.permute.xlu0 0
  %7667 = vperm.xlu0 %7666, %v7593
  %v7668 = vpop.permute.xlu0 %7667
  %7671 = vset.pattern.permute.xlu0 0
  %7672 = vperm.xlu0 %7671, %v7594
  %v7673 = vpop.permute.xlu0 %7672
  %7676 = vset.pattern.permute.xlu0 0
  %7677 = vperm.xlu0 %7676, %v7595
  %v7678 = vpop.permute.xlu0 %7677
  %7681 = vset.pattern.permute.xlu0 0
  %7682 = vperm.xlu0 %7681, %v7596
  %v7683 = vpop.permute.xlu0 %7682
  %7686 = vset.pattern.permute.xlu0 0
  %7687 = vperm.xlu0 %7686, %v7597
  %v7688 = vpop.permute.xlu0 %7687
  %7691 = vset.pattern.permute.xlu0 0
  %7692 = vperm.xlu0 %7691, %v7598
  %v7693 = vpop.permute.xlu0 %7692
  %7696 = vset.pattern.permute.xlu0 0
  %7697 = vperm.xlu0 %7696, %v7599
  %v7698 = vpop.permute.xlu0 %7697
  %7701 = vset.pattern.permute.xlu0 0
  %7702 = vperm.xlu0 %7701, %v7600
  %v7703 = vpop.permute.xlu0 %7702
  %7706 = vset.pattern.permute.xlu0 0
  %7707 = vperm.xlu0 %7706, %v7601
  %v7708 = vpop.permute.xlu0 %7707
  %7711 = vset.pattern.permute.xlu0 0
  %7712 = vperm.xlu0 %7711, %v7602
  %v7713 = vpop.permute.xlu0 %7712
  %7716 = vset.pattern.permute.xlu0 0
  %7717 = vperm.xlu0 %7716, %v7603
  %v7718 = vpop.permute.xlu0 %7717
  %7721 = vset.pattern.permute.xlu0 0
  %7722 = vperm.xlu0 %7721, %v7604
  %v7723 = vpop.permute.xlu0 %7722
  %7726 = vset.pattern.permute.xlu0 0
  %7727 = vperm.xlu0 %7726, %v7605
  %v7728 = vpop.permute.xlu0 %7727
  %7731 = vset.pattern.permute.xlu0 0
  %7732 = vperm.xlu0 %7731, %v7606
  %v7733 = vpop.permute.xlu0 %7732
  %7736 = vset.pattern.permute.xlu0 0
  %7737 = vperm.xlu0 %7736, %v7607
  %v7738 = vpop.permute.xlu0 %7737
  %7741 = vset.pattern.permute.xlu0 0
  %7742 = vperm.xlu0 %7741, %v7608
  %v7743 = vpop.permute.xlu0 %7742
  %7746 = vset.pattern.permute.xlu0 0
  %7747 = vperm.xlu0 %7746, %v7609
  %v7748 = vpop.permute.xlu0 %7747
  %7751 = vset.pattern.permute.xlu0 0
  %7752 = vperm.xlu0 %7751, %v7610
  %v7753 = vpop.permute.xlu0 %7752
  %7756 = vset.pattern.permute.xlu0 0
  %7757 = vperm.xlu0 %7756, %v7611
  %v7758 = vpop.permute.xlu0 %7757
  %7761 = vset.pattern.permute.xlu0 0
  %7762 = vperm.xlu0 %7761, %v7612
  %v7763 = vpop.permute.xlu0 %7762
  %7766 = vset.pattern.permute.xlu0 0
  %7767 = vperm.xlu0 %7766, %v7613
  %v7768 = vpop.permute.xlu0 %7767
  %7771 = vset.pattern.permute.xlu0 0
  %7772 = vperm.xlu0 %7771, %v7614
  %v7773 = vpop.permute.xlu0 %7772
  %7776 = vset.pattern.permute.xlu0 0
  %7777 = vperm.xlu0 %7776, %v7615
  %v7778 = vpop.permute.xlu0 %7777
  %7781 = vset.pattern.permute.xlu0 0
  %7782 = vperm.xlu0 %7781, %v7616
  %v7783 = vpop.permute.xlu0 %7782
  %7786 = vset.pattern.permute.xlu0 0
  %7787 = vperm.xlu0 %7786, %v7617
  %v7788 = vpop.permute.xlu0 %7787
  %7791 = vset.pattern.permute.xlu0 0
  %7792 = vperm.xlu0 %7791, %v7618
  %v7793 = vpop.permute.xlu0 %7792
  %7796 = vset.pattern.permute.xlu0 0
  %7797 = vperm.xlu0 %7796, %v7619
  %v7798 = vpop.permute.xlu0 %7797
  %7801 = vset.pattern.permute.xlu0 0
  %7802 = vperm.xlu0 %7801, %v7620
  %v7803 = vpop.permute.xlu0 %7802
  %7806 = vset.pattern.permute.xlu0 0
  %7807 = vperm.xlu0 %7806, %v7621
  %v7808 = vpop.permute.xlu0 %7807
  %7811 = vset.pattern.permute.xlu0 0
  %7812 = vperm.xlu0 %7811, %v7622
  %v7813 = vpop.permute.xlu0 %7812
  %7816 = vset.pattern.permute.xlu0 0
  %7817 = vperm.xlu0 %7816, %v7623
  %v7818 = vpop.permute.xlu0 %7817
  %7821 = vset.pattern.permute.xlu0 0
  %7822 = vperm.xlu0 %7821, %v7624
  %v7823 = vpop.permute.xlu0 %7822
  %7826 = vset.pattern.permute.xlu0 0
  %7827 = vperm.xlu0 %7826, %v7625
  %v7828 = vpop.permute.xlu0 %7827
  %7831 = vset.pattern.permute.xlu0 0
  %7832 = vperm.xlu0 %7831, %v7626
  %v7833 = vpop.permute.xlu0 %7832
  %7836 = vset.pattern.permute.xlu0 0
  %7837 = vperm.xlu0 %7836, %v7627
  %v7838 = vpop.permute.xlu0 %7837
  %7841 = vset.pattern.permute.xlu0 0
  %7842 = vperm.xlu0 %7841, %v7628
  %v7843 = vpop.permute.xlu0 %7842
  %7846 = vset.pattern.permute.xlu0 0
  %7847 = vperm.xlu0 %7846, %v7629
  %v7848 = vpop.permute.xlu0 %7847
  %7851 = vset.pattern.permute.xlu0 0
  %7852 = vperm.xlu0 %7851, %v7630
  %v7853 = vpop.permute.xlu0 %7852
  %7856 = vset.pattern.permute.xlu0 0
  %7857 = vperm.xlu0 %7856, %v7631
  %v7858 = vpop.permute.xlu0 %7857
  %7861 = vset.pattern.permute.xlu0 0
  %7862 = vperm.xlu0 %7861, %v7632
  %v7863 = vpop.permute.xlu0 %7862
  %7866 = vset.pattern.permute.xlu0 0
  %7867 = vperm.xlu0 %7866, %v7633
  %v7868 = vpop.permute.xlu0 %7867
  %7871 = vset.pattern.permute.xlu0 0
  %7872 = vperm.xlu0 %7871, %v7634
  %v7873 = vpop.permute.xlu0 %7872
  %7876 = vset.pattern.permute.xlu0 0
  %7877 = vperm.xlu0 %7876, %v7635
  %v7878 = vpop.permute.xlu0 %7877
  %7881 = vset.pattern.permute.xlu0 0
  %7882 = vperm.xlu0 %7881, %v7636
  %v7883 = vpop.permute.xlu0 %7882
  %7886 = vset.pattern.permute.xlu0 0
  %7887 = vperm.xlu0 %7886, %v7637
  %v7888 = vpop.permute.xlu0 %7887
  %7891 = vset.pattern.permute.xlu0 0
  %7892 = vperm.xlu0 %7891, %v7638
  %v7893 = vpop.permute.xlu0 %7892
  %7896 = vset.pattern.permute.xlu0 0
  %7897 = vperm.xlu0 %7896, %v7639
  %v7898 = vpop.permute.xlu0 %7897
  %7901 = vset.pattern.permute.xlu0 0
  %7902 = vperm.xlu0 %7901, %v7640
  %v7903 = vpop.permute.xlu0 %7902
  %7906 = vset.pattern.permute.xlu0 0
  %7907 = vperm.xlu0 %7906, %v7641
  %v7908 = vpop.permute.xlu0 %7907
  %7911 = vset.pattern.permute.xlu0 0
  %7912 = vperm.xlu0 %7911, %v7642
  %v7913 = vpop.permute.xlu0 %7912
  %7916 = vset.pattern.permute.xlu0 0
  %7917 = vperm.xlu0 %7916, %v7643
  %v7918 = vpop.permute.xlu0 %7917
  %7921 = vset.pattern.permute.xlu0 0
  %7922 = vperm.xlu0 %7921, %v7644
  %v7923 = vpop.permute.xlu0 %7922
  %7926 = vset.pattern.permute.xlu0 0
  %7927 = vperm.xlu0 %7926, %v7645
  %v7928 = vpop.permute.xlu0 %7927
  %7931 = vset.pattern.permute.xlu0 0
  %7932 = vperm.xlu0 %7931, %v7646
  %v7933 = vpop.permute.xlu0 %7932
  %7936 = vset.pattern.permute.xlu0 0
  %7937 = vperm.xlu0 %7936, %v7647
  %v7938 = vpop.permute.xlu0 %7937
  %7941 = vset.pattern.permute.xlu0 0
  %7942 = vperm.xlu0 %7941, %v7648
  %v7943 = vpop.permute.xlu0 %7942
  %7946 = vset.pattern.permute.xlu0 0
  %7947 = vperm.xlu0 %7946, %v7649
  %v7948 = vpop.permute.xlu0 %7947
  %7951 = vset.pattern.permute.xlu0 0
  %7952 = vperm.xlu0 %7951, %v7650
  %v7953 = vpop.permute.xlu0 %7952
  %7956 = vset.pattern.permute.xlu0 0
  %7957 = vperm.xlu0 %7956, %v7651
  %v7958 = vpop.permute.xlu0 %7957
  %7961 = vset.pattern.permute.xlu0 0
  %7962 = vperm.xlu0 %7961, %v7652
  %v7963 = vpop.permute.xlu0 %7962
  %7966 = vset.pattern.permute.xlu0 0
  %7967 = vperm.xlu0 %7966, %v7653
  %v7968 = vpop.permute.xlu0 %7967
  %7971 = vset.pattern.permute.xlu0 0
  %7972 = vperm.xlu0 %7971, %v7654
  %v7973 = vpop.permute.xlu0 %7972
  %v7975 = vlaneseq
  %v7976 = vshrl.u32 %v7975, 7
  %v7977 = vsub.s32 0, %v7976
  %v7978 = vrot.slane %v7450, %v7977
  %v7979 = vmul.f32 %v7658, %v7978
  %v7980 = vmul.f32 %v7663, %v7978
  %v7981 = vmul.f32 %v7668, %v7978
  %v7982 = vmul.f32 %v7673, %v7978
  %v7983 = vmul.f32 %v7678, %v7978
  %v7984 = vmul.f32 %v7683, %v7978
  %v7985 = vmul.f32 %v7688, %v7978
  %v7986 = vmul.f32 %v7693, %v7978
  %v7987 = vmul.f32 %v7698, %v7978
  %v7988 = vmul.f32 %v7703, %v7978
  %v7989 = vmul.f32 %v7708, %v7978
  %v7990 = vmul.f32 %v7713, %v7978
  %v7991 = vmul.f32 %v7718, %v7978
  %v7992 = vmul.f32 %v7723, %v7978
  %v7993 = vmul.f32 %v7728, %v7978
  %v7994 = vmul.f32 %v7733, %v7978
  %v7995 = vmul.f32 %v7738, %v7978
  %v7996 = vmul.f32 %v7743, %v7978
  %v7997 = vmul.f32 %v7748, %v7978
  %v7998 = vmul.f32 %v7753, %v7978
  %v7999 = vmul.f32 %v7758, %v7978
  %v8000 = vmul.f32 %v7763, %v7978
  %v8001 = vmul.f32 %v7768, %v7978
  %v8002 = vmul.f32 %v7773, %v7978
  %v8003 = vmul.f32 %v7778, %v7978
  %v8004 = vmul.f32 %v7783, %v7978
  %v8005 = vmul.f32 %v7788, %v7978
  %v8006 = vmul.f32 %v7793, %v7978
  %v8007 = vmul.f32 %v7798, %v7978
  %v8008 = vmul.f32 %v7803, %v7978
  %v8009 = vmul.f32 %v7808, %v7978
  %v8010 = vmul.f32 %v7813, %v7978
  %v8011 = vmul.f32 %v7818, %v7978
  %v8012 = vmul.f32 %v7823, %v7978
  %v8013 = vmul.f32 %v7828, %v7978
  %v8014 = vmul.f32 %v7833, %v7978
  %v8015 = vmul.f32 %v7838, %v7978
  %v8016 = vmul.f32 %v7843, %v7978
  %v8017 = vmul.f32 %v7848, %v7978
  %v8018 = vmul.f32 %v7853, %v7978
  %v8019 = vmul.f32 %v7858, %v7978
  %v8020 = vmul.f32 %v7863, %v7978
  %v8021 = vmul.f32 %v7868, %v7978
  %v8022 = vmul.f32 %v7873, %v7978
  %v8023 = vmul.f32 %v7878, %v7978
  %v8024 = vmul.f32 %v7883, %v7978
  %v8025 = vmul.f32 %v7888, %v7978
  %v8026 = vmul.f32 %v7893, %v7978
  %v8027 = vmul.f32 %v7898, %v7978
  %v8028 = vmul.f32 %v7903, %v7978
  %v8029 = vmul.f32 %v7908, %v7978
  %v8030 = vmul.f32 %v7913, %v7978
  %v8031 = vmul.f32 %v7918, %v7978
  %v8032 = vmul.f32 %v7923, %v7978
  %v8033 = vmul.f32 %v7928, %v7978
  %v8034 = vmul.f32 %v7933, %v7978
  %v8035 = vmul.f32 %v7938, %v7978
  %v8036 = vmul.f32 %v7943, %v7978
  %v8037 = vmul.f32 %v7948, %v7978
  %v8038 = vmul.f32 %v7953, %v7978
  %v8039 = vmul.f32 %v7958, %v7978
  %v8040 = vmul.f32 %v7963, %v7978
  %v8041 = vmul.f32 %v7968, %v7978
  %v8042 = vmul.f32 %v7973, %v7978
  %8043 = vset.pattern.permute.xlu0 1
  %8044 = vperm.xlu0 %8043, %v7591
  %v8045 = vpop.permute.xlu0 %8044
  %8047 = vset.pattern.permute.xlu0 1
  %8048 = vperm.xlu0 %8047, %v7592
  %v8049 = vpop.permute.xlu0 %8048
  %8051 = vset.pattern.permute.xlu0 1
  %8052 = vperm.xlu0 %8051, %v7593
  %v8053 = vpop.permute.xlu0 %8052
  %8055 = vset.pattern.permute.xlu0 1
  %8056 = vperm.xlu0 %8055, %v7594
  %v8057 = vpop.permute.xlu0 %8056
  %8059 = vset.pattern.permute.xlu0 1
  %8060 = vperm.xlu0 %8059, %v7595
  %v8061 = vpop.permute.xlu0 %8060
  %8063 = vset.pattern.permute.xlu0 1
  %8064 = vperm.xlu0 %8063, %v7596
  %v8065 = vpop.permute.xlu0 %8064
  %8067 = vset.pattern.permute.xlu0 1
  %8068 = vperm.xlu0 %8067, %v7597
  %v8069 = vpop.permute.xlu0 %8068
  %8071 = vset.pattern.permute.xlu0 1
  %8072 = vperm.xlu0 %8071, %v7598
  %v8073 = vpop.permute.xlu0 %8072
  %8075 = vset.pattern.permute.xlu0 1
  %8076 = vperm.xlu0 %8075, %v7599
  %v8077 = vpop.permute.xlu0 %8076
  %8079 = vset.pattern.permute.xlu0 1
  %8080 = vperm.xlu0 %8079, %v7600
  %v8081 = vpop.permute.xlu0 %8080
  %8083 = vset.pattern.permute.xlu0 1
  %8084 = vperm.xlu0 %8083, %v7601
  %v8085 = vpop.permute.xlu0 %8084
  %8087 = vset.pattern.permute.xlu0 1
  %8088 = vperm.xlu0 %8087, %v7602
  %v8089 = vpop.permute.xlu0 %8088
  %8091 = vset.pattern.permute.xlu0 1
  %8092 = vperm.xlu0 %8091, %v7603
  %v8093 = vpop.permute.xlu0 %8092
  %8095 = vset.pattern.permute.xlu0 1
  %8096 = vperm.xlu0 %8095, %v7604
  %v8097 = vpop.permute.xlu0 %8096
  %8099 = vset.pattern.permute.xlu0 1
  %8100 = vperm.xlu0 %8099, %v7605
  %v8101 = vpop.permute.xlu0 %8100
  %8103 = vset.pattern.permute.xlu0 1
  %8104 = vperm.xlu0 %8103, %v7606
  %v8105 = vpop.permute.xlu0 %8104
  %8107 = vset.pattern.permute.xlu0 1
  %8108 = vperm.xlu0 %8107, %v7607
  %v8109 = vpop.permute.xlu0 %8108
  %8111 = vset.pattern.permute.xlu0 1
  %8112 = vperm.xlu0 %8111, %v7608
  %v8113 = vpop.permute.xlu0 %8112
  %8115 = vset.pattern.permute.xlu0 1
  %8116 = vperm.xlu0 %8115, %v7609
  %v8117 = vpop.permute.xlu0 %8116
  %8119 = vset.pattern.permute.xlu0 1
  %8120 = vperm.xlu0 %8119, %v7610
  %v8121 = vpop.permute.xlu0 %8120
  %8123 = vset.pattern.permute.xlu0 1
  %8124 = vperm.xlu0 %8123, %v7611
  %v8125 = vpop.permute.xlu0 %8124
  %8127 = vset.pattern.permute.xlu0 1
  %8128 = vperm.xlu0 %8127, %v7612
  %v8129 = vpop.permute.xlu0 %8128
  %8131 = vset.pattern.permute.xlu0 1
  %8132 = vperm.xlu0 %8131, %v7613
  %v8133 = vpop.permute.xlu0 %8132
  %8135 = vset.pattern.permute.xlu0 1
  %8136 = vperm.xlu0 %8135, %v7614
  %v8137 = vpop.permute.xlu0 %8136
  %8139 = vset.pattern.permute.xlu0 1
  %8140 = vperm.xlu0 %8139, %v7615
  %v8141 = vpop.permute.xlu0 %8140
  %8143 = vset.pattern.permute.xlu0 1
  %8144 = vperm.xlu0 %8143, %v7616
  %v8145 = vpop.permute.xlu0 %8144
  %8147 = vset.pattern.permute.xlu0 1
  %8148 = vperm.xlu0 %8147, %v7617
  %v8149 = vpop.permute.xlu0 %8148
  %8151 = vset.pattern.permute.xlu0 1
  %8152 = vperm.xlu0 %8151, %v7618
  %v8153 = vpop.permute.xlu0 %8152
  %8155 = vset.pattern.permute.xlu0 1
  %8156 = vperm.xlu0 %8155, %v7619
  %v8157 = vpop.permute.xlu0 %8156
  %8159 = vset.pattern.permute.xlu0 1
  %8160 = vperm.xlu0 %8159, %v7620
  %v8161 = vpop.permute.xlu0 %8160
  %8163 = vset.pattern.permute.xlu0 1
  %8164 = vperm.xlu0 %8163, %v7621
  %v8165 = vpop.permute.xlu0 %8164
  %8167 = vset.pattern.permute.xlu0 1
  %8168 = vperm.xlu0 %8167, %v7622
  %v8169 = vpop.permute.xlu0 %8168
  %8171 = vset.pattern.permute.xlu0 1
  %8172 = vperm.xlu0 %8171, %v7623
  %v8173 = vpop.permute.xlu0 %8172
  %8175 = vset.pattern.permute.xlu0 1
  %8176 = vperm.xlu0 %8175, %v7624
  %v8177 = vpop.permute.xlu0 %8176
  %8179 = vset.pattern.permute.xlu0 1
  %8180 = vperm.xlu0 %8179, %v7625
  %v8181 = vpop.permute.xlu0 %8180
  %8183 = vset.pattern.permute.xlu0 1
  %8184 = vperm.xlu0 %8183, %v7626
  %v8185 = vpop.permute.xlu0 %8184
  %8187 = vset.pattern.permute.xlu0 1
  %8188 = vperm.xlu0 %8187, %v7627
  %v8189 = vpop.permute.xlu0 %8188
  %8191 = vset.pattern.permute.xlu0 1
  %8192 = vperm.xlu0 %8191, %v7628
  %v8193 = vpop.permute.xlu0 %8192
  %8195 = vset.pattern.permute.xlu0 1
  %8196 = vperm.xlu0 %8195, %v7629
  %v8197 = vpop.permute.xlu0 %8196
  %8199 = vset.pattern.permute.xlu0 1
  %8200 = vperm.xlu0 %8199, %v7630
  %v8201 = vpop.permute.xlu0 %8200
  %8203 = vset.pattern.permute.xlu0 1
  %8204 = vperm.xlu0 %8203, %v7631
  %v8205 = vpop.permute.xlu0 %8204
  %8207 = vset.pattern.permute.xlu0 1
  %8208 = vperm.xlu0 %8207, %v7632
  %v8209 = vpop.permute.xlu0 %8208
  %8211 = vset.pattern.permute.xlu0 1
  %8212 = vperm.xlu0 %8211, %v7633
  %v8213 = vpop.permute.xlu0 %8212
  %8215 = vset.pattern.permute.xlu0 1
  %8216 = vperm.xlu0 %8215, %v7634
  %v8217 = vpop.permute.xlu0 %8216
  %8219 = vset.pattern.permute.xlu0 1
  %8220 = vperm.xlu0 %8219, %v7635
  %v8221 = vpop.permute.xlu0 %8220
  %8223 = vset.pattern.permute.xlu0 1
  %8224 = vperm.xlu0 %8223, %v7636
  %v8225 = vpop.permute.xlu0 %8224
  %8227 = vset.pattern.permute.xlu0 1
  %8228 = vperm.xlu0 %8227, %v7637
  %v8229 = vpop.permute.xlu0 %8228
  %8231 = vset.pattern.permute.xlu0 1
  %8232 = vperm.xlu0 %8231, %v7638
  %v8233 = vpop.permute.xlu0 %8232
  %8235 = vset.pattern.permute.xlu0 1
  %8236 = vperm.xlu0 %8235, %v7639
  %v8237 = vpop.permute.xlu0 %8236
  %8239 = vset.pattern.permute.xlu0 1
  %8240 = vperm.xlu0 %8239, %v7640
  %v8241 = vpop.permute.xlu0 %8240
  %8243 = vset.pattern.permute.xlu0 1
  %8244 = vperm.xlu0 %8243, %v7641
  %v8245 = vpop.permute.xlu0 %8244
  %8247 = vset.pattern.permute.xlu0 1
  %8248 = vperm.xlu0 %8247, %v7642
  %v8249 = vpop.permute.xlu0 %8248
  %8251 = vset.pattern.permute.xlu0 1
  %8252 = vperm.xlu0 %8251, %v7643
  %v8253 = vpop.permute.xlu0 %8252
  %8255 = vset.pattern.permute.xlu0 1
  %8256 = vperm.xlu0 %8255, %v7644
  %v8257 = vpop.permute.xlu0 %8256
  %8259 = vset.pattern.permute.xlu0 1
  %8260 = vperm.xlu0 %8259, %v7645
  %v8261 = vpop.permute.xlu0 %8260
  %8263 = vset.pattern.permute.xlu0 1
  %8264 = vperm.xlu0 %8263, %v7646
  %v8265 = vpop.permute.xlu0 %8264
  %8267 = vset.pattern.permute.xlu0 1
  %8268 = vperm.xlu0 %8267, %v7647
  %v8269 = vpop.permute.xlu0 %8268
  %8271 = vset.pattern.permute.xlu0 1
  %8272 = vperm.xlu0 %8271, %v7648
  %v8273 = vpop.permute.xlu0 %8272
  %8275 = vset.pattern.permute.xlu0 1
  %8276 = vperm.xlu0 %8275, %v7649
  %v8277 = vpop.permute.xlu0 %8276
  %8279 = vset.pattern.permute.xlu0 1
  %8280 = vperm.xlu0 %8279, %v7650
  %v8281 = vpop.permute.xlu0 %8280
  %8283 = vset.pattern.permute.xlu0 1
  %8284 = vperm.xlu0 %8283, %v7651
  %v8285 = vpop.permute.xlu0 %8284
  %8287 = vset.pattern.permute.xlu0 1
  %8288 = vperm.xlu0 %8287, %v7652
  %v8289 = vpop.permute.xlu0 %8288
  %8291 = vset.pattern.permute.xlu0 1
  %8292 = vperm.xlu0 %8291, %v7653
  %v8293 = vpop.permute.xlu0 %8292
  %8295 = vset.pattern.permute.xlu0 1
  %8296 = vperm.xlu0 %8295, %v7654
  %v8297 = vpop.permute.xlu0 %8296
  %v8299 = vlaneseq
  %v8300 = vshrl.u32 %v8299, 7
  %v8301 = vsub.s32 0, %v8300
  %v8302 = vrot.slane %v7451, %v8301
  %v8303 = vmul.f32 %v8045, %v8302
  %v8304 = vmul.f32 %v8049, %v8302
  %v8305 = vmul.f32 %v8053, %v8302
  %v8306 = vmul.f32 %v8057, %v8302
  %v8307 = vmul.f32 %v8061, %v8302
  %v8308 = vmul.f32 %v8065, %v8302
  %v8309 = vmul.f32 %v8069, %v8302
  %v8310 = vmul.f32 %v8073, %v8302
  %v8311 = vmul.f32 %v8077, %v8302
  %v8312 = vmul.f32 %v8081, %v8302
  %v8313 = vmul.f32 %v8085, %v8302
  %v8314 = vmul.f32 %v8089, %v8302
  %v8315 = vmul.f32 %v8093, %v8302
  %v8316 = vmul.f32 %v8097, %v8302
  %v8317 = vmul.f32 %v8101, %v8302
  %v8318 = vmul.f32 %v8105, %v8302
  %v8319 = vmul.f32 %v8109, %v8302
  %v8320 = vmul.f32 %v8113, %v8302
  %v8321 = vmul.f32 %v8117, %v8302
  %v8322 = vmul.f32 %v8121, %v8302
  %v8323 = vmul.f32 %v8125, %v8302
  %v8324 = vmul.f32 %v8129, %v8302
  %v8325 = vmul.f32 %v8133, %v8302
  %v8326 = vmul.f32 %v8137, %v8302
  %v8327 = vmul.f32 %v8141, %v8302
  %v8328 = vmul.f32 %v8145, %v8302
  %v8329 = vmul.f32 %v8149, %v8302
  %v8330 = vmul.f32 %v8153, %v8302
  %v8331 = vmul.f32 %v8157, %v8302
  %v8332 = vmul.f32 %v8161, %v8302
  %v8333 = vmul.f32 %v8165, %v8302
  %v8334 = vmul.f32 %v8169, %v8302
  %v8335 = vmul.f32 %v8173, %v8302
  %v8336 = vmul.f32 %v8177, %v8302
  %v8337 = vmul.f32 %v8181, %v8302
  %v8338 = vmul.f32 %v8185, %v8302
  %v8339 = vmul.f32 %v8189, %v8302
  %v8340 = vmul.f32 %v8193, %v8302
  %v8341 = vmul.f32 %v8197, %v8302
  %v8342 = vmul.f32 %v8201, %v8302
  %v8343 = vmul.f32 %v8205, %v8302
  %v8344 = vmul.f32 %v8209, %v8302
  %v8345 = vmul.f32 %v8213, %v8302
  %v8346 = vmul.f32 %v8217, %v8302
  %v8347 = vmul.f32 %v8221, %v8302
  %v8348 = vmul.f32 %v8225, %v8302
  %v8349 = vmul.f32 %v8229, %v8302
  %v8350 = vmul.f32 %v8233, %v8302
  %v8351 = vmul.f32 %v8237, %v8302
  %v8352 = vmul.f32 %v8241, %v8302
  %v8353 = vmul.f32 %v8245, %v8302
  %v8354 = vmul.f32 %v8249, %v8302
  %v8355 = vmul.f32 %v8253, %v8302
  %v8356 = vmul.f32 %v8257, %v8302
  %v8357 = vmul.f32 %v8261, %v8302
  %v8358 = vmul.f32 %v8265, %v8302
  %v8359 = vmul.f32 %v8269, %v8302
  %v8360 = vmul.f32 %v8273, %v8302
  %v8361 = vmul.f32 %v8277, %v8302
  %v8362 = vmul.f32 %v8281, %v8302
  %v8363 = vmul.f32 %v8285, %v8302
  %v8364 = vmul.f32 %v8289, %v8302
  %v8365 = vmul.f32 %v8293, %v8302
  %v8366 = vmul.f32 %v8297, %v8302
  %v8367 = vadd.f32 %v7979, %v8303
  %v8368 = vadd.f32 %v7980, %v8304
  %v8369 = vadd.f32 %v7981, %v8305
  %v8370 = vadd.f32 %v7982, %v8306
  %v8371 = vadd.f32 %v7983, %v8307
  %v8372 = vadd.f32 %v7984, %v8308
  %v8373 = vadd.f32 %v7985, %v8309
  %v8374 = vadd.f32 %v7986, %v8310
  %v8375 = vadd.f32 %v7987, %v8311
  %v8376 = vadd.f32 %v7988, %v8312
  %v8377 = vadd.f32 %v7989, %v8313
  %v8378 = vadd.f32 %v7990, %v8314
  %v8379 = vadd.f32 %v7991, %v8315
  %v8380 = vadd.f32 %v7992, %v8316
  %v8381 = vadd.f32 %v7993, %v8317
  %v8382 = vadd.f32 %v7994, %v8318
  %v8383 = vadd.f32 %v7995, %v8319
  %v8384 = vadd.f32 %v7996, %v8320
  %v8385 = vadd.f32 %v7997, %v8321
  %v8386 = vadd.f32 %v7998, %v8322
  %v8387 = vadd.f32 %v7999, %v8323
  %v8388 = vadd.f32 %v8000, %v8324
  %v8389 = vadd.f32 %v8001, %v8325
  %v8390 = vadd.f32 %v8002, %v8326
  %v8391 = vadd.f32 %v8003, %v8327
  %v8392 = vadd.f32 %v8004, %v8328
  %v8393 = vadd.f32 %v8005, %v8329
  %v8394 = vadd.f32 %v8006, %v8330
  %v8395 = vadd.f32 %v8007, %v8331
  %v8396 = vadd.f32 %v8008, %v8332
  %v8397 = vadd.f32 %v8009, %v8333
  %v8398 = vadd.f32 %v8010, %v8334
  %v8399 = vadd.f32 %v8011, %v8335
  %v8400 = vadd.f32 %v8012, %v8336
  %v8401 = vadd.f32 %v8013, %v8337
  %v8402 = vadd.f32 %v8014, %v8338
  %v8403 = vadd.f32 %v8015, %v8339
  %v8404 = vadd.f32 %v8016, %v8340
  %v8405 = vadd.f32 %v8017, %v8341
  %v8406 = vadd.f32 %v8018, %v8342
  %v8407 = vadd.f32 %v8019, %v8343
  %v8408 = vadd.f32 %v8020, %v8344
  %v8409 = vadd.f32 %v8021, %v8345
  %v8410 = vadd.f32 %v8022, %v8346
  %v8411 = vadd.f32 %v8023, %v8347
  %v8412 = vadd.f32 %v8024, %v8348
  %v8413 = vadd.f32 %v8025, %v8349
  %v8414 = vadd.f32 %v8026, %v8350
  %v8415 = vadd.f32 %v8027, %v8351
  %v8416 = vadd.f32 %v8028, %v8352
  %v8417 = vadd.f32 %v8029, %v8353
  %v8418 = vadd.f32 %v8030, %v8354
  %v8419 = vadd.f32 %v8031, %v8355
  %v8420 = vadd.f32 %v8032, %v8356
  %v8421 = vadd.f32 %v8033, %v8357
  %v8422 = vadd.f32 %v8034, %v8358
  %v8423 = vadd.f32 %v8035, %v8359
  %v8424 = vadd.f32 %v8036, %v8360
  %v8425 = vadd.f32 %v8037, %v8361
  %v8426 = vadd.f32 %v8038, %v8362
  %v8427 = vadd.f32 %v8039, %v8363
  %v8428 = vadd.f32 %v8040, %v8364
  %v8429 = vadd.f32 %v8041, %v8365
  %v8430 = vadd.f32 %v8042, %v8366
  %v8431 = vlaneseq
  %v8432 = vshrl.u32 %v8431, 7
  %v8433 = vsub.s32 0, %v8432
  %v8434 = vrot.slane %v7447, %v8433
  %v8435 = vmul.f32 %v7383, %v8434
  %v8436 = vmul.f32 %v7384, %v8434
  %v8437 = vmul.f32 %v7385, %v8434
  %v8438 = vmul.f32 %v7386, %v8434
  %v8439 = vmul.f32 %v7387, %v8434
  %v8440 = vmul.f32 %v7388, %v8434
  %v8441 = vmul.f32 %v7389, %v8434
  %v8442 = vmul.f32 %v7390, %v8434
  %v8443 = vmul.f32 %v7391, %v8434
  %v8444 = vmul.f32 %v7392, %v8434
  %v8445 = vmul.f32 %v7393, %v8434
  %v8446 = vmul.f32 %v7394, %v8434
  %v8447 = vmul.f32 %v7395, %v8434
  %v8448 = vmul.f32 %v7396, %v8434
  %v8449 = vmul.f32 %v7397, %v8434
  %v8450 = vmul.f32 %v7398, %v8434
  %v8451 = vmul.f32 %v7399, %v8434
  %v8452 = vmul.f32 %v7400, %v8434
  %v8453 = vmul.f32 %v7401, %v8434
  %v8454 = vmul.f32 %v7402, %v8434
  %v8455 = vmul.f32 %v7403, %v8434
  %v8456 = vmul.f32 %v7404, %v8434
  %v8457 = vmul.f32 %v7405, %v8434
  %v8458 = vmul.f32 %v7406, %v8434
  %v8459 = vmul.f32 %v7407, %v8434
  %v8460 = vmul.f32 %v7408, %v8434
  %v8461 = vmul.f32 %v7409, %v8434
  %v8462 = vmul.f32 %v7410, %v8434
  %v8463 = vmul.f32 %v7411, %v8434
  %v8464 = vmul.f32 %v7412, %v8434
  %v8465 = vmul.f32 %v7413, %v8434
  %v8466 = vmul.f32 %v7414, %v8434
  %v8467 = vmul.f32 %v7415, %v8434
  %v8468 = vmul.f32 %v7416, %v8434
  %v8469 = vmul.f32 %v7417, %v8434
  %v8470 = vmul.f32 %v7418, %v8434
  %v8471 = vmul.f32 %v7419, %v8434
  %v8472 = vmul.f32 %v7420, %v8434
  %v8473 = vmul.f32 %v7421, %v8434
  %v8474 = vmul.f32 %v7422, %v8434
  %v8475 = vmul.f32 %v7423, %v8434
  %v8476 = vmul.f32 %v7424, %v8434
  %v8477 = vmul.f32 %v7425, %v8434
  %v8478 = vmul.f32 %v7426, %v8434
  %v8479 = vmul.f32 %v7427, %v8434
  %v8480 = vmul.f32 %v7428, %v8434
  %v8481 = vmul.f32 %v7429, %v8434
  %v8482 = vmul.f32 %v7430, %v8434
  %v8483 = vmul.f32 %v7431, %v8434
  %v8484 = vmul.f32 %v7432, %v8434
  %v8485 = vmul.f32 %v7433, %v8434
  %v8486 = vmul.f32 %v7434, %v8434
  %v8487 = vmul.f32 %v7435, %v8434
  %v8488 = vmul.f32 %v7436, %v8434
  %v8489 = vmul.f32 %v7437, %v8434
  %v8490 = vmul.f32 %v7438, %v8434
  %v8491 = vmul.f32 %v7439, %v8434
  %v8492 = vmul.f32 %v7440, %v8434
  %v8493 = vmul.f32 %v7441, %v8434
  %v8494 = vmul.f32 %v7442, %v8434
  %v8495 = vmul.f32 %v7443, %v8434
  %v8496 = vmul.f32 %v7444, %v8434
  %v8497 = vmul.f32 %v7445, %v8434
  %v8498 = vmul.f32 %v7446, %v8434
  %v8499 = vadd.f32 %v8435, %v7527
  %v8500 = vadd.f32 %v8436, %v7528
  %v8501 = vadd.f32 %v8437, %v7529
  %v8502 = vadd.f32 %v8438, %v7530
  %v8503 = vadd.f32 %v8439, %v7531
  %v8504 = vadd.f32 %v8440, %v7532
  %v8505 = vadd.f32 %v8441, %v7533
  %v8506 = vadd.f32 %v8442, %v7534
  %v8507 = vadd.f32 %v8443, %v7535
  %v8508 = vadd.f32 %v8444, %v7536
  %v8509 = vadd.f32 %v8445, %v7537
  %v8510 = vadd.f32 %v8446, %v7538
  %v8511 = vadd.f32 %v8447, %v7539
  %v8512 = vadd.f32 %v8448, %v7540
  %v8513 = vadd.f32 %v8449, %v7541
  %v8514 = vadd.f32 %v8450, %v7542
  %v8515 = vadd.f32 %v8451, %v7543
  %v8516 = vadd.f32 %v8452, %v7544
  %v8517 = vadd.f32 %v8453, %v7545
  %v8518 = vadd.f32 %v8454, %v7546
  %v8519 = vadd.f32 %v8455, %v7547
  %v8520 = vadd.f32 %v8456, %v7548
  %v8521 = vadd.f32 %v8457, %v7549
  %v8522 = vadd.f32 %v8458, %v7550
  %v8523 = vadd.f32 %v8459, %v7551
  %v8524 = vadd.f32 %v8460, %v7552
  %v8525 = vadd.f32 %v8461, %v7553
  %v8526 = vadd.f32 %v8462, %v7554
  %v8527 = vadd.f32 %v8463, %v7555
  %v8528 = vadd.f32 %v8464, %v7556
  %v8529 = vadd.f32 %v8465, %v7557
  %v8530 = vadd.f32 %v8466, %v7558
  %v8531 = vadd.f32 %v8467, %v7559
  %v8532 = vadd.f32 %v8468, %v7560
  %v8533 = vadd.f32 %v8469, %v7561
  %v8534 = vadd.f32 %v8470, %v7562
  %v8535 = vadd.f32 %v8471, %v7563
  %v8536 = vadd.f32 %v8472, %v7564
  %v8537 = vadd.f32 %v8473, %v7565
  %v8538 = vadd.f32 %v8474, %v7566
  %v8539 = vadd.f32 %v8475, %v7567
  %v8540 = vadd.f32 %v8476, %v7568
  %v8541 = vadd.f32 %v8477, %v7569
  %v8542 = vadd.f32 %v8478, %v7570
  %v8543 = vadd.f32 %v8479, %v7571
  %v8544 = vadd.f32 %v8480, %v7572
  %v8545 = vadd.f32 %v8481, %v7573
  %v8546 = vadd.f32 %v8482, %v7574
  %v8547 = vadd.f32 %v8483, %v7575
  %v8548 = vadd.f32 %v8484, %v7576
  %v8549 = vadd.f32 %v8485, %v7577
  %v8550 = vadd.f32 %v8486, %v7578
  %v8551 = vadd.f32 %v8487, %v7579
  %v8552 = vadd.f32 %v8488, %v7580
  %v8553 = vadd.f32 %v8489, %v7581
  %v8554 = vadd.f32 %v8490, %v7582
  %v8555 = vadd.f32 %v8491, %v7583
  %v8556 = vadd.f32 %v8492, %v7584
  %v8557 = vadd.f32 %v8493, %v7585
  %v8558 = vadd.f32 %v8494, %v7586
  %v8559 = vadd.f32 %v8495, %v7587
  %v8560 = vadd.f32 %v8496, %v7588
  %v8561 = vadd.f32 %v8497, %v7589
  %v8562 = vadd.f32 %v8498, %v7590
  %v8563 = vlaneseq
  %v8564 = vshrl.u32 %v8563, 7
  %v8565 = vsub.s32 0, %v8564
  %v8566 = vrot.slane %v7449, %v8565
  %v8567 = vmul.f32 %v6809, %v8566
  %v8568 = vmul.f32 %v6814, %v8566
  %v8569 = vmul.f32 %v6819, %v8566
  %v8570 = vmul.f32 %v6824, %v8566
  %v8571 = vmul.f32 %v6829, %v8566
  %v8572 = vmul.f32 %v6834, %v8566
  %v8573 = vmul.f32 %v6839, %v8566
  %v8574 = vmul.f32 %v6844, %v8566
  %v8575 = vmul.f32 %v6849, %v8566
  %v8576 = vmul.f32 %v6854, %v8566
  %v8577 = vmul.f32 %v6859, %v8566
  %v8578 = vmul.f32 %v6864, %v8566
  %v8579 = vmul.f32 %v6869, %v8566
  %v8580 = vmul.f32 %v6874, %v8566
  %v8581 = vmul.f32 %v6879, %v8566
  %v8582 = vmul.f32 %v6884, %v8566
  %v8583 = vmul.f32 %v6889, %v8566
  %v8584 = vmul.f32 %v6894, %v8566
  %v8585 = vmul.f32 %v6899, %v8566
  %v8586 = vmul.f32 %v6904, %v8566
  %v8587 = vmul.f32 %v6909, %v8566
  %v8588 = vmul.f32 %v6914, %v8566
  %v8589 = vmul.f32 %v6919, %v8566
  %v8590 = vmul.f32 %v6924, %v8566
  %v8591 = vmul.f32 %v6929, %v8566
  %v8592 = vmul.f32 %v6934, %v8566
  %v8593 = vmul.f32 %v6939, %v8566
  %v8594 = vmul.f32 %v6944, %v8566
  %v8595 = vmul.f32 %v6949, %v8566
  %v8596 = vmul.f32 %v6954, %v8566
  %v8597 = vmul.f32 %v6959, %v8566
  %v8598 = vmul.f32 %v6964, %v8566
  %v8599 = vmul.f32 %v6969, %v8566
  %v8600 = vmul.f32 %v6974, %v8566
  %v8601 = vmul.f32 %v6979, %v8566
  %v8602 = vmul.f32 %v6984, %v8566
  %v8603 = vmul.f32 %v6989, %v8566
  %v8604 = vmul.f32 %v6994, %v8566
  %v8605 = vmul.f32 %v6999, %v8566
  %v8606 = vmul.f32 %v7004, %v8566
  %v8607 = vmul.f32 %v7009, %v8566
  %v8608 = vmul.f32 %v7014, %v8566
  %v8609 = vmul.f32 %v7019, %v8566
  %v8610 = vmul.f32 %v7024, %v8566
  %v8611 = vmul.f32 %v7029, %v8566
  %v8612 = vmul.f32 %v7034, %v8566
  %v8613 = vmul.f32 %v7039, %v8566
  %v8614 = vmul.f32 %v7044, %v8566
  %v8615 = vmul.f32 %v7049, %v8566
  %v8616 = vmul.f32 %v7054, %v8566
  %v8617 = vmul.f32 %v7059, %v8566
  %v8618 = vmul.f32 %v7064, %v8566
  %v8619 = vmul.f32 %v7069, %v8566
  %v8620 = vmul.f32 %v7074, %v8566
  %v8621 = vmul.f32 %v7079, %v8566
  %v8622 = vmul.f32 %v7084, %v8566
  %v8623 = vmul.f32 %v7089, %v8566
  %v8624 = vmul.f32 %v7094, %v8566
  %v8625 = vmul.f32 %v7099, %v8566
  %v8626 = vmul.f32 %v7104, %v8566
  %v8627 = vmul.f32 %v7109, %v8566
  %v8628 = vmul.f32 %v7114, %v8566
  %v8629 = vmul.f32 %v7119, %v8566
  %v8630 = vmul.f32 %v7124, %v8566
  %v8631 = vadd.f32 %v8499, %v8567
  %v8632 = vadd.f32 %v8500, %v8568
  %v8633 = vadd.f32 %v8501, %v8569
  %v8634 = vadd.f32 %v8502, %v8570
  %v8635 = vadd.f32 %v8503, %v8571
  %v8636 = vadd.f32 %v8504, %v8572
  %v8637 = vadd.f32 %v8505, %v8573
  %v8638 = vadd.f32 %v8506, %v8574
  %v8639 = vadd.f32 %v8507, %v8575
  %v8640 = vadd.f32 %v8508, %v8576
  %v8641 = vadd.f32 %v8509, %v8577
  %v8642 = vadd.f32 %v8510, %v8578
  %v8643 = vadd.f32 %v8511, %v8579
  %v8644 = vadd.f32 %v8512, %v8580
  %v8645 = vadd.f32 %v8513, %v8581
  %v8646 = vadd.f32 %v8514, %v8582
  %v8647 = vadd.f32 %v8515, %v8583
  %v8648 = vadd.f32 %v8516, %v8584
  %v8649 = vadd.f32 %v8517, %v8585
  %v8650 = vadd.f32 %v8518, %v8586
  %v8651 = vadd.f32 %v8519, %v8587
  %v8652 = vadd.f32 %v8520, %v8588
  %v8653 = vadd.f32 %v8521, %v8589
  %v8654 = vadd.f32 %v8522, %v8590
  %v8655 = vadd.f32 %v8523, %v8591
  %v8656 = vadd.f32 %v8524, %v8592
  %v8657 = vadd.f32 %v8525, %v8593
  %v8658 = vadd.f32 %v8526, %v8594
  %v8659 = vadd.f32 %v8527, %v8595
  %v8660 = vadd.f32 %v8528, %v8596
  %v8661 = vadd.f32 %v8529, %v8597
  %v8662 = vadd.f32 %v8530, %v8598
  %v8663 = vadd.f32 %v8531, %v8599
  %v8664 = vadd.f32 %v8532, %v8600
  %v8665 = vadd.f32 %v8533, %v8601
  %v8666 = vadd.f32 %v8534, %v8602
  %v8667 = vadd.f32 %v8535, %v8603
  %v8668 = vadd.f32 %v8536, %v8604
  %v8669 = vadd.f32 %v8537, %v8605
  %v8670 = vadd.f32 %v8538, %v8606
  %v8671 = vadd.f32 %v8539, %v8607
  %v8672 = vadd.f32 %v8540, %v8608
  %v8673 = vadd.f32 %v8541, %v8609
  %v8674 = vadd.f32 %v8542, %v8610
  %v8675 = vadd.f32 %v8543, %v8611
  %v8676 = vadd.f32 %v8544, %v8612
  %v8677 = vadd.f32 %v8545, %v8613
  %v8678 = vadd.f32 %v8546, %v8614
  %v8679 = vadd.f32 %v8547, %v8615
  %v8680 = vadd.f32 %v8548, %v8616
  %v8681 = vadd.f32 %v8549, %v8617
  %v8682 = vadd.f32 %v8550, %v8618
  %v8683 = vadd.f32 %v8551, %v8619
  %v8684 = vadd.f32 %v8552, %v8620
  %v8685 = vadd.f32 %v8553, %v8621
  %v8686 = vadd.f32 %v8554, %v8622
  %v8687 = vadd.f32 %v8555, %v8623
  %v8688 = vadd.f32 %v8556, %v8624
  %v8689 = vadd.f32 %v8557, %v8625
  %v8690 = vadd.f32 %v8558, %v8626
  %v8691 = vadd.f32 %v8559, %v8627
  %v8692 = vadd.f32 %v8560, %v8628
  %v8693 = vadd.f32 %v8561, %v8629
  %v8694 = vadd.f32 %v8562, %v8630
  %v8695 = vadd.f32 %v8631, %v8367
  %v8696 = vadd.f32 %v8632, %v8368
  %v8697 = vadd.f32 %v8633, %v8369
  %v8698 = vadd.f32 %v8634, %v8370
  %v8699 = vadd.f32 %v8635, %v8371
  %v8700 = vadd.f32 %v8636, %v8372
  %v8701 = vadd.f32 %v8637, %v8373
  %v8702 = vadd.f32 %v8638, %v8374
  %v8703 = vadd.f32 %v8639, %v8375
  %v8704 = vadd.f32 %v8640, %v8376
  %v8705 = vadd.f32 %v8641, %v8377
  %v8706 = vadd.f32 %v8642, %v8378
  %v8707 = vadd.f32 %v8643, %v8379
  %v8708 = vadd.f32 %v8644, %v8380
  %v8709 = vadd.f32 %v8645, %v8381
  %v8710 = vadd.f32 %v8646, %v8382
  %v8711 = vadd.f32 %v8647, %v8383
  %v8712 = vadd.f32 %v8648, %v8384
  %v8713 = vadd.f32 %v8649, %v8385
  %v8714 = vadd.f32 %v8650, %v8386
  %v8715 = vadd.f32 %v8651, %v8387
  %v8716 = vadd.f32 %v8652, %v8388
  %v8717 = vadd.f32 %v8653, %v8389
  %v8718 = vadd.f32 %v8654, %v8390
  %v8719 = vadd.f32 %v8655, %v8391
  %v8720 = vadd.f32 %v8656, %v8392
  %v8721 = vadd.f32 %v8657, %v8393
  %v8722 = vadd.f32 %v8658, %v8394
  %v8723 = vadd.f32 %v8659, %v8395
  %v8724 = vadd.f32 %v8660, %v8396
  %v8725 = vadd.f32 %v8661, %v8397
  %v8726 = vadd.f32 %v8662, %v8398
  %v8727 = vadd.f32 %v8663, %v8399
  %v8728 = vadd.f32 %v8664, %v8400
  %v8729 = vadd.f32 %v8665, %v8401
  %v8730 = vadd.f32 %v8666, %v8402
  %v8731 = vadd.f32 %v8667, %v8403
  %v8732 = vadd.f32 %v8668, %v8404
  %v8733 = vadd.f32 %v8669, %v8405
  %v8734 = vadd.f32 %v8670, %v8406
  %v8735 = vadd.f32 %v8671, %v8407
  %v8736 = vadd.f32 %v8672, %v8408
  %v8737 = vadd.f32 %v8673, %v8409
  %v8738 = vadd.f32 %v8674, %v8410
  %v8739 = vadd.f32 %v8675, %v8411
  %v8740 = vadd.f32 %v8676, %v8412
  %v8741 = vadd.f32 %v8677, %v8413
  %v8742 = vadd.f32 %v8678, %v8414
  %v8743 = vadd.f32 %v8679, %v8415
  %v8744 = vadd.f32 %v8680, %v8416
  %v8745 = vadd.f32 %v8681, %v8417
  %v8746 = vadd.f32 %v8682, %v8418
  %v8747 = vadd.f32 %v8683, %v8419
  %v8748 = vadd.f32 %v8684, %v8420
  %v8749 = vadd.f32 %v8685, %v8421
  %v8750 = vadd.f32 %v8686, %v8422
  %v8751 = vadd.f32 %v8687, %v8423
  %v8752 = vadd.f32 %v8688, %v8424
  %v8753 = vadd.f32 %v8689, %v8425
  %v8754 = vadd.f32 %v8690, %v8426
  %v8755 = vadd.f32 %v8691, %v8427
  %v8756 = vadd.f32 %v8692, %v8428
  %v8757 = vadd.f32 %v8693, %v8429
  %v8758 = vadd.f32 %v8694, %v8430
  %8759 = vst [vmem:[%s4] sm:$0xff] %v8695
  %8760 = vst [vmem:[%s4 + $0x8] sm:$0xff] %v8696
  %8761 = vst [vmem:[%s4 + $0x10] sm:$0xff] %v8697
  %8762 = vst [vmem:[%s4 + $0x18] sm:$0xff] %v8698
  %8763 = vst [vmem:[%s4 + $0x20] sm:$0xff] %v8699
  %8764 = vst [vmem:[%s4 + $0x28] sm:$0xff] %v8700
  %8765 = vst [vmem:[%s4 + $0x30] sm:$0xff] %v8701
  %8766 = vst [vmem:[%s4 + $0x38] sm:$0xff] %v8702
  %8767 = vst [vmem:[%s4 + $0x40] sm:$0xff] %v8703
  %8768 = vst [vmem:[%s4 + $0x48] sm:$0xff] %v8704
  %8769 = vst [vmem:[%s4 + $0x50] sm:$0xff] %v8705
  %8770 = vst [vmem:[%s4 + $0x58] sm:$0xff] %v8706
  %8771 = vst [vmem:[%s4 + $0x60] sm:$0xff] %v8707
  %8772 = vst [vmem:[%s4 + $0x68] sm:$0xff] %v8708
  %8773 = vst [vmem:[%s4 + $0x70] sm:$0xff] %v8709
  %8774 = vst [vmem:[%s4 + $0x78] sm:$0xff] %v8710
  %8775 = vst [vmem:[%s4 + $0x80] sm:$0xff] %v8711
  %8776 = vst [vmem:[%s4 + $0x88] sm:$0xff] %v8712
  %8777 = vst [vmem:[%s4 + $0x90] sm:$0xff] %v8713
  %8778 = vst [vmem:[%s4 + $0x98] sm:$0xff] %v8714
  %8779 = vst [vmem:[%s4 + $0xa0] sm:$0xff] %v8715
  %8780 = vst [vmem:[%s4 + $0xa8] sm:$0xff] %v8716
  %8781 = vst [vmem:[%s4 + $0xb0] sm:$0xff] %v8717
  %8782 = vst [vmem:[%s4 + $0xb8] sm:$0xff] %v8718
  %8783 = vst [vmem:[%s4 + $0xc0] sm:$0xff] %v8719
  %8784 = vst [vmem:[%s4 + $0xc8] sm:$0xff] %v8720
  %8785 = vst [vmem:[%s4 + $0xd0] sm:$0xff] %v8721
  %8786 = vst [vmem:[%s4 + $0xd8] sm:$0xff] %v8722
  %8787 = vst [vmem:[%s4 + $0xe0] sm:$0xff] %v8723
  %8788 = vst [vmem:[%s4 + $0xe8] sm:$0xff] %v8724
  %8789 = vst [vmem:[%s4 + $0xf0] sm:$0xff] %v8725
  %8790 = vst [vmem:[%s4 + $0xf8] sm:$0xff] %v8726
  %8791 = vst [vmem:[%s4 + $0x100] sm:$0xff] %v8727
  %8792 = vst [vmem:[%s4 + $0x108] sm:$0xff] %v8728
  %8793 = vst [vmem:[%s4 + $0x110] sm:$0xff] %v8729
  %8794 = vst [vmem:[%s4 + $0x118] sm:$0xff] %v8730
  %8795 = vst [vmem:[%s4 + $0x120] sm:$0xff] %v8731
  %8796 = vst [vmem:[%s4 + $0x128] sm:$0xff] %v8732
  %8797 = vst [vmem:[%s4 + $0x130] sm:$0xff] %v8733
  %8798 = vst [vmem:[%s4 + $0x138] sm:$0xff] %v8734
  %8799 = vst [vmem:[%s4 + $0x140] sm:$0xff] %v8735
  %8800 = vst [vmem:[%s4 + $0x148] sm:$0xff] %v8736
  %8801 = vst [vmem:[%s4 + $0x150] sm:$0xff] %v8737
  %8802 = vst [vmem:[%s4 + $0x158] sm:$0xff] %v8738
  %8803 = vst [vmem:[%s4 + $0x160] sm:$0xff] %v8739
  %8804 = vst [vmem:[%s4 + $0x168] sm:$0xff] %v8740
  %8805 = vst [vmem:[%s4 + $0x170] sm:$0xff] %v8741
  %8806 = vst [vmem:[%s4 + $0x178] sm:$0xff] %v8742
  %8807 = vst [vmem:[%s4 + $0x180] sm:$0xff] %v8743
  %8808 = vst [vmem:[%s4 + $0x188] sm:$0xff] %v8744
  %8809 = vst [vmem:[%s4 + $0x190] sm:$0xff] %v8745
  %8810 = vst [vmem:[%s4 + $0x198] sm:$0xff] %v8746
  %8811 = vst [vmem:[%s4 + $0x1a0] sm:$0xff] %v8747
  %8812 = vst [vmem:[%s4 + $0x1a8] sm:$0xff] %v8748
  %8813 = vst [vmem:[%s4 + $0x1b0] sm:$0xff] %v8749
  %8814 = vst [vmem:[%s4 + $0x1b8] sm:$0xff] %v8750
  %8815 = vst [vmem:[%s4 + $0x1c0] sm:$0xff] %v8751
  %8816 = vst [vmem:[%s4 + $0x1c8] sm:$0xff] %v8752
  %8817 = vst [vmem:[%s4 + $0x1d0] sm:$0xff] %v8753
  %8818 = vst [vmem:[%s4 + $0x1d8] sm:$0xff] %v8754
  %8819 = vst [vmem:[%s4 + $0x1e0] sm:$0xff] %v8755
  %8820 = vst [vmem:[%s4 + $0x1e8] sm:$0xff] %v8756
  %8821 = vst [vmem:[%s4 + $0x1f0] sm:$0xff] %v8757
  %8822 = vst [vmem:[%s4 + $0x1f8] sm:$0xff] %v8758
  // Predicated region
  $region18: #{detect_layer.1} parent=0 // pred_check
    _
  $region19: #{detect_layer.1} parent=0 // pred_check_branch
    %8824 = sbr.rel (0) target = $region21
  $region20: #{detect_layer.1} parent=0 // pred_region
    _
  $region21: #{detect_layer.1} parent=0 // pred_fallthru
    _
  // Predicated region
  $region22: #{detect_layer.1} parent=0 // pred_check
    _
  $region23: #{detect_layer.1} parent=0 // pred_check_branch
    %8826 = sbr.rel (0) target = $region25
  $region24: #{detect_layer.1} parent=0 // pred_region
    _
  $region25: #{detect_layer.1} parent=0 // pred_fallthru
    _

</llo_original>
